<compile_context>
chip_gen: v5e
topology: v5e:2x2
jax: 0.10.0
libtpu: 0.0.40
codegen_flags: <defaults>
</compile_context>

<pallas_src>
import functools

import jax
import jax.numpy as jnp
from jax import lax
from jax.experimental import pallas as pl
from jax.experimental.pallas import tpu as pltpu


# --------------------------------------------------------------------------
# Fused kernel
# --------------------------------------------------------------------------
def _espc_fused_kernel(x1_ref, w1_ref, b1_ref, w2_ref, b2_ref, w3_ref, b3_ref,
                       o_ref, y1_ref, y2_ref, *, Wg, tH, K1):
    """One grid step = one batch element x one band of tH output rows.

    x1_ref : (1, (H+4)*Wg, K1+2) bf16  resident conv1 im2col patches.
             Channels [0, K1)   : 5x5xCin patch (row order dy, dx, cin).
             Channel  K1        : inside-image mask on the conv1 output grid.
             Channel  K1+1      : inside-image mask shifted for the conv2 grid.
    w1_ref : (K1+2, 64) bf16  (last two rows are zeros -> mask channels inert)
    w2_ref : (9, 64, C2) bf16   per-tap conv2 weights
    w3_ref : (9, C2, C3) bf16   per-tap conv3 weights
    b*_ref : (1, C) f32
    o_ref  : (1, tH*Wg, C3) f32   full-working-width conv3 rows for this band
             (column halo is sliced off in the wrapper before pixel shuffle)
    y1_ref : ((tH+4)*Wg + 8, 64) bf16  scratch: conv1 out, flat row-major
    y2_ref : ((tH+2)*Wg + 8, C2) bf16  scratch: conv2 out, flat row-major
    """
    band = pl.program_id(1)
    C2 = w2_ref.shape[-1]
    C3 = w3_ref.shape[-1]
    M1 = (tH + 4) * Wg          # conv1 rows incl. halo 2 (feeds conv2+conv3)
    M2 = (tH + 2) * Wg          # conv2 rows incl. halo 1 (feeds conv3)
    M3 = tH * Wg                # conv3 rows (this band's output rows)

    off1 = band * (tH * Wg)
    if (tH * Wg) % 8 == 0:
        off1 = pl.multiple_of(off1, 8)

    # ---------------- conv1: one big-K matmul over pre-packed patches -------
    lhs1 = x1_ref[0, pl.ds(off1, M1), :]                 # (M1, K1+2) bf16
    m1 = lhs1[:, K1:K1 + 1] > 0.5                        # inside-image, conv1 grid
    m2 = lhs1[:M2, K1 + 1:K1 + 2] > 0.5                  # inside-image, conv2 grid
    acc1 = jnp.dot(lhs1, w1_ref[...], preferred_element_type=jnp.float32)
    # TODO(synk): compute tanh in bf16 on v6e/v7x (2x EUP); kept f32 here so the
    # bf16-matched reference check stays tight.
    y1 = jnp.tanh(acc1 + b1_ref[...]).astype(jnp.bfloat16)
    # conv2's SAME padding needs zeros outside the image (tanh(b1) != 0 there).
    y1_ref[:M1, :] = jnp.where(m1, y1, 0.0)

    # ---------------- conv2: 9 shifted contiguous-slice taps ----------------
    acc2 = jnp.zeros((M2, C2), jnp.float32)
    for dy in range(3):
        for dx in range(3):
            s = dy * Wg + dx                             # static row offset
            acc2 = acc2 + jnp.dot(y1_ref[s:s + M2, :], w2_ref[dy * 3 + dx],
                                  preferred_element_type=jnp.float32)
    y2 = jnp.tanh(acc2 + b2_ref[...]).astype(jnp.bfloat16)
    y2_ref[:M2, :] = jnp.where(m2, y2, 0.0)

    # ---------------- conv3: 9 shifted taps, no activation ------------------
    acc3 = jnp.zeros((M3, C3), jnp.float32)
    for dy in range(3):
        for dx in range(3):
            s = dy * Wg + dx
            acc3 = acc3 + jnp.dot(y2_ref[s:s + M3, :], w3_ref[dy * 3 + dx],
                                  preferred_element_type=jnp.float32)
    # Full working-width rows are written; wrapper drops the column halo.
    o_ref[0] = (acc3 + b3_ref[...]).astype(o_ref.dtype)


# --------------------------------------------------------------------------
# Wrapper-side packing / tiling helpers
# --------------------------------------------------------------------------
def _round_up(x, m):
    return ((x + m - 1) // m) * m


def _pack_conv1_patches(x_nhwc):
    """(N,H,W,Cin) bf16 -> (N,(H+4)*(W+4), 25*Cin+2) bf16 patches + masks.

    Grid point (a, b) <-> image pixel (a-2, b-2): conv1's SAME halo of 2 plus
    the fused conv2/conv3 halos.  Two extra channels carry the inside-image
    masks used to recreate the zero padding of conv2 (channel 25*Cin) and of
    conv3 (channel 25*Cin+1, pre-shifted so an aligned slice works).
    """
    N, H, W, Cin = x_nhwc.shape
    Hg, Wg = H + 4, W + 4
    xp = jnp.pad(x_nhwc, ((0, 0), (4, 4), (4, 4), (0, 0)))
    taps = [xp[:, dy:dy + Hg, dx:dx + Wg, :]
            for dy in range(5) for dx in range(5)]
    patches = jnp.concatenate(taps, axis=-1)             # (N, Hg, Wg, 25*Cin)
    rows = jnp.arange(Hg)[:, None]
    cols = jnp.arange(Wg)[None, :]
    m1 = (rows >= 2) & (rows < H + 2) & (cols >= 2) & (cols < W + 2)
    m2 = (rows >= 1) & (rows < H + 1) & (cols >= 1) & (cols < W + 1)
    masks = jnp.stack([m1, m2], axis=-1).astype(patches.dtype)  # (Hg, Wg, 2)
    masks = jnp.broadcast_to(masks[None], (N, Hg, Wg, 2))
    packed = jnp.concatenate([patches, masks], axis=-1)
    return packed.reshape(N, Hg * Wg, 25 * Cin + 2)


def _vmem_budget_bytes():
    """Generation-aware budget for explicit buffers (headroom for compiler)."""
    cap = 64 * 1024 * 1024                                # conservative default
    try:
        cap = int(pltpu.get_tpu_info().vmem_capacity_bytes)
    except Exception:
        pass
    return int(min(0.80 * cap, 100 * 1024 * 1024))        # ~51 MiB v7x, 100 MiB v5e/v6e


def _vmem_estimate_bytes(H, Wg, tH, Kp, C1, C2, C3):
    lane = lambda c: _round_up(c, 128)
    M1, M2, M3 = (tH + 4) * Wg, (tH + 2) * Wg, tH * Wg
    b = 2 * (H + 4) * Wg * lane(Kp) * 2                   # resident patches (x2 buf, bf16)
    b += (M1 + 8) * lane(C1) * 2 + (M2 + 8) * lane(C2) * 2  # y1/y2 scratch (bf16)
    b += 2 * M3 * lane(C3) * 4                            # output block (x2 buf, f32)
    b += (M1 * lane(C1) + M2 * lane(C2) + M3 * lane(C3)) * 4  # live f32 accumulators
    b += (lane(Kp) * C1 + 9 * C1 * C2 + 9 * C2 * lane(C3)) * 2  # weights
    return b


def _choose_band_height(H, Wg, budget, Kp, C1, C2, C3):
    """Largest band height (divisor of H, sublane-friendly) fitting the budget."""
    legal = [t for t in range(1, H + 1)
             if H % t == 0 and (H // t == 1 or (t * Wg) % 8 == 0)]
    for t in sorted(legal, reverse=True):
        if _vmem_estimate_bytes(H, Wg, t, Kp, C1, C2, C3) <= budget:
            return t
    return min(legal) if legal else H


def pixel_shuffle_nhwc_to_nchw(x_nhwc, r):
    """PixelShuffle with torch semantics: channel index = c*r*r + i*r + j."""
    N, H, W, Crr = x_nhwc.shape
    C = Crr // (r * r)
    x = x_nhwc.reshape(N, H, W, C, r, r)
    x = jnp.transpose(x, (0, 3, 1, 4, 2, 5))              # (N, C, H, r, W, r)
    return x.reshape(N, C, H * r, W * r)


# --------------------------------------------------------------------------
# Public forward
# --------------------------------------------------------------------------
def espc_pallas(params, x_nchw, upscale_factor=4, band_h=None):
    N, Cin, H, W = x_nchw.shape
    r = upscale_factor
    w1, b1 = params["w1"], params["b1"]
    w2, b2 = params["w2"], params["b2"]
    w3, b3 = params["w3"], params["b3"]
    C1, C2, C3 = w1.shape[-1], w2.shape[-1], w3.shape[-1]
    K1 = 5 * 5 * Cin
    Kp = K1 + 2
    Wg = W + 4                     # working-grid width (conv1 halo of 2/side)
    Hg = H + 4
    # TODO(synk): add a column-tiling grid axis (with a column halo) for very
    # wide images so per-band scratch stops scaling with W.

    # NCHW -> NHWC bf16, then im2col pre-pack for conv1 (+ mask channels).
    x_nhwc = jnp.transpose(x_nchw, (0, 2, 3, 1)).astype(jnp.bfloat16)
    x1 = _pack_conv1_patches(x_nhwc)                      # (N, Hg*Wg, Kp) bf16

    # Weight packing.  NOTE: expects HWIO weights (KH,KW,Cin,Cout); permute
    # real PyTorch OIHW weights before calling.  Two zero rows keep the mask
    # channels inert in the conv1 matmul.
    w1f = jnp.concatenate(
        [w1.reshape(K1, C1), jnp.zeros((2, C1), w1.dtype)], axis=0
    ).astype(jnp.bfloat16)                                # (Kp, C1)
    w2f = w2.reshape(9, C1, C2).astype(jnp.bfloat16)
    w3f = w3.reshape(9, C2, C3).astype(jnp.bfloat16)
    b1f = b1.reshape(1, C1).astype(jnp.float32)
    b2f = b2.reshape(1, C2).astype(jnp.float32)
    b3f = b3.reshape(1, C3).astype(jnp.float32)

    budget = _vmem_budget_bytes()
    tH = band_h if band_h is not None else _choose_band_height(
        H, Wg, budget, Kp, C1, C2, C3)
    assert H % tH == 0 and (H // tH == 1 or (tH * Wg) % 8 == 0), (H, tH, Wg)
    nb = H // tH

    kernel = functools.partial(_espc_fused_kernel, Wg=Wg, tH=tH, K1=K1)

    grid_spec = pltpu.PrefetchScalarGridSpec(
        num_scalar_prefetch=0,
        grid=(N, nb),
        in_specs=[
            # Packed patches: block index constant in the band axis -> resident
            # across bands, DMA'd once per batch element.
            # TODO(synk): for large images switch to memory_space=pl.ANY plus a
            # manually double-buffered band-window DMA so VMEM scales with tH,
            # not H (matters most on v7x's 64 MiB/TC).
            pl.BlockSpec((1, Hg * Wg, Kp), lambda n, b: (n, 0, 0)),
            pl.BlockSpec((Kp, C1), lambda n, b: (0, 0)),
            pl.BlockSpec((1, C1), lambda n, b: (0, 0)),
            pl.BlockSpec((9, C1, C2), lambda n, b: (0, 0, 0)),
            pl.BlockSpec((1, C2), lambda n, b: (0, 0)),
            pl.BlockSpec((9, C2, C3), lambda n, b: (0, 0, 0)),
            pl.BlockSpec((1, C3), lambda n, b: (0, 0)),
        ],
        out_specs=pl.BlockSpec((1, tH * Wg, C3), lambda n, b: (n, b, 0)),
        scratch_shapes=[
            pltpu.VMEM(((tH + 4) * Wg + 8, C1), jnp.bfloat16),  # conv1 out (flat)
            pltpu.VMEM(((tH + 2) * Wg + 8, C2), jnp.bfloat16),  # conv2 out (flat)
        ],
    )

    y = pl.pallas_call(
        kernel,
        out_shape=jax.ShapeDtypeStruct((N, H * Wg, C3), jnp.float32),
        grid_spec=grid_spec,
        compiler_params=pltpu.CompilerParams(
            dimension_semantics=("parallel", "parallel"),
            vmem_limit_bytes=int(budget),
        ),
    )(x1, w1f, b1f, w2f, b2f, w3f, b3f)

    # Drop the working-width column halo, then pixel-shuffle (layout-only).
    # TODO(synk): fold the pixel shuffle / a lane-dense (tH, W*C3) output write
    # into the kernel to remove this extra HBM pass.
    y = y.reshape(N, H, Wg, C3)[:, :, :W, :]
    return pixel_shuffle_nhwc_to_nchw(y, r)


# --------------------------------------------------------------------------
# Params + numerics-matched reference (bf16 operands, f32 accumulation)
# --------------------------------------------------------------------------
def init_params(key, input_channel=4, upscale_factor=4):
    k1, k2, k3, k4, k5, k6 = jax.random.split(key, 6)
    return {
        "w1": jax.random.normal(k1, (5, 5, input_channel, 64), jnp.float32) * 0.1,
        "b1": jax.random.normal(k2, (64,), jnp.float32) * 0.01,
        "w2": jax.random.normal(k3, (3, 3, 64, 32), jnp.float32) * 0.1,
        "b2": jax.random.normal(k4, (32,), jnp.float32) * 0.01,
        "w3": jax.random.normal(k5, (3, 3, 32, 3 * upscale_factor ** 2),
                                jnp.float32) * 0.1,
        "b3": jax.random.normal(k6, (3 * upscale_factor ** 2,),
                                jnp.float32) * 0.01,
    }


def espc_ref_bf16(params, x_nchw, r=4):
    """Reference with the same bf16-operand / f32-accumulate numerics."""
    bf = jnp.bfloat16

    def conv(h, w, b):
        y = lax.conv_general_dilated(
            h.astype(bf), w.astype(bf), (1, 1), "SAME",
            dimension_numbers=("NHWC", "HWIO", "NHWC"),
            preferred_element_type=jnp.float32)
        return y + b.astype(jnp.float32)

    x = jnp.transpose(x_nchw, (0, 2, 3, 1))
    h = jnp.tanh(conv(x, params["w1"], params["b1"])).astype(bf)
    h = jnp.tanh(conv(h, params["w2"], params["b2"])).astype(bf)
    h = conv(h, params["w3"], params["b3"])
    return pixel_shuffle_nhwc_to_nchw(h, r)


if __name__ == "__main__":
    key = jax.random.PRNGKey(0)
    kp, kx = jax.random.split(key)

    N, C, H, W = 2, 4, 16, 16
    r = 4
    params = init_params(kp, input_channel=C, upscale_factor=r)
    x = jax.random.normal(kx, (N, C, H, W), jnp.float32)

    fwd = jax.jit(functools.partial(espc_pallas, upscale_factor=r))
    out = jax.block_until_ready(fwd(params, x))
    assert out.shape == (N, 3, H * r, W * r), out.shape

    ref = jax.block_until_ready(espc_ref_bf16(params, x, r))
    max_err = float(jnp.max(jnp.abs(out - ref)))
    assert jnp.allclose(out, ref, atol=5e-2, rtol=5e-2), max_err

    # Also exercise the multi-band (row-tiled) path.
    fwd2 = jax.jit(functools.partial(espc_pallas, upscale_factor=r, band_h=8))
    out2 = jax.block_until_ready(fwd2(params, x))
    max_err2 = float(jnp.max(jnp.abs(out2 - ref)))
    assert jnp.allclose(out2, ref, atol=5e-2, rtol=5e-2), max_err2

    print("KERNEL_OK")
</pallas_src>

<mosaic_0001>
module attributes {stable_mosaic.version = 11 : i64} {
  func.func @_espc_fused_kernel(%arg0: i32, %arg1: i32, %arg2: memref<1x400x102xbf16, #tpu.memory_space<vmem>>, %arg3: memref<102x64xbf16, #tpu.memory_space<vmem>>, %arg4: memref<1x64xf32, #tpu.memory_space<vmem>>, %arg5: memref<9x64x32xbf16, #tpu.memory_space<vmem>>, %arg6: memref<1x32xf32, #tpu.memory_space<vmem>>, %arg7: memref<9x32x48xbf16, #tpu.memory_space<vmem>>, %arg8: memref<1x48xf32, #tpu.memory_space<vmem>>, %arg9: memref<1x320x48xf32, #tpu.memory_space<vmem>>, %arg10: memref<408x64xbf16, #tpu.memory_space<vmem>>, %arg11: memref<368x32xbf16, #tpu.memory_space<vmem>>) attributes {dimension_semantics = [#tpu.dimension_semantics<parallel>, #tpu.dimension_semantics<parallel>], iteration_bounds = array<i64: 2, 1>, scalar_prefetch = 0 : i64, scratch_operands = 2 : i64, tpu.core_type = #tpu.core_type<tc>, window_params = [{transform_indices = @transform_0, window_bounds = array<i64: 1, 400, 102>}, {pipeline_mode = #tpu.pipeline_mode<synchronous>, transform_indices = @transform_1, window_bounds = array<i64: 102, 64>}, {pipeline_mode = #tpu.pipeline_mode<synchronous>, transform_indices = @transform_2, window_bounds = array<i64: 1, 64>}, {pipeline_mode = #tpu.pipeline_mode<synchronous>, transform_indices = @transform_3, window_bounds = array<i64: 9, 64, 32>}, {pipeline_mode = #tpu.pipeline_mode<synchronous>, transform_indices = @transform_4, window_bounds = array<i64: 1, 32>}, {pipeline_mode = #tpu.pipeline_mode<synchronous>, transform_indices = @transform_5, window_bounds = array<i64: 9, 32, 48>}, {pipeline_mode = #tpu.pipeline_mode<synchronous>, transform_indices = @transform_6, window_bounds = array<i64: 1, 48>}, {transform_indices = @transform_7, window_bounds = array<i64: 1, 320, 48>}]} {
    %c320_i32 = arith.constant 320 : i32
    %0 = arith.muli %arg1, %c320_i32 : i32
    %1 = tpu.assume_multiple %0, 8 : i32
    %c0 = arith.constant 0 : index
    %2 = arith.index_cast %1 : i32 to index
    %c0_0 = arith.constant 0 : index
    %3 = vector.load %arg2[%c0, %2, %c0_0] : memref<1x400x102xbf16, #tpu.memory_space<vmem>>, vector<1x400x102xbf16>
    %4 = vector.shape_cast %3 : vector<1x400x102xbf16> to vector<400x102xbf16>
    %5 = vector.extract_strided_slice %4 {offsets = [0, 100], sizes = [400, 1], strides = [1, 1]} : vector<400x102xbf16> to vector<400x1xbf16>
    %cst = arith.constant 5.000000e-01 : bf16
    %6 = vector.broadcast %cst : bf16 to vector<400x1xbf16>
    %7 = arith.cmpf ogt, %5, %6 : vector<400x1xbf16>
    %8 = vector.extract_strided_slice %4 {offsets = [0, 101], sizes = [360, 1], strides = [1, 1]} : vector<400x102xbf16> to vector<360x1xbf16>
    %cst_1 = arith.constant 5.000000e-01 : bf16
    %9 = vector.broadcast %cst_1 : bf16 to vector<360x1xbf16>
    %10 = arith.cmpf ogt, %8, %9 : vector<360x1xbf16>
    %c0_2 = arith.constant 0 : index
    %c0_3 = arith.constant 0 : index
    %11 = vector.load %arg3[%c0_2, %c0_3] : memref<102x64xbf16, #tpu.memory_space<vmem>>, vector<102x64xbf16>
    %cst_4 = arith.constant dense<0.000000e+00> : vector<400x64xf32>
    %12 = tpu.matmul %4, %11, %cst_4 {dimension_numbers = #tpu.dot_dimension_numbers<[1], [0], [0], [1], [0, 0, 1, 1], [], []>} : vector<400x102xbf16>, vector<102x64xbf16>, vector<400x64xf32> -> vector<400x64xf32>
    %c0_5 = arith.constant 0 : index
    %c0_6 = arith.constant 0 : index
    %13 = vector.load %arg4[%c0_5, %c0_6] : memref<1x64xf32, #tpu.memory_space<vmem>>, vector<1x64xf32>
    %14 = vector.broadcast %13 : vector<1x64xf32> to vector<400x64xf32>
    %15 = arith.addf %12, %14 : vector<400x64xf32>
    %16 = math.tanh %15 : vector<400x64xf32>
    %17 = arith.truncf %16 : vector<400x64xf32> to vector<400x64xbf16>
    %cst_7 = arith.constant 0.000000e+00 : f32
    %18 = arith.truncf %cst_7 : f32 to bf16
    %19 = vector.shape_cast %7 : vector<400x1xi1> to vector<400x1xi1>
    %20 = vector.broadcast %19 : vector<400x1xi1> to vector<400x64xi1>
    %21 = vector.broadcast %18 : bf16 to vector<400x64xbf16>
    %22 = arith.select %20, %17, %21 : vector<400x64xi1>, vector<400x64xbf16>
    %c0_8 = arith.constant 0 : index
    %c0_9 = arith.constant 0 : index
    %23 = vector.load %arg10[%c0_8, %c0_9] : memref<408x64xbf16, #tpu.memory_space<vmem>>, vector<400x64xbf16>
    tpu.vector_store %arg10[%c0_8, %c0_9], %22 {strides = array<i32>} : memref<408x64xbf16, #tpu.memory_space<vmem>>, vector<400x64xbf16>,
    %cst_10 = arith.constant 0.000000e+00 : f32
    %24 = vector.broadcast %cst_10 : f32 to vector<360x32xf32>
    %c0_11 = arith.constant 0 : index
    %c0_12 = arith.constant 0 : index
    %25 = vector.load %arg10[%c0_11, %c0_12] : memref<408x64xbf16, #tpu.memory_space<vmem>>, vector<360x64xbf16>
    %c0_13 = arith.constant 0 : index
    %c0_14 = arith.constant 0 : index
    %c0_15 = arith.constant 0 : index
    %26 = vector.load %arg5[%c0_13, %c0_14, %c0_15] : memref<9x64x32xbf16, #tpu.memory_space<vmem>>, vector<1x64x32xbf16>
    %27 = vector.shape_cast %26 : vector<1x64x32xbf16> to vector<64x32xbf16>
    %cst_16 = arith.constant dense<0.000000e+00> : vector<360x32xf32>
    %28 = tpu.matmul %25, %27, %cst_16 {dimension_numbers = #tpu.dot_dimension_numbers<[1], [0], [0], [1], [0, 0, 1, 1], [], []>} : vector<360x64xbf16>, vector<64x32xbf16>, vector<360x32xf32> -> vector<360x32xf32>
    %29 = arith.addf %24, %28 : vector<360x32xf32>
    %c1 = arith.constant 1 : index
    %c0_17 = arith.constant 0 : index
    %30 = vector.load %arg10[%c1, %c0_17] : memref<408x64xbf16, #tpu.memory_space<vmem>>, vector<360x64xbf16>
    %c1_18 = arith.constant 1 : index
    %c0_19 = arith.constant 0 : index
    %c0_20 = arith.constant 0 : index
    %31 = vector.load %arg5[%c1_18, %c0_19, %c0_20] : memref<9x64x32xbf16, #tpu.memory_space<vmem>>, vector<1x64x32xbf16>
    %32 = vector.shape_cast %31 : vector<1x64x32xbf16> to vector<64x32xbf16>
    %cst_21 = arith.constant dense<0.000000e+00> : vector<360x32xf32>
    %33 = tpu.matmul %30, %32, %cst_21 {dimension_numbers = #tpu.dot_dimension_numbers<[1], [0], [0], [1], [0, 0, 1, 1], [], []>} : vector<360x64xbf16>, vector<64x32xbf16>, vector<360x32xf32> -> vector<360x32xf32>
    %34 = arith.addf %29, %33 : vector<360x32xf32>
    %c2 = arith.constant 2 : index
    %c0_22 = arith.constant 0 : index
    %35 = vector.load %arg10[%c2, %c0_22] : memref<408x64xbf16, #tpu.memory_space<vmem>>, vector<360x64xbf16>
    %c2_23 = arith.constant 2 : index
    %c0_24 = arith.constant 0 : index
    %c0_25 = arith.constant 0 : index
    %36 = vector.load %arg5[%c2_23, %c0_24, %c0_25] : memref<9x64x32xbf16, #tpu.memory_space<vmem>>, vector<1x64x32xbf16>
    %37 = vector.shape_cast %36 : vector<1x64x32xbf16> to vector<64x32xbf16>
    %cst_26 = arith.constant dense<0.000000e+00> : vector<360x32xf32>
    %38 = tpu.matmul %35, %37, %cst_26 {dimension_numbers = #tpu.dot_dimension_numbers<[1], [0], [0], [1], [0, 0, 1, 1], [], []>} : vector<360x64xbf16>, vector<64x32xbf16>, vector<360x32xf32> -> vector<360x32xf32>
    %39 = arith.addf %34, %38 : vector<360x32xf32>
    %c20 = arith.constant 20 : index
    %c0_27 = arith.constant 0 : index
    %40 = vector.load %arg10[%c20, %c0_27] : memref<408x64xbf16, #tpu.memory_space<vmem>>, vector<360x64xbf16>
    %c3 = arith.constant 3 : index
    %c0_28 = arith.constant 0 : index
    %c0_29 = arith.constant 0 : index
    %41 = vector.load %arg5[%c3, %c0_28, %c0_29] : memref<9x64x32xbf16, #tpu.memory_space<vmem>>, vector<1x64x32xbf16>
    %42 = vector.shape_cast %41 : vector<1x64x32xbf16> to vector<64x32xbf16>
    %cst_30 = arith.constant dense<0.000000e+00> : vector<360x32xf32>
    %43 = tpu.matmul %40, %42, %cst_30 {dimension_numbers = #tpu.dot_dimension_numbers<[1], [0], [0], [1], [0, 0, 1, 1], [], []>} : vector<360x64xbf16>, vector<64x32xbf16>, vector<360x32xf32> -> vector<360x32xf32>
    %44 = arith.addf %39, %43 : vector<360x32xf32>
    %c21 = arith.constant 21 : index
    %c0_31 = arith.constant 0 : index
    %45 = vector.load %arg10[%c21, %c0_31] : memref<408x64xbf16, #tpu.memory_space<vmem>>, vector<360x64xbf16>
    %c4 = arith.constant 4 : index
    %c0_32 = arith.constant 0 : index
    %c0_33 = arith.constant 0 : index
    %46 = vector.load %arg5[%c4, %c0_32, %c0_33] : memref<9x64x32xbf16, #tpu.memory_space<vmem>>, vector<1x64x32xbf16>
    %47 = vector.shape_cast %46 : vector<1x64x32xbf16> to vector<64x32xbf16>
    %cst_34 = arith.constant dense<0.000000e+00> : vector<360x32xf32>
    %48 = tpu.matmul %45, %47, %cst_34 {dimension_numbers = #tpu.dot_dimension_numbers<[1], [0], [0], [1], [0, 0, 1, 1], [], []>} : vector<360x64xbf16>, vector<64x32xbf16>, vector<360x32xf32> -> vector<360x32xf32>
    %49 = arith.addf %44, %48 : vector<360x32xf32>
    %c22 = arith.constant 22 : index
    %c0_35 = arith.constant 0 : index
    %50 = vector.load %arg10[%c22, %c0_35] : memref<408x64xbf16, #tpu.memory_space<vmem>>, vector<360x64xbf16>
    %c5 = arith.constant 5 : index
    %c0_36 = arith.constant 0 : index
    %c0_37 = arith.constant 0 : index
    %51 = vector.load %arg5[%c5, %c0_36, %c0_37] : memref<9x64x32xbf16, #tpu.memory_space<vmem>>, vector<1x64x32xbf16>
    %52 = vector.shape_cast %51 : vector<1x64x32xbf16> to vector<64x32xbf16>
    %cst_38 = arith.constant dense<0.000000e+00> : vector<360x32xf32>
    %53 = tpu.matmul %50, %52, %cst_38 {dimension_numbers = #tpu.dot_dimension_numbers<[1], [0], [0], [1], [0, 0, 1, 1], [], []>} : vector<360x64xbf16>, vector<64x32xbf16>, vector<360x32xf32> -> vector<360x32xf32>
    %54 = arith.addf %49, %53 : vector<360x32xf32>
    %c40 = arith.constant 40 : index
    %c0_39 = arith.constant 0 : index
    %55 = vector.load %arg10[%c40, %c0_39] : memref<408x64xbf16, #tpu.memory_space<vmem>>, vector<360x64xbf16>
    %c6 = arith.constant 6 : index
    %c0_40 = arith.constant 0 : index
    %c0_41 = arith.constant 0 : index
    %56 = vector.load %arg5[%c6, %c0_40, %c0_41] : memref<9x64x32xbf16, #tpu.memory_space<vmem>>, vector<1x64x32xbf16>
    %57 = vector.shape_cast %56 : vector<1x64x32xbf16> to vector<64x32xbf16>
    %cst_42 = arith.constant dense<0.000000e+00> : vector<360x32xf32>
    %58 = tpu.matmul %55, %57, %cst_42 {dimension_numbers = #tpu.dot_dimension_numbers<[1], [0], [0], [1], [0, 0, 1, 1], [], []>} : vector<360x64xbf16>, vector<64x32xbf16>, vector<360x32xf32> -> vector<360x32xf32>
    %59 = arith.addf %54, %58 : vector<360x32xf32>
    %c41 = arith.constant 41 : index
    %c0_43 = arith.constant 0 : index
    %60 = vector.load %arg10[%c41, %c0_43] : memref<408x64xbf16, #tpu.memory_space<vmem>>, vector<360x64xbf16>
    %c7 = arith.constant 7 : index
    %c0_44 = arith.constant 0 : index
    %c0_45 = arith.constant 0 : index
    %61 = vector.load %arg5[%c7, %c0_44, %c0_45] : memref<9x64x32xbf16, #tpu.memory_space<vmem>>, vector<1x64x32xbf16>
    %62 = vector.shape_cast %61 : vector<1x64x32xbf16> to vector<64x32xbf16>
    %cst_46 = arith.constant dense<0.000000e+00> : vector<360x32xf32>
    %63 = tpu.matmul %60, %62, %cst_46 {dimension_numbers = #tpu.dot_dimension_numbers<[1], [0], [0], [1], [0, 0, 1, 1], [], []>} : vector<360x64xbf16>, vector<64x32xbf16>, vector<360x32xf32> -> vector<360x32xf32>
    %64 = arith.addf %59, %63 : vector<360x32xf32>
    %c42 = arith.constant 42 : index
    %c0_47 = arith.constant 0 : index
    %65 = vector.load %arg10[%c42, %c0_47] : memref<408x64xbf16, #tpu.memory_space<vmem>>, vector<360x64xbf16>
    %c8 = arith.constant 8 : index
    %c0_48 = arith.constant 0 : index
    %c0_49 = arith.constant 0 : index
    %66 = vector.load %arg5[%c8, %c0_48, %c0_49] : memref<9x64x32xbf16, #tpu.memory_space<vmem>>, vector<1x64x32xbf16>
    %67 = vector.shape_cast %66 : vector<1x64x32xbf16> to vector<64x32xbf16>
    %cst_50 = arith.constant dense<0.000000e+00> : vector<360x32xf32>
    %68 = tpu.matmul %65, %67, %cst_50 {dimension_numbers = #tpu.dot_dimension_numbers<[1], [0], [0], [1], [0, 0, 1, 1], [], []>} : vector<360x64xbf16>, vector<64x32xbf16>, vector<360x32xf32> -> vector<360x32xf32>
    %69 = arith.addf %64, %68 : vector<360x32xf32>
    %c0_51 = arith.constant 0 : index
    %c0_52 = arith.constant 0 : index
    %70 = vector.load %arg6[%c0_51, %c0_52] : memref<1x32xf32, #tpu.memory_space<vmem>>, vector<1x32xf32>
    %71 = vector.broadcast %70 : vector<1x32xf32> to vector<360x32xf32>
    %72 = arith.addf %69, %71 : vector<360x32xf32>
    %73 = math.tanh %72 : vector<360x32xf32>
    %74 = arith.truncf %73 : vector<360x32xf32> to vector<360x32xbf16>
    %cst_53 = arith.constant 0.000000e+00 : f32
    %75 = arith.truncf %cst_53 : f32 to bf16
    %76 = vector.shape_cast %10 : vector<360x1xi1> to vector<360x1xi1>
    %77 = vector.broadcast %76 : vector<360x1xi1> to vector<360x32xi1>
    %78 = vector.broadcast %75 : bf16 to vector<360x32xbf16>
    %79 = arith.select %77, %74, %78 : vector<360x32xi1>, vector<360x32xbf16>
    %c0_54 = arith.constant 0 : index
    %c0_55 = arith.constant 0 : index
    %80 = vector.load %arg11[%c0_54, %c0_55] : memref<368x32xbf16, #tpu.memory_space<vmem>>, vector<360x32xbf16>
    tpu.vector_store %arg11[%c0_54, %c0_55], %79 {strides = array<i32>} : memref<368x32xbf16, #tpu.memory_space<vmem>>, vector<360x32xbf16>,
    %cst_56 = arith.constant 0.000000e+00 : f32
    %81 = vector.broadcast %cst_56 : f32 to vector<320x48xf32>
    %c0_57 = arith.constant 0 : index
    %c0_58 = arith.constant 0 : index
    %82 = vector.load %arg11[%c0_57, %c0_58] : memref<368x32xbf16, #tpu.memory_space<vmem>>, vector<320x32xbf16>
    %c0_59 = arith.constant 0 : index
    %c0_60 = arith.constant 0 : index
    %c0_61 = arith.constant 0 : index
    %83 = vector.load %arg7[%c0_59, %c0_60, %c0_61] : memref<9x32x48xbf16, #tpu.memory_space<vmem>>, vector<1x32x48xbf16>
    %84 = vector.shape_cast %83 : vector<1x32x48xbf16> to vector<32x48xbf16>
    %cst_62 = arith.constant dense<0.000000e+00> : vector<320x48xf32>
    %85 = tpu.matmul %82, %84, %cst_62 {dimension_numbers = #tpu.dot_dimension_numbers<[1], [0], [0], [1], [0, 0, 1, 1], [], []>} : vector<320x32xbf16>, vector<32x48xbf16>, vector<320x48xf32> -> vector<320x48xf32>
    %86 = arith.addf %81, %85 : vector<320x48xf32>
    %c1_63 = arith.constant 1 : index
    %c0_64 = arith.constant 0 : index
    %87 = vector.load %arg11[%c1_63, %c0_64] : memref<368x32xbf16, #tpu.memory_space<vmem>>, vector<320x32xbf16>
    %c1_65 = arith.constant 1 : index
    %c0_66 = arith.constant 0 : index
    %c0_67 = arith.constant 0 : index
    %88 = vector.load %arg7[%c1_65, %c0_66, %c0_67] : memref<9x32x48xbf16, #tpu.memory_space<vmem>>, vector<1x32x48xbf16>
    %89 = vector.shape_cast %88 : vector<1x32x48xbf16> to vector<32x48xbf16>
    %cst_68 = arith.constant dense<0.000000e+00> : vector<320x48xf32>
    %90 = tpu.matmul %87, %89, %cst_68 {dimension_numbers = #tpu.dot_dimension_numbers<[1], [0], [0], [1], [0, 0, 1, 1], [], []>} : vector<320x32xbf16>, vector<32x48xbf16>, vector<320x48xf32> -> vector<320x48xf32>
    %91 = arith.addf %86, %90 : vector<320x48xf32>
    %c2_69 = arith.constant 2 : index
    %c0_70 = arith.constant 0 : index
    %92 = vector.load %arg11[%c2_69, %c0_70] : memref<368x32xbf16, #tpu.memory_space<vmem>>, vector<320x32xbf16>
    %c2_71 = arith.constant 2 : index
    %c0_72 = arith.constant 0 : index
    %c0_73 = arith.constant 0 : index
    %93 = vector.load %arg7[%c2_71, %c0_72, %c0_73] : memref<9x32x48xbf16, #tpu.memory_space<vmem>>, vector<1x32x48xbf16>
    %94 = vector.shape_cast %93 : vector<1x32x48xbf16> to vector<32x48xbf16>
    %cst_74 = arith.constant dense<0.000000e+00> : vector<320x48xf32>
    %95 = tpu.matmul %92, %94, %cst_74 {dimension_numbers = #tpu.dot_dimension_numbers<[1], [0], [0], [1], [0, 0, 1, 1], [], []>} : vector<320x32xbf16>, vector<32x48xbf16>, vector<320x48xf32> -> vector<320x48xf32>
    %96 = arith.addf %91, %95 : vector<320x48xf32>
    %c20_75 = arith.constant 20 : index
    %c0_76 = arith.constant 0 : index
    %97 = vector.load %arg11[%c20_75, %c0_76] : memref<368x32xbf16, #tpu.memory_space<vmem>>, vector<320x32xbf16>
    %c3_77 = arith.constant 3 : index
    %c0_78 = arith.constant 0 : index
    %c0_79 = arith.constant 0 : index
    %98 = vector.load %arg7[%c3_77, %c0_78, %c0_79] : memref<9x32x48xbf16, #tpu.memory_space<vmem>>, vector<1x32x48xbf16>
    %99 = vector.shape_cast %98 : vector<1x32x48xbf16> to vector<32x48xbf16>
    %cst_80 = arith.constant dense<0.000000e+00> : vector<320x48xf32>
    %100 = tpu.matmul %97, %99, %cst_80 {dimension_numbers = #tpu.dot_dimension_numbers<[1], [0], [0], [1], [0, 0, 1, 1], [], []>} : vector<320x32xbf16>, vector<32x48xbf16>, vector<320x48xf32> -> vector<320x48xf32>
    %101 = arith.addf %96, %100 : vector<320x48xf32>
    %c21_81 = arith.constant 21 : index
    %c0_82 = arith.constant 0 : index
    %102 = vector.load %arg11[%c21_81, %c0_82] : memref<368x32xbf16, #tpu.memory_space<vmem>>, vector<320x32xbf16>
    %c4_83 = arith.constant 4 : index
    %c0_84 = arith.constant 0 : index
    %c0_85 = arith.constant 0 : index
    %103 = vector.load %arg7[%c4_83, %c0_84, %c0_85] : memref<9x32x48xbf16, #tpu.memory_space<vmem>>, vector<1x32x48xbf16>
    %104 = vector.shape_cast %103 : vector<1x32x48xbf16> to vector<32x48xbf16>
    %cst_86 = arith.constant dense<0.000000e+00> : vector<320x48xf32>
    %105 = tpu.matmul %102, %104, %cst_86 {dimension_numbers = #tpu.dot_dimension_numbers<[1], [0], [0], [1], [0, 0, 1, 1], [], []>} : vector<320x32xbf16>, vector<32x48xbf16>, vector<320x48xf32> -> vector<320x48xf32>
    %106 = arith.addf %101, %105 : vector<320x48xf32>
    %c22_87 = arith.constant 22 : index
    %c0_88 = arith.constant 0 : index
    %107 = vector.load %arg11[%c22_87, %c0_88] : memref<368x32xbf16, #tpu.memory_space<vmem>>, vector<320x32xbf16>
    %c5_89 = arith.constant 5 : index
    %c0_90 = arith.constant 0 : index
    %c0_91 = arith.constant 0 : index
    %108 = vector.load %arg7[%c5_89, %c0_90, %c0_91] : memref<9x32x48xbf16, #tpu.memory_space<vmem>>, vector<1x32x48xbf16>
    %109 = vector.shape_cast %108 : vector<1x32x48xbf16> to vector<32x48xbf16>
    %cst_92 = arith.constant dense<0.000000e+00> : vector<320x48xf32>
    %110 = tpu.matmul %107, %109, %cst_92 {dimension_numbers = #tpu.dot_dimension_numbers<[1], [0], [0], [1], [0, 0, 1, 1], [], []>} : vector<320x32xbf16>, vector<32x48xbf16>, vector<320x48xf32> -> vector<320x48xf32>
    %111 = arith.addf %106, %110 : vector<320x48xf32>
    %c40_93 = arith.constant 40 : index
    %c0_94 = arith.constant 0 : index
    %112 = vector.load %arg11[%c40_93, %c0_94] : memref<368x32xbf16, #tpu.memory_space<vmem>>, vector<320x32xbf16>
    %c6_95 = arith.constant 6 : index
    %c0_96 = arith.constant 0 : index
    %c0_97 = arith.constant 0 : index
    %113 = vector.load %arg7[%c6_95, %c0_96, %c0_97] : memref<9x32x48xbf16, #tpu.memory_space<vmem>>, vector<1x32x48xbf16>
    %114 = vector.shape_cast %113 : vector<1x32x48xbf16> to vector<32x48xbf16>
    %cst_98 = arith.constant dense<0.000000e+00> : vector<320x48xf32>
    %115 = tpu.matmul %112, %114, %cst_98 {dimension_numbers = #tpu.dot_dimension_numbers<[1], [0], [0], [1], [0, 0, 1, 1], [], []>} : vector<320x32xbf16>, vector<32x48xbf16>, vector<320x48xf32> -> vector<320x48xf32>
    %116 = arith.addf %111, %115 : vector<320x48xf32>
    %c41_99 = arith.constant 41 : index
    %c0_100 = arith.constant 0 : index
    %117 = vector.load %arg11[%c41_99, %c0_100] : memref<368x32xbf16, #tpu.memory_space<vmem>>, vector<320x32xbf16>
    %c7_101 = arith.constant 7 : index
    %c0_102 = arith.constant 0 : index
    %c0_103 = arith.constant 0 : index
    %118 = vector.load %arg7[%c7_101, %c0_102, %c0_103] : memref<9x32x48xbf16, #tpu.memory_space<vmem>>, vector<1x32x48xbf16>
    %119 = vector.shape_cast %118 : vector<1x32x48xbf16> to vector<32x48xbf16>
    %cst_104 = arith.constant dense<0.000000e+00> : vector<320x48xf32>
    %120 = tpu.matmul %117, %119, %cst_104 {dimension_numbers = #tpu.dot_dimension_numbers<[1], [0], [0], [1], [0, 0, 1, 1], [], []>} : vector<320x32xbf16>, vector<32x48xbf16>, vector<320x48xf32> -> vector<320x48xf32>
    %121 = arith.addf %116, %120 : vector<320x48xf32>
    %c42_105 = arith.constant 42 : index
    %c0_106 = arith.constant 0 : index
    %122 = vector.load %arg11[%c42_105, %c0_106] : memref<368x32xbf16, #tpu.memory_space<vmem>>, vector<320x32xbf16>
    %c8_107 = arith.constant 8 : index
    %c0_108 = arith.constant 0 : index
    %c0_109 = arith.constant 0 : index
    %123 = vector.load %arg7[%c8_107, %c0_108, %c0_109] : memref<9x32x48xbf16, #tpu.memory_space<vmem>>, vector<1x32x48xbf16>
    %124 = vector.shape_cast %123 : vector<1x32x48xbf16> to vector<32x48xbf16>
    %cst_110 = arith.constant dense<0.000000e+00> : vector<320x48xf32>
    %125 = tpu.matmul %122, %124, %cst_110 {dimension_numbers = #tpu.dot_dimension_numbers<[1], [0], [0], [1], [0, 0, 1, 1], [], []>} : vector<320x32xbf16>, vector<32x48xbf16>, vector<320x48xf32> -> vector<320x48xf32>
    %126 = arith.addf %121, %125 : vector<320x48xf32>
    %c0_111 = arith.constant 0 : index
    %c0_112 = arith.constant 0 : index
    %127 = vector.load %arg8[%c0_111, %c0_112] : memref<1x48xf32, #tpu.memory_space<vmem>>, vector<1x48xf32>
    %128 = vector.broadcast %127 : vector<1x48xf32> to vector<320x48xf32>
    %129 = arith.addf %126, %128 : vector<320x48xf32>
    %c0_113 = arith.constant 0 : index
    %c0_114 = arith.constant 0 : index
    %c0_115 = arith.constant 0 : index
    %130 = vector.load %arg9[%c0_113, %c0_114, %c0_115] : memref<1x320x48xf32, #tpu.memory_space<vmem>>, vector<1x320x48xf32>
    %131 = vector.shape_cast %130 : vector<1x320x48xf32> to vector<320x48xf32>
    %132 = vector.shape_cast %129 : vector<320x48xf32> to vector<1x320x48xf32>
    tpu.vector_store %arg9[%c0_113, %c0_114, %c0_115], %132 {strides = array<i32>} : memref<1x320x48xf32, #tpu.memory_space<vmem>>, vector<1x320x48xf32>,
    return
  }
  func.func @transform_0(%arg0: i32, %arg1: i32) -> (i32, i32, i32) {
    %c0_i32 = arith.constant 0 : i32
    %c0_i32_0 = arith.constant 0 : i32
    %c0_i32_1 = arith.constant 0 : i32
    return %arg0, %c0_i32, %c0_i32_0 : i32, i32, i32
  }
  func.func @transform_1(%arg0: i32, %arg1: i32) -> (i32, i32) {
    %c0_i32 = arith.constant 0 : i32
    %c0_i32_0 = arith.constant 0 : i32
    %c0_i32_1 = arith.constant 0 : i32
    return %c0_i32, %c0_i32_0 : i32, i32
  }
  func.func @transform_2(%arg0: i32, %arg1: i32) -> (i32, i32) {
    %c0_i32 = arith.constant 0 : i32
    %c0_i32_0 = arith.constant 0 : i32
    %c0_i32_1 = arith.constant 0 : i32
    return %c0_i32, %c0_i32_0 : i32, i32
  }
  func.func @transform_3(%arg0: i32, %arg1: i32) -> (i32, i32, i32) {
    %c0_i32 = arith.constant 0 : i32
    %c0_i32_0 = arith.constant 0 : i32
    %c0_i32_1 = arith.constant 0 : i32
    %c0_i32_2 = arith.constant 0 : i32
    return %c0_i32, %c0_i32_0, %c0_i32_1 : i32, i32, i32
  }
  func.func @transform_4(%arg0: i32, %arg1: i32) -> (i32, i32) {
    %c0_i32 = arith.constant 0 : i32
    %c0_i32_0 = arith.constant 0 : i32
    %c0_i32_1 = arith.constant 0 : i32
    return %c0_i32, %c0_i32_0 : i32, i32
  }
  func.func @transform_5(%arg0: i32, %arg1: i32) -> (i32, i32, i32) {
    %c0_i32 = arith.constant 0 : i32
    %c0_i32_0 = arith.constant 0 : i32
    %c0_i32_1 = arith.constant 0 : i32
    %c0_i32_2 = arith.constant 0 : i32
    return %c0_i32, %c0_i32_0, %c0_i32_1 : i32, i32, i32
  }
  func.func @transform_6(%arg0: i32, %arg1: i32) -> (i32, i32) {
    %c0_i32 = arith.constant 0 : i32
    %c0_i32_0 = arith.constant 0 : i32
    %c0_i32_1 = arith.constant 0 : i32
    return %c0_i32, %c0_i32_0 : i32, i32
  }
  func.func @transform_7(%arg0: i32, %arg1: i32) -> (i32, i32, i32) {
    %c0_i32 = arith.constant 0 : i32
    %c0_i32_0 = arith.constant 0 : i32
    return %arg0, %arg1, %c0_i32 : i32, i32, i32
  }
}

</mosaic_0001>

<llo_original>
// kernel: espc_pallas.1
$region0: #{espc_pallas.1}
  #allocation0 [shape = 'u32[]', space=smem, size = 0x4, offset = 0x4, fixed_abs, tag = 'smem constant byte address 0x4 - core index']
  #allocation1 [shape = 'u32[72,128]{1,0:T(1,128)}', space=vmem, size = 0x9000, scoped, tag = 'internal scratch']
  #allocation2 [shape = 'bf16[408,64]{1,0:T(8,128)(2,1)}', space=vmem, size = 0x19800, scoped, tag = 'scratch operand']
  #allocation3 [shape = 'bf16[368,32]{1,0:T(8,128)(2,1)}', space=vmem, size = 0x17000, scoped, tag = 'scratch operand']
  %s0 = inlined_call_operand.vmem [shape: bf16[2,400,102], index: 0, kind: input, shape index: {}]
  %s1 = inlined_call_operand.vmem [shape: bf16[102,64], index: 1, kind: input, shape index: {}]
  %s2 = inlined_call_operand.vmem [shape: f32[1,64], index: 2, kind: input, shape index: {}]
  %s3 = inlined_call_operand.vmem [shape: bf16[9,64,32], index: 3, kind: input, shape index: {}]
  %s4 = inlined_call_operand.vmem [shape: f32[1,32], index: 4, kind: input, shape index: {}]
  %s5 = inlined_call_operand.vmem [shape: bf16[9,32,48], index: 5, kind: input, shape index: {}]
  %s6 = inlined_call_operand.vmem [shape: f32[1,48], index: 6, kind: input, shape index: {}]
  %s7 = inlined_call_operand.vmem [shape: f32[2,320,48], index: 7, kind: output, shape index: {}]
  %s8 = sld [smem:[#allocation0]]
  $region61: #{espc_pallas.1} parent=0
    _
  %s10 = ssub.s32 1, %s8
  %s11 = scalar_select 0, %s10, %s8
  loop: start=0, step=1, limit=4
  $region2: #{espc_pallas.1} parent=0 // loop_pre_header
    _
  $region3: #{espc_pallas.1} parent=0 // loop_header
    %s13 = sphi 0, %s17
    %p14 = scmp.ge.s32.totalorder %s13, 4
    %s20 = sphi 0, %s32
    %s21 = sphi 0, %s28
    %s22 = sphi 0, %s20
    %s23 = sphi 0, %s21
    %s24 = sphi 0, %s22
    %s25 = sphi 0, %s23
    %s35 = sphi 0, %s37
    %s38 = sphi 0, %s35
    %s39 = sphi 0, %s38
    %s55 = sphi 0, %s39
    %s59 = sphi 0, %s59
    %s61 = sphi 0, %s59
    %s62 = sphi 0, %s61
    %s76 = sphi 0, %s62
    %s80 = sphi 0, %s80
    %s82 = sphi 0, %s80
    %s83 = sphi 0, %s82
    %s97 = sphi 0, %s83
    %s101 = sphi 0, %s101
    %s103 = sphi 0, %s101
    %s104 = sphi 0, %s103
    %s118 = sphi 0, %s104
    %s122 = sphi 0, %s122
    %s124 = sphi 0, %s122
    %s125 = sphi 0, %s124
    %s139 = sphi 0, %s125
    %s143 = sphi 0, %s143
    %s145 = sphi 0, %s143
    %s146 = sphi 0, %s145
    %s160 = sphi 0, %s146
    %s164 = sphi 0, %s164
    %s166 = sphi 0, %s164
    %s167 = sphi 0, %s166
    %s181 = sphi 0, %s167
    %s189 = sphi 0, %s191
    %s192 = sphi 0, %s189
    %s193 = sphi 0, %s192
    %s209 = sphi 0, %s193
  $region4: #{espc_pallas.1} parent=0 // loop_header_branch
    %16 = sbr.rel (%p14) target = $region8
  $region5: #{espc_pallas.1} parent=0 // loop_body
    %s18 = ssub.s32 %s13, 1
    %s19 = ssub.s32 %s13, 2
    %s26 = sadd.s32 1, %s21
    %p27 = scmp.ge.s32.totalorder %s26, 1
    %s28 = scalar_select %p27, 0, %s26
    %s29 = sadd.s32 1, %s20
    %s30 = scalar_select %p27, %s29, %s20
    %p31 = scmp.ge.s32.totalorder %s30, 2
    %s32 = scalar_select %p31, 0, %s30
    %s33 = ssub.s32 %s20, %s32
    %p34 = scmp.eq.s32.totalorder %s33, 0
    %s36 = sadd.s32 %s35, 1
    %s37 = scalar_select %p34, %s35, %s36
    %p40 = pneg %p34
    %p41 = scmp.eq.s32.totalorder %s13, 1
    %p42 = por %p40, %p41
    %p43 = scmp.ne.s32.totalorder %s35, %s38
    %p44 = scmp.eq.s32.totalorder %s13, 0
    %p45 = por %p43, %p44
    %p46 = scmp.ne.s32.totalorder %s35, %s38
    %p47 = scmp.eq.s32.totalorder %s18, 1
    %p48 = por %p46, %p47
    %p49 = scmp.ne.s32.totalorder %s38, %s39
    %p50 = scmp.eq.s32.totalorder %s18, 0
    %p51 = por %p49, %p50
    %p52 = scmp.ne.s32.totalorder %s38, %s39
    %p53 = scmp.eq.s32.totalorder %s19, 1
    %p54 = por %p52, %p53
    %p56 = scmp.ne.s32.totalorder %s39, %s55
    %p57 = scmp.eq.s32.totalorder %s19, 0
    %p58 = por %p56, %p57
    %s60 = sadd.s32 %s59, 1
    %p63 = scmp.eq.s32.totalorder %s13, 1
    %p64 = scmp.ne.s32.totalorder %s59, %s61
    %p65 = scmp.eq.s32.totalorder %s13, 0
    %p66 = por %p64, %p65
    %p67 = scmp.ne.s32.totalorder %s59, %s61
    %p68 = scmp.eq.s32.totalorder %s18, 1
    %p69 = por %p67, %p68
    %p70 = scmp.ne.s32.totalorder %s61, %s62
    %p71 = scmp.eq.s32.totalorder %s18, 0
    %p72 = por %p70, %p71
    %p73 = scmp.ne.s32.totalorder %s61, %s62
    %p74 = scmp.eq.s32.totalorder %s19, 1
    %p75 = por %p73, %p74
    %p77 = scmp.ne.s32.totalorder %s62, %s76
    %p78 = scmp.eq.s32.totalorder %s19, 0
    %p79 = por %p77, %p78
    %s81 = sadd.s32 %s80, 1
    %p84 = scmp.eq.s32.totalorder %s13, 1
    %p85 = scmp.ne.s32.totalorder %s80, %s82
    %p86 = scmp.eq.s32.totalorder %s13, 0
    %p87 = por %p85, %p86
    %p88 = scmp.ne.s32.totalorder %s80, %s82
    %p89 = scmp.eq.s32.totalorder %s18, 1
    %p90 = por %p88, %p89
    %p91 = scmp.ne.s32.totalorder %s82, %s83
    %p92 = scmp.eq.s32.totalorder %s18, 0
    %p93 = por %p91, %p92
    %p94 = scmp.ne.s32.totalorder %s82, %s83
    %p95 = scmp.eq.s32.totalorder %s19, 1
    %p96 = por %p94, %p95
    %p98 = scmp.ne.s32.totalorder %s83, %s97
    %p99 = scmp.eq.s32.totalorder %s19, 0
    %p100 = por %p98, %p99
    %s102 = sadd.s32 %s101, 1
    %p105 = scmp.eq.s32.totalorder %s13, 1
    %p106 = scmp.ne.s32.totalorder %s101, %s103
    %p107 = scmp.eq.s32.totalorder %s13, 0
    %p108 = por %p106, %p107
    %p109 = scmp.ne.s32.totalorder %s101, %s103
    %p110 = scmp.eq.s32.totalorder %s18, 1
    %p111 = por %p109, %p110
    %p112 = scmp.ne.s32.totalorder %s103, %s104
    %p113 = scmp.eq.s32.totalorder %s18, 0
    %p114 = por %p112, %p113
    %p115 = scmp.ne.s32.totalorder %s103, %s104
    %p116 = scmp.eq.s32.totalorder %s19, 1
    %p117 = por %p115, %p116
    %p119 = scmp.ne.s32.totalorder %s104, %s118
    %p120 = scmp.eq.s32.totalorder %s19, 0
    %p121 = por %p119, %p120
    %s123 = sadd.s32 %s122, 1
    %p126 = scmp.eq.s32.totalorder %s13, 1
    %p127 = scmp.ne.s32.totalorder %s122, %s124
    %p128 = scmp.eq.s32.totalorder %s13, 0
    %p129 = por %p127, %p128
    %p130 = scmp.ne.s32.totalorder %s122, %s124
    %p131 = scmp.eq.s32.totalorder %s18, 1
    %p132 = por %p130, %p131
    %p133 = scmp.ne.s32.totalorder %s124, %s125
    %p134 = scmp.eq.s32.totalorder %s18, 0
    %p135 = por %p133, %p134
    %p136 = scmp.ne.s32.totalorder %s124, %s125
    %p137 = scmp.eq.s32.totalorder %s19, 1
    %p138 = por %p136, %p137
    %p140 = scmp.ne.s32.totalorder %s125, %s139
    %p141 = scmp.eq.s32.totalorder %s19, 0
    %p142 = por %p140, %p141
    %s144 = sadd.s32 %s143, 1
    %p147 = scmp.eq.s32.totalorder %s13, 1
    %p148 = scmp.ne.s32.totalorder %s143, %s145
    %p149 = scmp.eq.s32.totalorder %s13, 0
    %p150 = por %p148, %p149
    %p151 = scmp.ne.s32.totalorder %s143, %s145
    %p152 = scmp.eq.s32.totalorder %s18, 1
    %p153 = por %p151, %p152
    %p154 = scmp.ne.s32.totalorder %s145, %s146
    %p155 = scmp.eq.s32.totalorder %s18, 0
    %p156 = por %p154, %p155
    %p157 = scmp.ne.s32.totalorder %s145, %s146
    %p158 = scmp.eq.s32.totalorder %s19, 1
    %p159 = por %p157, %p158
    %p161 = scmp.ne.s32.totalorder %s146, %s160
    %p162 = scmp.eq.s32.totalorder %s19, 0
    %p163 = por %p161, %p162
    %s165 = sadd.s32 %s164, 1
    %p168 = scmp.eq.s32.totalorder %s13, 1
    %p169 = scmp.ne.s32.totalorder %s164, %s166
    %p170 = scmp.eq.s32.totalorder %s13, 0
    %p171 = por %p169, %p170
    %p172 = scmp.ne.s32.totalorder %s164, %s166
    %p173 = scmp.eq.s32.totalorder %s18, 1
    %p174 = por %p172, %p173
    %p175 = scmp.ne.s32.totalorder %s166, %s167
    %p176 = scmp.eq.s32.totalorder %s18, 0
    %p177 = por %p175, %p176
    %p178 = scmp.ne.s32.totalorder %s166, %s167
    %p179 = scmp.eq.s32.totalorder %s19, 1
    %p180 = por %p178, %p179
    %p182 = scmp.ne.s32.totalorder %s167, %s181
    %p183 = scmp.eq.s32.totalorder %s19, 0
    %p184 = por %p182, %p183
    %s185 = ssub.s32 %s20, %s32
    %s186 = ssub.s32 %s21, %s28
    %s187 = sor.u32 %s185, %s186
    %p188 = scmp.eq.s32.totalorder %s187, 0
    %s190 = sadd.s32 %s189, 1
    %s191 = scalar_select %p188, %s189, %s190
    %p194 = pneg %p188
    %p195 = scmp.eq.s32.totalorder %s13, 1
    %p196 = por %p194, %p195
    %p197 = scmp.ne.s32.totalorder %s189, %s192
    %p198 = scmp.eq.s32.totalorder %s13, 0
    %p199 = por %p197, %p198
    %p200 = scmp.ne.s32.totalorder %s189, %s192
    %p201 = scmp.eq.s32.totalorder %s18, 1
    %p202 = por %p200, %p201
    %p203 = scmp.ne.s32.totalorder %s192, %s193
    %p204 = scmp.eq.s32.totalorder %s18, 0
    %p205 = por %p203, %p204
    %p206 = scmp.ne.s32.totalorder %s192, %s193
    %p207 = scmp.eq.s32.totalorder %s19, 1
    %p208 = por %p206, %p207
    %p210 = scmp.ne.s32.totalorder %s193, %s209
    %p211 = scmp.eq.s32.totalorder %s19, 0
    %p212 = por %p210, %p211
    %p213 = scmp.le.s32.totalorder 1, %s13
    %p214 = scmp.lt.s32.totalorder %s13, 3
    %p215 = pnand %p213, %p214
    %p216 = pneg %p215
    // Predicated region
    $region9: #{espc_pallas.1} parent=5 // pred_check
      _
    $region10: #{espc_pallas.1} parent=5 // pred_check_branch
      %218 = sbr.rel (%p215) target = $region12
    $region11: #{espc_pallas.1} parent=5 // pred_region
      %s219 = ssub.s32 %s13, 1
      // Predicated region
      $region13: #{espc_pallas.1} parent=11 // pred_check
        %p220 = pneg %p72
      $region14: #{espc_pallas.1} parent=11 // pred_check_branch
        %222 = sbr.rel (%p220) target = $region16
      $region15: #{espc_pallas.1} parent=11 // pred_region
        _
      $region16: #{espc_pallas.1} parent=11 // pred_fallthru
        _
      // Predicated region
      $region17: #{espc_pallas.1} parent=11 // pred_check
        %p223 = pneg %p93
      $region18: #{espc_pallas.1} parent=11 // pred_check_branch
        %225 = sbr.rel (%p223) target = $region20
      $region19: #{espc_pallas.1} parent=11 // pred_region
        _
      $region20: #{espc_pallas.1} parent=11 // pred_fallthru
        _
      // Predicated region
      $region21: #{espc_pallas.1} parent=11 // pred_check
        %p226 = pneg %p114
      $region22: #{espc_pallas.1} parent=11 // pred_check_branch
        %228 = sbr.rel (%p226) target = $region24
      $region23: #{espc_pallas.1} parent=11 // pred_region
        _
      $region24: #{espc_pallas.1} parent=11 // pred_fallthru
        _
      // Predicated region
      $region25: #{espc_pallas.1} parent=11 // pred_check
        %p229 = pneg %p135
      $region26: #{espc_pallas.1} parent=11 // pred_check_branch
        %231 = sbr.rel (%p229) target = $region28
      $region27: #{espc_pallas.1} parent=11 // pred_region
        _
      $region28: #{espc_pallas.1} parent=11 // pred_fallthru
        _
      // Predicated region
      $region29: #{espc_pallas.1} parent=11 // pred_check
        %p232 = pneg %p156
      $region30: #{espc_pallas.1} parent=11 // pred_check_branch
        %234 = sbr.rel (%p232) target = $region32
      $region31: #{espc_pallas.1} parent=11 // pred_region
        _
      $region32: #{espc_pallas.1} parent=11 // pred_fallthru
        _
      // Predicated region
      $region33: #{espc_pallas.1} parent=11 // pred_check
        %p235 = pneg %p177
      $region34: #{espc_pallas.1} parent=11 // pred_check_branch
        %237 = sbr.rel (%p235) target = $region36
      $region35: #{espc_pallas.1} parent=11 // pred_region
        _
      $region36: #{espc_pallas.1} parent=11 // pred_fallthru
        _
    $region12: #{espc_pallas.1} parent=5 // pred_fallthru
      _
    %p238 = scmp.lt.s32.totalorder %s13, 2
    // Predicated region
    $region37: #{espc_pallas.1} parent=5 // pred_check
      %p239 = pneg %p238
    $region38: #{espc_pallas.1} parent=5 // pred_check_branch
      %241 = sbr.rel (%p239) target = $region40
    $region39: #{espc_pallas.1} parent=5 // pred_region
      // Predicated region
      $region41: #{espc_pallas.1} parent=39 // pred_check
        %p242 = pneg %p45
      $region42: #{espc_pallas.1} parent=39 // pred_check_branch
        %244 = sbr.rel (%p242) target = $region44
      $region43: #{espc_pallas.1} parent=39 // pred_region
        %p245 = scmp.lt.s32.totalorder %s20, 1
        %s246 = scalar_select %p245, %s20, 1
        %s247 = smul.addr %s246, 50
        %s248 = smul.addr %s247, 4
        %s249 = scalar_lea.vmem %s0, %s248
      $region44: #{espc_pallas.1} parent=39 // pred_fallthru
        _
    $region40: #{espc_pallas.1} parent=5 // pred_fallthru
      _
    %p250 = scmp.le.s32.totalorder 1, %s13
    %p251 = scmp.lt.s32.totalorder %s13, 3
    %p252 = pnand %p250, %p251
    %p253 = pneg %p252
    // Predicated region
    $region45: #{espc_pallas.1} parent=5 // pred_check
      _
    $region46: #{espc_pallas.1} parent=5 // pred_check_branch
      %255 = sbr.rel (%p252) target = $region48
    $region47: #{espc_pallas.1} parent=5 // pred_region
      %s256 = ssub.s32 %s13, 1
      %p257 = scmp.lt.s32.totalorder %s22, 1
      %s258 = scalar_select %p257, %s22, 1
      %s259 = smul.addr %s258, 50
      %s260 = smul.addr %s259, 4
      %s261 = scalar_lea.vmem %s0, %s260
      %p262 = pneg %p51
      %p263 = pneg %p48
      %p264 = pneg %p72
      %p265 = pneg %p69
      %p266 = pneg %p93
      %p267 = pneg %p90
      %p268 = pneg %p114
      %p269 = pneg %p111
      %p270 = pneg %p135
      %p271 = pneg %p132
      %p272 = pneg %p156
      %p273 = pneg %p153
      %p274 = pneg %p177
      %p275 = pneg %p174
      %p276 = pneg %p205
      %p277 = pneg %p202
      %s278 = smul.u32 40, %s23
      %p279 = scmp.lt.s32.totalorder %s22, 1
      %s280 = scalar_select %p279, %s22, 1
      %p281 = scmp.lt.s32.totalorder %s278, 39
      %s282 = scalar_select %p281, %s278, 39
      %s283 = smul.addr %s280, 40
      %s284 = sadd.s32 %s282, %s283
      %s285 = smul.addr %s284, 8
      %s286 = scalar_lea.vmem %s7, %s285
      %p287 = scmp.lt.s32.totalorder %s22, 1
      %s288 = scalar_select %p287, %s22, 1
      %s289 = smul.addr %s288, 50
      %s290 = smul.addr %s289, 4
      %s291 = scalar_lea.vmem %s0, %s290
      %s292 = smul.u32 40, %s23
      %p293 = scmp.lt.s32.totalorder %s22, 1
      %s294 = scalar_select %p293, %s22, 1
      %p295 = scmp.lt.s32.totalorder %s292, 39
      %s296 = scalar_select %p295, %s292, 39
      %s297 = smul.addr %s294, 40
      %s298 = sadd.s32 %s296, %s297
      %s299 = smul.addr %s298, 8
      %s300 = scalar_lea.vmem %s7, %s299
      %s301 = smul.u32 40, %s23
      %s303 = smul.u32 %s23, 320
      %s304 = sshra.s32 %s303, 3
      %s305 = sand.u32 %s303, 7
      %s306 = smul.addr %s304, 4
      %s307 = scalar_lea.vmem %s291, %s306
      %v308 = vld [vmem:[%s307] sm:$0xf]
      %v309 = vld [vmem:[%s307 + $0x4] sm:$0xf]
      %v310 = vld [vmem:[%s307 + $0x8] sm:$0xf]
      %v311 = vld [vmem:[%s307 + $0xc] sm:$0xf]
      %v312 = vld [vmem:[%s307 + $0x10] sm:$0xf]
      %v313 = vld [vmem:[%s307 + $0x14] sm:$0xf]
      %v314 = vld [vmem:[%s307 + $0x18] sm:$0xf]
      %v315 = vld [vmem:[%s307 + $0x1c] sm:$0xf]
      %v316 = vld [vmem:[%s307 + $0x20] sm:$0xf]
      %v317 = vld [vmem:[%s307 + $0x24] sm:$0xf]
      %v318 = vld [vmem:[%s307 + $0x28] sm:$0xf]
      %v319 = vld [vmem:[%s307 + $0x2c] sm:$0xf]
      %v320 = vld [vmem:[%s307 + $0x30] sm:$0xf]
      %v321 = vld [vmem:[%s307 + $0x34] sm:$0xf]
      %v322 = vld [vmem:[%s307 + $0x38] sm:$0xf]
      %v323 = vld [vmem:[%s307 + $0x3c] sm:$0xf]
      %v324 = vld [vmem:[%s307 + $0x40] sm:$0xf]
      %v325 = vld [vmem:[%s307 + $0x44] sm:$0xf]
      %v326 = vld [vmem:[%s307 + $0x48] sm:$0xf]
      %v327 = vld [vmem:[%s307 + $0x4c] sm:$0xf]
      %v328 = vld [vmem:[%s307 + $0x50] sm:$0xf]
      %v329 = vld [vmem:[%s307 + $0x54] sm:$0xf]
      %v330 = vld [vmem:[%s307 + $0x58] sm:$0xf]
      %v331 = vld [vmem:[%s307 + $0x5c] sm:$0xf]
      %v332 = vld [vmem:[%s307 + $0x60] sm:$0xf]
      %v333 = vld [vmem:[%s307 + $0x64] sm:$0xf]
      %v334 = vld [vmem:[%s307 + $0x68] sm:$0xf]
      %v335 = vld [vmem:[%s307 + $0x6c] sm:$0xf]
      %v336 = vld [vmem:[%s307 + $0x70] sm:$0xf]
      %v337 = vld [vmem:[%s307 + $0x74] sm:$0xf]
      %v338 = vld [vmem:[%s307 + $0x78] sm:$0xf]
      %v339 = vld [vmem:[%s307 + $0x7c] sm:$0xf]
      %v340 = vld [vmem:[%s307 + $0x80] sm:$0xf]
      %v341 = vld [vmem:[%s307 + $0x84] sm:$0xf]
      %v342 = vld [vmem:[%s307 + $0x88] sm:$0xf]
      %v343 = vld [vmem:[%s307 + $0x8c] sm:$0xf]
      %v344 = vld [vmem:[%s307 + $0x90] sm:$0xf]
      %v345 = vld [vmem:[%s307 + $0x94] sm:$0xf]
      %v346 = vld [vmem:[%s307 + $0x98] sm:$0xf]
      %v347 = vld [vmem:[%s307 + $0x9c] sm:$0xf]
      %v348 = vld [vmem:[%s307 + $0xa0] sm:$0xf]
      %v349 = vld [vmem:[%s307 + $0xa4] sm:$0xf]
      %v350 = vld [vmem:[%s307 + $0xa8] sm:$0xf]
      %v351 = vld [vmem:[%s307 + $0xac] sm:$0xf]
      %v352 = vld [vmem:[%s307 + $0xb0] sm:$0xf]
      %v353 = vld [vmem:[%s307 + $0xb4] sm:$0xf]
      %v354 = vld [vmem:[%s307 + $0xb8] sm:$0xf]
      %v355 = vld [vmem:[%s307 + $0xbc] sm:$0xf]
      %v356 = vld [vmem:[%s307 + $0xc0] sm:$0xf]
      %v357 = vld [vmem:[%s307 + $0xc4] sm:$0xf]
      %v358 = vunpack.c.l.bf16 %v308
      %v359 = vunpack.c.l.bf16 %v309
      %v360 = vunpack.c.l.bf16 %v310
      %v361 = vunpack.c.l.bf16 %v311
      %v362 = vunpack.c.l.bf16 %v312
      %v363 = vunpack.c.l.bf16 %v313
      %v364 = vunpack.c.l.bf16 %v314
      %v365 = vunpack.c.l.bf16 %v315
      %v366 = vunpack.c.l.bf16 %v316
      %v367 = vunpack.c.l.bf16 %v317
      %v368 = vunpack.c.l.bf16 %v318
      %v369 = vunpack.c.l.bf16 %v319
      %v370 = vunpack.c.l.bf16 %v320
      %v371 = vunpack.c.l.bf16 %v321
      %v372 = vunpack.c.l.bf16 %v322
      %v373 = vunpack.c.l.bf16 %v323
      %v374 = vunpack.c.l.bf16 %v324
      %v375 = vunpack.c.l.bf16 %v325
      %v376 = vunpack.c.l.bf16 %v326
      %v377 = vunpack.c.l.bf16 %v327
      %v378 = vunpack.c.l.bf16 %v328
      %v379 = vunpack.c.l.bf16 %v329
      %v380 = vunpack.c.l.bf16 %v330
      %v381 = vunpack.c.l.bf16 %v331
      %v382 = vunpack.c.l.bf16 %v332
      %v383 = vunpack.c.l.bf16 %v333
      %v384 = vunpack.c.l.bf16 %v334
      %v385 = vunpack.c.l.bf16 %v335
      %v386 = vunpack.c.l.bf16 %v336
      %v387 = vunpack.c.l.bf16 %v337
      %v388 = vunpack.c.l.bf16 %v338
      %v389 = vunpack.c.l.bf16 %v339
      %v390 = vunpack.c.l.bf16 %v340
      %v391 = vunpack.c.l.bf16 %v341
      %v392 = vunpack.c.l.bf16 %v342
      %v393 = vunpack.c.l.bf16 %v343
      %v394 = vunpack.c.l.bf16 %v344
      %v395 = vunpack.c.l.bf16 %v345
      %v396 = vunpack.c.l.bf16 %v346
      %v397 = vunpack.c.l.bf16 %v347
      %v398 = vunpack.c.l.bf16 %v348
      %v399 = vunpack.c.l.bf16 %v349
      %v400 = vunpack.c.l.bf16 %v350
      %v401 = vunpack.c.l.bf16 %v351
      %v402 = vunpack.c.l.bf16 %v352
      %v403 = vunpack.c.l.bf16 %v353
      %v404 = vunpack.c.l.bf16 %v354
      %v405 = vunpack.c.l.bf16 %v355
      %v406 = vunpack.c.l.bf16 %v356
      %v407 = vunpack.c.l.bf16 %v357
      %vm408 = vcmp.gt.f32.partialorder %v358, 0.5
      %vm409 = vcmp.gt.f32.partialorder %v359, 0.5
      %vm410 = vcmp.gt.f32.partialorder %v360, 0.5
      %vm411 = vcmp.gt.f32.partialorder %v361, 0.5
      %vm412 = vcmp.gt.f32.partialorder %v362, 0.5
      %vm413 = vcmp.gt.f32.partialorder %v363, 0.5
      %vm414 = vcmp.gt.f32.partialorder %v364, 0.5
      %vm415 = vcmp.gt.f32.partialorder %v365, 0.5
      %vm416 = vcmp.gt.f32.partialorder %v366, 0.5
      %vm417 = vcmp.gt.f32.partialorder %v367, 0.5
      %vm418 = vcmp.gt.f32.partialorder %v368, 0.5
      %vm419 = vcmp.gt.f32.partialorder %v369, 0.5
      %vm420 = vcmp.gt.f32.partialorder %v370, 0.5
      %vm421 = vcmp.gt.f32.partialorder %v371, 0.5
      %vm422 = vcmp.gt.f32.partialorder %v372, 0.5
      %vm423 = vcmp.gt.f32.partialorder %v373, 0.5
      %vm424 = vcmp.gt.f32.partialorder %v374, 0.5
      %vm425 = vcmp.gt.f32.partialorder %v375, 0.5
      %vm426 = vcmp.gt.f32.partialorder %v376, 0.5
      %vm427 = vcmp.gt.f32.partialorder %v377, 0.5
      %vm428 = vcmp.gt.f32.partialorder %v378, 0.5
      %vm429 = vcmp.gt.f32.partialorder %v379, 0.5
      %vm430 = vcmp.gt.f32.partialorder %v380, 0.5
      %vm431 = vcmp.gt.f32.partialorder %v381, 0.5
      %vm432 = vcmp.gt.f32.partialorder %v382, 0.5
      %vm433 = vcmp.gt.f32.partialorder %v383, 0.5
      %vm434 = vcmp.gt.f32.partialorder %v384, 0.5
      %vm435 = vcmp.gt.f32.partialorder %v385, 0.5
      %vm436 = vcmp.gt.f32.partialorder %v386, 0.5
      %vm437 = vcmp.gt.f32.partialorder %v387, 0.5
      %vm438 = vcmp.gt.f32.partialorder %v388, 0.5
      %vm439 = vcmp.gt.f32.partialorder %v389, 0.5
      %vm440 = vcmp.gt.f32.partialorder %v390, 0.5
      %vm441 = vcmp.gt.f32.partialorder %v391, 0.5
      %vm442 = vcmp.gt.f32.partialorder %v392, 0.5
      %vm443 = vcmp.gt.f32.partialorder %v393, 0.5
      %vm444 = vcmp.gt.f32.partialorder %v394, 0.5
      %vm445 = vcmp.gt.f32.partialorder %v395, 0.5
      %vm446 = vcmp.gt.f32.partialorder %v396, 0.5
      %vm447 = vcmp.gt.f32.partialorder %v397, 0.5
      %vm448 = vcmp.gt.f32.partialorder %v398, 0.5
      %vm449 = vcmp.gt.f32.partialorder %v399, 0.5
      %vm450 = vcmp.gt.f32.partialorder %v400, 0.5
      %vm451 = vcmp.gt.f32.partialorder %v401, 0.5
      %vm452 = vcmp.gt.f32.partialorder %v402, 0.5
      %vm453 = vcmp.gt.f32.partialorder %v403, 0.5
      %vm454 = vcmp.gt.f32.partialorder %v404, 0.5
      %vm455 = vcmp.gt.f32.partialorder %v405, 0.5
      %vm456 = vcmp.gt.f32.partialorder %v406, 0.5
      %vm457 = vcmp.gt.f32.partialorder %v407, 0.5
      %v458 = vld [vmem:[%s1] sm:$0xf]
      %v459 = vld [vmem:[%s1 + $0x4] sm:$0xf]
      %v460 = vld [vmem:[%s1 + $0x8] sm:$0xf]
      %v461 = vld [vmem:[%s1 + $0xc] sm:$0xf]
      %v462 = vld [vmem:[%s1 + $0x10] sm:$0xf]
      %v463 = vld [vmem:[%s1 + $0x14] sm:$0xf]
      %v464 = vld [vmem:[%s1 + $0x18] sm:$0xf]
      %v465 = vld [vmem:[%s1 + $0x1c] sm:$0xf]
      %v466 = vld [vmem:[%s1 + $0x20] sm:$0xf]
      %v467 = vld [vmem:[%s1 + $0x24] sm:$0xf]
      %v468 = vld [vmem:[%s1 + $0x28] sm:$0xf]
      %v469 = vld [vmem:[%s1 + $0x2c] sm:$0xf]
      %v470 = vld [vmem:[%s1 + $0x30] sm:$0x7]
      %v471 = vld [vmem:[%s2] sm:$0x1]
      %v473 = vperm.slane %v471, 0
      %v525 = vunpack.c.l.b16 %v308
      %v526 = vunpack.c.l.b16 %v309
      %v527 = vunpack.c.l.b16 %v310
      %v528 = vunpack.c.l.b16 %v311
      %v529 = vunpack.c.l.b16 %v312
      %v530 = vunpack.c.l.b16 %v313
      %v531 = vunpack.c.l.b16 %v314
      %v532 = vunpack.c.l.b16 %v315
      %v533 = vunpack.c.l.b16 %v316
      %v534 = vunpack.c.l.b16 %v317
      %v535 = vunpack.c.l.b16 %v318
      %v536 = vunpack.c.l.b16 %v319
      %v537 = vunpack.c.l.b16 %v320
      %v538 = vunpack.c.l.b16 %v321
      %v539 = vunpack.c.l.b16 %v322
      %v540 = vunpack.c.l.b16 %v323
      %v541 = vunpack.c.l.b16 %v324
      %v542 = vunpack.c.l.b16 %v325
      %v543 = vunpack.c.l.b16 %v326
      %v544 = vunpack.c.l.b16 %v327
      %v545 = vunpack.c.l.b16 %v328
      %v546 = vunpack.c.l.b16 %v329
      %v547 = vunpack.c.l.b16 %v330
      %v548 = vunpack.c.l.b16 %v331
      %v549 = vunpack.c.l.b16 %v332
      %v550 = vunpack.c.l.b16 %v333
      %v551 = vunpack.c.l.b16 %v334
      %v552 = vunpack.c.l.b16 %v335
      %v553 = vunpack.c.l.b16 %v336
      %v554 = vunpack.c.l.b16 %v337
      %v555 = vunpack.c.l.b16 %v338
      %v556 = vunpack.c.l.b16 %v339
      %v557 = vunpack.c.l.b16 %v340
      %v558 = vunpack.c.l.b16 %v341
      %v559 = vunpack.c.l.b16 %v342
      %v560 = vunpack.c.l.b16 %v343
      %v561 = vunpack.c.l.b16 %v344
      %v562 = vunpack.c.l.b16 %v345
      %v563 = vunpack.c.l.b16 %v346
      %v564 = vunpack.c.l.b16 %v347
      %v565 = vunpack.c.l.b16 %v348
      %v566 = vunpack.c.l.b16 %v349
      %v567 = vunpack.c.l.b16 %v350
      %v568 = vunpack.c.l.b16 %v351
      %v569 = vunpack.c.l.b16 %v352
      %v570 = vunpack.c.l.b16 %v353
      %v571 = vunpack.c.l.b16 %v354
      %v572 = vunpack.c.l.b16 %v355
      %v573 = vunpack.c.l.b16 %v356
      %v574 = vunpack.c.l.b16 %v357
      %v575 = vpack.c.b16 %v526, %v525
      %v576 = vpack.c.b16 %v528, %v527
      %v577 = vpack.c.b16 %v530, %v529
      %v578 = vpack.c.b16 %v532, %v531
      %v579 = vpack.c.b16 %v534, %v533
      %v580 = vpack.c.b16 %v536, %v535
      %v581 = vpack.c.b16 %v538, %v537
      %v582 = vpack.c.b16 %v540, %v539
      %v583 = vpack.c.b16 %v542, %v541
      %v584 = vpack.c.b16 %v544, %v543
      %v585 = vpack.c.b16 %v546, %v545
      %v586 = vpack.c.b16 %v548, %v547
      %v587 = vpack.c.b16 %v550, %v549
      %v588 = vpack.c.b16 %v552, %v551
      %v589 = vpack.c.b16 %v554, %v553
      %v590 = vpack.c.b16 %v556, %v555
      %v591 = vpack.c.b16 %v558, %v557
      %v592 = vpack.c.b16 %v560, %v559
      %v593 = vpack.c.b16 %v562, %v561
      %v594 = vpack.c.b16 %v564, %v563
      %v595 = vpack.c.b16 %v566, %v565
      %v596 = vpack.c.b16 %v568, %v567
      %v597 = vpack.c.b16 %v570, %v569
      %v598 = vpack.c.b16 %v572, %v571
      %v599 = vpack.c.b16 %v574, %v573
      %v613 = vunpack.c.l.b16 %v458
      %v614 = vunpack.c.l.b16 %v459
      %v615 = vunpack.c.l.b16 %v460
      %v616 = vunpack.c.l.b16 %v461
      %v617 = vunpack.c.l.b16 %v462
      %v618 = vunpack.c.l.b16 %v463
      %v619 = vunpack.c.l.b16 %v464
      %v620 = vunpack.c.l.b16 %v465
      %v621 = vunpack.c.l.b16 %v466
      %v622 = vunpack.c.l.b16 %v467
      %v623 = vunpack.c.l.b16 %v468
      %v624 = vunpack.c.l.b16 %v469
      %v625 = vunpack.c.l.b16 %v470
      %v626 = vpack.c.b16 %v614, %v613
      %v627 = vpack.c.b16 %v616, %v615
      %v628 = vpack.c.b16 %v618, %v617
      %v629 = vpack.c.b16 %v620, %v619
      %v630 = vpack.c.b16 %v622, %v621
      %v631 = vpack.c.b16 %v624, %v623
      %v632 = vpack.c.b16 %v625, %v625
      %vm639 = vcmask 834560
      %v641 = vsel %vm639, %v575, 0
      %v644 = vsel %vm639, %v576, 0
      %v647 = vsel %vm639, %v577, 0
      %v650 = vsel %vm639, %v578, 0
      %v653 = vsel %vm639, %v579, 0
      %v656 = vsel %vm639, %v580, 0
      %v659 = vsel %vm639, %v581, 0
      %v662 = vsel %vm639, %v582, 0
      %v665 = vsel %vm639, %v583, 0
      %v668 = vsel %vm639, %v584, 0
      %v671 = vsel %vm639, %v585, 0
      %v674 = vsel %vm639, %v586, 0
      %v677 = vsel %vm639, %v587, 0
      %v680 = vsel %vm639, %v588, 0
      %v683 = vsel %vm639, %v589, 0
      %v686 = vsel %vm639, %v590, 0
      %v689 = vsel %vm639, %v591, 0
      %v692 = vsel %vm639, %v592, 0
      %v695 = vsel %vm639, %v593, 0
      %v698 = vsel %vm639, %v594, 0
      %v701 = vsel %vm639, %v595, 0
      %v704 = vsel %vm639, %v596, 0
      %v707 = vsel %vm639, %v597, 0
      %v710 = vsel %vm639, %v598, 0
      %v713 = vsel %vm639, %v599, 0
      %vm715 = vcmask 1042432
      %v717 = vsel %vm715, %v632, 0
      %719 = vmatpush.bf16.msra.mxu0 0
      %720 = vmatpush.bf16.msra.mxu0 %v717
      %721 = vmatpush.bf16.msra.mxu0 %v631
      %722 = vmatpush.bf16.msra.mxu0 %v630
      %723 = vmatpush.bf16.msra.mxu0 %v629
      %724 = vmatpush.bf16.msra.mxu0 %v628
      %725 = vmatpush.bf16.msra.mxu0 %v627
      %726 = vmatpush.bf16.msra.mxu0 %v626
      %727 = vmatmul.bf16.gmra.mxu0 %v641
      %v728 = vpop.f32.mrf.mxu0
      %v729 = vadd.f32 %v473, %v728
      %v730 = vpop.f32.mrf.mxu0
      %v731 = vadd.f32 %v473, %v730
      %732 = vmatmul.bf16.gmra.mxu0 %v644
      %v733 = vpop.f32.mrf.mxu0
      %v734 = vadd.f32 %v473, %v733
      %v735 = vpop.f32.mrf.mxu0
      %v736 = vadd.f32 %v473, %v735
      %737 = vmatmul.bf16.gmra.mxu0 %v647
      %v738 = vpop.f32.mrf.mxu0
      %v739 = vadd.f32 %v473, %v738
      %v740 = vpop.f32.mrf.mxu0
      %v741 = vadd.f32 %v473, %v740
      %742 = vmatmul.bf16.gmra.mxu0 %v650
      %v743 = vpop.f32.mrf.mxu0
      %v744 = vadd.f32 %v473, %v743
      %v745 = vpop.f32.mrf.mxu0
      %v746 = vadd.f32 %v473, %v745
      %747 = vmatmul.bf16.gmra.mxu0 %v653
      %v748 = vpop.f32.mrf.mxu0
      %v749 = vadd.f32 %v473, %v748
      %v750 = vpop.f32.mrf.mxu0
      %v751 = vadd.f32 %v473, %v750
      %752 = vmatmul.bf16.gmra.mxu0 %v656
      %v753 = vpop.f32.mrf.mxu0
      %v754 = vadd.f32 %v473, %v753
      %v755 = vpop.f32.mrf.mxu0
      %v756 = vadd.f32 %v473, %v755
      %757 = vmatmul.bf16.gmra.mxu0 %v659
      %v758 = vpop.f32.mrf.mxu0
      %v759 = vadd.f32 %v473, %v758
      %v760 = vpop.f32.mrf.mxu0
      %v761 = vadd.f32 %v473, %v760
      %762 = vmatmul.bf16.gmra.mxu0 %v662
      %v763 = vpop.f32.mrf.mxu0
      %v764 = vadd.f32 %v473, %v763
      %v765 = vpop.f32.mrf.mxu0
      %v766 = vadd.f32 %v473, %v765
      %767 = vmatmul.bf16.gmra.mxu0 %v665
      %v768 = vpop.f32.mrf.mxu0
      %v769 = vadd.f32 %v473, %v768
      %v770 = vpop.f32.mrf.mxu0
      %v771 = vadd.f32 %v473, %v770
      %772 = vmatmul.bf16.gmra.mxu0 %v668
      %v773 = vpop.f32.mrf.mxu0
      %v774 = vadd.f32 %v473, %v773
      %v775 = vpop.f32.mrf.mxu0
      %v776 = vadd.f32 %v473, %v775
      %777 = vmatmul.bf16.gmra.mxu0 %v671
      %v778 = vpop.f32.mrf.mxu0
      %v779 = vadd.f32 %v473, %v778
      %v780 = vpop.f32.mrf.mxu0
      %v781 = vadd.f32 %v473, %v780
      %782 = vmatmul.bf16.gmra.mxu0 %v674
      %v783 = vpop.f32.mrf.mxu0
      %v784 = vadd.f32 %v473, %v783
      %v785 = vpop.f32.mrf.mxu0
      %v786 = vadd.f32 %v473, %v785
      %787 = vmatmul.bf16.gmra.mxu0 %v677
      %v788 = vpop.f32.mrf.mxu0
      %v789 = vadd.f32 %v473, %v788
      %v790 = vpop.f32.mrf.mxu0
      %v791 = vadd.f32 %v473, %v790
      %792 = vmatmul.bf16.gmra.mxu0 %v680
      %v793 = vpop.f32.mrf.mxu0
      %v794 = vadd.f32 %v473, %v793
      %v795 = vpop.f32.mrf.mxu0
      %v796 = vadd.f32 %v473, %v795
      %797 = vmatmul.bf16.gmra.mxu0 %v683
      %v798 = vpop.f32.mrf.mxu0
      %v799 = vadd.f32 %v473, %v798
      %v800 = vpop.f32.mrf.mxu0
      %v801 = vadd.f32 %v473, %v800
      %802 = vmatmul.bf16.gmra.mxu0 %v686
      %v803 = vpop.f32.mrf.mxu0
      %v804 = vadd.f32 %v473, %v803
      %v805 = vpop.f32.mrf.mxu0
      %v806 = vadd.f32 %v473, %v805
      %807 = vmatmul.bf16.gmra.mxu0 %v689
      %v808 = vpop.f32.mrf.mxu0
      %v809 = vadd.f32 %v473, %v808
      %v810 = vpop.f32.mrf.mxu0
      %v811 = vadd.f32 %v473, %v810
      %812 = vmatmul.bf16.gmra.mxu0 %v692
      %v813 = vpop.f32.mrf.mxu0
      %v814 = vadd.f32 %v473, %v813
      %v815 = vpop.f32.mrf.mxu0
      %v816 = vadd.f32 %v473, %v815
      %817 = vmatmul.bf16.gmra.mxu0 %v695
      %v818 = vpop.f32.mrf.mxu0
      %v819 = vadd.f32 %v473, %v818
      %v820 = vpop.f32.mrf.mxu0
      %v821 = vadd.f32 %v473, %v820
      %822 = vmatmul.bf16.gmra.mxu0 %v698
      %v823 = vpop.f32.mrf.mxu0
      %v824 = vadd.f32 %v473, %v823
      %v825 = vpop.f32.mrf.mxu0
      %v826 = vadd.f32 %v473, %v825
      %827 = vmatmul.bf16.gmra.mxu0 %v701
      %v828 = vpop.f32.mrf.mxu0
      %v829 = vadd.f32 %v473, %v828
      %v830 = vpop.f32.mrf.mxu0
      %v831 = vadd.f32 %v473, %v830
      %832 = vmatmul.bf16.gmra.mxu0 %v704
      %v833 = vpop.f32.mrf.mxu0
      %v834 = vadd.f32 %v473, %v833
      %v835 = vpop.f32.mrf.mxu0
      %v836 = vadd.f32 %v473, %v835
      %837 = vmatmul.bf16.gmra.mxu0 %v707
      %v838 = vpop.f32.mrf.mxu0
      %v839 = vadd.f32 %v473, %v838
      %v840 = vpop.f32.mrf.mxu0
      %v841 = vadd.f32 %v473, %v840
      %842 = vmatmul.bf16.gmra.mxu0 %v710
      %v843 = vpop.f32.mrf.mxu0
      %v844 = vadd.f32 %v473, %v843
      %v845 = vpop.f32.mrf.mxu0
      %v846 = vadd.f32 %v473, %v845
      %847 = vmatmul.bf16.gmra.mxu0 %v713
      %v848 = vpop.f32.mrf.mxu0
      %v849 = vadd.f32 %v473, %v848
      %v850 = vpop.f32.mrf.mxu0
      %v851 = vadd.f32 %v473, %v850
      %852 = vdwg.mxu0
      %v853 = vtanh.pop %v729
      %v854 = vtanh.pop %v731
      %v855 = vtanh.pop %v734
      %v856 = vtanh.pop %v736
      %v857 = vtanh.pop %v739
      %v858 = vtanh.pop %v741
      %v859 = vtanh.pop %v744
      %v860 = vtanh.pop %v746
      %v861 = vtanh.pop %v749
      %v862 = vtanh.pop %v751
      %v863 = vtanh.pop %v754
      %v864 = vtanh.pop %v756
      %v865 = vtanh.pop %v759
      %v866 = vtanh.pop %v761
      %v867 = vtanh.pop %v764
      %v868 = vtanh.pop %v766
      %v869 = vtanh.pop %v769
      %v870 = vtanh.pop %v771
      %v871 = vtanh.pop %v774
      %v872 = vtanh.pop %v776
      %v873 = vtanh.pop %v779
      %v874 = vtanh.pop %v781
      %v875 = vtanh.pop %v784
      %v876 = vtanh.pop %v786
      %v877 = vtanh.pop %v789
      %v878 = vtanh.pop %v791
      %v879 = vtanh.pop %v794
      %v880 = vtanh.pop %v796
      %v881 = vtanh.pop %v799
      %v882 = vtanh.pop %v801
      %v883 = vtanh.pop %v804
      %v884 = vtanh.pop %v806
      %v885 = vtanh.pop %v809
      %v886 = vtanh.pop %v811
      %v887 = vtanh.pop %v814
      %v888 = vtanh.pop %v816
      %v889 = vtanh.pop %v819
      %v890 = vtanh.pop %v821
      %v891 = vtanh.pop %v824
      %v892 = vtanh.pop %v826
      %v893 = vtanh.pop %v829
      %v894 = vtanh.pop %v831
      %v895 = vtanh.pop %v834
      %v896 = vtanh.pop %v836
      %v897 = vtanh.pop %v839
      %v898 = vtanh.pop %v841
      %v899 = vtanh.pop %v844
      %v900 = vtanh.pop %v846
      %v901 = vtanh.pop %v849
      %v902 = vtanh.pop %v851
      %v903 = vpack.c.bf16 %v853, %v853
      %v904 = vpack.c.bf16 %v854, %v854
      %v905 = vpack.c.bf16 %v855, %v855
      %v906 = vpack.c.bf16 %v856, %v856
      %v907 = vpack.c.bf16 %v857, %v857
      %v908 = vpack.c.bf16 %v858, %v858
      %v909 = vpack.c.bf16 %v859, %v859
      %v910 = vpack.c.bf16 %v860, %v860
      %v911 = vpack.c.bf16 %v861, %v861
      %v912 = vpack.c.bf16 %v862, %v862
      %v913 = vpack.c.bf16 %v863, %v863
      %v914 = vpack.c.bf16 %v864, %v864
      %v915 = vpack.c.bf16 %v865, %v865
      %v916 = vpack.c.bf16 %v866, %v866
      %v917 = vpack.c.bf16 %v867, %v867
      %v918 = vpack.c.bf16 %v868, %v868
      %v919 = vpack.c.bf16 %v869, %v869
      %v920 = vpack.c.bf16 %v870, %v870
      %v921 = vpack.c.bf16 %v871, %v871
      %v922 = vpack.c.bf16 %v872, %v872
      %v923 = vpack.c.bf16 %v873, %v873
      %v924 = vpack.c.bf16 %v874, %v874
      %v925 = vpack.c.bf16 %v875, %v875
      %v926 = vpack.c.bf16 %v876, %v876
      %v927 = vpack.c.bf16 %v877, %v877
      %v928 = vpack.c.bf16 %v878, %v878
      %v929 = vpack.c.bf16 %v879, %v879
      %v930 = vpack.c.bf16 %v880, %v880
      %v931 = vpack.c.bf16 %v881, %v881
      %v932 = vpack.c.bf16 %v882, %v882
      %v933 = vpack.c.bf16 %v883, %v883
      %v934 = vpack.c.bf16 %v884, %v884
      %v935 = vpack.c.bf16 %v885, %v885
      %v936 = vpack.c.bf16 %v886, %v886
      %v937 = vpack.c.bf16 %v887, %v887
      %v938 = vpack.c.bf16 %v888, %v888
      %v939 = vpack.c.bf16 %v889, %v889
      %v940 = vpack.c.bf16 %v890, %v890
      %v941 = vpack.c.bf16 %v891, %v891
      %v942 = vpack.c.bf16 %v892, %v892
      %v943 = vpack.c.bf16 %v893, %v893
      %v944 = vpack.c.bf16 %v894, %v894
      %v945 = vpack.c.bf16 %v895, %v895
      %v946 = vpack.c.bf16 %v896, %v896
      %v947 = vpack.c.bf16 %v897, %v897
      %v948 = vpack.c.bf16 %v898, %v898
      %v949 = vpack.c.bf16 %v899, %v899
      %v950 = vpack.c.bf16 %v900, %v900
      %v951 = vpack.c.bf16 %v901, %v901
      %v952 = vpack.c.bf16 %v902, %v902
      %v953 = vsel %vm408, 1, 0
      %v954 = vsel %vm409, 1, 0
      %v955 = vsel %vm410, 1, 0
      %v956 = vsel %vm411, 1, 0
      %v957 = vsel %vm412, 1, 0
      %v958 = vsel %vm413, 1, 0
      %v959 = vsel %vm414, 1, 0
      %v960 = vsel %vm415, 1, 0
      %v961 = vsel %vm416, 1, 0
      %v962 = vsel %vm417, 1, 0
      %v963 = vsel %vm418, 1, 0
      %v964 = vsel %vm419, 1, 0
      %v965 = vsel %vm420, 1, 0
      %v966 = vsel %vm421, 1, 0
      %v967 = vsel %vm422, 1, 0
      %v968 = vsel %vm423, 1, 0
      %v969 = vsel %vm424, 1, 0
      %v970 = vsel %vm425, 1, 0
      %v971 = vsel %vm426, 1, 0
      %v972 = vsel %vm427, 1, 0
      %v973 = vsel %vm428, 1, 0
      %v974 = vsel %vm429, 1, 0
      %v975 = vsel %vm430, 1, 0
      %v976 = vsel %vm431, 1, 0
      %v977 = vsel %vm432, 1, 0
      %v978 = vsel %vm433, 1, 0
      %v979 = vsel %vm434, 1, 0
      %v980 = vsel %vm435, 1, 0
      %v981 = vsel %vm436, 1, 0
      %v982 = vsel %vm437, 1, 0
      %v983 = vsel %vm438, 1, 0
      %v984 = vsel %vm439, 1, 0
      %v985 = vsel %vm440, 1, 0
      %v986 = vsel %vm441, 1, 0
      %v987 = vsel %vm442, 1, 0
      %v988 = vsel %vm443, 1, 0
      %v989 = vsel %vm444, 1, 0
      %v990 = vsel %vm445, 1, 0
      %v991 = vsel %vm446, 1, 0
      %v992 = vsel %vm447, 1, 0
      %v993 = vsel %vm448, 1, 0
      %v994 = vsel %vm449, 1, 0
      %v995 = vsel %vm450, 1, 0
      %v996 = vsel %vm451, 1, 0
      %v997 = vsel %vm452, 1, 0
      %v998 = vsel %vm453, 1, 0
      %v999 = vsel %vm454, 1, 0
      %v1000 = vsel %vm455, 1, 0
      %v1001 = vsel %vm456, 1, 0
      %v1002 = vsel %vm457, 1, 0
      %1003 = vset.pattern.permute.xlu0 100
      %1004 = vperm.xlu0 %1003, %v953
      %v1005 = vpop.permute.xlu0 %1004
      %1006 = vset.pattern.permute.xlu0 100
      %1007 = vperm.xlu0 %1006, %v954
      %v1008 = vpop.permute.xlu0 %1007
      %1009 = vset.pattern.permute.xlu0 100
      %1010 = vperm.xlu0 %1009, %v955
      %v1011 = vpop.permute.xlu0 %1010
      %1012 = vset.pattern.permute.xlu0 100
      %1013 = vperm.xlu0 %1012, %v956
      %v1014 = vpop.permute.xlu0 %1013
      %1015 = vset.pattern.permute.xlu0 100
      %1016 = vperm.xlu0 %1015, %v957
      %v1017 = vpop.permute.xlu0 %1016
      %1018 = vset.pattern.permute.xlu0 100
      %1019 = vperm.xlu0 %1018, %v958
      %v1020 = vpop.permute.xlu0 %1019
      %1021 = vset.pattern.permute.xlu0 100
      %1022 = vperm.xlu0 %1021, %v959
      %v1023 = vpop.permute.xlu0 %1022
      %1024 = vset.pattern.permute.xlu0 100
      %1025 = vperm.xlu0 %1024, %v960
      %v1026 = vpop.permute.xlu0 %1025
      %1027 = vset.pattern.permute.xlu0 100
      %1028 = vperm.xlu0 %1027, %v961
      %v1029 = vpop.permute.xlu0 %1028
      %1030 = vset.pattern.permute.xlu0 100
      %1031 = vperm.xlu0 %1030, %v962
      %v1032 = vpop.permute.xlu0 %1031
      %1033 = vset.pattern.permute.xlu0 100
      %1034 = vperm.xlu0 %1033, %v963
      %v1035 = vpop.permute.xlu0 %1034
      %1036 = vset.pattern.permute.xlu0 100
      %1037 = vperm.xlu0 %1036, %v964
      %v1038 = vpop.permute.xlu0 %1037
      %1039 = vset.pattern.permute.xlu0 100
      %1040 = vperm.xlu0 %1039, %v965
      %v1041 = vpop.permute.xlu0 %1040
      %1042 = vset.pattern.permute.xlu0 100
      %1043 = vperm.xlu0 %1042, %v966
      %v1044 = vpop.permute.xlu0 %1043
      %1045 = vset.pattern.permute.xlu0 100
      %1046 = vperm.xlu0 %1045, %v967
      %v1047 = vpop.permute.xlu0 %1046
      %1048 = vset.pattern.permute.xlu0 100
      %1049 = vperm.xlu0 %1048, %v968
      %v1050 = vpop.permute.xlu0 %1049
      %1051 = vset.pattern.permute.xlu0 100
      %1052 = vperm.xlu0 %1051, %v969
      %v1053 = vpop.permute.xlu0 %1052
      %1054 = vset.pattern.permute.xlu0 100
      %1055 = vperm.xlu0 %1054, %v970
      %v1056 = vpop.permute.xlu0 %1055
      %1057 = vset.pattern.permute.xlu0 100
      %1058 = vperm.xlu0 %1057, %v971
      %v1059 = vpop.permute.xlu0 %1058
      %1060 = vset.pattern.permute.xlu0 100
      %1061 = vperm.xlu0 %1060, %v972
      %v1062 = vpop.permute.xlu0 %1061
      %1063 = vset.pattern.permute.xlu0 100
      %1064 = vperm.xlu0 %1063, %v973
      %v1065 = vpop.permute.xlu0 %1064
      %1066 = vset.pattern.permute.xlu0 100
      %1067 = vperm.xlu0 %1066, %v974
      %v1068 = vpop.permute.xlu0 %1067
      %1069 = vset.pattern.permute.xlu0 100
      %1070 = vperm.xlu0 %1069, %v975
      %v1071 = vpop.permute.xlu0 %1070
      %1072 = vset.pattern.permute.xlu0 100
      %1073 = vperm.xlu0 %1072, %v976
      %v1074 = vpop.permute.xlu0 %1073
      %1075 = vset.pattern.permute.xlu0 100
      %1076 = vperm.xlu0 %1075, %v977
      %v1077 = vpop.permute.xlu0 %1076
      %1078 = vset.pattern.permute.xlu0 100
      %1079 = vperm.xlu0 %1078, %v978
      %v1080 = vpop.permute.xlu0 %1079
      %1081 = vset.pattern.permute.xlu0 100
      %1082 = vperm.xlu0 %1081, %v979
      %v1083 = vpop.permute.xlu0 %1082
      %1084 = vset.pattern.permute.xlu0 100
      %1085 = vperm.xlu0 %1084, %v980
      %v1086 = vpop.permute.xlu0 %1085
      %1087 = vset.pattern.permute.xlu0 100
      %1088 = vperm.xlu0 %1087, %v981
      %v1089 = vpop.permute.xlu0 %1088
      %1090 = vset.pattern.permute.xlu0 100
      %1091 = vperm.xlu0 %1090, %v982
      %v1092 = vpop.permute.xlu0 %1091
      %1093 = vset.pattern.permute.xlu0 100
      %1094 = vperm.xlu0 %1093, %v983
      %v1095 = vpop.permute.xlu0 %1094
      %1096 = vset.pattern.permute.xlu0 100
      %1097 = vperm.xlu0 %1096, %v984
      %v1098 = vpop.permute.xlu0 %1097
      %1099 = vset.pattern.permute.xlu0 100
      %1100 = vperm.xlu0 %1099, %v985
      %v1101 = vpop.permute.xlu0 %1100
      %1102 = vset.pattern.permute.xlu0 100
      %1103 = vperm.xlu0 %1102, %v986
      %v1104 = vpop.permute.xlu0 %1103
      %1105 = vset.pattern.permute.xlu0 100
      %1106 = vperm.xlu0 %1105, %v987
      %v1107 = vpop.permute.xlu0 %1106
      %1108 = vset.pattern.permute.xlu0 100
      %1109 = vperm.xlu0 %1108, %v988
      %v1110 = vpop.permute.xlu0 %1109
      %1111 = vset.pattern.permute.xlu0 100
      %1112 = vperm.xlu0 %1111, %v989
      %v1113 = vpop.permute.xlu0 %1112
      %1114 = vset.pattern.permute.xlu0 100
      %1115 = vperm.xlu0 %1114, %v990
      %v1116 = vpop.permute.xlu0 %1115
      %1117 = vset.pattern.permute.xlu0 100
      %1118 = vperm.xlu0 %1117, %v991
      %v1119 = vpop.permute.xlu0 %1118
      %1120 = vset.pattern.permute.xlu0 100
      %1121 = vperm.xlu0 %1120, %v992
      %v1122 = vpop.permute.xlu0 %1121
      %1123 = vset.pattern.permute.xlu0 100
      %1124 = vperm.xlu0 %1123, %v993
      %v1125 = vpop.permute.xlu0 %1124
      %1126 = vset.pattern.permute.xlu0 100
      %1127 = vperm.xlu0 %1126, %v994
      %v1128 = vpop.permute.xlu0 %1127
      %1129 = vset.pattern.permute.xlu0 100
      %1130 = vperm.xlu0 %1129, %v995
      %v1131 = vpop.permute.xlu0 %1130
      %1132 = vset.pattern.permute.xlu0 100
      %1133 = vperm.xlu0 %1132, %v996
      %v1134 = vpop.permute.xlu0 %1133
      %1135 = vset.pattern.permute.xlu0 100
      %1136 = vperm.xlu0 %1135, %v997
      %v1137 = vpop.permute.xlu0 %1136
      %1138 = vset.pattern.permute.xlu0 100
      %1139 = vperm.xlu0 %1138, %v998
      %v1140 = vpop.permute.xlu0 %1139
      %1141 = vset.pattern.permute.xlu0 100
      %1142 = vperm.xlu0 %1141, %v999
      %v1143 = vpop.permute.xlu0 %1142
      %1144 = vset.pattern.permute.xlu0 100
      %1145 = vperm.xlu0 %1144, %v1000
      %v1146 = vpop.permute.xlu0 %1145
      %1147 = vset.pattern.permute.xlu0 100
      %1148 = vperm.xlu0 %1147, %v1001
      %v1149 = vpop.permute.xlu0 %1148
      %1150 = vset.pattern.permute.xlu0 100
      %1151 = vperm.xlu0 %1150, %v1002
      %v1152 = vpop.permute.xlu0 %1151
      %vm1153 = vcmp.eq.s32.totalorder %v1005, 1
      %vm1154 = vcmp.eq.s32.totalorder %v1008, 1
      %vm1155 = vcmp.eq.s32.totalorder %v1011, 1
      %vm1156 = vcmp.eq.s32.totalorder %v1014, 1
      %vm1157 = vcmp.eq.s32.totalorder %v1017, 1
      %vm1158 = vcmp.eq.s32.totalorder %v1020, 1
      %vm1159 = vcmp.eq.s32.totalorder %v1023, 1
      %vm1160 = vcmp.eq.s32.totalorder %v1026, 1
      %vm1161 = vcmp.eq.s32.totalorder %v1029, 1
      %vm1162 = vcmp.eq.s32.totalorder %v1032, 1
      %vm1163 = vcmp.eq.s32.totalorder %v1035, 1
      %vm1164 = vcmp.eq.s32.totalorder %v1038, 1
      %vm1165 = vcmp.eq.s32.totalorder %v1041, 1
      %vm1166 = vcmp.eq.s32.totalorder %v1044, 1
      %vm1167 = vcmp.eq.s32.totalorder %v1047, 1
      %vm1168 = vcmp.eq.s32.totalorder %v1050, 1
      %vm1169 = vcmp.eq.s32.totalorder %v1053, 1
      %vm1170 = vcmp.eq.s32.totalorder %v1056, 1
      %vm1171 = vcmp.eq.s32.totalorder %v1059, 1
      %vm1172 = vcmp.eq.s32.totalorder %v1062, 1
      %vm1173 = vcmp.eq.s32.totalorder %v1065, 1
      %vm1174 = vcmp.eq.s32.totalorder %v1068, 1
      %vm1175 = vcmp.eq.s32.totalorder %v1071, 1
      %vm1176 = vcmp.eq.s32.totalorder %v1074, 1
      %vm1177 = vcmp.eq.s32.totalorder %v1077, 1
      %vm1178 = vcmp.eq.s32.totalorder %v1080, 1
      %vm1179 = vcmp.eq.s32.totalorder %v1083, 1
      %vm1180 = vcmp.eq.s32.totalorder %v1086, 1
      %vm1181 = vcmp.eq.s32.totalorder %v1089, 1
      %vm1182 = vcmp.eq.s32.totalorder %v1092, 1
      %vm1183 = vcmp.eq.s32.totalorder %v1095, 1
      %vm1184 = vcmp.eq.s32.totalorder %v1098, 1
      %vm1185 = vcmp.eq.s32.totalorder %v1101, 1
      %vm1186 = vcmp.eq.s32.totalorder %v1104, 1
      %vm1187 = vcmp.eq.s32.totalorder %v1107, 1
      %vm1188 = vcmp.eq.s32.totalorder %v1110, 1
      %vm1189 = vcmp.eq.s32.totalorder %v1113, 1
      %vm1190 = vcmp.eq.s32.totalorder %v1116, 1
      %vm1191 = vcmp.eq.s32.totalorder %v1119, 1
      %vm1192 = vcmp.eq.s32.totalorder %v1122, 1
      %vm1193 = vcmp.eq.s32.totalorder %v1125, 1
      %vm1194 = vcmp.eq.s32.totalorder %v1128, 1
      %vm1195 = vcmp.eq.s32.totalorder %v1131, 1
      %vm1196 = vcmp.eq.s32.totalorder %v1134, 1
      %vm1197 = vcmp.eq.s32.totalorder %v1137, 1
      %vm1198 = vcmp.eq.s32.totalorder %v1140, 1
      %vm1199 = vcmp.eq.s32.totalorder %v1143, 1
      %vm1200 = vcmp.eq.s32.totalorder %v1146, 1
      %vm1201 = vcmp.eq.s32.totalorder %v1149, 1
      %vm1202 = vcmp.eq.s32.totalorder %v1152, 1
      %vm1203 = vmpackc.low %vm1153, %vm1153
      %vm1204 = vmpackc.low %vm1154, %vm1154
      %vm1205 = vmpackc.low %vm1155, %vm1155
      %vm1206 = vmpackc.low %vm1156, %vm1156
      %vm1207 = vmpackc.low %vm1157, %vm1157
      %vm1208 = vmpackc.low %vm1158, %vm1158
      %vm1209 = vmpackc.low %vm1159, %vm1159
      %vm1210 = vmpackc.low %vm1160, %vm1160
      %vm1211 = vmpackc.low %vm1161, %vm1161
      %vm1212 = vmpackc.low %vm1162, %vm1162
      %vm1213 = vmpackc.low %vm1163, %vm1163
      %vm1214 = vmpackc.low %vm1164, %vm1164
      %vm1215 = vmpackc.low %vm1165, %vm1165
      %vm1216 = vmpackc.low %vm1166, %vm1166
      %vm1217 = vmpackc.low %vm1167, %vm1167
      %vm1218 = vmpackc.low %vm1168, %vm1168
      %vm1219 = vmpackc.low %vm1169, %vm1169
      %vm1220 = vmpackc.low %vm1170, %vm1170
      %vm1221 = vmpackc.low %vm1171, %vm1171
      %vm1222 = vmpackc.low %vm1172, %vm1172
      %vm1223 = vmpackc.low %vm1173, %vm1173
      %vm1224 = vmpackc.low %vm1174, %vm1174
      %vm1225 = vmpackc.low %vm1175, %vm1175
      %vm1226 = vmpackc.low %vm1176, %vm1176
      %vm1227 = vmpackc.low %vm1177, %vm1177
      %vm1228 = vmpackc.low %vm1178, %vm1178
      %vm1229 = vmpackc.low %vm1179, %vm1179
      %vm1230 = vmpackc.low %vm1180, %vm1180
      %vm1231 = vmpackc.low %vm1181, %vm1181
      %vm1232 = vmpackc.low %vm1182, %vm1182
      %vm1233 = vmpackc.low %vm1183, %vm1183
      %vm1234 = vmpackc.low %vm1184, %vm1184
      %vm1235 = vmpackc.low %vm1185, %vm1185
      %vm1236 = vmpackc.low %vm1186, %vm1186
      %vm1237 = vmpackc.low %vm1187, %vm1187
      %vm1238 = vmpackc.low %vm1188, %vm1188
      %vm1239 = vmpackc.low %vm1189, %vm1189
      %vm1240 = vmpackc.low %vm1190, %vm1190
      %vm1241 = vmpackc.low %vm1191, %vm1191
      %vm1242 = vmpackc.low %vm1192, %vm1192
      %vm1243 = vmpackc.low %vm1193, %vm1193
      %vm1244 = vmpackc.low %vm1194, %vm1194
      %vm1245 = vmpackc.low %vm1195, %vm1195
      %vm1246 = vmpackc.low %vm1196, %vm1196
      %vm1247 = vmpackc.low %vm1197, %vm1197
      %vm1248 = vmpackc.low %vm1198, %vm1198
      %vm1249 = vmpackc.low %vm1199, %vm1199
      %vm1250 = vmpackc.low %vm1200, %vm1200
      %vm1251 = vmpackc.low %vm1201, %vm1201
      %vm1252 = vmpackc.low %vm1202, %vm1202
      %v1253 = vsel %vm1203, %v903, 0
      %v1254 = vsel %vm1204, %v904, 0
      %v1255 = vsel %vm1205, %v905, 0
      %v1256 = vsel %vm1206, %v906, 0
      %v1257 = vsel %vm1207, %v907, 0
      %v1258 = vsel %vm1208, %v908, 0
      %v1259 = vsel %vm1209, %v909, 0
      %v1260 = vsel %vm1210, %v910, 0
      %v1261 = vsel %vm1211, %v911, 0
      %v1262 = vsel %vm1212, %v912, 0
      %v1263 = vsel %vm1213, %v913, 0
      %v1264 = vsel %vm1214, %v914, 0
      %v1265 = vsel %vm1215, %v915, 0
      %v1266 = vsel %vm1216, %v916, 0
      %v1267 = vsel %vm1217, %v917, 0
      %v1268 = vsel %vm1218, %v918, 0
      %v1269 = vsel %vm1219, %v919, 0
      %v1270 = vsel %vm1220, %v920, 0
      %v1271 = vsel %vm1221, %v921, 0
      %v1272 = vsel %vm1222, %v922, 0
      %v1273 = vsel %vm1223, %v923, 0
      %v1274 = vsel %vm1224, %v924, 0
      %v1275 = vsel %vm1225, %v925, 0
      %v1276 = vsel %vm1226, %v926, 0
      %v1277 = vsel %vm1227, %v927, 0
      %v1278 = vsel %vm1228, %v928, 0
      %v1279 = vsel %vm1229, %v929, 0
      %v1280 = vsel %vm1230, %v930, 0
      %v1281 = vsel %vm1231, %v931, 0
      %v1282 = vsel %vm1232, %v932, 0
      %v1283 = vsel %vm1233, %v933, 0
      %v1284 = vsel %vm1234, %v934, 0
      %v1285 = vsel %vm1235, %v935, 0
      %v1286 = vsel %vm1236, %v936, 0
      %v1287 = vsel %vm1237, %v937, 0
      %v1288 = vsel %vm1238, %v938, 0
      %v1289 = vsel %vm1239, %v939, 0
      %v1290 = vsel %vm1240, %v940, 0
      %v1291 = vsel %vm1241, %v941, 0
      %v1292 = vsel %vm1242, %v942, 0
      %v1293 = vsel %vm1243, %v943, 0
      %v1294 = vsel %vm1244, %v944, 0
      %v1295 = vsel %vm1245, %v945, 0
      %v1296 = vsel %vm1246, %v946, 0
      %v1297 = vsel %vm1247, %v947, 0
      %v1298 = vsel %vm1248, %v948, 0
      %v1299 = vsel %vm1249, %v949, 0
      %v1300 = vsel %vm1250, %v950, 0
      %v1301 = vsel %vm1251, %v951, 0
      %v1302 = vsel %vm1252, %v952, 0
      %vm1303 = vcmask 519168
      %1304 = vst.msk [vmem:[#allocation2] sm:$0xf] %vm1303, %v1253
      %1305 = vst.msk [vmem:[#allocation2 + $0x4] sm:$0xf] %vm1303, %v1254
      %1306 = vst.msk [vmem:[#allocation2 + $0x8] sm:$0xf] %vm1303, %v1255
      %1307 = vst.msk [vmem:[#allocation2 + $0xc] sm:$0xf] %vm1303, %v1256
      %1308 = vst.msk [vmem:[#allocation2 + $0x10] sm:$0xf] %vm1303, %v1257
      %1309 = vst.msk [vmem:[#allocation2 + $0x14] sm:$0xf] %vm1303, %v1258
      %1310 = vst.msk [vmem:[#allocation2 + $0x18] sm:$0xf] %vm1303, %v1259
      %1311 = vst.msk [vmem:[#allocation2 + $0x1c] sm:$0xf] %vm1303, %v1260
      %1312 = vst.msk [vmem:[#allocation2 + $0x20] sm:$0xf] %vm1303, %v1261
      %1313 = vst.msk [vmem:[#allocation2 + $0x24] sm:$0xf] %vm1303, %v1262
      %1314 = vst.msk [vmem:[#allocation2 + $0x28] sm:$0xf] %vm1303, %v1263
      %1315 = vst.msk [vmem:[#allocation2 + $0x2c] sm:$0xf] %vm1303, %v1264
      %1316 = vst.msk [vmem:[#allocation2 + $0x30] sm:$0xf] %vm1303, %v1265
      %1317 = vst.msk [vmem:[#allocation2 + $0x34] sm:$0xf] %vm1303, %v1266
      %1318 = vst.msk [vmem:[#allocation2 + $0x38] sm:$0xf] %vm1303, %v1267
      %1319 = vst.msk [vmem:[#allocation2 + $0x3c] sm:$0xf] %vm1303, %v1268
      %1320 = vst.msk [vmem:[#allocation2 + $0x40] sm:$0xf] %vm1303, %v1269
      %1321 = vst.msk [vmem:[#allocation2 + $0x44] sm:$0xf] %vm1303, %v1270
      %1322 = vst.msk [vmem:[#allocation2 + $0x48] sm:$0xf] %vm1303, %v1271
      %1323 = vst.msk [vmem:[#allocation2 + $0x4c] sm:$0xf] %vm1303, %v1272
      %1324 = vst.msk [vmem:[#allocation2 + $0x50] sm:$0xf] %vm1303, %v1273
      %1325 = vst.msk [vmem:[#allocation2 + $0x54] sm:$0xf] %vm1303, %v1274
      %1326 = vst.msk [vmem:[#allocation2 + $0x58] sm:$0xf] %vm1303, %v1275
      %1327 = vst.msk [vmem:[#allocation2 + $0x5c] sm:$0xf] %vm1303, %v1276
      %1328 = vst.msk [vmem:[#allocation2 + $0x60] sm:$0xf] %vm1303, %v1277
      %1329 = vst.msk [vmem:[#allocation2 + $0x64] sm:$0xf] %vm1303, %v1278
      %1330 = vst.msk [vmem:[#allocation2 + $0x68] sm:$0xf] %vm1303, %v1279
      %1331 = vst.msk [vmem:[#allocation2 + $0x6c] sm:$0xf] %vm1303, %v1280
      %1332 = vst.msk [vmem:[#allocation2 + $0x70] sm:$0xf] %vm1303, %v1281
      %1333 = vst.msk [vmem:[#allocation2 + $0x74] sm:$0xf] %vm1303, %v1282
      %1334 = vst.msk [vmem:[#allocation2 + $0x78] sm:$0xf] %vm1303, %v1283
      %1335 = vst.msk [vmem:[#allocation2 + $0x7c] sm:$0xf] %vm1303, %v1284
      %1336 = vst.msk [vmem:[#allocation2 + $0x80] sm:$0xf] %vm1303, %v1285
      %1337 = vst.msk [vmem:[#allocation2 + $0x84] sm:$0xf] %vm1303, %v1286
      %1338 = vst.msk [vmem:[#allocation2 + $0x88] sm:$0xf] %vm1303, %v1287
      %1339 = vst.msk [vmem:[#allocation2 + $0x8c] sm:$0xf] %vm1303, %v1288
      %1340 = vst.msk [vmem:[#allocation2 + $0x90] sm:$0xf] %vm1303, %v1289
      %1341 = vst.msk [vmem:[#allocation2 + $0x94] sm:$0xf] %vm1303, %v1290
      %1342 = vst.msk [vmem:[#allocation2 + $0x98] sm:$0xf] %vm1303, %v1291
      %1343 = vst.msk [vmem:[#allocation2 + $0x9c] sm:$0xf] %vm1303, %v1292
      %1344 = vst.msk [vmem:[#allocation2 + $0xa0] sm:$0xf] %vm1303, %v1293
      %1345 = vst.msk [vmem:[#allocation2 + $0xa4] sm:$0xf] %vm1303, %v1294
      %1346 = vst.msk [vmem:[#allocation2 + $0xa8] sm:$0xf] %vm1303, %v1295
      %1347 = vst.msk [vmem:[#allocation2 + $0xac] sm:$0xf] %vm1303, %v1296
      %1348 = vst.msk [vmem:[#allocation2 + $0xb0] sm:$0xf] %vm1303, %v1297
      %1349 = vst.msk [vmem:[#allocation2 + $0xb4] sm:$0xf] %vm1303, %v1298
      %1350 = vst.msk [vmem:[#allocation2 + $0xb8] sm:$0xf] %vm1303, %v1299
      %1351 = vst.msk [vmem:[#allocation2 + $0xbc] sm:$0xf] %vm1303, %v1300
      %1352 = vst.msk [vmem:[#allocation2 + $0xc0] sm:$0xf] %vm1303, %v1301
      %1353 = vst.msk [vmem:[#allocation2 + $0xc4] sm:$0xf] %vm1303, %v1302
      %v1354 = vld [vmem:[#allocation2] sm:$0xf]
      %v1355 = vld [vmem:[#allocation2 + $0x4] sm:$0xf]
      %v1356 = vld [vmem:[#allocation2 + $0x8] sm:$0xf]
      %v1357 = vld [vmem:[#allocation2 + $0xc] sm:$0xf]
      %v1358 = vld [vmem:[#allocation2 + $0x10] sm:$0xf]
      %v1359 = vld [vmem:[#allocation2 + $0x14] sm:$0xf]
      %v1360 = vld [vmem:[#allocation2 + $0x18] sm:$0xf]
      %v1361 = vld [vmem:[#allocation2 + $0x1c] sm:$0xf]
      %v1362 = vld [vmem:[#allocation2 + $0x20] sm:$0xf]
      %v1363 = vld [vmem:[#allocation2 + $0x24] sm:$0xf]
      %v1364 = vld [vmem:[#allocation2 + $0x28] sm:$0xf]
      %v1365 = vld [vmem:[#allocation2 + $0x2c] sm:$0xf]
      %v1366 = vld [vmem:[#allocation2 + $0x30] sm:$0xf]
      %v1367 = vld [vmem:[#allocation2 + $0x34] sm:$0xf]
      %v1368 = vld [vmem:[#allocation2 + $0x38] sm:$0xf]
      %v1369 = vld [vmem:[#allocation2 + $0x3c] sm:$0xf]
      %v1370 = vld [vmem:[#allocation2 + $0x40] sm:$0xf]
      %v1371 = vld [vmem:[#allocation2 + $0x44] sm:$0xf]
      %v1372 = vld [vmem:[#allocation2 + $0x48] sm:$0xf]
      %v1373 = vld [vmem:[#allocation2 + $0x4c] sm:$0xf]
      %v1374 = vld [vmem:[#allocation2 + $0x50] sm:$0xf]
      %v1375 = vld [vmem:[#allocation2 + $0x54] sm:$0xf]
      %v1376 = vld [vmem:[#allocation2 + $0x58] sm:$0xf]
      %v1377 = vld [vmem:[#allocation2 + $0x5c] sm:$0xf]
      %v1378 = vld [vmem:[#allocation2 + $0x60] sm:$0xf]
      %v1379 = vld [vmem:[#allocation2 + $0x64] sm:$0xf]
      %v1380 = vld [vmem:[#allocation2 + $0x68] sm:$0xf]
      %v1381 = vld [vmem:[#allocation2 + $0x6c] sm:$0xf]
      %v1382 = vld [vmem:[#allocation2 + $0x70] sm:$0xf]
      %v1383 = vld [vmem:[#allocation2 + $0x74] sm:$0xf]
      %v1384 = vld [vmem:[#allocation2 + $0x78] sm:$0xf]
      %v1385 = vld [vmem:[#allocation2 + $0x7c] sm:$0xf]
      %v1386 = vld [vmem:[#allocation2 + $0x80] sm:$0xf]
      %v1387 = vld [vmem:[#allocation2 + $0x84] sm:$0xf]
      %v1388 = vld [vmem:[#allocation2 + $0x88] sm:$0xf]
      %v1389 = vld [vmem:[#allocation2 + $0x8c] sm:$0xf]
      %v1390 = vld [vmem:[#allocation2 + $0x90] sm:$0xf]
      %v1391 = vld [vmem:[#allocation2 + $0x94] sm:$0xf]
      %v1392 = vld [vmem:[#allocation2 + $0x98] sm:$0xf]
      %v1393 = vld [vmem:[#allocation2 + $0x9c] sm:$0xf]
      %v1394 = vld [vmem:[#allocation2 + $0xa0] sm:$0xf]
      %v1395 = vld [vmem:[#allocation2 + $0xa4] sm:$0xf]
      %v1396 = vld [vmem:[#allocation2 + $0xa8] sm:$0xf]
      %v1397 = vld [vmem:[#allocation2 + $0xac] sm:$0xf]
      %v1398 = vld [vmem:[#allocation2 + $0xb0] sm:$0xf]
      %v1399 = vld [vmem:[%s3] sm:$0xf]
      %v1400 = vld [vmem:[%s3 + $0x4] sm:$0xf]
      %v1401 = vld [vmem:[%s3 + $0x8] sm:$0xf]
      %v1402 = vld [vmem:[%s3 + $0xc] sm:$0xf]
      %v1403 = vld [vmem:[%s3 + $0x10] sm:$0xf]
      %v1404 = vld [vmem:[%s3 + $0x14] sm:$0xf]
      %v1405 = vld [vmem:[%s3 + $0x18] sm:$0xf]
      %v1406 = vld [vmem:[%s3 + $0x1c] sm:$0xf]
      %v1407 = vld [vmem:[#allocation2 + $0xb4] sm:$0x1]
      %s1408 = scalar_lea.vmem %s3, 32
      %v1409 = vld [vmem:[%s1408] sm:$0xf]
      %v1410 = vld [vmem:[%s1408 + $0x4] sm:$0xf]
      %v1411 = vld [vmem:[%s1408 + $0x8] sm:$0xf]
      %v1412 = vld [vmem:[%s1408 + $0xc] sm:$0xf]
      %v1413 = vld [vmem:[%s1408 + $0x10] sm:$0xf]
      %v1414 = vld [vmem:[%s1408 + $0x14] sm:$0xf]
      %v1415 = vld [vmem:[%s1408 + $0x18] sm:$0xf]
      %v1416 = vld [vmem:[%s1408 + $0x1c] sm:$0xf]
      %v1463 = vunpack.c.l.b16 %v1354
      %v1464 = vunpack.c.l.b16 %v1355
      %v1465 = vunpack.c.l.b16 %v1356
      %v1466 = vunpack.c.l.b16 %v1357
      %v1467 = vunpack.c.l.b16 %v1358
      %v1468 = vunpack.c.l.b16 %v1359
      %v1469 = vunpack.c.l.b16 %v1360
      %v1470 = vunpack.c.l.b16 %v1361
      %v1471 = vunpack.c.l.b16 %v1362
      %v1472 = vunpack.c.l.b16 %v1363
      %v1473 = vunpack.c.l.b16 %v1364
      %v1474 = vunpack.c.l.b16 %v1365
      %v1475 = vunpack.c.l.b16 %v1366
      %v1476 = vunpack.c.l.b16 %v1367
      %v1477 = vunpack.c.l.b16 %v1368
      %v1478 = vunpack.c.l.b16 %v1369
      %v1479 = vunpack.c.l.b16 %v1370
      %v1480 = vunpack.c.l.b16 %v1371
      %v1481 = vunpack.c.l.b16 %v1372
      %v1482 = vunpack.c.l.b16 %v1373
      %v1483 = vunpack.c.l.b16 %v1374
      %v1484 = vunpack.c.l.b16 %v1375
      %v1485 = vunpack.c.l.b16 %v1376
      %v1486 = vunpack.c.l.b16 %v1377
      %v1487 = vunpack.c.l.b16 %v1378
      %v1488 = vunpack.c.l.b16 %v1379
      %v1489 = vunpack.c.l.b16 %v1380
      %v1490 = vunpack.c.l.b16 %v1381
      %v1491 = vunpack.c.l.b16 %v1382
      %v1492 = vunpack.c.l.b16 %v1383
      %v1493 = vunpack.c.l.b16 %v1384
      %v1494 = vunpack.c.l.b16 %v1385
      %v1495 = vunpack.c.l.b16 %v1386
      %v1496 = vunpack.c.l.b16 %v1387
      %v1497 = vunpack.c.l.b16 %v1388
      %v1498 = vunpack.c.l.b16 %v1389
      %v1499 = vunpack.c.l.b16 %v1390
      %v1500 = vunpack.c.l.b16 %v1391
      %v1501 = vunpack.c.l.b16 %v1392
      %v1502 = vunpack.c.l.b16 %v1393
      %v1503 = vunpack.c.l.b16 %v1394
      %v1504 = vunpack.c.l.b16 %v1395
      %v1505 = vunpack.c.l.b16 %v1396
      %v1506 = vunpack.c.l.b16 %v1397
      %v1507 = vunpack.c.l.b16 %v1398
      %v1508 = vunpack.c.l.b16 %v1407
      %v1509 = vpack.c.b16 %v1464, %v1463
      %v1510 = vpack.c.b16 %v1466, %v1465
      %v1511 = vpack.c.b16 %v1468, %v1467
      %v1512 = vpack.c.b16 %v1470, %v1469
      %v1513 = vpack.c.b16 %v1472, %v1471
      %v1514 = vpack.c.b16 %v1474, %v1473
      %v1515 = vpack.c.b16 %v1476, %v1475
      %v1516 = vpack.c.b16 %v1478, %v1477
      %v1517 = vpack.c.b16 %v1480, %v1479
      %v1518 = vpack.c.b16 %v1482, %v1481
      %v1519 = vpack.c.b16 %v1484, %v1483
      %v1520 = vpack.c.b16 %v1486, %v1485
      %v1521 = vpack.c.b16 %v1488, %v1487
      %v1522 = vpack.c.b16 %v1490, %v1489
      %v1523 = vpack.c.b16 %v1492, %v1491
      %v1524 = vpack.c.b16 %v1494, %v1493
      %v1525 = vpack.c.b16 %v1496, %v1495
      %v1526 = vpack.c.b16 %v1498, %v1497
      %v1527 = vpack.c.b16 %v1500, %v1499
      %v1528 = vpack.c.b16 %v1502, %v1501
      %v1529 = vpack.c.b16 %v1504, %v1503
      %v1530 = vpack.c.b16 %v1506, %v1505
      %v1531 = vpack.c.b16 %v1508, %v1507
      %vm1532 = vsmask.f32 7424
      %v1534 = vshrl.u32 %v1509, 16
      %v1536 = vshll.u32 %v1509, 16
      %v1538 = vrot.slane %v1536, 1
      %v1539 = vor.u32 %v1534, %v1538
      %v1541 = vshll.u32 %v1510, 16
      %v1543 = vrot.slane %v1541, 1
      %v1544 = vsel %vm1532, %v1539, %v1543
      %v1545 = vshrl.u32 %v1510, 16
      %v1547 = vor.u32 %v1545, %v1543
      %v1549 = vshll.u32 %v1511, 16
      %v1551 = vrot.slane %v1549, 1
      %v1552 = vsel %vm1532, %v1547, %v1551
      %v1553 = vshrl.u32 %v1511, 16
      %v1555 = vor.u32 %v1553, %v1551
      %v1557 = vshll.u32 %v1512, 16
      %v1559 = vrot.slane %v1557, 1
      %v1560 = vsel %vm1532, %v1555, %v1559
      %v1561 = vshrl.u32 %v1512, 16
      %v1563 = vor.u32 %v1561, %v1559
      %v1565 = vshll.u32 %v1513, 16
      %v1567 = vrot.slane %v1565, 1
      %v1568 = vsel %vm1532, %v1563, %v1567
      %v1569 = vshrl.u32 %v1513, 16
      %v1571 = vor.u32 %v1569, %v1567
      %v1573 = vshll.u32 %v1514, 16
      %v1575 = vrot.slane %v1573, 1
      %v1576 = vsel %vm1532, %v1571, %v1575
      %v1577 = vshrl.u32 %v1514, 16
      %v1579 = vor.u32 %v1577, %v1575
      %v1581 = vshll.u32 %v1515, 16
      %v1583 = vrot.slane %v1581, 1
      %v1584 = vsel %vm1532, %v1579, %v1583
      %v1585 = vshrl.u32 %v1515, 16
      %v1587 = vor.u32 %v1585, %v1583
      %v1589 = vshll.u32 %v1516, 16
      %v1591 = vrot.slane %v1589, 1
      %v1592 = vsel %vm1532, %v1587, %v1591
      %v1593 = vshrl.u32 %v1516, 16
      %v1595 = vor.u32 %v1593, %v1591
      %v1597 = vshll.u32 %v1517, 16
      %v1599 = vrot.slane %v1597, 1
      %v1600 = vsel %vm1532, %v1595, %v1599
      %v1601 = vshrl.u32 %v1517, 16
      %v1603 = vor.u32 %v1601, %v1599
      %v1605 = vshll.u32 %v1518, 16
      %v1607 = vrot.slane %v1605, 1
      %v1608 = vsel %vm1532, %v1603, %v1607
      %v1609 = vshrl.u32 %v1518, 16
      %v1611 = vor.u32 %v1609, %v1607
      %v1613 = vshll.u32 %v1519, 16
      %v1615 = vrot.slane %v1613, 1
      %v1616 = vsel %vm1532, %v1611, %v1615
      %v1617 = vshrl.u32 %v1519, 16
      %v1619 = vor.u32 %v1617, %v1615
      %v1621 = vshll.u32 %v1520, 16
      %v1623 = vrot.slane %v1621, 1
      %v1624 = vsel %vm1532, %v1619, %v1623
      %v1625 = vshrl.u32 %v1520, 16
      %v1627 = vor.u32 %v1625, %v1623
      %v1629 = vshll.u32 %v1521, 16
      %v1631 = vrot.slane %v1629, 1
      %v1632 = vsel %vm1532, %v1627, %v1631
      %v1633 = vshrl.u32 %v1521, 16
      %v1635 = vor.u32 %v1633, %v1631
      %v1637 = vshll.u32 %v1522, 16
      %v1639 = vrot.slane %v1637, 1
      %v1640 = vsel %vm1532, %v1635, %v1639
      %v1641 = vshrl.u32 %v1522, 16
      %v1643 = vor.u32 %v1641, %v1639
      %v1645 = vshll.u32 %v1523, 16
      %v1647 = vrot.slane %v1645, 1
      %v1648 = vsel %vm1532, %v1643, %v1647
      %v1649 = vshrl.u32 %v1523, 16
      %v1651 = vor.u32 %v1649, %v1647
      %v1653 = vshll.u32 %v1524, 16
      %v1655 = vrot.slane %v1653, 1
      %v1656 = vsel %vm1532, %v1651, %v1655
      %v1657 = vshrl.u32 %v1524, 16
      %v1659 = vor.u32 %v1657, %v1655
      %v1661 = vshll.u32 %v1525, 16
      %v1663 = vrot.slane %v1661, 1
      %v1664 = vsel %vm1532, %v1659, %v1663
      %v1665 = vshrl.u32 %v1525, 16
      %v1667 = vor.u32 %v1665, %v1663
      %v1669 = vshll.u32 %v1526, 16
      %v1671 = vrot.slane %v1669, 1
      %v1672 = vsel %vm1532, %v1667, %v1671
      %v1673 = vshrl.u32 %v1526, 16
      %v1675 = vor.u32 %v1673, %v1671
      %v1677 = vshll.u32 %v1527, 16
      %v1679 = vrot.slane %v1677, 1
      %v1680 = vsel %vm1532, %v1675, %v1679
      %v1681 = vshrl.u32 %v1527, 16
      %v1683 = vor.u32 %v1681, %v1679
      %v1685 = vshll.u32 %v1528, 16
      %v1687 = vrot.slane %v1685, 1
      %v1688 = vsel %vm1532, %v1683, %v1687
      %v1689 = vshrl.u32 %v1528, 16
      %v1691 = vor.u32 %v1689, %v1687
      %v1693 = vshll.u32 %v1529, 16
      %v1695 = vrot.slane %v1693, 1
      %v1696 = vsel %vm1532, %v1691, %v1695
      %v1697 = vshrl.u32 %v1529, 16
      %v1699 = vor.u32 %v1697, %v1695
      %v1701 = vshll.u32 %v1530, 16
      %v1703 = vrot.slane %v1701, 1
      %v1704 = vsel %vm1532, %v1699, %v1703
      %v1705 = vshrl.u32 %v1530, 16
      %v1707 = vor.u32 %v1705, %v1703
      %v1709 = vshll.u32 %v1531, 16
      %v1711 = vrot.slane %v1709, 1
      %v1712 = vsel %vm1532, %v1707, %v1711
      %v1713 = vshrl.u32 %v1531, 16
      %v1715 = vor.u32 %v1713, %v1711
      %v1724 = vunpack.c.l.b16 %v1409
      %v1725 = vunpack.c.l.b16 %v1410
      %v1726 = vunpack.c.l.b16 %v1411
      %v1727 = vunpack.c.l.b16 %v1412
      %v1728 = vunpack.c.l.b16 %v1413
      %v1729 = vunpack.c.l.b16 %v1414
      %v1730 = vunpack.c.l.b16 %v1415
      %v1731 = vunpack.c.l.b16 %v1416
      %v1732 = vpack.c.b16 %v1725, %v1724
      %v1733 = vpack.c.b16 %v1727, %v1726
      %v1734 = vpack.c.b16 %v1729, %v1728
      %v1735 = vpack.c.b16 %v1731, %v1730
      %vm1740 = vcmask 523264
      %v1742 = vsel %vm1740, %v1544, 0
      %v1745 = vsel %vm1740, %v1552, 0
      %v1748 = vsel %vm1740, %v1560, 0
      %v1751 = vsel %vm1740, %v1568, 0
      %v1754 = vsel %vm1740, %v1576, 0
      %v1757 = vsel %vm1740, %v1584, 0
      %v1760 = vsel %vm1740, %v1592, 0
      %v1763 = vsel %vm1740, %v1600, 0
      %v1766 = vsel %vm1740, %v1608, 0
      %v1769 = vsel %vm1740, %v1616, 0
      %v1772 = vsel %vm1740, %v1624, 0
      %v1775 = vsel %vm1740, %v1632, 0
      %v1778 = vsel %vm1740, %v1640, 0
      %v1781 = vsel %vm1740, %v1648, 0
      %v1784 = vsel %vm1740, %v1656, 0
      %v1787 = vsel %vm1740, %v1664, 0
      %v1790 = vsel %vm1740, %v1672, 0
      %v1793 = vsel %vm1740, %v1680, 0
      %v1796 = vsel %vm1740, %v1688, 0
      %v1799 = vsel %vm1740, %v1696, 0
      %v1802 = vsel %vm1740, %v1704, 0
      %v1805 = vsel %vm1740, %v1712, 0
      %v1808 = vsel %vm1740, %v1715, 0
      %1810 = vmatpush.bf16.msra.mxu0 0
      %1811 = vmatpush.bf16.msra.mxu0 0
      %1812 = vmatpush.bf16.msra.mxu0 0
      %1813 = vmatpush.bf16.msra.mxu0 0
      %1814 = vmatpush.bf16.msra.mxu0 %v1735
      %1815 = vmatpush.bf16.msra.mxu0 %v1734
      %1816 = vmatpush.bf16.msra.mxu0 %v1733
      %1817 = vmatpush.bf16.msra.mxu0 %v1732
      %1818 = vmatmul.bf16.gmra.mxu0 %v1742
      %v1819 = vpop.f32.mrf.mxu0
      %v1820 = vadd.f32 0.0, %v1819
      %v1821 = vpop.f32.mrf.mxu0
      %v1822 = vadd.f32 0.0, %v1821
      %1823 = vmatmul.bf16.gmra.mxu0 %v1745
      %v1824 = vpop.f32.mrf.mxu0
      %v1825 = vadd.f32 0.0, %v1824
      %v1826 = vpop.f32.mrf.mxu0
      %v1827 = vadd.f32 0.0, %v1826
      %1828 = vmatmul.bf16.gmra.mxu0 %v1748
      %v1829 = vpop.f32.mrf.mxu0
      %v1830 = vadd.f32 0.0, %v1829
      %v1831 = vpop.f32.mrf.mxu0
      %v1832 = vadd.f32 0.0, %v1831
      %1833 = vmatmul.bf16.gmra.mxu0 %v1751
      %v1834 = vpop.f32.mrf.mxu0
      %v1835 = vadd.f32 0.0, %v1834
      %v1836 = vpop.f32.mrf.mxu0
      %v1837 = vadd.f32 0.0, %v1836
      %1838 = vmatmul.bf16.gmra.mxu0 %v1754
      %v1839 = vpop.f32.mrf.mxu0
      %v1840 = vadd.f32 0.0, %v1839
      %v1841 = vpop.f32.mrf.mxu0
      %v1842 = vadd.f32 0.0, %v1841
      %1843 = vmatmul.bf16.gmra.mxu0 %v1757
      %v1844 = vpop.f32.mrf.mxu0
      %v1845 = vadd.f32 0.0, %v1844
      %v1846 = vpop.f32.mrf.mxu0
      %v1847 = vadd.f32 0.0, %v1846
      %1848 = vmatmul.bf16.gmra.mxu0 %v1760
      %v1849 = vpop.f32.mrf.mxu0
      %v1850 = vadd.f32 0.0, %v1849
      %v1851 = vpop.f32.mrf.mxu0
      %v1852 = vadd.f32 0.0, %v1851
      %1853 = vmatmul.bf16.gmra.mxu0 %v1763
      %v1854 = vpop.f32.mrf.mxu0
      %v1855 = vadd.f32 0.0, %v1854
      %v1856 = vpop.f32.mrf.mxu0
      %v1857 = vadd.f32 0.0, %v1856
      %1858 = vmatmul.bf16.gmra.mxu0 %v1766
      %v1859 = vpop.f32.mrf.mxu0
      %v1860 = vadd.f32 0.0, %v1859
      %v1861 = vpop.f32.mrf.mxu0
      %v1862 = vadd.f32 0.0, %v1861
      %1863 = vmatmul.bf16.gmra.mxu0 %v1769
      %v1864 = vpop.f32.mrf.mxu0
      %v1865 = vadd.f32 0.0, %v1864
      %v1866 = vpop.f32.mrf.mxu0
      %v1867 = vadd.f32 0.0, %v1866
      %1868 = vmatmul.bf16.gmra.mxu0 %v1772
      %v1869 = vpop.f32.mrf.mxu0
      %v1870 = vadd.f32 0.0, %v1869
      %v1871 = vpop.f32.mrf.mxu0
      %v1872 = vadd.f32 0.0, %v1871
      %1873 = vmatmul.bf16.gmra.mxu0 %v1775
      %v1874 = vpop.f32.mrf.mxu0
      %v1875 = vadd.f32 0.0, %v1874
      %v1876 = vpop.f32.mrf.mxu0
      %v1877 = vadd.f32 0.0, %v1876
      %1878 = vmatmul.bf16.gmra.mxu0 %v1778
      %v1879 = vpop.f32.mrf.mxu0
      %v1880 = vadd.f32 0.0, %v1879
      %v1881 = vpop.f32.mrf.mxu0
      %v1882 = vadd.f32 0.0, %v1881
      %1883 = vmatmul.bf16.gmra.mxu0 %v1781
      %v1884 = vpop.f32.mrf.mxu0
      %v1885 = vadd.f32 0.0, %v1884
      %v1886 = vpop.f32.mrf.mxu0
      %v1887 = vadd.f32 0.0, %v1886
      %1888 = vmatmul.bf16.gmra.mxu0 %v1784
      %v1889 = vpop.f32.mrf.mxu0
      %v1890 = vadd.f32 0.0, %v1889
      %v1891 = vpop.f32.mrf.mxu0
      %v1892 = vadd.f32 0.0, %v1891
      %1893 = vmatmul.bf16.gmra.mxu0 %v1787
      %v1894 = vpop.f32.mrf.mxu0
      %v1895 = vadd.f32 0.0, %v1894
      %v1896 = vpop.f32.mrf.mxu0
      %v1897 = vadd.f32 0.0, %v1896
      %1898 = vmatmul.bf16.gmra.mxu0 %v1790
      %v1899 = vpop.f32.mrf.mxu0
      %v1900 = vadd.f32 0.0, %v1899
      %v1901 = vpop.f32.mrf.mxu0
      %v1902 = vadd.f32 0.0, %v1901
      %1903 = vmatmul.bf16.gmra.mxu0 %v1793
      %v1904 = vpop.f32.mrf.mxu0
      %v1905 = vadd.f32 0.0, %v1904
      %v1906 = vpop.f32.mrf.mxu0
      %v1907 = vadd.f32 0.0, %v1906
      %1908 = vmatmul.bf16.gmra.mxu0 %v1796
      %v1909 = vpop.f32.mrf.mxu0
      %v1910 = vadd.f32 0.0, %v1909
      %v1911 = vpop.f32.mrf.mxu0
      %v1912 = vadd.f32 0.0, %v1911
      %1913 = vmatmul.bf16.gmra.mxu0 %v1799
      %v1914 = vpop.f32.mrf.mxu0
      %v1915 = vadd.f32 0.0, %v1914
      %v1916 = vpop.f32.mrf.mxu0
      %v1917 = vadd.f32 0.0, %v1916
      %1918 = vmatmul.bf16.gmra.mxu0 %v1802
      %v1919 = vpop.f32.mrf.mxu0
      %v1920 = vadd.f32 0.0, %v1919
      %v1921 = vpop.f32.mrf.mxu0
      %v1922 = vadd.f32 0.0, %v1921
      %1923 = vmatmul.bf16.gmra.mxu0 %v1805
      %v1924 = vpop.f32.mrf.mxu0
      %v1925 = vadd.f32 0.0, %v1924
      %v1926 = vpop.f32.mrf.mxu0
      %v1927 = vadd.f32 0.0, %v1926
      %1928 = vmatmul.bf16.gmra.mxu0 %v1808
      %v1929 = vpop.f32.mrf.mxu0
      %v1930 = vadd.f32 0.0, %v1929
      %v1931 = vpop.f32.mrf.mxu0
      %1932 = vdwg.mxu0
      %v1933 = vpack.c.b16 %v1507, %v1507
      %v1942 = vunpack.c.l.b16 %v1399
      %v1943 = vunpack.c.l.b16 %v1400
      %v1944 = vunpack.c.l.b16 %v1401
      %v1945 = vunpack.c.l.b16 %v1402
      %v1946 = vunpack.c.l.b16 %v1403
      %v1947 = vunpack.c.l.b16 %v1404
      %v1948 = vunpack.c.l.b16 %v1405
      %v1949 = vunpack.c.l.b16 %v1406
      %v1950 = vpack.c.b16 %v1943, %v1942
      %v1951 = vpack.c.b16 %v1945, %v1944
      %v1952 = vpack.c.b16 %v1947, %v1946
      %v1953 = vpack.c.b16 %v1949, %v1948
      %v1958 = vsel %vm1740, %v1509, 0
      %v1960 = vsel %vm1740, %v1510, 0
      %v1962 = vsel %vm1740, %v1511, 0
      %v1964 = vsel %vm1740, %v1512, 0
      %v1966 = vsel %vm1740, %v1513, 0
      %v1968 = vsel %vm1740, %v1514, 0
      %v1970 = vsel %vm1740, %v1515, 0
      %v1972 = vsel %vm1740, %v1516, 0
      %v1974 = vsel %vm1740, %v1517, 0
      %v1976 = vsel %vm1740, %v1518, 0
      %v1978 = vsel %vm1740, %v1519, 0
      %v1980 = vsel %vm1740, %v1520, 0
      %v1982 = vsel %vm1740, %v1521, 0
      %v1984 = vsel %vm1740, %v1522, 0
      %v1986 = vsel %vm1740, %v1523, 0
      %v1988 = vsel %vm1740, %v1524, 0
      %v1990 = vsel %vm1740, %v1525, 0
      %v1992 = vsel %vm1740, %v1526, 0
      %v1994 = vsel %vm1740, %v1527, 0
      %v1996 = vsel %vm1740, %v1528, 0
      %v1998 = vsel %vm1740, %v1529, 0
      %v2000 = vsel %vm1740, %v1530, 0
      %v2003 = vsel %vm1740, %v1933, 0
      %2005 = vmatpush.bf16.msra.mxu0 0
      %2006 = vmatpush.bf16.msra.mxu0 0
      %2007 = vmatpush.bf16.msra.mxu0 0
      %2008 = vmatpush.bf16.msra.mxu0 0
      %2009 = vmatpush.bf16.msra.mxu0 %v1953
      %2010 = vmatpush.bf16.msra.mxu0 %v1952
      %2011 = vmatpush.bf16.msra.mxu0 %v1951
      %2012 = vmatpush.bf16.msra.mxu0 %v1950
      %2013 = vmatmul.bf16.gmra.mxu0 %v1958
      %v2014 = vpop.f32.mrf.mxu0
      %v2015 = vadd.f32 %v1820, %v2014
      %v2016 = vpop.f32.mrf.mxu0
      %v2017 = vadd.f32 %v1822, %v2016
      %2018 = vmatmul.bf16.gmra.mxu0 %v1960
      %v2019 = vpop.f32.mrf.mxu0
      %v2020 = vadd.f32 %v1825, %v2019
      %v2021 = vpop.f32.mrf.mxu0
      %v2022 = vadd.f32 %v1827, %v2021
      %2023 = vmatmul.bf16.gmra.mxu0 %v1962
      %v2024 = vpop.f32.mrf.mxu0
      %v2025 = vadd.f32 %v1830, %v2024
      %v2026 = vpop.f32.mrf.mxu0
      %v2027 = vadd.f32 %v1832, %v2026
      %2028 = vmatmul.bf16.gmra.mxu0 %v1964
      %v2029 = vpop.f32.mrf.mxu0
      %v2030 = vadd.f32 %v1835, %v2029
      %v2031 = vpop.f32.mrf.mxu0
      %v2032 = vadd.f32 %v1837, %v2031
      %2033 = vmatmul.bf16.gmra.mxu0 %v1966
      %v2034 = vpop.f32.mrf.mxu0
      %v2035 = vadd.f32 %v1840, %v2034
      %v2036 = vpop.f32.mrf.mxu0
      %v2037 = vadd.f32 %v1842, %v2036
      %2038 = vmatmul.bf16.gmra.mxu0 %v1968
      %v2039 = vpop.f32.mrf.mxu0
      %v2040 = vadd.f32 %v1845, %v2039
      %v2041 = vpop.f32.mrf.mxu0
      %v2042 = vadd.f32 %v1847, %v2041
      %2043 = vmatmul.bf16.gmra.mxu0 %v1970
      %v2044 = vpop.f32.mrf.mxu0
      %v2045 = vadd.f32 %v1850, %v2044
      %v2046 = vpop.f32.mrf.mxu0
      %v2047 = vadd.f32 %v1852, %v2046
      %2048 = vmatmul.bf16.gmra.mxu0 %v1972
      %v2049 = vpop.f32.mrf.mxu0
      %v2050 = vadd.f32 %v1855, %v2049
      %v2051 = vpop.f32.mrf.mxu0
      %v2052 = vadd.f32 %v1857, %v2051
      %2053 = vmatmul.bf16.gmra.mxu0 %v1974
      %v2054 = vpop.f32.mrf.mxu0
      %v2055 = vadd.f32 %v1860, %v2054
      %v2056 = vpop.f32.mrf.mxu0
      %v2057 = vadd.f32 %v1862, %v2056
      %2058 = vmatmul.bf16.gmra.mxu0 %v1976
      %v2059 = vpop.f32.mrf.mxu0
      %v2060 = vadd.f32 %v1865, %v2059
      %v2061 = vpop.f32.mrf.mxu0
      %v2062 = vadd.f32 %v1867, %v2061
      %2063 = vmatmul.bf16.gmra.mxu0 %v1978
      %v2064 = vpop.f32.mrf.mxu0
      %v2065 = vadd.f32 %v1870, %v2064
      %v2066 = vpop.f32.mrf.mxu0
      %v2067 = vadd.f32 %v1872, %v2066
      %2068 = vmatmul.bf16.gmra.mxu0 %v1980
      %v2069 = vpop.f32.mrf.mxu0
      %v2070 = vadd.f32 %v1875, %v2069
      %v2071 = vpop.f32.mrf.mxu0
      %v2072 = vadd.f32 %v1877, %v2071
      %2073 = vmatmul.bf16.gmra.mxu0 %v1982
      %v2074 = vpop.f32.mrf.mxu0
      %v2075 = vadd.f32 %v1880, %v2074
      %v2076 = vpop.f32.mrf.mxu0
      %v2077 = vadd.f32 %v1882, %v2076
      %2078 = vmatmul.bf16.gmra.mxu0 %v1984
      %v2079 = vpop.f32.mrf.mxu0
      %v2080 = vadd.f32 %v1885, %v2079
      %v2081 = vpop.f32.mrf.mxu0
      %v2082 = vadd.f32 %v1887, %v2081
      %2083 = vmatmul.bf16.gmra.mxu0 %v1986
      %v2084 = vpop.f32.mrf.mxu0
      %v2085 = vadd.f32 %v1890, %v2084
      %v2086 = vpop.f32.mrf.mxu0
      %v2087 = vadd.f32 %v1892, %v2086
      %2088 = vmatmul.bf16.gmra.mxu0 %v1988
      %v2089 = vpop.f32.mrf.mxu0
      %v2090 = vadd.f32 %v1895, %v2089
      %v2091 = vpop.f32.mrf.mxu0
      %v2092 = vadd.f32 %v1897, %v2091
      %2093 = vmatmul.bf16.gmra.mxu0 %v1990
      %v2094 = vpop.f32.mrf.mxu0
      %v2095 = vadd.f32 %v1900, %v2094
      %v2096 = vpop.f32.mrf.mxu0
      %v2097 = vadd.f32 %v1902, %v2096
      %2098 = vmatmul.bf16.gmra.mxu0 %v1992
      %v2099 = vpop.f32.mrf.mxu0
      %v2100 = vadd.f32 %v1905, %v2099
      %v2101 = vpop.f32.mrf.mxu0
      %v2102 = vadd.f32 %v1907, %v2101
      %2103 = vmatmul.bf16.gmra.mxu0 %v1994
      %v2104 = vpop.f32.mrf.mxu0
      %v2105 = vadd.f32 %v1910, %v2104
      %v2106 = vpop.f32.mrf.mxu0
      %v2107 = vadd.f32 %v1912, %v2106
      %2108 = vmatmul.bf16.gmra.mxu0 %v1996
      %v2109 = vpop.f32.mrf.mxu0
      %v2110 = vadd.f32 %v1915, %v2109
      %v2111 = vpop.f32.mrf.mxu0
      %v2112 = vadd.f32 %v1917, %v2111
      %2113 = vmatmul.bf16.gmra.mxu0 %v1998
      %v2114 = vpop.f32.mrf.mxu0
      %v2115 = vadd.f32 %v1920, %v2114
      %v2116 = vpop.f32.mrf.mxu0
      %v2117 = vadd.f32 %v1922, %v2116
      %2118 = vmatmul.bf16.gmra.mxu0 %v2000
      %v2119 = vpop.f32.mrf.mxu0
      %v2120 = vadd.f32 %v1925, %v2119
      %v2121 = vpop.f32.mrf.mxu0
      %v2122 = vadd.f32 %v1927, %v2121
      %2123 = vmatmul.bf16.gmra.mxu0 %v2003
      %v2124 = vpop.f32.mrf.mxu0
      %v2125 = vadd.f32 %v1930, %v2124
      %v2126 = vpop.f32.mrf.mxu0
      %2127 = vdwg.mxu0
      %v2128 = vld [vmem:[#allocation2] sm:$0xe]
      %s2129 = scalar_lea.vmem %s3, 64
      %v2130 = vld [vmem:[%s2129] sm:$0xf]
      %v2131 = vld [vmem:[%s2129 + $0x4] sm:$0xf]
      %v2132 = vld [vmem:[%s2129 + $0x8] sm:$0xf]
      %v2133 = vld [vmem:[%s2129 + $0xc] sm:$0xf]
      %v2134 = vld [vmem:[%s2129 + $0x10] sm:$0xf]
      %v2135 = vld [vmem:[%s2129 + $0x14] sm:$0xf]
      %v2136 = vld [vmem:[%s2129 + $0x18] sm:$0xf]
      %v2137 = vld [vmem:[%s2129 + $0x1c] sm:$0xf]
      %v2139 = vunpack.c.l.b16 %v2128
      %v2140 = vpack.c.b16 %v1464, %v2139
      %vm2141 = vcmask 1046528
      %v2142 = vrot.slane %v2140, 1
      %v2143 = vrot.slane %v1510, 1
      %v2144 = vsel %vm2141, %v2142, %v2143
      %v2145 = vrot.slane %v1511, 1
      %v2146 = vsel %vm2141, %v2143, %v2145
      %v2147 = vrot.slane %v1512, 1
      %v2148 = vsel %vm2141, %v2145, %v2147
      %v2149 = vrot.slane %v1513, 1
      %v2150 = vsel %vm2141, %v2147, %v2149
      %v2151 = vrot.slane %v1514, 1
      %v2152 = vsel %vm2141, %v2149, %v2151
      %v2153 = vrot.slane %v1515, 1
      %v2154 = vsel %vm2141, %v2151, %v2153
      %v2155 = vrot.slane %v1516, 1
      %v2156 = vsel %vm2141, %v2153, %v2155
      %v2157 = vrot.slane %v1517, 1
      %v2158 = vsel %vm2141, %v2155, %v2157
      %v2159 = vrot.slane %v1518, 1
      %v2160 = vsel %vm2141, %v2157, %v2159
      %v2161 = vrot.slane %v1519, 1
      %v2162 = vsel %vm2141, %v2159, %v2161
      %v2163 = vrot.slane %v1520, 1
      %v2164 = vsel %vm2141, %v2161, %v2163
      %v2165 = vrot.slane %v1521, 1
      %v2166 = vsel %vm2141, %v2163, %v2165
      %v2167 = vrot.slane %v1522, 1
      %v2168 = vsel %vm2141, %v2165, %v2167
      %v2169 = vrot.slane %v1523, 1
      %v2170 = vsel %vm2141, %v2167, %v2169
      %v2171 = vrot.slane %v1524, 1
      %v2172 = vsel %vm2141, %v2169, %v2171
      %v2173 = vrot.slane %v1525, 1
      %v2174 = vsel %vm2141, %v2171, %v2173
      %v2175 = vrot.slane %v1526, 1
      %v2176 = vsel %vm2141, %v2173, %v2175
      %v2177 = vrot.slane %v1527, 1
      %v2178 = vsel %vm2141, %v2175, %v2177
      %v2179 = vrot.slane %v1528, 1
      %v2180 = vsel %vm2141, %v2177, %v2179
      %v2181 = vrot.slane %v1529, 1
      %v2182 = vsel %vm2141, %v2179, %v2181
      %v2183 = vrot.slane %v1530, 1
      %v2184 = vsel %vm2141, %v2181, %v2183
      %v2185 = vrot.slane %v1531, 1
      %v2186 = vsel %vm2141, %v2183, %v2185
      %v2195 = vunpack.c.l.b16 %v2130
      %v2196 = vunpack.c.l.b16 %v2131
      %v2197 = vunpack.c.l.b16 %v2132
      %v2198 = vunpack.c.l.b16 %v2133
      %v2199 = vunpack.c.l.b16 %v2134
      %v2200 = vunpack.c.l.b16 %v2135
      %v2201 = vunpack.c.l.b16 %v2136
      %v2202 = vunpack.c.l.b16 %v2137
      %v2203 = vpack.c.b16 %v2196, %v2195
      %v2204 = vpack.c.b16 %v2198, %v2197
      %v2205 = vpack.c.b16 %v2200, %v2199
      %v2206 = vpack.c.b16 %v2202, %v2201
      %v2212 = vsel %vm1740, %v2144, 0
      %v2215 = vsel %vm1740, %v2146, 0
      %v2218 = vsel %vm1740, %v2148, 0
      %v2221 = vsel %vm1740, %v2150, 0
      %v2224 = vsel %vm1740, %v2152, 0
      %v2227 = vsel %vm1740, %v2154, 0
      %v2230 = vsel %vm1740, %v2156, 0
      %v2233 = vsel %vm1740, %v2158, 0
      %v2236 = vsel %vm1740, %v2160, 0
      %v2239 = vsel %vm1740, %v2162, 0
      %v2242 = vsel %vm1740, %v2164, 0
      %v2245 = vsel %vm1740, %v2166, 0
      %v2248 = vsel %vm1740, %v2168, 0
      %v2251 = vsel %vm1740, %v2170, 0
      %v2254 = vsel %vm1740, %v2172, 0
      %v2257 = vsel %vm1740, %v2174, 0
      %v2260 = vsel %vm1740, %v2176, 0
      %v2263 = vsel %vm1740, %v2178, 0
      %v2266 = vsel %vm1740, %v2180, 0
      %v2269 = vsel %vm1740, %v2182, 0
      %v2272 = vsel %vm1740, %v2184, 0
      %v2275 = vsel %vm1740, %v2186, 0
      %v2278 = vsel %vm1740, %v2185, 0
      %2280 = vmatpush.bf16.msra.mxu0 0
      %2281 = vmatpush.bf16.msra.mxu0 0
      %2282 = vmatpush.bf16.msra.mxu0 0
      %2283 = vmatpush.bf16.msra.mxu0 0
      %2284 = vmatpush.bf16.msra.mxu0 %v2206
      %2285 = vmatpush.bf16.msra.mxu0 %v2205
      %2286 = vmatpush.bf16.msra.mxu0 %v2204
      %2287 = vmatpush.bf16.msra.mxu0 %v2203
      %2288 = vmatmul.bf16.gmra.mxu0 %v2212
      %v2289 = vpop.f32.mrf.mxu0
      %v2290 = vadd.f32 0.0, %v2289
      %v2291 = vpop.f32.mrf.mxu0
      %v2292 = vadd.f32 0.0, %v2291
      %2293 = vmatmul.bf16.gmra.mxu0 %v2215
      %v2294 = vpop.f32.mrf.mxu0
      %v2295 = vadd.f32 0.0, %v2294
      %v2296 = vpop.f32.mrf.mxu0
      %v2297 = vadd.f32 0.0, %v2296
      %2298 = vmatmul.bf16.gmra.mxu0 %v2218
      %v2299 = vpop.f32.mrf.mxu0
      %v2300 = vadd.f32 0.0, %v2299
      %v2301 = vpop.f32.mrf.mxu0
      %v2302 = vadd.f32 0.0, %v2301
      %2303 = vmatmul.bf16.gmra.mxu0 %v2221
      %v2304 = vpop.f32.mrf.mxu0
      %v2305 = vadd.f32 0.0, %v2304
      %v2306 = vpop.f32.mrf.mxu0
      %v2307 = vadd.f32 0.0, %v2306
      %2308 = vmatmul.bf16.gmra.mxu0 %v2224
      %v2309 = vpop.f32.mrf.mxu0
      %v2310 = vadd.f32 0.0, %v2309
      %v2311 = vpop.f32.mrf.mxu0
      %v2312 = vadd.f32 0.0, %v2311
      %2313 = vmatmul.bf16.gmra.mxu0 %v2227
      %v2314 = vpop.f32.mrf.mxu0
      %v2315 = vadd.f32 0.0, %v2314
      %v2316 = vpop.f32.mrf.mxu0
      %v2317 = vadd.f32 0.0, %v2316
      %2318 = vmatmul.bf16.gmra.mxu0 %v2230
      %v2319 = vpop.f32.mrf.mxu0
      %v2320 = vadd.f32 0.0, %v2319
      %v2321 = vpop.f32.mrf.mxu0
      %v2322 = vadd.f32 0.0, %v2321
      %2323 = vmatmul.bf16.gmra.mxu0 %v2233
      %v2324 = vpop.f32.mrf.mxu0
      %v2325 = vadd.f32 0.0, %v2324
      %v2326 = vpop.f32.mrf.mxu0
      %v2327 = vadd.f32 0.0, %v2326
      %2328 = vmatmul.bf16.gmra.mxu0 %v2236
      %v2329 = vpop.f32.mrf.mxu0
      %v2330 = vadd.f32 0.0, %v2329
      %v2331 = vpop.f32.mrf.mxu0
      %v2332 = vadd.f32 0.0, %v2331
      %2333 = vmatmul.bf16.gmra.mxu0 %v2239
      %v2334 = vpop.f32.mrf.mxu0
      %v2335 = vadd.f32 0.0, %v2334
      %v2336 = vpop.f32.mrf.mxu0
      %v2337 = vadd.f32 0.0, %v2336
      %2338 = vmatmul.bf16.gmra.mxu0 %v2242
      %v2339 = vpop.f32.mrf.mxu0
      %v2340 = vadd.f32 0.0, %v2339
      %v2341 = vpop.f32.mrf.mxu0
      %v2342 = vadd.f32 0.0, %v2341
      %2343 = vmatmul.bf16.gmra.mxu0 %v2245
      %v2344 = vpop.f32.mrf.mxu0
      %v2345 = vadd.f32 0.0, %v2344
      %v2346 = vpop.f32.mrf.mxu0
      %v2347 = vadd.f32 0.0, %v2346
      %2348 = vmatmul.bf16.gmra.mxu0 %v2248
      %v2349 = vpop.f32.mrf.mxu0
      %v2350 = vadd.f32 0.0, %v2349
      %v2351 = vpop.f32.mrf.mxu0
      %v2352 = vadd.f32 0.0, %v2351
      %2353 = vmatmul.bf16.gmra.mxu0 %v2251
      %v2354 = vpop.f32.mrf.mxu0
      %v2355 = vadd.f32 0.0, %v2354
      %v2356 = vpop.f32.mrf.mxu0
      %v2357 = vadd.f32 0.0, %v2356
      %2358 = vmatmul.bf16.gmra.mxu0 %v2254
      %v2359 = vpop.f32.mrf.mxu0
      %v2360 = vadd.f32 0.0, %v2359
      %v2361 = vpop.f32.mrf.mxu0
      %v2362 = vadd.f32 0.0, %v2361
      %2363 = vmatmul.bf16.gmra.mxu0 %v2257
      %v2364 = vpop.f32.mrf.mxu0
      %v2365 = vadd.f32 0.0, %v2364
      %v2366 = vpop.f32.mrf.mxu0
      %v2367 = vadd.f32 0.0, %v2366
      %2368 = vmatmul.bf16.gmra.mxu0 %v2260
      %v2369 = vpop.f32.mrf.mxu0
      %v2370 = vadd.f32 0.0, %v2369
      %v2371 = vpop.f32.mrf.mxu0
      %v2372 = vadd.f32 0.0, %v2371
      %2373 = vmatmul.bf16.gmra.mxu0 %v2263
      %v2374 = vpop.f32.mrf.mxu0
      %v2375 = vadd.f32 0.0, %v2374
      %v2376 = vpop.f32.mrf.mxu0
      %v2377 = vadd.f32 0.0, %v2376
      %2378 = vmatmul.bf16.gmra.mxu0 %v2266
      %v2379 = vpop.f32.mrf.mxu0
      %v2380 = vadd.f32 0.0, %v2379
      %v2381 = vpop.f32.mrf.mxu0
      %v2382 = vadd.f32 0.0, %v2381
      %2383 = vmatmul.bf16.gmra.mxu0 %v2269
      %v2384 = vpop.f32.mrf.mxu0
      %v2385 = vadd.f32 0.0, %v2384
      %v2386 = vpop.f32.mrf.mxu0
      %v2387 = vadd.f32 0.0, %v2386
      %2388 = vmatmul.bf16.gmra.mxu0 %v2272
      %v2389 = vpop.f32.mrf.mxu0
      %v2390 = vadd.f32 0.0, %v2389
      %v2391 = vpop.f32.mrf.mxu0
      %v2392 = vadd.f32 0.0, %v2391
      %2393 = vmatmul.bf16.gmra.mxu0 %v2275
      %v2394 = vpop.f32.mrf.mxu0
      %v2395 = vadd.f32 0.0, %v2394
      %v2396 = vpop.f32.mrf.mxu0
      %v2397 = vadd.f32 0.0, %v2396
      %2398 = vmatmul.bf16.gmra.mxu0 %v2278
      %v2399 = vpop.f32.mrf.mxu0
      %v2400 = vadd.f32 0.0, %v2399
      %v2401 = vpop.f32.mrf.mxu0
      %2402 = vdwg.mxu0
      %v2403 = vadd.f32 %v2015, %v2290
      %v2404 = vadd.f32 %v2017, %v2292
      %v2405 = vadd.f32 %v2020, %v2295
      %v2406 = vadd.f32 %v2022, %v2297
      %v2407 = vadd.f32 %v2025, %v2300
      %v2408 = vadd.f32 %v2027, %v2302
      %v2409 = vadd.f32 %v2030, %v2305
      %v2410 = vadd.f32 %v2032, %v2307
      %v2411 = vadd.f32 %v2035, %v2310
      %v2412 = vadd.f32 %v2037, %v2312
      %v2413 = vadd.f32 %v2040, %v2315
      %v2414 = vadd.f32 %v2042, %v2317
      %v2415 = vadd.f32 %v2045, %v2320
      %v2416 = vadd.f32 %v2047, %v2322
      %v2417 = vadd.f32 %v2050, %v2325
      %v2418 = vadd.f32 %v2052, %v2327
      %v2419 = vadd.f32 %v2055, %v2330
      %v2420 = vadd.f32 %v2057, %v2332
      %v2421 = vadd.f32 %v2060, %v2335
      %v2422 = vadd.f32 %v2062, %v2337
      %v2423 = vadd.f32 %v2065, %v2340
      %v2424 = vadd.f32 %v2067, %v2342
      %v2425 = vadd.f32 %v2070, %v2345
      %v2426 = vadd.f32 %v2072, %v2347
      %v2427 = vadd.f32 %v2075, %v2350
      %v2428 = vadd.f32 %v2077, %v2352
      %v2429 = vadd.f32 %v2080, %v2355
      %v2430 = vadd.f32 %v2082, %v2357
      %v2431 = vadd.f32 %v2085, %v2360
      %v2432 = vadd.f32 %v2087, %v2362
      %v2433 = vadd.f32 %v2090, %v2365
      %v2434 = vadd.f32 %v2092, %v2367
      %v2435 = vadd.f32 %v2095, %v2370
      %v2436 = vadd.f32 %v2097, %v2372
      %v2437 = vadd.f32 %v2100, %v2375
      %v2438 = vadd.f32 %v2102, %v2377
      %v2439 = vadd.f32 %v2105, %v2380
      %v2440 = vadd.f32 %v2107, %v2382
      %v2441 = vadd.f32 %v2110, %v2385
      %v2442 = vadd.f32 %v2112, %v2387
      %v2443 = vadd.f32 %v2115, %v2390
      %v2444 = vadd.f32 %v2117, %v2392
      %v2445 = vadd.f32 %v2120, %v2395
      %v2446 = vadd.f32 %v2122, %v2397
      %v2447 = vadd.f32 %v2125, %v2400
      %v2448 = vld [vmem:[#allocation2 + $0x8] sm:$0xc]
      %v2449 = vld [vmem:[#allocation2 + $0xc] sm:$0xf]
      %v2450 = vld [vmem:[#allocation2 + $0x10] sm:$0xf]
      %v2451 = vld [vmem:[#allocation2 + $0x14] sm:$0xf]
      %v2452 = vld [vmem:[#allocation2 + $0x18] sm:$0xf]
      %v2453 = vld [vmem:[#allocation2 + $0x1c] sm:$0xf]
      %v2454 = vld [vmem:[#allocation2 + $0x20] sm:$0xf]
      %v2455 = vld [vmem:[#allocation2 + $0x24] sm:$0xf]
      %v2456 = vld [vmem:[#allocation2 + $0x28] sm:$0xf]
      %v2457 = vld [vmem:[#allocation2 + $0x2c] sm:$0xf]
      %v2458 = vld [vmem:[#allocation2 + $0x30] sm:$0xf]
      %v2459 = vld [vmem:[#allocation2 + $0x34] sm:$0xf]
      %v2460 = vld [vmem:[#allocation2 + $0x38] sm:$0xf]
      %v2461 = vld [vmem:[#allocation2 + $0x3c] sm:$0xf]
      %v2462 = vld [vmem:[#allocation2 + $0x40] sm:$0xf]
      %v2463 = vld [vmem:[#allocation2 + $0x44] sm:$0xf]
      %v2464 = vld [vmem:[#allocation2 + $0x48] sm:$0xf]
      %v2465 = vld [vmem:[#allocation2 + $0x4c] sm:$0xf]
      %v2466 = vld [vmem:[#allocation2 + $0x50] sm:$0xf]
      %v2467 = vld [vmem:[#allocation2 + $0x54] sm:$0xf]
      %v2468 = vld [vmem:[#allocation2 + $0x58] sm:$0xf]
      %v2469 = vld [vmem:[#allocation2 + $0x5c] sm:$0xf]
      %v2470 = vld [vmem:[#allocation2 + $0x60] sm:$0xf]
      %v2471 = vld [vmem:[#allocation2 + $0x64] sm:$0xf]
      %v2472 = vld [vmem:[#allocation2 + $0x68] sm:$0xf]
      %v2473 = vld [vmem:[#allocation2 + $0x6c] sm:$0xf]
      %v2474 = vld [vmem:[#allocation2 + $0x70] sm:$0xf]
      %v2475 = vld [vmem:[#allocation2 + $0x74] sm:$0xf]
      %v2476 = vld [vmem:[#allocation2 + $0x78] sm:$0xf]
      %v2477 = vld [vmem:[#allocation2 + $0x7c] sm:$0xf]
      %v2478 = vld [vmem:[#allocation2 + $0x80] sm:$0xf]
      %v2479 = vld [vmem:[#allocation2 + $0x84] sm:$0xf]
      %v2480 = vld [vmem:[#allocation2 + $0x88] sm:$0xf]
      %v2481 = vld [vmem:[#allocation2 + $0x8c] sm:$0xf]
      %v2482 = vld [vmem:[#allocation2 + $0x90] sm:$0xf]
      %v2483 = vld [vmem:[#allocation2 + $0x94] sm:$0xf]
      %v2484 = vld [vmem:[#allocation2 + $0x98] sm:$0xf]
      %v2485 = vld [vmem:[#allocation2 + $0x9c] sm:$0xf]
      %v2486 = vld [vmem:[#allocation2 + $0xa0] sm:$0xf]
      %v2487 = vld [vmem:[#allocation2 + $0xa4] sm:$0xf]
      %v2488 = vld [vmem:[#allocation2 + $0xa8] sm:$0xf]
      %v2489 = vld [vmem:[#allocation2 + $0xac] sm:$0xf]
      %v2490 = vld [vmem:[#allocation2 + $0xb0] sm:$0xf]
      %v2491 = vld [vmem:[#allocation2 + $0xb4] sm:$0xf]
      %v2492 = vld [vmem:[#allocation2 + $0xb8] sm:$0xf]
      %v2493 = vld [vmem:[#allocation2 + $0xbc] sm:$0x3]
      %s2494 = scalar_lea.vmem %s3, 96
      %v2495 = vld [vmem:[%s2494] sm:$0xf]
      %v2496 = vld [vmem:[%s2494 + $0x4] sm:$0xf]
      %v2497 = vld [vmem:[%s2494 + $0x8] sm:$0xf]
      %v2498 = vld [vmem:[%s2494 + $0xc] sm:$0xf]
      %v2499 = vld [vmem:[%s2494 + $0x10] sm:$0xf]
      %v2500 = vld [vmem:[%s2494 + $0x14] sm:$0xf]
      %v2501 = vld [vmem:[%s2494 + $0x18] sm:$0xf]
      %v2502 = vld [vmem:[%s2494 + $0x1c] sm:$0xf]
      %v2549 = vunpack.c.l.b16 %v2448
      %v2550 = vunpack.c.l.b16 %v2449
      %v2551 = vunpack.c.l.b16 %v2450
      %v2552 = vunpack.c.l.b16 %v2451
      %v2553 = vunpack.c.l.b16 %v2452
      %v2554 = vunpack.c.l.b16 %v2453
      %v2555 = vunpack.c.l.b16 %v2454
      %v2556 = vunpack.c.l.b16 %v2455
      %v2557 = vunpack.c.l.b16 %v2456
      %v2558 = vunpack.c.l.b16 %v2457
      %v2559 = vunpack.c.l.b16 %v2458
      %v2560 = vunpack.c.l.b16 %v2459
      %v2561 = vunpack.c.l.b16 %v2460
      %v2562 = vunpack.c.l.b16 %v2461
      %v2563 = vunpack.c.l.b16 %v2462
      %v2564 = vunpack.c.l.b16 %v2463
      %v2565 = vunpack.c.l.b16 %v2464
      %v2566 = vunpack.c.l.b16 %v2465
      %v2567 = vunpack.c.l.b16 %v2466
      %v2568 = vunpack.c.l.b16 %v2467
      %v2569 = vunpack.c.l.b16 %v2468
      %v2570 = vunpack.c.l.b16 %v2469
      %v2571 = vunpack.c.l.b16 %v2470
      %v2572 = vunpack.c.l.b16 %v2471
      %v2573 = vunpack.c.l.b16 %v2472
      %v2574 = vunpack.c.l.b16 %v2473
      %v2575 = vunpack.c.l.b16 %v2474
      %v2576 = vunpack.c.l.b16 %v2475
      %v2577 = vunpack.c.l.b16 %v2476
      %v2578 = vunpack.c.l.b16 %v2477
      %v2579 = vunpack.c.l.b16 %v2478
      %v2580 = vunpack.c.l.b16 %v2479
      %v2581 = vunpack.c.l.b16 %v2480
      %v2582 = vunpack.c.l.b16 %v2481
      %v2583 = vunpack.c.l.b16 %v2482
      %v2584 = vunpack.c.l.b16 %v2483
      %v2585 = vunpack.c.l.b16 %v2484
      %v2586 = vunpack.c.l.b16 %v2485
      %v2587 = vunpack.c.l.b16 %v2486
      %v2588 = vunpack.c.l.b16 %v2487
      %v2589 = vunpack.c.l.b16 %v2488
      %v2590 = vunpack.c.l.b16 %v2489
      %v2591 = vunpack.c.l.b16 %v2490
      %v2592 = vunpack.c.l.b16 %v2491
      %v2593 = vunpack.c.l.b16 %v2492
      %v2594 = vunpack.c.l.b16 %v2493
      %v2595 = vpack.c.b16 %v2550, %v2549
      %v2596 = vpack.c.b16 %v2552, %v2551
      %v2597 = vpack.c.b16 %v2554, %v2553
      %v2598 = vpack.c.b16 %v2556, %v2555
      %v2599 = vpack.c.b16 %v2558, %v2557
      %v2600 = vpack.c.b16 %v2560, %v2559
      %v2601 = vpack.c.b16 %v2562, %v2561
      %v2602 = vpack.c.b16 %v2564, %v2563
      %v2603 = vpack.c.b16 %v2566, %v2565
      %v2604 = vpack.c.b16 %v2568, %v2567
      %v2605 = vpack.c.b16 %v2570, %v2569
      %v2606 = vpack.c.b16 %v2572, %v2571
      %v2607 = vpack.c.b16 %v2574, %v2573
      %v2608 = vpack.c.b16 %v2576, %v2575
      %v2609 = vpack.c.b16 %v2578, %v2577
      %v2610 = vpack.c.b16 %v2580, %v2579
      %v2611 = vpack.c.b16 %v2582, %v2581
      %v2612 = vpack.c.b16 %v2584, %v2583
      %v2613 = vpack.c.b16 %v2586, %v2585
      %v2614 = vpack.c.b16 %v2588, %v2587
      %v2615 = vpack.c.b16 %v2590, %v2589
      %v2616 = vpack.c.b16 %v2592, %v2591
      %v2617 = vpack.c.b16 %v2594, %v2593
      %vm2618 = vcmask 1045504
      %v2619 = vrot.slane %v2595, 2
      %v2620 = vrot.slane %v2596, 2
      %v2621 = vsel %vm2618, %v2619, %v2620
      %v2622 = vrot.slane %v2597, 2
      %v2623 = vsel %vm2618, %v2620, %v2622
      %v2624 = vrot.slane %v2598, 2
      %v2625 = vsel %vm2618, %v2622, %v2624
      %v2626 = vrot.slane %v2599, 2
      %v2627 = vsel %vm2618, %v2624, %v2626
      %v2628 = vrot.slane %v2600, 2
      %v2629 = vsel %vm2618, %v2626, %v2628
      %v2630 = vrot.slane %v2601, 2
      %v2631 = vsel %vm2618, %v2628, %v2630
      %v2632 = vrot.slane %v2602, 2
      %v2633 = vsel %vm2618, %v2630, %v2632
      %v2634 = vrot.slane %v2603, 2
      %v2635 = vsel %vm2618, %v2632, %v2634
      %v2636 = vrot.slane %v2604, 2
      %v2637 = vsel %vm2618, %v2634, %v2636
      %v2638 = vrot.slane %v2605, 2
      %v2639 = vsel %vm2618, %v2636, %v2638
      %v2640 = vrot.slane %v2606, 2
      %v2641 = vsel %vm2618, %v2638, %v2640
      %v2642 = vrot.slane %v2607, 2
      %v2643 = vsel %vm2618, %v2640, %v2642
      %v2644 = vrot.slane %v2608, 2
      %v2645 = vsel %vm2618, %v2642, %v2644
      %v2646 = vrot.slane %v2609, 2
      %v2647 = vsel %vm2618, %v2644, %v2646
      %v2648 = vrot.slane %v2610, 2
      %v2649 = vsel %vm2618, %v2646, %v2648
      %v2650 = vrot.slane %v2611, 2
      %v2651 = vsel %vm2618, %v2648, %v2650
      %v2652 = vrot.slane %v2612, 2
      %v2653 = vsel %vm2618, %v2650, %v2652
      %v2654 = vrot.slane %v2613, 2
      %v2655 = vsel %vm2618, %v2652, %v2654
      %v2656 = vrot.slane %v2614, 2
      %v2657 = vsel %vm2618, %v2654, %v2656
      %v2658 = vrot.slane %v2615, 2
      %v2659 = vsel %vm2618, %v2656, %v2658
      %v2660 = vrot.slane %v2616, 2
      %v2661 = vsel %vm2618, %v2658, %v2660
      %v2662 = vrot.slane %v2617, 2
      %v2663 = vsel %vm2618, %v2660, %v2662
      %v2672 = vunpack.c.l.b16 %v2495
      %v2673 = vunpack.c.l.b16 %v2496
      %v2674 = vunpack.c.l.b16 %v2497
      %v2675 = vunpack.c.l.b16 %v2498
      %v2676 = vunpack.c.l.b16 %v2499
      %v2677 = vunpack.c.l.b16 %v2500
      %v2678 = vunpack.c.l.b16 %v2501
      %v2679 = vunpack.c.l.b16 %v2502
      %v2680 = vpack.c.b16 %v2673, %v2672
      %v2681 = vpack.c.b16 %v2675, %v2674
      %v2682 = vpack.c.b16 %v2677, %v2676
      %v2683 = vpack.c.b16 %v2679, %v2678
      %v2689 = vsel %vm1740, %v2621, 0
      %v2692 = vsel %vm1740, %v2623, 0
      %v2695 = vsel %vm1740, %v2625, 0
      %v2698 = vsel %vm1740, %v2627, 0
      %v2701 = vsel %vm1740, %v2629, 0
      %v2704 = vsel %vm1740, %v2631, 0
      %v2707 = vsel %vm1740, %v2633, 0
      %v2710 = vsel %vm1740, %v2635, 0
      %v2713 = vsel %vm1740, %v2637, 0
      %v2716 = vsel %vm1740, %v2639, 0
      %v2719 = vsel %vm1740, %v2641, 0
      %v2722 = vsel %vm1740, %v2643, 0
      %v2725 = vsel %vm1740, %v2645, 0
      %v2728 = vsel %vm1740, %v2647, 0
      %v2731 = vsel %vm1740, %v2649, 0
      %v2734 = vsel %vm1740, %v2651, 0
      %v2737 = vsel %vm1740, %v2653, 0
      %v2740 = vsel %vm1740, %v2655, 0
      %v2743 = vsel %vm1740, %v2657, 0
      %v2746 = vsel %vm1740, %v2659, 0
      %v2749 = vsel %vm1740, %v2661, 0
      %v2752 = vsel %vm1740, %v2663, 0
      %v2755 = vsel %vm1740, %v2662, 0
      %2757 = vmatpush.bf16.msra.mxu0 0
      %2758 = vmatpush.bf16.msra.mxu0 0
      %2759 = vmatpush.bf16.msra.mxu0 0
      %2760 = vmatpush.bf16.msra.mxu0 0
      %2761 = vmatpush.bf16.msra.mxu0 %v2683
      %2762 = vmatpush.bf16.msra.mxu0 %v2682
      %2763 = vmatpush.bf16.msra.mxu0 %v2681
      %2764 = vmatpush.bf16.msra.mxu0 %v2680
      %2765 = vmatmul.bf16.gmra.mxu0 %v2689
      %v2766 = vpop.f32.mrf.mxu0
      %v2767 = vadd.f32 0.0, %v2766
      %v2768 = vpop.f32.mrf.mxu0
      %v2769 = vadd.f32 0.0, %v2768
      %2770 = vmatmul.bf16.gmra.mxu0 %v2692
      %v2771 = vpop.f32.mrf.mxu0
      %v2772 = vadd.f32 0.0, %v2771
      %v2773 = vpop.f32.mrf.mxu0
      %v2774 = vadd.f32 0.0, %v2773
      %2775 = vmatmul.bf16.gmra.mxu0 %v2695
      %v2776 = vpop.f32.mrf.mxu0
      %v2777 = vadd.f32 0.0, %v2776
      %v2778 = vpop.f32.mrf.mxu0
      %v2779 = vadd.f32 0.0, %v2778
      %2780 = vmatmul.bf16.gmra.mxu0 %v2698
      %v2781 = vpop.f32.mrf.mxu0
      %v2782 = vadd.f32 0.0, %v2781
      %v2783 = vpop.f32.mrf.mxu0
      %v2784 = vadd.f32 0.0, %v2783
      %2785 = vmatmul.bf16.gmra.mxu0 %v2701
      %v2786 = vpop.f32.mrf.mxu0
      %v2787 = vadd.f32 0.0, %v2786
      %v2788 = vpop.f32.mrf.mxu0
      %v2789 = vadd.f32 0.0, %v2788
      %2790 = vmatmul.bf16.gmra.mxu0 %v2704
      %v2791 = vpop.f32.mrf.mxu0
      %v2792 = vadd.f32 0.0, %v2791
      %v2793 = vpop.f32.mrf.mxu0
      %v2794 = vadd.f32 0.0, %v2793
      %2795 = vmatmul.bf16.gmra.mxu0 %v2707
      %v2796 = vpop.f32.mrf.mxu0
      %v2797 = vadd.f32 0.0, %v2796
      %v2798 = vpop.f32.mrf.mxu0
      %v2799 = vadd.f32 0.0, %v2798
      %2800 = vmatmul.bf16.gmra.mxu0 %v2710
      %v2801 = vpop.f32.mrf.mxu0
      %v2802 = vadd.f32 0.0, %v2801
      %v2803 = vpop.f32.mrf.mxu0
      %v2804 = vadd.f32 0.0, %v2803
      %2805 = vmatmul.bf16.gmra.mxu0 %v2713
      %v2806 = vpop.f32.mrf.mxu0
      %v2807 = vadd.f32 0.0, %v2806
      %v2808 = vpop.f32.mrf.mxu0
      %v2809 = vadd.f32 0.0, %v2808
      %2810 = vmatmul.bf16.gmra.mxu0 %v2716
      %v2811 = vpop.f32.mrf.mxu0
      %v2812 = vadd.f32 0.0, %v2811
      %v2813 = vpop.f32.mrf.mxu0
      %v2814 = vadd.f32 0.0, %v2813
      %2815 = vmatmul.bf16.gmra.mxu0 %v2719
      %v2816 = vpop.f32.mrf.mxu0
      %v2817 = vadd.f32 0.0, %v2816
      %v2818 = vpop.f32.mrf.mxu0
      %v2819 = vadd.f32 0.0, %v2818
      %2820 = vmatmul.bf16.gmra.mxu0 %v2722
      %v2821 = vpop.f32.mrf.mxu0
      %v2822 = vadd.f32 0.0, %v2821
      %v2823 = vpop.f32.mrf.mxu0
      %v2824 = vadd.f32 0.0, %v2823
      %2825 = vmatmul.bf16.gmra.mxu0 %v2725
      %v2826 = vpop.f32.mrf.mxu0
      %v2827 = vadd.f32 0.0, %v2826
      %v2828 = vpop.f32.mrf.mxu0
      %v2829 = vadd.f32 0.0, %v2828
      %2830 = vmatmul.bf16.gmra.mxu0 %v2728
      %v2831 = vpop.f32.mrf.mxu0
      %v2832 = vadd.f32 0.0, %v2831
      %v2833 = vpop.f32.mrf.mxu0
      %v2834 = vadd.f32 0.0, %v2833
      %2835 = vmatmul.bf16.gmra.mxu0 %v2731
      %v2836 = vpop.f32.mrf.mxu0
      %v2837 = vadd.f32 0.0, %v2836
      %v2838 = vpop.f32.mrf.mxu0
      %v2839 = vadd.f32 0.0, %v2838
      %2840 = vmatmul.bf16.gmra.mxu0 %v2734
      %v2841 = vpop.f32.mrf.mxu0
      %v2842 = vadd.f32 0.0, %v2841
      %v2843 = vpop.f32.mrf.mxu0
      %v2844 = vadd.f32 0.0, %v2843
      %2845 = vmatmul.bf16.gmra.mxu0 %v2737
      %v2846 = vpop.f32.mrf.mxu0
      %v2847 = vadd.f32 0.0, %v2846
      %v2848 = vpop.f32.mrf.mxu0
      %v2849 = vadd.f32 0.0, %v2848
      %2850 = vmatmul.bf16.gmra.mxu0 %v2740
      %v2851 = vpop.f32.mrf.mxu0
      %v2852 = vadd.f32 0.0, %v2851
      %v2853 = vpop.f32.mrf.mxu0
      %v2854 = vadd.f32 0.0, %v2853
      %2855 = vmatmul.bf16.gmra.mxu0 %v2743
      %v2856 = vpop.f32.mrf.mxu0
      %v2857 = vadd.f32 0.0, %v2856
      %v2858 = vpop.f32.mrf.mxu0
      %v2859 = vadd.f32 0.0, %v2858
      %2860 = vmatmul.bf16.gmra.mxu0 %v2746
      %v2861 = vpop.f32.mrf.mxu0
      %v2862 = vadd.f32 0.0, %v2861
      %v2863 = vpop.f32.mrf.mxu0
      %v2864 = vadd.f32 0.0, %v2863
      %2865 = vmatmul.bf16.gmra.mxu0 %v2749
      %v2866 = vpop.f32.mrf.mxu0
      %v2867 = vadd.f32 0.0, %v2866
      %v2868 = vpop.f32.mrf.mxu0
      %v2869 = vadd.f32 0.0, %v2868
      %2870 = vmatmul.bf16.gmra.mxu0 %v2752
      %v2871 = vpop.f32.mrf.mxu0
      %v2872 = vadd.f32 0.0, %v2871
      %v2873 = vpop.f32.mrf.mxu0
      %v2874 = vadd.f32 0.0, %v2873
      %2875 = vmatmul.bf16.gmra.mxu0 %v2755
      %v2876 = vpop.f32.mrf.mxu0
      %v2877 = vadd.f32 0.0, %v2876
      %v2878 = vpop.f32.mrf.mxu0
      %2879 = vdwg.mxu0
      %v2880 = vadd.f32 %v2403, %v2767
      %v2881 = vadd.f32 %v2404, %v2769
      %v2882 = vadd.f32 %v2405, %v2772
      %v2883 = vadd.f32 %v2406, %v2774
      %v2884 = vadd.f32 %v2407, %v2777
      %v2885 = vadd.f32 %v2408, %v2779
      %v2886 = vadd.f32 %v2409, %v2782
      %v2887 = vadd.f32 %v2410, %v2784
      %v2888 = vadd.f32 %v2411, %v2787
      %v2889 = vadd.f32 %v2412, %v2789
      %v2890 = vadd.f32 %v2413, %v2792
      %v2891 = vadd.f32 %v2414, %v2794
      %v2892 = vadd.f32 %v2415, %v2797
      %v2893 = vadd.f32 %v2416, %v2799
      %v2894 = vadd.f32 %v2417, %v2802
      %v2895 = vadd.f32 %v2418, %v2804
      %v2896 = vadd.f32 %v2419, %v2807
      %v2897 = vadd.f32 %v2420, %v2809
      %v2898 = vadd.f32 %v2421, %v2812
      %v2899 = vadd.f32 %v2422, %v2814
      %v2900 = vadd.f32 %v2423, %v2817
      %v2901 = vadd.f32 %v2424, %v2819
      %v2902 = vadd.f32 %v2425, %v2822
      %v2903 = vadd.f32 %v2426, %v2824
      %v2904 = vadd.f32 %v2427, %v2827
      %v2905 = vadd.f32 %v2428, %v2829
      %v2906 = vadd.f32 %v2429, %v2832
      %v2907 = vadd.f32 %v2430, %v2834
      %v2908 = vadd.f32 %v2431, %v2837
      %v2909 = vadd.f32 %v2432, %v2839
      %v2910 = vadd.f32 %v2433, %v2842
      %v2911 = vadd.f32 %v2434, %v2844
      %v2912 = vadd.f32 %v2435, %v2847
      %v2913 = vadd.f32 %v2436, %v2849
      %v2914 = vadd.f32 %v2437, %v2852
      %v2915 = vadd.f32 %v2438, %v2854
      %v2916 = vadd.f32 %v2439, %v2857
      %v2917 = vadd.f32 %v2440, %v2859
      %v2918 = vadd.f32 %v2441, %v2862
      %v2919 = vadd.f32 %v2442, %v2864
      %v2920 = vadd.f32 %v2443, %v2867
      %v2921 = vadd.f32 %v2444, %v2869
      %v2922 = vadd.f32 %v2445, %v2872
      %v2923 = vadd.f32 %v2446, %v2874
      %v2924 = vadd.f32 %v2447, %v2877
      %v2925 = vld [vmem:[#allocation2 + $0xbc] sm:$0x7]
      %s2926 = scalar_lea.vmem %s3, 128
      %v2927 = vld [vmem:[%s2926] sm:$0xf]
      %v2928 = vld [vmem:[%s2926 + $0x4] sm:$0xf]
      %v2929 = vld [vmem:[%s2926 + $0x8] sm:$0xf]
      %v2930 = vld [vmem:[%s2926 + $0xc] sm:$0xf]
      %v2931 = vld [vmem:[%s2926 + $0x10] sm:$0xf]
      %v2932 = vld [vmem:[%s2926 + $0x14] sm:$0xf]
      %v2933 = vld [vmem:[%s2926 + $0x18] sm:$0xf]
      %v2934 = vld [vmem:[%s2926 + $0x1c] sm:$0xf]
      %v2936 = vunpack.c.l.b16 %v2925
      %v2937 = vpack.c.b16 %v2936, %v2593
      %vm2938 = vsmask.f32 5376
      %v2940 = vshrl.u32 %v2595, 16
      %v2942 = vrot.slane %v2940, 2
      %v2943 = vshll.u32 %v2595, 16
      %v2945 = vrot.slane %v2943, 3
      %v2946 = vor.u32 %v2942, %v2945
      %v2948 = vshrl.u32 %v2596, 16
      %v2950 = vrot.slane %v2948, 2
      %v2951 = vshll.u32 %v2596, 16
      %v2953 = vrot.slane %v2951, 3
      %v2954 = vor.u32 %v2950, %v2953
      %v2955 = vsel %vm2938, %v2946, %v2954
      %v2957 = vshrl.u32 %v2597, 16
      %v2959 = vrot.slane %v2957, 2
      %v2960 = vshll.u32 %v2597, 16
      %v2962 = vrot.slane %v2960, 3
      %v2963 = vor.u32 %v2959, %v2962
      %v2964 = vsel %vm2938, %v2954, %v2963
      %v2966 = vshrl.u32 %v2598, 16
      %v2968 = vrot.slane %v2966, 2
      %v2969 = vshll.u32 %v2598, 16
      %v2971 = vrot.slane %v2969, 3
      %v2972 = vor.u32 %v2968, %v2971
      %v2973 = vsel %vm2938, %v2963, %v2972
      %v2975 = vshrl.u32 %v2599, 16
      %v2977 = vrot.slane %v2975, 2
      %v2978 = vshll.u32 %v2599, 16
      %v2980 = vrot.slane %v2978, 3
      %v2981 = vor.u32 %v2977, %v2980
      %v2982 = vsel %vm2938, %v2972, %v2981
      %v2984 = vshrl.u32 %v2600, 16
      %v2986 = vrot.slane %v2984, 2
      %v2987 = vshll.u32 %v2600, 16
      %v2989 = vrot.slane %v2987, 3
      %v2990 = vor.u32 %v2986, %v2989
      %v2991 = vsel %vm2938, %v2981, %v2990
      %v2993 = vshrl.u32 %v2601, 16
      %v2995 = vrot.slane %v2993, 2
      %v2996 = vshll.u32 %v2601, 16
      %v2998 = vrot.slane %v2996, 3
      %v2999 = vor.u32 %v2995, %v2998
      %v3000 = vsel %vm2938, %v2990, %v2999
      %v3002 = vshrl.u32 %v2602, 16
      %v3004 = vrot.slane %v3002, 2
      %v3005 = vshll.u32 %v2602, 16
      %v3007 = vrot.slane %v3005, 3
      %v3008 = vor.u32 %v3004, %v3007
      %v3009 = vsel %vm2938, %v2999, %v3008
      %v3011 = vshrl.u32 %v2603, 16
      %v3013 = vrot.slane %v3011, 2
      %v3014 = vshll.u32 %v2603, 16
      %v3016 = vrot.slane %v3014, 3
      %v3017 = vor.u32 %v3013, %v3016
      %v3018 = vsel %vm2938, %v3008, %v3017
      %v3020 = vshrl.u32 %v2604, 16
      %v3022 = vrot.slane %v3020, 2
      %v3023 = vshll.u32 %v2604, 16
      %v3025 = vrot.slane %v3023, 3
      %v3026 = vor.u32 %v3022, %v3025
      %v3027 = vsel %vm2938, %v3017, %v3026
      %v3029 = vshrl.u32 %v2605, 16
      %v3031 = vrot.slane %v3029, 2
      %v3032 = vshll.u32 %v2605, 16
      %v3034 = vrot.slane %v3032, 3
      %v3035 = vor.u32 %v3031, %v3034
      %v3036 = vsel %vm2938, %v3026, %v3035
      %v3038 = vshrl.u32 %v2606, 16
      %v3040 = vrot.slane %v3038, 2
      %v3041 = vshll.u32 %v2606, 16
      %v3043 = vrot.slane %v3041, 3
      %v3044 = vor.u32 %v3040, %v3043
      %v3045 = vsel %vm2938, %v3035, %v3044
      %v3047 = vshrl.u32 %v2607, 16
      %v3049 = vrot.slane %v3047, 2
      %v3050 = vshll.u32 %v2607, 16
      %v3052 = vrot.slane %v3050, 3
      %v3053 = vor.u32 %v3049, %v3052
      %v3054 = vsel %vm2938, %v3044, %v3053
      %v3056 = vshrl.u32 %v2608, 16
      %v3058 = vrot.slane %v3056, 2
      %v3059 = vshll.u32 %v2608, 16
      %v3061 = vrot.slane %v3059, 3
      %v3062 = vor.u32 %v3058, %v3061
      %v3063 = vsel %vm2938, %v3053, %v3062
      %v3065 = vshrl.u32 %v2609, 16
      %v3067 = vrot.slane %v3065, 2
      %v3068 = vshll.u32 %v2609, 16
      %v3070 = vrot.slane %v3068, 3
      %v3071 = vor.u32 %v3067, %v3070
      %v3072 = vsel %vm2938, %v3062, %v3071
      %v3074 = vshrl.u32 %v2610, 16
      %v3076 = vrot.slane %v3074, 2
      %v3077 = vshll.u32 %v2610, 16
      %v3079 = vrot.slane %v3077, 3
      %v3080 = vor.u32 %v3076, %v3079
      %v3081 = vsel %vm2938, %v3071, %v3080
      %v3083 = vshrl.u32 %v2611, 16
      %v3085 = vrot.slane %v3083, 2
      %v3086 = vshll.u32 %v2611, 16
      %v3088 = vrot.slane %v3086, 3
      %v3089 = vor.u32 %v3085, %v3088
      %v3090 = vsel %vm2938, %v3080, %v3089
      %v3092 = vshrl.u32 %v2612, 16
      %v3094 = vrot.slane %v3092, 2
      %v3095 = vshll.u32 %v2612, 16
      %v3097 = vrot.slane %v3095, 3
      %v3098 = vor.u32 %v3094, %v3097
      %v3099 = vsel %vm2938, %v3089, %v3098
      %v3101 = vshrl.u32 %v2613, 16
      %v3103 = vrot.slane %v3101, 2
      %v3104 = vshll.u32 %v2613, 16
      %v3106 = vrot.slane %v3104, 3
      %v3107 = vor.u32 %v3103, %v3106
      %v3108 = vsel %vm2938, %v3098, %v3107
      %v3110 = vshrl.u32 %v2614, 16
      %v3112 = vrot.slane %v3110, 2
      %v3113 = vshll.u32 %v2614, 16
      %v3115 = vrot.slane %v3113, 3
      %v3116 = vor.u32 %v3112, %v3115
      %v3117 = vsel %vm2938, %v3107, %v3116
      %v3119 = vshrl.u32 %v2615, 16
      %v3121 = vrot.slane %v3119, 2
      %v3122 = vshll.u32 %v2615, 16
      %v3124 = vrot.slane %v3122, 3
      %v3125 = vor.u32 %v3121, %v3124
      %v3126 = vsel %vm2938, %v3116, %v3125
      %v3128 = vshrl.u32 %v2616, 16
      %v3130 = vrot.slane %v3128, 2
      %v3131 = vshll.u32 %v2616, 16
      %v3133 = vrot.slane %v3131, 3
      %v3134 = vor.u32 %v3130, %v3133
      %v3135 = vsel %vm2938, %v3125, %v3134
      %v3137 = vshrl.u32 %v2937, 16
      %v3139 = vrot.slane %v3137, 2
      %v3140 = vshll.u32 %v2937, 16
      %v3142 = vrot.slane %v3140, 3
      %v3143 = vor.u32 %v3139, %v3142
      %v3144 = vsel %vm2938, %v3134, %v3143
      %v3153 = vunpack.c.l.b16 %v2927
      %v3154 = vunpack.c.l.b16 %v2928
      %v3155 = vunpack.c.l.b16 %v2929
      %v3156 = vunpack.c.l.b16 %v2930
      %v3157 = vunpack.c.l.b16 %v2931
      %v3158 = vunpack.c.l.b16 %v2932
      %v3159 = vunpack.c.l.b16 %v2933
      %v3160 = vunpack.c.l.b16 %v2934
      %v3161 = vpack.c.b16 %v3154, %v3153
      %v3162 = vpack.c.b16 %v3156, %v3155
      %v3163 = vpack.c.b16 %v3158, %v3157
      %v3164 = vpack.c.b16 %v3160, %v3159
      %v3170 = vsel %vm1740, %v2955, 0
      %v3173 = vsel %vm1740, %v2964, 0
      %v3176 = vsel %vm1740, %v2973, 0
      %v3179 = vsel %vm1740, %v2982, 0
      %v3182 = vsel %vm1740, %v2991, 0
      %v3185 = vsel %vm1740, %v3000, 0
      %v3188 = vsel %vm1740, %v3009, 0
      %v3191 = vsel %vm1740, %v3018, 0
      %v3194 = vsel %vm1740, %v3027, 0
      %v3197 = vsel %vm1740, %v3036, 0
      %v3200 = vsel %vm1740, %v3045, 0
      %v3203 = vsel %vm1740, %v3054, 0
      %v3206 = vsel %vm1740, %v3063, 0
      %v3209 = vsel %vm1740, %v3072, 0
      %v3212 = vsel %vm1740, %v3081, 0
      %v3215 = vsel %vm1740, %v3090, 0
      %v3218 = vsel %vm1740, %v3099, 0
      %v3221 = vsel %vm1740, %v3108, 0
      %v3224 = vsel %vm1740, %v3117, 0
      %v3227 = vsel %vm1740, %v3126, 0
      %v3230 = vsel %vm1740, %v3135, 0
      %v3233 = vsel %vm1740, %v3144, 0
      %v3236 = vsel %vm1740, %v3143, 0
      %3238 = vmatpush.bf16.msra.mxu0 0
      %3239 = vmatpush.bf16.msra.mxu0 0
      %3240 = vmatpush.bf16.msra.mxu0 0
      %3241 = vmatpush.bf16.msra.mxu0 0
      %3242 = vmatpush.bf16.msra.mxu0 %v3164
      %3243 = vmatpush.bf16.msra.mxu0 %v3163
      %3244 = vmatpush.bf16.msra.mxu0 %v3162
      %3245 = vmatpush.bf16.msra.mxu0 %v3161
      %3246 = vmatmul.bf16.gmra.mxu0 %v3170
      %v3247 = vpop.f32.mrf.mxu0
      %v3248 = vadd.f32 0.0, %v3247
      %v3249 = vpop.f32.mrf.mxu0
      %v3250 = vadd.f32 0.0, %v3249
      %3251 = vmatmul.bf16.gmra.mxu0 %v3173
      %v3252 = vpop.f32.mrf.mxu0
      %v3253 = vadd.f32 0.0, %v3252
      %v3254 = vpop.f32.mrf.mxu0
      %v3255 = vadd.f32 0.0, %v3254
      %3256 = vmatmul.bf16.gmra.mxu0 %v3176
      %v3257 = vpop.f32.mrf.mxu0
      %v3258 = vadd.f32 0.0, %v3257
      %v3259 = vpop.f32.mrf.mxu0
      %v3260 = vadd.f32 0.0, %v3259
      %3261 = vmatmul.bf16.gmra.mxu0 %v3179
      %v3262 = vpop.f32.mrf.mxu0
      %v3263 = vadd.f32 0.0, %v3262
      %v3264 = vpop.f32.mrf.mxu0
      %v3265 = vadd.f32 0.0, %v3264
      %3266 = vmatmul.bf16.gmra.mxu0 %v3182
      %v3267 = vpop.f32.mrf.mxu0
      %v3268 = vadd.f32 0.0, %v3267
      %v3269 = vpop.f32.mrf.mxu0
      %v3270 = vadd.f32 0.0, %v3269
      %3271 = vmatmul.bf16.gmra.mxu0 %v3185
      %v3272 = vpop.f32.mrf.mxu0
      %v3273 = vadd.f32 0.0, %v3272
      %v3274 = vpop.f32.mrf.mxu0
      %v3275 = vadd.f32 0.0, %v3274
      %3276 = vmatmul.bf16.gmra.mxu0 %v3188
      %v3277 = vpop.f32.mrf.mxu0
      %v3278 = vadd.f32 0.0, %v3277
      %v3279 = vpop.f32.mrf.mxu0
      %v3280 = vadd.f32 0.0, %v3279
      %3281 = vmatmul.bf16.gmra.mxu0 %v3191
      %v3282 = vpop.f32.mrf.mxu0
      %v3283 = vadd.f32 0.0, %v3282
      %v3284 = vpop.f32.mrf.mxu0
      %v3285 = vadd.f32 0.0, %v3284
      %3286 = vmatmul.bf16.gmra.mxu0 %v3194
      %v3287 = vpop.f32.mrf.mxu0
      %v3288 = vadd.f32 0.0, %v3287
      %v3289 = vpop.f32.mrf.mxu0
      %v3290 = vadd.f32 0.0, %v3289
      %3291 = vmatmul.bf16.gmra.mxu0 %v3197
      %v3292 = vpop.f32.mrf.mxu0
      %v3293 = vadd.f32 0.0, %v3292
      %v3294 = vpop.f32.mrf.mxu0
      %v3295 = vadd.f32 0.0, %v3294
      %3296 = vmatmul.bf16.gmra.mxu0 %v3200
      %v3297 = vpop.f32.mrf.mxu0
      %v3298 = vadd.f32 0.0, %v3297
      %v3299 = vpop.f32.mrf.mxu0
      %v3300 = vadd.f32 0.0, %v3299
      %3301 = vmatmul.bf16.gmra.mxu0 %v3203
      %v3302 = vpop.f32.mrf.mxu0
      %v3303 = vadd.f32 0.0, %v3302
      %v3304 = vpop.f32.mrf.mxu0
      %v3305 = vadd.f32 0.0, %v3304
      %3306 = vmatmul.bf16.gmra.mxu0 %v3206
      %v3307 = vpop.f32.mrf.mxu0
      %v3308 = vadd.f32 0.0, %v3307
      %v3309 = vpop.f32.mrf.mxu0
      %v3310 = vadd.f32 0.0, %v3309
      %3311 = vmatmul.bf16.gmra.mxu0 %v3209
      %v3312 = vpop.f32.mrf.mxu0
      %v3313 = vadd.f32 0.0, %v3312
      %v3314 = vpop.f32.mrf.mxu0
      %v3315 = vadd.f32 0.0, %v3314
      %3316 = vmatmul.bf16.gmra.mxu0 %v3212
      %v3317 = vpop.f32.mrf.mxu0
      %v3318 = vadd.f32 0.0, %v3317
      %v3319 = vpop.f32.mrf.mxu0
      %v3320 = vadd.f32 0.0, %v3319
      %3321 = vmatmul.bf16.gmra.mxu0 %v3215
      %v3322 = vpop.f32.mrf.mxu0
      %v3323 = vadd.f32 0.0, %v3322
      %v3324 = vpop.f32.mrf.mxu0
      %v3325 = vadd.f32 0.0, %v3324
      %3326 = vmatmul.bf16.gmra.mxu0 %v3218
      %v3327 = vpop.f32.mrf.mxu0
      %v3328 = vadd.f32 0.0, %v3327
      %v3329 = vpop.f32.mrf.mxu0
      %v3330 = vadd.f32 0.0, %v3329
      %3331 = vmatmul.bf16.gmra.mxu0 %v3221
      %v3332 = vpop.f32.mrf.mxu0
      %v3333 = vadd.f32 0.0, %v3332
      %v3334 = vpop.f32.mrf.mxu0
      %v3335 = vadd.f32 0.0, %v3334
      %3336 = vmatmul.bf16.gmra.mxu0 %v3224
      %v3337 = vpop.f32.mrf.mxu0
      %v3338 = vadd.f32 0.0, %v3337
      %v3339 = vpop.f32.mrf.mxu0
      %v3340 = vadd.f32 0.0, %v3339
      %3341 = vmatmul.bf16.gmra.mxu0 %v3227
      %v3342 = vpop.f32.mrf.mxu0
      %v3343 = vadd.f32 0.0, %v3342
      %v3344 = vpop.f32.mrf.mxu0
      %v3345 = vadd.f32 0.0, %v3344
      %3346 = vmatmul.bf16.gmra.mxu0 %v3230
      %v3347 = vpop.f32.mrf.mxu0
      %v3348 = vadd.f32 0.0, %v3347
      %v3349 = vpop.f32.mrf.mxu0
      %v3350 = vadd.f32 0.0, %v3349
      %3351 = vmatmul.bf16.gmra.mxu0 %v3233
      %v3352 = vpop.f32.mrf.mxu0
      %v3353 = vadd.f32 0.0, %v3352
      %v3354 = vpop.f32.mrf.mxu0
      %v3355 = vadd.f32 0.0, %v3354
      %3356 = vmatmul.bf16.gmra.mxu0 %v3236
      %v3357 = vpop.f32.mrf.mxu0
      %v3358 = vadd.f32 0.0, %v3357
      %v3359 = vpop.f32.mrf.mxu0
      %3360 = vdwg.mxu0
      %v3361 = vadd.f32 %v2880, %v3248
      %v3362 = vadd.f32 %v2881, %v3250
      %v3363 = vadd.f32 %v2882, %v3253
      %v3364 = vadd.f32 %v2883, %v3255
      %v3365 = vadd.f32 %v2884, %v3258
      %v3366 = vadd.f32 %v2885, %v3260
      %v3367 = vadd.f32 %v2886, %v3263
      %v3368 = vadd.f32 %v2887, %v3265
      %v3369 = vadd.f32 %v2888, %v3268
      %v3370 = vadd.f32 %v2889, %v3270
      %v3371 = vadd.f32 %v2890, %v3273
      %v3372 = vadd.f32 %v2891, %v3275
      %v3373 = vadd.f32 %v2892, %v3278
      %v3374 = vadd.f32 %v2893, %v3280
      %v3375 = vadd.f32 %v2894, %v3283
      %v3376 = vadd.f32 %v2895, %v3285
      %v3377 = vadd.f32 %v2896, %v3288
      %v3378 = vadd.f32 %v2897, %v3290
      %v3379 = vadd.f32 %v2898, %v3293
      %v3380 = vadd.f32 %v2899, %v3295
      %v3381 = vadd.f32 %v2900, %v3298
      %v3382 = vadd.f32 %v2901, %v3300
      %v3383 = vadd.f32 %v2902, %v3303
      %v3384 = vadd.f32 %v2903, %v3305
      %v3385 = vadd.f32 %v2904, %v3308
      %v3386 = vadd.f32 %v2905, %v3310
      %v3387 = vadd.f32 %v2906, %v3313
      %v3388 = vadd.f32 %v2907, %v3315
      %v3389 = vadd.f32 %v2908, %v3318
      %v3390 = vadd.f32 %v2909, %v3320
      %v3391 = vadd.f32 %v2910, %v3323
      %v3392 = vadd.f32 %v2911, %v3325
      %v3393 = vadd.f32 %v2912, %v3328
      %v3394 = vadd.f32 %v2913, %v3330
      %v3395 = vadd.f32 %v2914, %v3333
      %v3396 = vadd.f32 %v2915, %v3335
      %v3397 = vadd.f32 %v2916, %v3338
      %v3398 = vadd.f32 %v2917, %v3340
      %v3399 = vadd.f32 %v2918, %v3343
      %v3400 = vadd.f32 %v2919, %v3345
      %v3401 = vadd.f32 %v2920, %v3348
      %v3402 = vadd.f32 %v2921, %v3350
      %v3403 = vadd.f32 %v2922, %v3353
      %v3404 = vadd.f32 %v2923, %v3355
      %v3405 = vadd.f32 %v2924, %v3358
      %v3406 = vld [vmem:[#allocation2 + $0x8] sm:$0x8]
      %s3407 = scalar_lea.vmem %s3, 160
      %v3408 = vld [vmem:[%s3407] sm:$0xf]
      %v3409 = vld [vmem:[%s3407 + $0x4] sm:$0xf]
      %v3410 = vld [vmem:[%s3407 + $0x8] sm:$0xf]
      %v3411 = vld [vmem:[%s3407 + $0xc] sm:$0xf]
      %v3412 = vld [vmem:[%s3407 + $0x10] sm:$0xf]
      %v3413 = vld [vmem:[%s3407 + $0x14] sm:$0xf]
      %v3414 = vld [vmem:[%s3407 + $0x18] sm:$0xf]
      %v3415 = vld [vmem:[%s3407 + $0x1c] sm:$0xf]
      %v3417 = vunpack.c.l.b16 %v3406
      %v3418 = vpack.c.b16 %v2550, %v3417
      %vm3419 = vcmask 1044480
      %v3420 = vrot.slane %v3418, 3
      %v3421 = vrot.slane %v2596, 3
      %v3422 = vsel %vm3419, %v3420, %v3421
      %v3423 = vrot.slane %v2597, 3
      %v3424 = vsel %vm3419, %v3421, %v3423
      %v3425 = vrot.slane %v2598, 3
      %v3426 = vsel %vm3419, %v3423, %v3425
      %v3427 = vrot.slane %v2599, 3
      %v3428 = vsel %vm3419, %v3425, %v3427
      %v3429 = vrot.slane %v2600, 3
      %v3430 = vsel %vm3419, %v3427, %v3429
      %v3431 = vrot.slane %v2601, 3
      %v3432 = vsel %vm3419, %v3429, %v3431
      %v3433 = vrot.slane %v2602, 3
      %v3434 = vsel %vm3419, %v3431, %v3433
      %v3435 = vrot.slane %v2603, 3
      %v3436 = vsel %vm3419, %v3433, %v3435
      %v3437 = vrot.slane %v2604, 3
      %v3438 = vsel %vm3419, %v3435, %v3437
      %v3439 = vrot.slane %v2605, 3
      %v3440 = vsel %vm3419, %v3437, %v3439
      %v3441 = vrot.slane %v2606, 3
      %v3442 = vsel %vm3419, %v3439, %v3441
      %v3443 = vrot.slane %v2607, 3
      %v3444 = vsel %vm3419, %v3441, %v3443
      %v3445 = vrot.slane %v2608, 3
      %v3446 = vsel %vm3419, %v3443, %v3445
      %v3447 = vrot.slane %v2609, 3
      %v3448 = vsel %vm3419, %v3445, %v3447
      %v3449 = vrot.slane %v2610, 3
      %v3450 = vsel %vm3419, %v3447, %v3449
      %v3451 = vrot.slane %v2611, 3
      %v3452 = vsel %vm3419, %v3449, %v3451
      %v3453 = vrot.slane %v2612, 3
      %v3454 = vsel %vm3419, %v3451, %v3453
      %v3455 = vrot.slane %v2613, 3
      %v3456 = vsel %vm3419, %v3453, %v3455
      %v3457 = vrot.slane %v2614, 3
      %v3458 = vsel %vm3419, %v3455, %v3457
      %v3459 = vrot.slane %v2615, 3
      %v3460 = vsel %vm3419, %v3457, %v3459
      %v3461 = vrot.slane %v2616, 3
      %v3462 = vsel %vm3419, %v3459, %v3461
      %v3463 = vrot.slane %v2937, 3
      %v3464 = vsel %vm3419, %v3461, %v3463
      %v3473 = vunpack.c.l.b16 %v3408
      %v3474 = vunpack.c.l.b16 %v3409
      %v3475 = vunpack.c.l.b16 %v3410
      %v3476 = vunpack.c.l.b16 %v3411
      %v3477 = vunpack.c.l.b16 %v3412
      %v3478 = vunpack.c.l.b16 %v3413
      %v3479 = vunpack.c.l.b16 %v3414
      %v3480 = vunpack.c.l.b16 %v3415
      %v3481 = vpack.c.b16 %v3474, %v3473
      %v3482 = vpack.c.b16 %v3476, %v3475
      %v3483 = vpack.c.b16 %v3478, %v3477
      %v3484 = vpack.c.b16 %v3480, %v3479
      %v3490 = vsel %vm1740, %v3422, 0
      %v3493 = vsel %vm1740, %v3424, 0
      %v3496 = vsel %vm1740, %v3426, 0
      %v3499 = vsel %vm1740, %v3428, 0
      %v3502 = vsel %vm1740, %v3430, 0
      %v3505 = vsel %vm1740, %v3432, 0
      %v3508 = vsel %vm1740, %v3434, 0
      %v3511 = vsel %vm1740, %v3436, 0
      %v3514 = vsel %vm1740, %v3438, 0
      %v3517 = vsel %vm1740, %v3440, 0
      %v3520 = vsel %vm1740, %v3442, 0
      %v3523 = vsel %vm1740, %v3444, 0
      %v3526 = vsel %vm1740, %v3446, 0
      %v3529 = vsel %vm1740, %v3448, 0
      %v3532 = vsel %vm1740, %v3450, 0
      %v3535 = vsel %vm1740, %v3452, 0
      %v3538 = vsel %vm1740, %v3454, 0
      %v3541 = vsel %vm1740, %v3456, 0
      %v3544 = vsel %vm1740, %v3458, 0
      %v3547 = vsel %vm1740, %v3460, 0
      %v3550 = vsel %vm1740, %v3462, 0
      %v3553 = vsel %vm1740, %v3464, 0
      %v3556 = vsel %vm1740, %v3463, 0
      %3558 = vmatpush.bf16.msra.mxu0 0
      %3559 = vmatpush.bf16.msra.mxu0 0
      %3560 = vmatpush.bf16.msra.mxu0 0
      %3561 = vmatpush.bf16.msra.mxu0 0
      %3562 = vmatpush.bf16.msra.mxu0 %v3484
      %3563 = vmatpush.bf16.msra.mxu0 %v3483
      %3564 = vmatpush.bf16.msra.mxu0 %v3482
      %3565 = vmatpush.bf16.msra.mxu0 %v3481
      %3566 = vmatmul.bf16.gmra.mxu0 %v3490
      %v3567 = vpop.f32.mrf.mxu0
      %v3568 = vadd.f32 0.0, %v3567
      %v3569 = vpop.f32.mrf.mxu0
      %v3570 = vadd.f32 0.0, %v3569
      %3571 = vmatmul.bf16.gmra.mxu0 %v3493
      %v3572 = vpop.f32.mrf.mxu0
      %v3573 = vadd.f32 0.0, %v3572
      %v3574 = vpop.f32.mrf.mxu0
      %v3575 = vadd.f32 0.0, %v3574
      %3576 = vmatmul.bf16.gmra.mxu0 %v3496
      %v3577 = vpop.f32.mrf.mxu0
      %v3578 = vadd.f32 0.0, %v3577
      %v3579 = vpop.f32.mrf.mxu0
      %v3580 = vadd.f32 0.0, %v3579
      %3581 = vmatmul.bf16.gmra.mxu0 %v3499
      %v3582 = vpop.f32.mrf.mxu0
      %v3583 = vadd.f32 0.0, %v3582
      %v3584 = vpop.f32.mrf.mxu0
      %v3585 = vadd.f32 0.0, %v3584
      %3586 = vmatmul.bf16.gmra.mxu0 %v3502
      %v3587 = vpop.f32.mrf.mxu0
      %v3588 = vadd.f32 0.0, %v3587
      %v3589 = vpop.f32.mrf.mxu0
      %v3590 = vadd.f32 0.0, %v3589
      %3591 = vmatmul.bf16.gmra.mxu0 %v3505
      %v3592 = vpop.f32.mrf.mxu0
      %v3593 = vadd.f32 0.0, %v3592
      %v3594 = vpop.f32.mrf.mxu0
      %v3595 = vadd.f32 0.0, %v3594
      %3596 = vmatmul.bf16.gmra.mxu0 %v3508
      %v3597 = vpop.f32.mrf.mxu0
      %v3598 = vadd.f32 0.0, %v3597
      %v3599 = vpop.f32.mrf.mxu0
      %v3600 = vadd.f32 0.0, %v3599
      %3601 = vmatmul.bf16.gmra.mxu0 %v3511
      %v3602 = vpop.f32.mrf.mxu0
      %v3603 = vadd.f32 0.0, %v3602
      %v3604 = vpop.f32.mrf.mxu0
      %v3605 = vadd.f32 0.0, %v3604
      %3606 = vmatmul.bf16.gmra.mxu0 %v3514
      %v3607 = vpop.f32.mrf.mxu0
      %v3608 = vadd.f32 0.0, %v3607
      %v3609 = vpop.f32.mrf.mxu0
      %v3610 = vadd.f32 0.0, %v3609
      %3611 = vmatmul.bf16.gmra.mxu0 %v3517
      %v3612 = vpop.f32.mrf.mxu0
      %v3613 = vadd.f32 0.0, %v3612
      %v3614 = vpop.f32.mrf.mxu0
      %v3615 = vadd.f32 0.0, %v3614
      %3616 = vmatmul.bf16.gmra.mxu0 %v3520
      %v3617 = vpop.f32.mrf.mxu0
      %v3618 = vadd.f32 0.0, %v3617
      %v3619 = vpop.f32.mrf.mxu0
      %v3620 = vadd.f32 0.0, %v3619
      %3621 = vmatmul.bf16.gmra.mxu0 %v3523
      %v3622 = vpop.f32.mrf.mxu0
      %v3623 = vadd.f32 0.0, %v3622
      %v3624 = vpop.f32.mrf.mxu0
      %v3625 = vadd.f32 0.0, %v3624
      %3626 = vmatmul.bf16.gmra.mxu0 %v3526
      %v3627 = vpop.f32.mrf.mxu0
      %v3628 = vadd.f32 0.0, %v3627
      %v3629 = vpop.f32.mrf.mxu0
      %v3630 = vadd.f32 0.0, %v3629
      %3631 = vmatmul.bf16.gmra.mxu0 %v3529
      %v3632 = vpop.f32.mrf.mxu0
      %v3633 = vadd.f32 0.0, %v3632
      %v3634 = vpop.f32.mrf.mxu0
      %v3635 = vadd.f32 0.0, %v3634
      %3636 = vmatmul.bf16.gmra.mxu0 %v3532
      %v3637 = vpop.f32.mrf.mxu0
      %v3638 = vadd.f32 0.0, %v3637
      %v3639 = vpop.f32.mrf.mxu0
      %v3640 = vadd.f32 0.0, %v3639
      %3641 = vmatmul.bf16.gmra.mxu0 %v3535
      %v3642 = vpop.f32.mrf.mxu0
      %v3643 = vadd.f32 0.0, %v3642
      %v3644 = vpop.f32.mrf.mxu0
      %v3645 = vadd.f32 0.0, %v3644
      %3646 = vmatmul.bf16.gmra.mxu0 %v3538
      %v3647 = vpop.f32.mrf.mxu0
      %v3648 = vadd.f32 0.0, %v3647
      %v3649 = vpop.f32.mrf.mxu0
      %v3650 = vadd.f32 0.0, %v3649
      %3651 = vmatmul.bf16.gmra.mxu0 %v3541
      %v3652 = vpop.f32.mrf.mxu0
      %v3653 = vadd.f32 0.0, %v3652
      %v3654 = vpop.f32.mrf.mxu0
      %v3655 = vadd.f32 0.0, %v3654
      %3656 = vmatmul.bf16.gmra.mxu0 %v3544
      %v3657 = vpop.f32.mrf.mxu0
      %v3658 = vadd.f32 0.0, %v3657
      %v3659 = vpop.f32.mrf.mxu0
      %v3660 = vadd.f32 0.0, %v3659
      %3661 = vmatmul.bf16.gmra.mxu0 %v3547
      %v3662 = vpop.f32.mrf.mxu0
      %v3663 = vadd.f32 0.0, %v3662
      %v3664 = vpop.f32.mrf.mxu0
      %v3665 = vadd.f32 0.0, %v3664
      %3666 = vmatmul.bf16.gmra.mxu0 %v3550
      %v3667 = vpop.f32.mrf.mxu0
      %v3668 = vadd.f32 0.0, %v3667
      %v3669 = vpop.f32.mrf.mxu0
      %v3670 = vadd.f32 0.0, %v3669
      %3671 = vmatmul.bf16.gmra.mxu0 %v3553
      %v3672 = vpop.f32.mrf.mxu0
      %v3673 = vadd.f32 0.0, %v3672
      %v3674 = vpop.f32.mrf.mxu0
      %v3675 = vadd.f32 0.0, %v3674
      %3676 = vmatmul.bf16.gmra.mxu0 %v3556
      %v3677 = vpop.f32.mrf.mxu0
      %v3678 = vadd.f32 0.0, %v3677
      %v3679 = vpop.f32.mrf.mxu0
      %3680 = vdwg.mxu0
      %v3681 = vadd.f32 %v3361, %v3568
      %v3682 = vadd.f32 %v3362, %v3570
      %v3683 = vadd.f32 %v3363, %v3573
      %v3684 = vadd.f32 %v3364, %v3575
      %v3685 = vadd.f32 %v3365, %v3578
      %v3686 = vadd.f32 %v3366, %v3580
      %v3687 = vadd.f32 %v3367, %v3583
      %v3688 = vadd.f32 %v3368, %v3585
      %v3689 = vadd.f32 %v3369, %v3588
      %v3690 = vadd.f32 %v3370, %v3590
      %v3691 = vadd.f32 %v3371, %v3593
      %v3692 = vadd.f32 %v3372, %v3595
      %v3693 = vadd.f32 %v3373, %v3598
      %v3694 = vadd.f32 %v3374, %v3600
      %v3695 = vadd.f32 %v3375, %v3603
      %v3696 = vadd.f32 %v3376, %v3605
      %v3697 = vadd.f32 %v3377, %v3608
      %v3698 = vadd.f32 %v3378, %v3610
      %v3699 = vadd.f32 %v3379, %v3613
      %v3700 = vadd.f32 %v3380, %v3615
      %v3701 = vadd.f32 %v3381, %v3618
      %v3702 = vadd.f32 %v3382, %v3620
      %v3703 = vadd.f32 %v3383, %v3623
      %v3704 = vadd.f32 %v3384, %v3625
      %v3705 = vadd.f32 %v3385, %v3628
      %v3706 = vadd.f32 %v3386, %v3630
      %v3707 = vadd.f32 %v3387, %v3633
      %v3708 = vadd.f32 %v3388, %v3635
      %v3709 = vadd.f32 %v3389, %v3638
      %v3710 = vadd.f32 %v3390, %v3640
      %v3711 = vadd.f32 %v3391, %v3643
      %v3712 = vadd.f32 %v3392, %v3645
      %v3713 = vadd.f32 %v3393, %v3648
      %v3714 = vadd.f32 %v3394, %v3650
      %v3715 = vadd.f32 %v3395, %v3653
      %v3716 = vadd.f32 %v3396, %v3655
      %v3717 = vadd.f32 %v3397, %v3658
      %v3718 = vadd.f32 %v3398, %v3660
      %v3719 = vadd.f32 %v3399, %v3663
      %v3720 = vadd.f32 %v3400, %v3665
      %v3721 = vadd.f32 %v3401, %v3668
      %v3722 = vadd.f32 %v3402, %v3670
      %v3723 = vadd.f32 %v3403, %v3673
      %v3724 = vadd.f32 %v3404, %v3675
      %v3725 = vadd.f32 %v3405, %v3678
      %v3726 = vld [vmem:[#allocation2 + $0x14] sm:$0xf]
      %v3727 = vld [vmem:[#allocation2 + $0x18] sm:$0xf]
      %v3728 = vld [vmem:[#allocation2 + $0x1c] sm:$0xf]
      %v3729 = vld [vmem:[#allocation2 + $0x20] sm:$0xf]
      %v3730 = vld [vmem:[#allocation2 + $0x24] sm:$0xf]
      %v3731 = vld [vmem:[#allocation2 + $0x28] sm:$0xf]
      %v3732 = vld [vmem:[#allocation2 + $0x2c] sm:$0xf]
      %v3733 = vld [vmem:[#allocation2 + $0x30] sm:$0xf]
      %v3734 = vld [vmem:[#allocation2 + $0x34] sm:$0xf]
      %v3735 = vld [vmem:[#allocation2 + $0x38] sm:$0xf]
      %v3736 = vld [vmem:[#allocation2 + $0x3c] sm:$0xf]
      %v3737 = vld [vmem:[#allocation2 + $0x40] sm:$0xf]
      %v3738 = vld [vmem:[#allocation2 + $0x44] sm:$0xf]
      %v3739 = vld [vmem:[#allocation2 + $0x48] sm:$0xf]
      %v3740 = vld [vmem:[#allocation2 + $0x4c] sm:$0xf]
      %v3741 = vld [vmem:[#allocation2 + $0x50] sm:$0xf]
      %v3742 = vld [vmem:[#allocation2 + $0x54] sm:$0xf]
      %v3743 = vld [vmem:[#allocation2 + $0x58] sm:$0xf]
      %v3744 = vld [vmem:[#allocation2 + $0x5c] sm:$0xf]
      %v3745 = vld [vmem:[#allocation2 + $0x60] sm:$0xf]
      %v3746 = vld [vmem:[#allocation2 + $0x64] sm:$0xf]
      %v3747 = vld [vmem:[#allocation2 + $0x68] sm:$0xf]
      %v3748 = vld [vmem:[#allocation2 + $0x6c] sm:$0xf]
      %v3749 = vld [vmem:[#allocation2 + $0x70] sm:$0xf]
      %v3750 = vld [vmem:[#allocation2 + $0x74] sm:$0xf]
      %v3751 = vld [vmem:[#allocation2 + $0x78] sm:$0xf]
      %v3752 = vld [vmem:[#allocation2 + $0x7c] sm:$0xf]
      %v3753 = vld [vmem:[#allocation2 + $0x80] sm:$0xf]
      %v3754 = vld [vmem:[#allocation2 + $0x84] sm:$0xf]
      %v3755 = vld [vmem:[#allocation2 + $0x88] sm:$0xf]
      %v3756 = vld [vmem:[#allocation2 + $0x8c] sm:$0xf]
      %v3757 = vld [vmem:[#allocation2 + $0x90] sm:$0xf]
      %v3758 = vld [vmem:[#allocation2 + $0x94] sm:$0xf]
      %v3759 = vld [vmem:[#allocation2 + $0x98] sm:$0xf]
      %v3760 = vld [vmem:[#allocation2 + $0x9c] sm:$0xf]
      %v3761 = vld [vmem:[#allocation2 + $0xa0] sm:$0xf]
      %v3762 = vld [vmem:[#allocation2 + $0xa4] sm:$0xf]
      %v3763 = vld [vmem:[#allocation2 + $0xa8] sm:$0xf]
      %v3764 = vld [vmem:[#allocation2 + $0xac] sm:$0xf]
      %v3765 = vld [vmem:[#allocation2 + $0xb0] sm:$0xf]
      %v3766 = vld [vmem:[#allocation2 + $0xb4] sm:$0xf]
      %v3767 = vld [vmem:[#allocation2 + $0xb8] sm:$0xf]
      %v3768 = vld [vmem:[#allocation2 + $0xbc] sm:$0xf]
      %v3769 = vld [vmem:[#allocation2 + $0xc0] sm:$0xf]
      %v3770 = vld [vmem:[#allocation2 + $0xc4] sm:$0xf]
      %s3771 = scalar_lea.vmem %s3, 192
      %v3772 = vld [vmem:[%s3771] sm:$0xf]
      %v3773 = vld [vmem:[%s3771 + $0x4] sm:$0xf]
      %v3774 = vld [vmem:[%s3771 + $0x8] sm:$0xf]
      %v3775 = vld [vmem:[%s3771 + $0xc] sm:$0xf]
      %v3776 = vld [vmem:[%s3771 + $0x10] sm:$0xf]
      %v3777 = vld [vmem:[%s3771 + $0x14] sm:$0xf]
      %v3778 = vld [vmem:[%s3771 + $0x18] sm:$0xf]
      %v3779 = vld [vmem:[%s3771 + $0x1c] sm:$0xf]
      %v3825 = vunpack.c.l.b16 %v3726
      %v3826 = vunpack.c.l.b16 %v3727
      %v3827 = vunpack.c.l.b16 %v3728
      %v3828 = vunpack.c.l.b16 %v3729
      %v3829 = vunpack.c.l.b16 %v3730
      %v3830 = vunpack.c.l.b16 %v3731
      %v3831 = vunpack.c.l.b16 %v3732
      %v3832 = vunpack.c.l.b16 %v3733
      %v3833 = vunpack.c.l.b16 %v3734
      %v3834 = vunpack.c.l.b16 %v3735
      %v3835 = vunpack.c.l.b16 %v3736
      %v3836 = vunpack.c.l.b16 %v3737
      %v3837 = vunpack.c.l.b16 %v3738
      %v3838 = vunpack.c.l.b16 %v3739
      %v3839 = vunpack.c.l.b16 %v3740
      %v3840 = vunpack.c.l.b16 %v3741
      %v3841 = vunpack.c.l.b16 %v3742
      %v3842 = vunpack.c.l.b16 %v3743
      %v3843 = vunpack.c.l.b16 %v3744
      %v3844 = vunpack.c.l.b16 %v3745
      %v3845 = vunpack.c.l.b16 %v3746
      %v3846 = vunpack.c.l.b16 %v3747
      %v3847 = vunpack.c.l.b16 %v3748
      %v3848 = vunpack.c.l.b16 %v3749
      %v3849 = vunpack.c.l.b16 %v3750
      %v3850 = vunpack.c.l.b16 %v3751
      %v3851 = vunpack.c.l.b16 %v3752
      %v3852 = vunpack.c.l.b16 %v3753
      %v3853 = vunpack.c.l.b16 %v3754
      %v3854 = vunpack.c.l.b16 %v3755
      %v3855 = vunpack.c.l.b16 %v3756
      %v3856 = vunpack.c.l.b16 %v3757
      %v3857 = vunpack.c.l.b16 %v3758
      %v3858 = vunpack.c.l.b16 %v3759
      %v3859 = vunpack.c.l.b16 %v3760
      %v3860 = vunpack.c.l.b16 %v3761
      %v3861 = vunpack.c.l.b16 %v3762
      %v3862 = vunpack.c.l.b16 %v3763
      %v3863 = vunpack.c.l.b16 %v3764
      %v3864 = vunpack.c.l.b16 %v3765
      %v3865 = vunpack.c.l.b16 %v3766
      %v3866 = vunpack.c.l.b16 %v3767
      %v3867 = vunpack.c.l.b16 %v3768
      %v3868 = vunpack.c.l.b16 %v3769
      %v3869 = vunpack.c.l.b16 %v3770
      %v3870 = vpack.c.b16 %v3826, %v3825
      %v3871 = vpack.c.b16 %v3828, %v3827
      %v3872 = vpack.c.b16 %v3830, %v3829
      %v3873 = vpack.c.b16 %v3832, %v3831
      %v3874 = vpack.c.b16 %v3834, %v3833
      %v3875 = vpack.c.b16 %v3836, %v3835
      %v3876 = vpack.c.b16 %v3838, %v3837
      %v3877 = vpack.c.b16 %v3840, %v3839
      %v3878 = vpack.c.b16 %v3842, %v3841
      %v3879 = vpack.c.b16 %v3844, %v3843
      %v3880 = vpack.c.b16 %v3846, %v3845
      %v3881 = vpack.c.b16 %v3848, %v3847
      %v3882 = vpack.c.b16 %v3850, %v3849
      %v3883 = vpack.c.b16 %v3852, %v3851
      %v3884 = vpack.c.b16 %v3854, %v3853
      %v3885 = vpack.c.b16 %v3856, %v3855
      %v3886 = vpack.c.b16 %v3858, %v3857
      %v3887 = vpack.c.b16 %v3860, %v3859
      %v3888 = vpack.c.b16 %v3862, %v3861
      %v3889 = vpack.c.b16 %v3864, %v3863
      %v3890 = vpack.c.b16 %v3866, %v3865
      %v3891 = vpack.c.b16 %v3868, %v3867
      %v3892 = vpack.c.b16 %v3869, %v3869
      %v3901 = vunpack.c.l.b16 %v3772
      %v3902 = vunpack.c.l.b16 %v3773
      %v3903 = vunpack.c.l.b16 %v3774
      %v3904 = vunpack.c.l.b16 %v3775
      %v3905 = vunpack.c.l.b16 %v3776
      %v3906 = vunpack.c.l.b16 %v3777
      %v3907 = vunpack.c.l.b16 %v3778
      %v3908 = vunpack.c.l.b16 %v3779
      %v3909 = vpack.c.b16 %v3902, %v3901
      %v3910 = vpack.c.b16 %v3904, %v3903
      %v3911 = vpack.c.b16 %v3906, %v3905
      %v3912 = vpack.c.b16 %v3908, %v3907
      %v3918 = vsel %vm1740, %v3870, 0
      %v3921 = vsel %vm1740, %v3871, 0
      %v3924 = vsel %vm1740, %v3872, 0
      %v3927 = vsel %vm1740, %v3873, 0
      %v3930 = vsel %vm1740, %v3874, 0
      %v3933 = vsel %vm1740, %v3875, 0
      %v3936 = vsel %vm1740, %v3876, 0
      %v3939 = vsel %vm1740, %v3877, 0
      %v3942 = vsel %vm1740, %v3878, 0
      %v3945 = vsel %vm1740, %v3879, 0
      %v3948 = vsel %vm1740, %v3880, 0
      %v3951 = vsel %vm1740, %v3881, 0
      %v3954 = vsel %vm1740, %v3882, 0
      %v3957 = vsel %vm1740, %v3883, 0
      %v3960 = vsel %vm1740, %v3884, 0
      %v3963 = vsel %vm1740, %v3885, 0
      %v3966 = vsel %vm1740, %v3886, 0
      %v3969 = vsel %vm1740, %v3887, 0
      %v3972 = vsel %vm1740, %v3888, 0
      %v3975 = vsel %vm1740, %v3889, 0
      %v3978 = vsel %vm1740, %v3890, 0
      %v3981 = vsel %vm1740, %v3891, 0
      %v3984 = vsel %vm1740, %v3892, 0
      %3986 = vmatpush.bf16.msra.mxu0 0
      %3987 = vmatpush.bf16.msra.mxu0 0
      %3988 = vmatpush.bf16.msra.mxu0 0
      %3989 = vmatpush.bf16.msra.mxu0 0
      %3990 = vmatpush.bf16.msra.mxu0 %v3912
      %3991 = vmatpush.bf16.msra.mxu0 %v3911
      %3992 = vmatpush.bf16.msra.mxu0 %v3910
      %3993 = vmatpush.bf16.msra.mxu0 %v3909
      %3994 = vmatmul.bf16.gmra.mxu0 %v3918
      %v3995 = vpop.f32.mrf.mxu0
      %v3996 = vadd.f32 0.0, %v3995
      %v3997 = vpop.f32.mrf.mxu0
      %v3998 = vadd.f32 0.0, %v3997
      %3999 = vmatmul.bf16.gmra.mxu0 %v3921
      %v4000 = vpop.f32.mrf.mxu0
      %v4001 = vadd.f32 0.0, %v4000
      %v4002 = vpop.f32.mrf.mxu0
      %v4003 = vadd.f32 0.0, %v4002
      %4004 = vmatmul.bf16.gmra.mxu0 %v3924
      %v4005 = vpop.f32.mrf.mxu0
      %v4006 = vadd.f32 0.0, %v4005
      %v4007 = vpop.f32.mrf.mxu0
      %v4008 = vadd.f32 0.0, %v4007
      %4009 = vmatmul.bf16.gmra.mxu0 %v3927
      %v4010 = vpop.f32.mrf.mxu0
      %v4011 = vadd.f32 0.0, %v4010
      %v4012 = vpop.f32.mrf.mxu0
      %v4013 = vadd.f32 0.0, %v4012
      %4014 = vmatmul.bf16.gmra.mxu0 %v3930
      %v4015 = vpop.f32.mrf.mxu0
      %v4016 = vadd.f32 0.0, %v4015
      %v4017 = vpop.f32.mrf.mxu0
      %v4018 = vadd.f32 0.0, %v4017
      %4019 = vmatmul.bf16.gmra.mxu0 %v3933
      %v4020 = vpop.f32.mrf.mxu0
      %v4021 = vadd.f32 0.0, %v4020
      %v4022 = vpop.f32.mrf.mxu0
      %v4023 = vadd.f32 0.0, %v4022
      %4024 = vmatmul.bf16.gmra.mxu0 %v3936
      %v4025 = vpop.f32.mrf.mxu0
      %v4026 = vadd.f32 0.0, %v4025
      %v4027 = vpop.f32.mrf.mxu0
      %v4028 = vadd.f32 0.0, %v4027
      %4029 = vmatmul.bf16.gmra.mxu0 %v3939
      %v4030 = vpop.f32.mrf.mxu0
      %v4031 = vadd.f32 0.0, %v4030
      %v4032 = vpop.f32.mrf.mxu0
      %v4033 = vadd.f32 0.0, %v4032
      %4034 = vmatmul.bf16.gmra.mxu0 %v3942
      %v4035 = vpop.f32.mrf.mxu0
      %v4036 = vadd.f32 0.0, %v4035
      %v4037 = vpop.f32.mrf.mxu0
      %v4038 = vadd.f32 0.0, %v4037
      %4039 = vmatmul.bf16.gmra.mxu0 %v3945
      %v4040 = vpop.f32.mrf.mxu0
      %v4041 = vadd.f32 0.0, %v4040
      %v4042 = vpop.f32.mrf.mxu0
      %v4043 = vadd.f32 0.0, %v4042
      %4044 = vmatmul.bf16.gmra.mxu0 %v3948
      %v4045 = vpop.f32.mrf.mxu0
      %v4046 = vadd.f32 0.0, %v4045
      %v4047 = vpop.f32.mrf.mxu0
      %v4048 = vadd.f32 0.0, %v4047
      %4049 = vmatmul.bf16.gmra.mxu0 %v3951
      %v4050 = vpop.f32.mrf.mxu0
      %v4051 = vadd.f32 0.0, %v4050
      %v4052 = vpop.f32.mrf.mxu0
      %v4053 = vadd.f32 0.0, %v4052
      %4054 = vmatmul.bf16.gmra.mxu0 %v3954
      %v4055 = vpop.f32.mrf.mxu0
      %v4056 = vadd.f32 0.0, %v4055
      %v4057 = vpop.f32.mrf.mxu0
      %v4058 = vadd.f32 0.0, %v4057
      %4059 = vmatmul.bf16.gmra.mxu0 %v3957
      %v4060 = vpop.f32.mrf.mxu0
      %v4061 = vadd.f32 0.0, %v4060
      %v4062 = vpop.f32.mrf.mxu0
      %v4063 = vadd.f32 0.0, %v4062
      %4064 = vmatmul.bf16.gmra.mxu0 %v3960
      %v4065 = vpop.f32.mrf.mxu0
      %v4066 = vadd.f32 0.0, %v4065
      %v4067 = vpop.f32.mrf.mxu0
      %v4068 = vadd.f32 0.0, %v4067
      %4069 = vmatmul.bf16.gmra.mxu0 %v3963
      %v4070 = vpop.f32.mrf.mxu0
      %v4071 = vadd.f32 0.0, %v4070
      %v4072 = vpop.f32.mrf.mxu0
      %v4073 = vadd.f32 0.0, %v4072
      %4074 = vmatmul.bf16.gmra.mxu0 %v3966
      %v4075 = vpop.f32.mrf.mxu0
      %v4076 = vadd.f32 0.0, %v4075
      %v4077 = vpop.f32.mrf.mxu0
      %v4078 = vadd.f32 0.0, %v4077
      %4079 = vmatmul.bf16.gmra.mxu0 %v3969
      %v4080 = vpop.f32.mrf.mxu0
      %v4081 = vadd.f32 0.0, %v4080
      %v4082 = vpop.f32.mrf.mxu0
      %v4083 = vadd.f32 0.0, %v4082
      %4084 = vmatmul.bf16.gmra.mxu0 %v3972
      %v4085 = vpop.f32.mrf.mxu0
      %v4086 = vadd.f32 0.0, %v4085
      %v4087 = vpop.f32.mrf.mxu0
      %v4088 = vadd.f32 0.0, %v4087
      %4089 = vmatmul.bf16.gmra.mxu0 %v3975
      %v4090 = vpop.f32.mrf.mxu0
      %v4091 = vadd.f32 0.0, %v4090
      %v4092 = vpop.f32.mrf.mxu0
      %v4093 = vadd.f32 0.0, %v4092
      %4094 = vmatmul.bf16.gmra.mxu0 %v3978
      %v4095 = vpop.f32.mrf.mxu0
      %v4096 = vadd.f32 0.0, %v4095
      %v4097 = vpop.f32.mrf.mxu0
      %v4098 = vadd.f32 0.0, %v4097
      %4099 = vmatmul.bf16.gmra.mxu0 %v3981
      %v4100 = vpop.f32.mrf.mxu0
      %v4101 = vadd.f32 0.0, %v4100
      %v4102 = vpop.f32.mrf.mxu0
      %v4103 = vadd.f32 0.0, %v4102
      %4104 = vmatmul.bf16.gmra.mxu0 %v3984
      %v4105 = vpop.f32.mrf.mxu0
      %v4106 = vadd.f32 0.0, %v4105
      %v4107 = vpop.f32.mrf.mxu0
      %4108 = vdwg.mxu0
      %v4109 = vadd.f32 %v3681, %v3996
      %v4110 = vadd.f32 %v3682, %v3998
      %v4111 = vadd.f32 %v3683, %v4001
      %v4112 = vadd.f32 %v3684, %v4003
      %v4113 = vadd.f32 %v3685, %v4006
      %v4114 = vadd.f32 %v3686, %v4008
      %v4115 = vadd.f32 %v3687, %v4011
      %v4116 = vadd.f32 %v3688, %v4013
      %v4117 = vadd.f32 %v3689, %v4016
      %v4118 = vadd.f32 %v3690, %v4018
      %v4119 = vadd.f32 %v3691, %v4021
      %v4120 = vadd.f32 %v3692, %v4023
      %v4121 = vadd.f32 %v3693, %v4026
      %v4122 = vadd.f32 %v3694, %v4028
      %v4123 = vadd.f32 %v3695, %v4031
      %v4124 = vadd.f32 %v3696, %v4033
      %v4125 = vadd.f32 %v3697, %v4036
      %v4126 = vadd.f32 %v3698, %v4038
      %v4127 = vadd.f32 %v3699, %v4041
      %v4128 = vadd.f32 %v3700, %v4043
      %v4129 = vadd.f32 %v3701, %v4046
      %v4130 = vadd.f32 %v3702, %v4048
      %v4131 = vadd.f32 %v3703, %v4051
      %v4132 = vadd.f32 %v3704, %v4053
      %v4133 = vadd.f32 %v3705, %v4056
      %v4134 = vadd.f32 %v3706, %v4058
      %v4135 = vadd.f32 %v3707, %v4061
      %v4136 = vadd.f32 %v3708, %v4063
      %v4137 = vadd.f32 %v3709, %v4066
      %v4138 = vadd.f32 %v3710, %v4068
      %v4139 = vadd.f32 %v3711, %v4071
      %v4140 = vadd.f32 %v3712, %v4073
      %v4141 = vadd.f32 %v3713, %v4076
      %v4142 = vadd.f32 %v3714, %v4078
      %v4143 = vadd.f32 %v3715, %v4081
      %v4144 = vadd.f32 %v3716, %v4083
      %v4145 = vadd.f32 %v3717, %v4086
      %v4146 = vadd.f32 %v3718, %v4088
      %v4147 = vadd.f32 %v3719, %v4091
      %v4148 = vadd.f32 %v3720, %v4093
      %v4149 = vadd.f32 %v3721, %v4096
      %v4150 = vadd.f32 %v3722, %v4098
      %v4151 = vadd.f32 %v3723, %v4101
      %v4152 = vadd.f32 %v3724, %v4103
      %v4153 = vadd.f32 %v3725, %v4106
      %v4154 = vld [vmem:[#allocation2 + $0x14] sm:$0xf]
      %v4155 = vld [vmem:[#allocation2 + $0x18] sm:$0xf]
      %v4156 = vld [vmem:[#allocation2 + $0x1c] sm:$0xf]
      %v4157 = vld [vmem:[#allocation2 + $0x20] sm:$0xf]
      %v4158 = vld [vmem:[#allocation2 + $0x24] sm:$0xf]
      %v4159 = vld [vmem:[#allocation2 + $0x28] sm:$0xf]
      %v4160 = vld [vmem:[#allocation2 + $0x2c] sm:$0xf]
      %v4161 = vld [vmem:[#allocation2 + $0x30] sm:$0xf]
      %v4162 = vld [vmem:[#allocation2 + $0x34] sm:$0xf]
      %v4163 = vld [vmem:[#allocation2 + $0x38] sm:$0xf]
      %v4164 = vld [vmem:[#allocation2 + $0x3c] sm:$0xf]
      %v4165 = vld [vmem:[#allocation2 + $0x40] sm:$0xf]
      %v4166 = vld [vmem:[#allocation2 + $0x44] sm:$0xf]
      %v4167 = vld [vmem:[#allocation2 + $0x48] sm:$0xf]
      %v4168 = vld [vmem:[#allocation2 + $0x4c] sm:$0xf]
      %v4169 = vld [vmem:[#allocation2 + $0x50] sm:$0xf]
      %v4170 = vld [vmem:[#allocation2 + $0x54] sm:$0xf]
      %v4171 = vld [vmem:[#allocation2 + $0x58] sm:$0xf]
      %v4172 = vld [vmem:[#allocation2 + $0x5c] sm:$0xf]
      %v4173 = vld [vmem:[#allocation2 + $0x60] sm:$0xf]
      %v4174 = vld [vmem:[#allocation2 + $0x64] sm:$0xf]
      %v4175 = vld [vmem:[#allocation2 + $0x68] sm:$0xf]
      %v4176 = vld [vmem:[#allocation2 + $0x6c] sm:$0xf]
      %v4177 = vld [vmem:[#allocation2 + $0x70] sm:$0xf]
      %v4178 = vld [vmem:[#allocation2 + $0x74] sm:$0xf]
      %v4179 = vld [vmem:[#allocation2 + $0x78] sm:$0xf]
      %v4180 = vld [vmem:[#allocation2 + $0x7c] sm:$0xf]
      %v4181 = vld [vmem:[#allocation2 + $0x80] sm:$0xf]
      %v4182 = vld [vmem:[#allocation2 + $0x84] sm:$0xf]
      %v4183 = vld [vmem:[#allocation2 + $0x88] sm:$0xf]
      %v4184 = vld [vmem:[#allocation2 + $0x8c] sm:$0xf]
      %v4185 = vld [vmem:[#allocation2 + $0x90] sm:$0xf]
      %v4186 = vld [vmem:[#allocation2 + $0x94] sm:$0xf]
      %v4187 = vld [vmem:[#allocation2 + $0x98] sm:$0xf]
      %v4188 = vld [vmem:[#allocation2 + $0x9c] sm:$0xf]
      %v4189 = vld [vmem:[#allocation2 + $0xa0] sm:$0xf]
      %v4190 = vld [vmem:[#allocation2 + $0xa4] sm:$0xf]
      %v4191 = vld [vmem:[#allocation2 + $0xa8] sm:$0xf]
      %v4192 = vld [vmem:[#allocation2 + $0xac] sm:$0xf]
      %v4193 = vld [vmem:[#allocation2 + $0xb0] sm:$0xf]
      %v4194 = vld [vmem:[#allocation2 + $0xb4] sm:$0xf]
      %v4195 = vld [vmem:[#allocation2 + $0xb8] sm:$0xf]
      %v4196 = vld [vmem:[#allocation2 + $0xbc] sm:$0xf]
      %v4197 = vld [vmem:[#allocation2 + $0xc0] sm:$0xf]
      %v4198 = vld [vmem:[#allocation2 + $0xc4] sm:$0xf]
      %v4199 = vld [vmem:[#allocation2 + $0xc8] sm:$0x1]
      %s4200 = scalar_lea.vmem %s3, 224
      %v4201 = vld [vmem:[%s4200] sm:$0xf]
      %v4202 = vld [vmem:[%s4200 + $0x4] sm:$0xf]
      %v4203 = vld [vmem:[%s4200 + $0x8] sm:$0xf]
      %v4204 = vld [vmem:[%s4200 + $0xc] sm:$0xf]
      %v4205 = vld [vmem:[%s4200 + $0x10] sm:$0xf]
      %v4206 = vld [vmem:[%s4200 + $0x14] sm:$0xf]
      %v4207 = vld [vmem:[%s4200 + $0x18] sm:$0xf]
      %v4208 = vld [vmem:[%s4200 + $0x1c] sm:$0xf]
      %v4255 = vunpack.c.l.b16 %v4154
      %v4256 = vunpack.c.l.b16 %v4155
      %v4257 = vunpack.c.l.b16 %v4156
      %v4258 = vunpack.c.l.b16 %v4157
      %v4259 = vunpack.c.l.b16 %v4158
      %v4260 = vunpack.c.l.b16 %v4159
      %v4261 = vunpack.c.l.b16 %v4160
      %v4262 = vunpack.c.l.b16 %v4161
      %v4263 = vunpack.c.l.b16 %v4162
      %v4264 = vunpack.c.l.b16 %v4163
      %v4265 = vunpack.c.l.b16 %v4164
      %v4266 = vunpack.c.l.b16 %v4165
      %v4267 = vunpack.c.l.b16 %v4166
      %v4268 = vunpack.c.l.b16 %v4167
      %v4269 = vunpack.c.l.b16 %v4168
      %v4270 = vunpack.c.l.b16 %v4169
      %v4271 = vunpack.c.l.b16 %v4170
      %v4272 = vunpack.c.l.b16 %v4171
      %v4273 = vunpack.c.l.b16 %v4172
      %v4274 = vunpack.c.l.b16 %v4173
      %v4275 = vunpack.c.l.b16 %v4174
      %v4276 = vunpack.c.l.b16 %v4175
      %v4277 = vunpack.c.l.b16 %v4176
      %v4278 = vunpack.c.l.b16 %v4177
      %v4279 = vunpack.c.l.b16 %v4178
      %v4280 = vunpack.c.l.b16 %v4179
      %v4281 = vunpack.c.l.b16 %v4180
      %v4282 = vunpack.c.l.b16 %v4181
      %v4283 = vunpack.c.l.b16 %v4182
      %v4284 = vunpack.c.l.b16 %v4183
      %v4285 = vunpack.c.l.b16 %v4184
      %v4286 = vunpack.c.l.b16 %v4185
      %v4287 = vunpack.c.l.b16 %v4186
      %v4288 = vunpack.c.l.b16 %v4187
      %v4289 = vunpack.c.l.b16 %v4188
      %v4290 = vunpack.c.l.b16 %v4189
      %v4291 = vunpack.c.l.b16 %v4190
      %v4292 = vunpack.c.l.b16 %v4191
      %v4293 = vunpack.c.l.b16 %v4192
      %v4294 = vunpack.c.l.b16 %v4193
      %v4295 = vunpack.c.l.b16 %v4194
      %v4296 = vunpack.c.l.b16 %v4195
      %v4297 = vunpack.c.l.b16 %v4196
      %v4298 = vunpack.c.l.b16 %v4197
      %v4299 = vunpack.c.l.b16 %v4198
      %v4300 = vunpack.c.l.b16 %v4199
      %v4301 = vpack.c.b16 %v4256, %v4255
      %v4302 = vpack.c.b16 %v4258, %v4257
      %v4303 = vpack.c.b16 %v4260, %v4259
      %v4304 = vpack.c.b16 %v4262, %v4261
      %v4305 = vpack.c.b16 %v4264, %v4263
      %v4306 = vpack.c.b16 %v4266, %v4265
      %v4307 = vpack.c.b16 %v4268, %v4267
      %v4308 = vpack.c.b16 %v4270, %v4269
      %v4309 = vpack.c.b16 %v4272, %v4271
      %v4310 = vpack.c.b16 %v4274, %v4273
      %v4311 = vpack.c.b16 %v4276, %v4275
      %v4312 = vpack.c.b16 %v4278, %v4277
      %v4313 = vpack.c.b16 %v4280, %v4279
      %v4314 = vpack.c.b16 %v4282, %v4281
      %v4315 = vpack.c.b16 %v4284, %v4283
      %v4316 = vpack.c.b16 %v4286, %v4285
      %v4317 = vpack.c.b16 %v4288, %v4287
      %v4318 = vpack.c.b16 %v4290, %v4289
      %v4319 = vpack.c.b16 %v4292, %v4291
      %v4320 = vpack.c.b16 %v4294, %v4293
      %v4321 = vpack.c.b16 %v4296, %v4295
      %v4322 = vpack.c.b16 %v4298, %v4297
      %v4323 = vpack.c.b16 %v4300, %v4299
      %v4325 = vshrl.u32 %v4301, 16
      %v4327 = vshll.u32 %v4301, 16
      %v4329 = vrot.slane %v4327, 1
      %v4330 = vor.u32 %v4325, %v4329
      %v4332 = vshll.u32 %v4302, 16
      %v4334 = vrot.slane %v4332, 1
      %v4335 = vsel %vm1532, %v4330, %v4334
      %v4336 = vshrl.u32 %v4302, 16
      %v4338 = vor.u32 %v4336, %v4334
      %v4340 = vshll.u32 %v4303, 16
      %v4342 = vrot.slane %v4340, 1
      %v4343 = vsel %vm1532, %v4338, %v4342
      %v4344 = vshrl.u32 %v4303, 16
      %v4346 = vor.u32 %v4344, %v4342
      %v4348 = vshll.u32 %v4304, 16
      %v4350 = vrot.slane %v4348, 1
      %v4351 = vsel %vm1532, %v4346, %v4350
      %v4352 = vshrl.u32 %v4304, 16
      %v4354 = vor.u32 %v4352, %v4350
      %v4356 = vshll.u32 %v4305, 16
      %v4358 = vrot.slane %v4356, 1
      %v4359 = vsel %vm1532, %v4354, %v4358
      %v4360 = vshrl.u32 %v4305, 16
      %v4362 = vor.u32 %v4360, %v4358
      %v4364 = vshll.u32 %v4306, 16
      %v4366 = vrot.slane %v4364, 1
      %v4367 = vsel %vm1532, %v4362, %v4366
      %v4368 = vshrl.u32 %v4306, 16
      %v4370 = vor.u32 %v4368, %v4366
      %v4372 = vshll.u32 %v4307, 16
      %v4374 = vrot.slane %v4372, 1
      %v4375 = vsel %vm1532, %v4370, %v4374
      %v4376 = vshrl.u32 %v4307, 16
      %v4378 = vor.u32 %v4376, %v4374
      %v4380 = vshll.u32 %v4308, 16
      %v4382 = vrot.slane %v4380, 1
      %v4383 = vsel %vm1532, %v4378, %v4382
      %v4384 = vshrl.u32 %v4308, 16
      %v4386 = vor.u32 %v4384, %v4382
      %v4388 = vshll.u32 %v4309, 16
      %v4390 = vrot.slane %v4388, 1
      %v4391 = vsel %vm1532, %v4386, %v4390
      %v4392 = vshrl.u32 %v4309, 16
      %v4394 = vor.u32 %v4392, %v4390
      %v4396 = vshll.u32 %v4310, 16
      %v4398 = vrot.slane %v4396, 1
      %v4399 = vsel %vm1532, %v4394, %v4398
      %v4400 = vshrl.u32 %v4310, 16
      %v4402 = vor.u32 %v4400, %v4398
      %v4404 = vshll.u32 %v4311, 16
      %v4406 = vrot.slane %v4404, 1
      %v4407 = vsel %vm1532, %v4402, %v4406
      %v4408 = vshrl.u32 %v4311, 16
      %v4410 = vor.u32 %v4408, %v4406
      %v4412 = vshll.u32 %v4312, 16
      %v4414 = vrot.slane %v4412, 1
      %v4415 = vsel %vm1532, %v4410, %v4414
      %v4416 = vshrl.u32 %v4312, 16
      %v4418 = vor.u32 %v4416, %v4414
      %v4420 = vshll.u32 %v4313, 16
      %v4422 = vrot.slane %v4420, 1
      %v4423 = vsel %vm1532, %v4418, %v4422
      %v4424 = vshrl.u32 %v4313, 16
      %v4426 = vor.u32 %v4424, %v4422
      %v4428 = vshll.u32 %v4314, 16
      %v4430 = vrot.slane %v4428, 1
      %v4431 = vsel %vm1532, %v4426, %v4430
      %v4432 = vshrl.u32 %v4314, 16
      %v4434 = vor.u32 %v4432, %v4430
      %v4436 = vshll.u32 %v4315, 16
      %v4438 = vrot.slane %v4436, 1
      %v4439 = vsel %vm1532, %v4434, %v4438
      %v4440 = vshrl.u32 %v4315, 16
      %v4442 = vor.u32 %v4440, %v4438
      %v4444 = vshll.u32 %v4316, 16
      %v4446 = vrot.slane %v4444, 1
      %v4447 = vsel %vm1532, %v4442, %v4446
      %v4448 = vshrl.u32 %v4316, 16
      %v4450 = vor.u32 %v4448, %v4446
      %v4452 = vshll.u32 %v4317, 16
      %v4454 = vrot.slane %v4452, 1
      %v4455 = vsel %vm1532, %v4450, %v4454
      %v4456 = vshrl.u32 %v4317, 16
      %v4458 = vor.u32 %v4456, %v4454
      %v4460 = vshll.u32 %v4318, 16
      %v4462 = vrot.slane %v4460, 1
      %v4463 = vsel %vm1532, %v4458, %v4462
      %v4464 = vshrl.u32 %v4318, 16
      %v4466 = vor.u32 %v4464, %v4462
      %v4468 = vshll.u32 %v4319, 16
      %v4470 = vrot.slane %v4468, 1
      %v4471 = vsel %vm1532, %v4466, %v4470
      %v4472 = vshrl.u32 %v4319, 16
      %v4474 = vor.u32 %v4472, %v4470
      %v4476 = vshll.u32 %v4320, 16
      %v4478 = vrot.slane %v4476, 1
      %v4479 = vsel %vm1532, %v4474, %v4478
      %v4480 = vshrl.u32 %v4320, 16
      %v4482 = vor.u32 %v4480, %v4478
      %v4484 = vshll.u32 %v4321, 16
      %v4486 = vrot.slane %v4484, 1
      %v4487 = vsel %vm1532, %v4482, %v4486
      %v4488 = vshrl.u32 %v4321, 16
      %v4490 = vor.u32 %v4488, %v4486
      %v4492 = vshll.u32 %v4322, 16
      %v4494 = vrot.slane %v4492, 1
      %v4495 = vsel %vm1532, %v4490, %v4494
      %v4496 = vshrl.u32 %v4322, 16
      %v4498 = vor.u32 %v4496, %v4494
      %v4500 = vshll.u32 %v4323, 16
      %v4502 = vrot.slane %v4500, 1
      %v4503 = vsel %vm1532, %v4498, %v4502
      %v4504 = vshrl.u32 %v4323, 16
      %v4506 = vor.u32 %v4504, %v4502
      %v4515 = vunpack.c.l.b16 %v4201
      %v4516 = vunpack.c.l.b16 %v4202
      %v4517 = vunpack.c.l.b16 %v4203
      %v4518 = vunpack.c.l.b16 %v4204
      %v4519 = vunpack.c.l.b16 %v4205
      %v4520 = vunpack.c.l.b16 %v4206
      %v4521 = vunpack.c.l.b16 %v4207
      %v4522 = vunpack.c.l.b16 %v4208
      %v4523 = vpack.c.b16 %v4516, %v4515
      %v4524 = vpack.c.b16 %v4518, %v4517
      %v4525 = vpack.c.b16 %v4520, %v4519
      %v4526 = vpack.c.b16 %v4522, %v4521
      %v4532 = vsel %vm1740, %v4335, 0
      %v4535 = vsel %vm1740, %v4343, 0
      %v4538 = vsel %vm1740, %v4351, 0
      %v4541 = vsel %vm1740, %v4359, 0
      %v4544 = vsel %vm1740, %v4367, 0
      %v4547 = vsel %vm1740, %v4375, 0
      %v4550 = vsel %vm1740, %v4383, 0
      %v4553 = vsel %vm1740, %v4391, 0
      %v4556 = vsel %vm1740, %v4399, 0
      %v4559 = vsel %vm1740, %v4407, 0
      %v4562 = vsel %vm1740, %v4415, 0
      %v4565 = vsel %vm1740, %v4423, 0
      %v4568 = vsel %vm1740, %v4431, 0
      %v4571 = vsel %vm1740, %v4439, 0
      %v4574 = vsel %vm1740, %v4447, 0
      %v4577 = vsel %vm1740, %v4455, 0
      %v4580 = vsel %vm1740, %v4463, 0
      %v4583 = vsel %vm1740, %v4471, 0
      %v4586 = vsel %vm1740, %v4479, 0
      %v4589 = vsel %vm1740, %v4487, 0
      %v4592 = vsel %vm1740, %v4495, 0
      %v4595 = vsel %vm1740, %v4503, 0
      %v4598 = vsel %vm1740, %v4506, 0
      %4600 = vmatpush.bf16.msra.mxu0 0
      %4601 = vmatpush.bf16.msra.mxu0 0
      %4602 = vmatpush.bf16.msra.mxu0 0
      %4603 = vmatpush.bf16.msra.mxu0 0
      %4604 = vmatpush.bf16.msra.mxu0 %v4526
      %4605 = vmatpush.bf16.msra.mxu0 %v4525
      %4606 = vmatpush.bf16.msra.mxu0 %v4524
      %4607 = vmatpush.bf16.msra.mxu0 %v4523
      %4608 = vmatmul.bf16.gmra.mxu0 %v4532
      %v4609 = vpop.f32.mrf.mxu0
      %v4610 = vadd.f32 0.0, %v4609
      %v4611 = vpop.f32.mrf.mxu0
      %v4612 = vadd.f32 0.0, %v4611
      %4613 = vmatmul.bf16.gmra.mxu0 %v4535
      %v4614 = vpop.f32.mrf.mxu0
      %v4615 = vadd.f32 0.0, %v4614
      %v4616 = vpop.f32.mrf.mxu0
      %v4617 = vadd.f32 0.0, %v4616
      %4618 = vmatmul.bf16.gmra.mxu0 %v4538
      %v4619 = vpop.f32.mrf.mxu0
      %v4620 = vadd.f32 0.0, %v4619
      %v4621 = vpop.f32.mrf.mxu0
      %v4622 = vadd.f32 0.0, %v4621
      %4623 = vmatmul.bf16.gmra.mxu0 %v4541
      %v4624 = vpop.f32.mrf.mxu0
      %v4625 = vadd.f32 0.0, %v4624
      %v4626 = vpop.f32.mrf.mxu0
      %v4627 = vadd.f32 0.0, %v4626
      %4628 = vmatmul.bf16.gmra.mxu0 %v4544
      %v4629 = vpop.f32.mrf.mxu0
      %v4630 = vadd.f32 0.0, %v4629
      %v4631 = vpop.f32.mrf.mxu0
      %v4632 = vadd.f32 0.0, %v4631
      %4633 = vmatmul.bf16.gmra.mxu0 %v4547
      %v4634 = vpop.f32.mrf.mxu0
      %v4635 = vadd.f32 0.0, %v4634
      %v4636 = vpop.f32.mrf.mxu0
      %v4637 = vadd.f32 0.0, %v4636
      %4638 = vmatmul.bf16.gmra.mxu0 %v4550
      %v4639 = vpop.f32.mrf.mxu0
      %v4640 = vadd.f32 0.0, %v4639
      %v4641 = vpop.f32.mrf.mxu0
      %v4642 = vadd.f32 0.0, %v4641
      %4643 = vmatmul.bf16.gmra.mxu0 %v4553
      %v4644 = vpop.f32.mrf.mxu0
      %v4645 = vadd.f32 0.0, %v4644
      %v4646 = vpop.f32.mrf.mxu0
      %v4647 = vadd.f32 0.0, %v4646
      %4648 = vmatmul.bf16.gmra.mxu0 %v4556
      %v4649 = vpop.f32.mrf.mxu0
      %v4650 = vadd.f32 0.0, %v4649
      %v4651 = vpop.f32.mrf.mxu0
      %v4652 = vadd.f32 0.0, %v4651
      %4653 = vmatmul.bf16.gmra.mxu0 %v4559
      %v4654 = vpop.f32.mrf.mxu0
      %v4655 = vadd.f32 0.0, %v4654
      %v4656 = vpop.f32.mrf.mxu0
      %v4657 = vadd.f32 0.0, %v4656
      %4658 = vmatmul.bf16.gmra.mxu0 %v4562
      %v4659 = vpop.f32.mrf.mxu0
      %v4660 = vadd.f32 0.0, %v4659
      %v4661 = vpop.f32.mrf.mxu0
      %v4662 = vadd.f32 0.0, %v4661
      %4663 = vmatmul.bf16.gmra.mxu0 %v4565
      %v4664 = vpop.f32.mrf.mxu0
      %v4665 = vadd.f32 0.0, %v4664
      %v4666 = vpop.f32.mrf.mxu0
      %v4667 = vadd.f32 0.0, %v4666
      %4668 = vmatmul.bf16.gmra.mxu0 %v4568
      %v4669 = vpop.f32.mrf.mxu0
      %v4670 = vadd.f32 0.0, %v4669
      %v4671 = vpop.f32.mrf.mxu0
      %v4672 = vadd.f32 0.0, %v4671
      %4673 = vmatmul.bf16.gmra.mxu0 %v4571
      %v4674 = vpop.f32.mrf.mxu0
      %v4675 = vadd.f32 0.0, %v4674
      %v4676 = vpop.f32.mrf.mxu0
      %v4677 = vadd.f32 0.0, %v4676
      %4678 = vmatmul.bf16.gmra.mxu0 %v4574
      %v4679 = vpop.f32.mrf.mxu0
      %v4680 = vadd.f32 0.0, %v4679
      %v4681 = vpop.f32.mrf.mxu0
      %v4682 = vadd.f32 0.0, %v4681
      %4683 = vmatmul.bf16.gmra.mxu0 %v4577
      %v4684 = vpop.f32.mrf.mxu0
      %v4685 = vadd.f32 0.0, %v4684
      %v4686 = vpop.f32.mrf.mxu0
      %v4687 = vadd.f32 0.0, %v4686
      %4688 = vmatmul.bf16.gmra.mxu0 %v4580
      %v4689 = vpop.f32.mrf.mxu0
      %v4690 = vadd.f32 0.0, %v4689
      %v4691 = vpop.f32.mrf.mxu0
      %v4692 = vadd.f32 0.0, %v4691
      %4693 = vmatmul.bf16.gmra.mxu0 %v4583
      %v4694 = vpop.f32.mrf.mxu0
      %v4695 = vadd.f32 0.0, %v4694
      %v4696 = vpop.f32.mrf.mxu0
      %v4697 = vadd.f32 0.0, %v4696
      %4698 = vmatmul.bf16.gmra.mxu0 %v4586
      %v4699 = vpop.f32.mrf.mxu0
      %v4700 = vadd.f32 0.0, %v4699
      %v4701 = vpop.f32.mrf.mxu0
      %v4702 = vadd.f32 0.0, %v4701
      %4703 = vmatmul.bf16.gmra.mxu0 %v4589
      %v4704 = vpop.f32.mrf.mxu0
      %v4705 = vadd.f32 0.0, %v4704
      %v4706 = vpop.f32.mrf.mxu0
      %v4707 = vadd.f32 0.0, %v4706
      %4708 = vmatmul.bf16.gmra.mxu0 %v4592
      %v4709 = vpop.f32.mrf.mxu0
      %v4710 = vadd.f32 0.0, %v4709
      %v4711 = vpop.f32.mrf.mxu0
      %v4712 = vadd.f32 0.0, %v4711
      %4713 = vmatmul.bf16.gmra.mxu0 %v4595
      %v4714 = vpop.f32.mrf.mxu0
      %v4715 = vadd.f32 0.0, %v4714
      %v4716 = vpop.f32.mrf.mxu0
      %v4717 = vadd.f32 0.0, %v4716
      %4718 = vmatmul.bf16.gmra.mxu0 %v4598
      %v4719 = vpop.f32.mrf.mxu0
      %v4720 = vadd.f32 0.0, %v4719
      %v4721 = vpop.f32.mrf.mxu0
      %4722 = vdwg.mxu0
      %v4723 = vadd.f32 %v4109, %v4610
      %v4724 = vadd.f32 %v4110, %v4612
      %v4725 = vadd.f32 %v4111, %v4615
      %v4726 = vadd.f32 %v4112, %v4617
      %v4727 = vadd.f32 %v4113, %v4620
      %v4728 = vadd.f32 %v4114, %v4622
      %v4729 = vadd.f32 %v4115, %v4625
      %v4730 = vadd.f32 %v4116, %v4627
      %v4731 = vadd.f32 %v4117, %v4630
      %v4732 = vadd.f32 %v4118, %v4632
      %v4733 = vadd.f32 %v4119, %v4635
      %v4734 = vadd.f32 %v4120, %v4637
      %v4735 = vadd.f32 %v4121, %v4640
      %v4736 = vadd.f32 %v4122, %v4642
      %v4737 = vadd.f32 %v4123, %v4645
      %v4738 = vadd.f32 %v4124, %v4647
      %v4739 = vadd.f32 %v4125, %v4650
      %v4740 = vadd.f32 %v4126, %v4652
      %v4741 = vadd.f32 %v4127, %v4655
      %v4742 = vadd.f32 %v4128, %v4657
      %v4743 = vadd.f32 %v4129, %v4660
      %v4744 = vadd.f32 %v4130, %v4662
      %v4745 = vadd.f32 %v4131, %v4665
      %v4746 = vadd.f32 %v4132, %v4667
      %v4747 = vadd.f32 %v4133, %v4670
      %v4748 = vadd.f32 %v4134, %v4672
      %v4749 = vadd.f32 %v4135, %v4675
      %v4750 = vadd.f32 %v4136, %v4677
      %v4751 = vadd.f32 %v4137, %v4680
      %v4752 = vadd.f32 %v4138, %v4682
      %v4753 = vadd.f32 %v4139, %v4685
      %v4754 = vadd.f32 %v4140, %v4687
      %v4755 = vadd.f32 %v4141, %v4690
      %v4756 = vadd.f32 %v4142, %v4692
      %v4757 = vadd.f32 %v4143, %v4695
      %v4758 = vadd.f32 %v4144, %v4697
      %v4759 = vadd.f32 %v4145, %v4700
      %v4760 = vadd.f32 %v4146, %v4702
      %v4761 = vadd.f32 %v4147, %v4705
      %v4762 = vadd.f32 %v4148, %v4707
      %v4763 = vadd.f32 %v4149, %v4710
      %v4764 = vadd.f32 %v4150, %v4712
      %v4765 = vadd.f32 %v4151, %v4715
      %v4766 = vadd.f32 %v4152, %v4717
      %v4767 = vadd.f32 %v4153, %v4720
      %v4768 = vld [vmem:[#allocation2 + $0x14] sm:$0xe]
      %s4769 = scalar_lea.vmem %s3, 256
      %v4770 = vld [vmem:[%s4769] sm:$0xf]
      %v4771 = vld [vmem:[%s4769 + $0x4] sm:$0xf]
      %v4772 = vld [vmem:[%s4769 + $0x8] sm:$0xf]
      %v4773 = vld [vmem:[%s4769 + $0xc] sm:$0xf]
      %v4774 = vld [vmem:[%s4769 + $0x10] sm:$0xf]
      %v4775 = vld [vmem:[%s4769 + $0x14] sm:$0xf]
      %v4776 = vld [vmem:[%s4769 + $0x18] sm:$0xf]
      %v4777 = vld [vmem:[%s4769 + $0x1c] sm:$0xf]
      %v4779 = vunpack.c.l.b16 %v4768
      %v4780 = vpack.c.b16 %v4256, %v4779
      %v4781 = vrot.slane %v4780, 1
      %v4782 = vrot.slane %v4302, 1
      %v4783 = vsel %vm2141, %v4781, %v4782
      %v4784 = vrot.slane %v4303, 1
      %v4785 = vsel %vm2141, %v4782, %v4784
      %v4786 = vrot.slane %v4304, 1
      %v4787 = vsel %vm2141, %v4784, %v4786
      %v4788 = vrot.slane %v4305, 1
      %v4789 = vsel %vm2141, %v4786, %v4788
      %v4790 = vrot.slane %v4306, 1
      %v4791 = vsel %vm2141, %v4788, %v4790
      %v4792 = vrot.slane %v4307, 1
      %v4793 = vsel %vm2141, %v4790, %v4792
      %v4794 = vrot.slane %v4308, 1
      %v4795 = vsel %vm2141, %v4792, %v4794
      %v4796 = vrot.slane %v4309, 1
      %v4797 = vsel %vm2141, %v4794, %v4796
      %v4798 = vrot.slane %v4310, 1
      %v4799 = vsel %vm2141, %v4796, %v4798
      %v4800 = vrot.slane %v4311, 1
      %v4801 = vsel %vm2141, %v4798, %v4800
      %v4802 = vrot.slane %v4312, 1
      %v4803 = vsel %vm2141, %v4800, %v4802
      %v4804 = vrot.slane %v4313, 1
      %v4805 = vsel %vm2141, %v4802, %v4804
      %v4806 = vrot.slane %v4314, 1
      %v4807 = vsel %vm2141, %v4804, %v4806
      %v4808 = vrot.slane %v4315, 1
      %v4809 = vsel %vm2141, %v4806, %v4808
      %v4810 = vrot.slane %v4316, 1
      %v4811 = vsel %vm2141, %v4808, %v4810
      %v4812 = vrot.slane %v4317, 1
      %v4813 = vsel %vm2141, %v4810, %v4812
      %v4814 = vrot.slane %v4318, 1
      %v4815 = vsel %vm2141, %v4812, %v4814
      %v4816 = vrot.slane %v4319, 1
      %v4817 = vsel %vm2141, %v4814, %v4816
      %v4818 = vrot.slane %v4320, 1
      %v4819 = vsel %vm2141, %v4816, %v4818
      %v4820 = vrot.slane %v4321, 1
      %v4821 = vsel %vm2141, %v4818, %v4820
      %v4822 = vrot.slane %v4322, 1
      %v4823 = vsel %vm2141, %v4820, %v4822
      %v4824 = vrot.slane %v4323, 1
      %v4825 = vsel %vm2141, %v4822, %v4824
      %v4834 = vunpack.c.l.b16 %v4770
      %v4835 = vunpack.c.l.b16 %v4771
      %v4836 = vunpack.c.l.b16 %v4772
      %v4837 = vunpack.c.l.b16 %v4773
      %v4838 = vunpack.c.l.b16 %v4774
      %v4839 = vunpack.c.l.b16 %v4775
      %v4840 = vunpack.c.l.b16 %v4776
      %v4841 = vunpack.c.l.b16 %v4777
      %v4842 = vpack.c.b16 %v4835, %v4834
      %v4843 = vpack.c.b16 %v4837, %v4836
      %v4844 = vpack.c.b16 %v4839, %v4838
      %v4845 = vpack.c.b16 %v4841, %v4840
      %v4851 = vsel %vm1740, %v4783, 0
      %v4854 = vsel %vm1740, %v4785, 0
      %v4857 = vsel %vm1740, %v4787, 0
      %v4860 = vsel %vm1740, %v4789, 0
      %v4863 = vsel %vm1740, %v4791, 0
      %v4866 = vsel %vm1740, %v4793, 0
      %v4869 = vsel %vm1740, %v4795, 0
      %v4872 = vsel %vm1740, %v4797, 0
      %v4875 = vsel %vm1740, %v4799, 0
      %v4878 = vsel %vm1740, %v4801, 0
      %v4881 = vsel %vm1740, %v4803, 0
      %v4884 = vsel %vm1740, %v4805, 0
      %v4887 = vsel %vm1740, %v4807, 0
      %v4890 = vsel %vm1740, %v4809, 0
      %v4893 = vsel %vm1740, %v4811, 0
      %v4896 = vsel %vm1740, %v4813, 0
      %v4899 = vsel %vm1740, %v4815, 0
      %v4902 = vsel %vm1740, %v4817, 0
      %v4905 = vsel %vm1740, %v4819, 0
      %v4908 = vsel %vm1740, %v4821, 0
      %v4911 = vsel %vm1740, %v4823, 0
      %v4914 = vsel %vm1740, %v4825, 0
      %v4917 = vsel %vm1740, %v4824, 0
      %4919 = vmatpush.bf16.msra.mxu0 0
      %4920 = vmatpush.bf16.msra.mxu0 0
      %4921 = vmatpush.bf16.msra.mxu0 0
      %4922 = vmatpush.bf16.msra.mxu0 0
      %4923 = vmatpush.bf16.msra.mxu0 %v4845
      %4924 = vmatpush.bf16.msra.mxu0 %v4844
      %4925 = vmatpush.bf16.msra.mxu0 %v4843
      %4926 = vmatpush.bf16.msra.mxu0 %v4842
      %4927 = vmatmul.bf16.gmra.mxu0 %v4851
      %v4928 = vpop.f32.mrf.mxu0
      %v4929 = vadd.f32 0.0, %v4928
      %v4930 = vpop.f32.mrf.mxu0
      %v4931 = vadd.f32 0.0, %v4930
      %4932 = vmatmul.bf16.gmra.mxu0 %v4854
      %v4933 = vpop.f32.mrf.mxu0
      %v4934 = vadd.f32 0.0, %v4933
      %v4935 = vpop.f32.mrf.mxu0
      %v4936 = vadd.f32 0.0, %v4935
      %4937 = vmatmul.bf16.gmra.mxu0 %v4857
      %v4938 = vpop.f32.mrf.mxu0
      %v4939 = vadd.f32 0.0, %v4938
      %v4940 = vpop.f32.mrf.mxu0
      %v4941 = vadd.f32 0.0, %v4940
      %4942 = vmatmul.bf16.gmra.mxu0 %v4860
      %v4943 = vpop.f32.mrf.mxu0
      %v4944 = vadd.f32 0.0, %v4943
      %v4945 = vpop.f32.mrf.mxu0
      %v4946 = vadd.f32 0.0, %v4945
      %4947 = vmatmul.bf16.gmra.mxu0 %v4863
      %v4948 = vpop.f32.mrf.mxu0
      %v4949 = vadd.f32 0.0, %v4948
      %v4950 = vpop.f32.mrf.mxu0
      %v4951 = vadd.f32 0.0, %v4950
      %4952 = vmatmul.bf16.gmra.mxu0 %v4866
      %v4953 = vpop.f32.mrf.mxu0
      %v4954 = vadd.f32 0.0, %v4953
      %v4955 = vpop.f32.mrf.mxu0
      %v4956 = vadd.f32 0.0, %v4955
      %4957 = vmatmul.bf16.gmra.mxu0 %v4869
      %v4958 = vpop.f32.mrf.mxu0
      %v4959 = vadd.f32 0.0, %v4958
      %v4960 = vpop.f32.mrf.mxu0
      %v4961 = vadd.f32 0.0, %v4960
      %4962 = vmatmul.bf16.gmra.mxu0 %v4872
      %v4963 = vpop.f32.mrf.mxu0
      %v4964 = vadd.f32 0.0, %v4963
      %v4965 = vpop.f32.mrf.mxu0
      %v4966 = vadd.f32 0.0, %v4965
      %4967 = vmatmul.bf16.gmra.mxu0 %v4875
      %v4968 = vpop.f32.mrf.mxu0
      %v4969 = vadd.f32 0.0, %v4968
      %v4970 = vpop.f32.mrf.mxu0
      %v4971 = vadd.f32 0.0, %v4970
      %4972 = vmatmul.bf16.gmra.mxu0 %v4878
      %v4973 = vpop.f32.mrf.mxu0
      %v4974 = vadd.f32 0.0, %v4973
      %v4975 = vpop.f32.mrf.mxu0
      %v4976 = vadd.f32 0.0, %v4975
      %4977 = vmatmul.bf16.gmra.mxu0 %v4881
      %v4978 = vpop.f32.mrf.mxu0
      %v4979 = vadd.f32 0.0, %v4978
      %v4980 = vpop.f32.mrf.mxu0
      %v4981 = vadd.f32 0.0, %v4980
      %4982 = vmatmul.bf16.gmra.mxu0 %v4884
      %v4983 = vpop.f32.mrf.mxu0
      %v4984 = vadd.f32 0.0, %v4983
      %v4985 = vpop.f32.mrf.mxu0
      %v4986 = vadd.f32 0.0, %v4985
      %4987 = vmatmul.bf16.gmra.mxu0 %v4887
      %v4988 = vpop.f32.mrf.mxu0
      %v4989 = vadd.f32 0.0, %v4988
      %v4990 = vpop.f32.mrf.mxu0
      %v4991 = vadd.f32 0.0, %v4990
      %4992 = vmatmul.bf16.gmra.mxu0 %v4890
      %v4993 = vpop.f32.mrf.mxu0
      %v4994 = vadd.f32 0.0, %v4993
      %v4995 = vpop.f32.mrf.mxu0
      %v4996 = vadd.f32 0.0, %v4995
      %4997 = vmatmul.bf16.gmra.mxu0 %v4893
      %v4998 = vpop.f32.mrf.mxu0
      %v4999 = vadd.f32 0.0, %v4998
      %v5000 = vpop.f32.mrf.mxu0
      %v5001 = vadd.f32 0.0, %v5000
      %5002 = vmatmul.bf16.gmra.mxu0 %v4896
      %v5003 = vpop.f32.mrf.mxu0
      %v5004 = vadd.f32 0.0, %v5003
      %v5005 = vpop.f32.mrf.mxu0
      %v5006 = vadd.f32 0.0, %v5005
      %5007 = vmatmul.bf16.gmra.mxu0 %v4899
      %v5008 = vpop.f32.mrf.mxu0
      %v5009 = vadd.f32 0.0, %v5008
      %v5010 = vpop.f32.mrf.mxu0
      %v5011 = vadd.f32 0.0, %v5010
      %5012 = vmatmul.bf16.gmra.mxu0 %v4902
      %v5013 = vpop.f32.mrf.mxu0
      %v5014 = vadd.f32 0.0, %v5013
      %v5015 = vpop.f32.mrf.mxu0
      %v5016 = vadd.f32 0.0, %v5015
      %5017 = vmatmul.bf16.gmra.mxu0 %v4905
      %v5018 = vpop.f32.mrf.mxu0
      %v5019 = vadd.f32 0.0, %v5018
      %v5020 = vpop.f32.mrf.mxu0
      %v5021 = vadd.f32 0.0, %v5020
      %5022 = vmatmul.bf16.gmra.mxu0 %v4908
      %v5023 = vpop.f32.mrf.mxu0
      %v5024 = vadd.f32 0.0, %v5023
      %v5025 = vpop.f32.mrf.mxu0
      %v5026 = vadd.f32 0.0, %v5025
      %5027 = vmatmul.bf16.gmra.mxu0 %v4911
      %v5028 = vpop.f32.mrf.mxu0
      %v5029 = vadd.f32 0.0, %v5028
      %v5030 = vpop.f32.mrf.mxu0
      %v5031 = vadd.f32 0.0, %v5030
      %5032 = vmatmul.bf16.gmra.mxu0 %v4914
      %v5033 = vpop.f32.mrf.mxu0
      %v5034 = vadd.f32 0.0, %v5033
      %v5035 = vpop.f32.mrf.mxu0
      %v5036 = vadd.f32 0.0, %v5035
      %5037 = vmatmul.bf16.gmra.mxu0 %v4917
      %v5038 = vpop.f32.mrf.mxu0
      %v5039 = vadd.f32 0.0, %v5038
      %v5040 = vpop.f32.mrf.mxu0
      %5041 = vdwg.mxu0
      %v5042 = vadd.f32 %v4723, %v4929
      %v5043 = vadd.f32 %v4724, %v4931
      %v5044 = vadd.f32 %v4725, %v4934
      %v5045 = vadd.f32 %v4726, %v4936
      %v5046 = vadd.f32 %v4727, %v4939
      %v5047 = vadd.f32 %v4728, %v4941
      %v5048 = vadd.f32 %v4729, %v4944
      %v5049 = vadd.f32 %v4730, %v4946
      %v5050 = vadd.f32 %v4731, %v4949
      %v5051 = vadd.f32 %v4732, %v4951
      %v5052 = vadd.f32 %v4733, %v4954
      %v5053 = vadd.f32 %v4734, %v4956
      %v5054 = vadd.f32 %v4735, %v4959
      %v5055 = vadd.f32 %v4736, %v4961
      %v5056 = vadd.f32 %v4737, %v4964
      %v5057 = vadd.f32 %v4738, %v4966
      %v5058 = vadd.f32 %v4739, %v4969
      %v5059 = vadd.f32 %v4740, %v4971
      %v5060 = vadd.f32 %v4741, %v4974
      %v5061 = vadd.f32 %v4742, %v4976
      %v5062 = vadd.f32 %v4743, %v4979
      %v5063 = vadd.f32 %v4744, %v4981
      %v5064 = vadd.f32 %v4745, %v4984
      %v5065 = vadd.f32 %v4746, %v4986
      %v5066 = vadd.f32 %v4747, %v4989
      %v5067 = vadd.f32 %v4748, %v4991
      %v5068 = vadd.f32 %v4749, %v4994
      %v5069 = vadd.f32 %v4750, %v4996
      %v5070 = vadd.f32 %v4751, %v4999
      %v5071 = vadd.f32 %v4752, %v5001
      %v5072 = vadd.f32 %v4753, %v5004
      %v5073 = vadd.f32 %v4754, %v5006
      %v5074 = vadd.f32 %v4755, %v5009
      %v5075 = vadd.f32 %v4756, %v5011
      %v5076 = vadd.f32 %v4757, %v5014
      %v5077 = vadd.f32 %v4758, %v5016
      %v5078 = vadd.f32 %v4759, %v5019
      %v5079 = vadd.f32 %v4760, %v5021
      %v5080 = vadd.f32 %v4761, %v5024
      %v5081 = vadd.f32 %v4762, %v5026
      %v5082 = vadd.f32 %v4763, %v5029
      %v5083 = vadd.f32 %v4764, %v5031
      %v5084 = vadd.f32 %v4765, %v5034
      %v5085 = vadd.f32 %v4766, %v5036
      %v5086 = vadd.f32 %v4767, %v5039
      %v5087 = vld [vmem:[%s4] sm:$0x1]
      %v5089 = vperm.slane %v5087, 0
      %v5091 = vadd.f32 %v5042, %v5089
      %v5092 = vadd.f32 %v5043, %v5089
      %v5093 = vadd.f32 %v5044, %v5089
      %v5094 = vadd.f32 %v5045, %v5089
      %v5095 = vadd.f32 %v5046, %v5089
      %v5096 = vadd.f32 %v5047, %v5089
      %v5097 = vadd.f32 %v5048, %v5089
      %v5098 = vadd.f32 %v5049, %v5089
      %v5099 = vadd.f32 %v5050, %v5089
      %v5100 = vadd.f32 %v5051, %v5089
      %v5101 = vadd.f32 %v5052, %v5089
      %v5102 = vadd.f32 %v5053, %v5089
      %v5103 = vadd.f32 %v5054, %v5089
      %v5104 = vadd.f32 %v5055, %v5089
      %v5105 = vadd.f32 %v5056, %v5089
      %v5106 = vadd.f32 %v5057, %v5089
      %v5107 = vadd.f32 %v5058, %v5089
      %v5108 = vadd.f32 %v5059, %v5089
      %v5109 = vadd.f32 %v5060, %v5089
      %v5110 = vadd.f32 %v5061, %v5089
      %v5111 = vadd.f32 %v5062, %v5089
      %v5112 = vadd.f32 %v5063, %v5089
      %v5113 = vadd.f32 %v5064, %v5089
      %v5114 = vadd.f32 %v5065, %v5089
      %v5115 = vadd.f32 %v5066, %v5089
      %v5116 = vadd.f32 %v5067, %v5089
      %v5117 = vadd.f32 %v5068, %v5089
      %v5118 = vadd.f32 %v5069, %v5089
      %v5119 = vadd.f32 %v5070, %v5089
      %v5120 = vadd.f32 %v5071, %v5089
      %v5121 = vadd.f32 %v5072, %v5089
      %v5122 = vadd.f32 %v5073, %v5089
      %v5123 = vadd.f32 %v5074, %v5089
      %v5124 = vadd.f32 %v5075, %v5089
      %v5125 = vadd.f32 %v5076, %v5089
      %v5126 = vadd.f32 %v5077, %v5089
      %v5127 = vadd.f32 %v5078, %v5089
      %v5128 = vadd.f32 %v5079, %v5089
      %v5129 = vadd.f32 %v5080, %v5089
      %v5130 = vadd.f32 %v5081, %v5089
      %v5131 = vadd.f32 %v5082, %v5089
      %v5132 = vadd.f32 %v5083, %v5089
      %v5133 = vadd.f32 %v5084, %v5089
      %v5134 = vadd.f32 %v5085, %v5089
      %v5135 = vadd.f32 %v5086, %v5089
      %v5136 = vtanh.pop %v5091
      %v5137 = vtanh.pop %v5092
      %v5138 = vtanh.pop %v5093
      %v5139 = vtanh.pop %v5094
      %v5140 = vtanh.pop %v5095
      %v5141 = vtanh.pop %v5096
      %v5142 = vtanh.pop %v5097
      %v5143 = vtanh.pop %v5098
      %v5144 = vtanh.pop %v5099
      %v5145 = vtanh.pop %v5100
      %v5146 = vtanh.pop %v5101
      %v5147 = vtanh.pop %v5102
      %v5148 = vtanh.pop %v5103
      %v5149 = vtanh.pop %v5104
      %v5150 = vtanh.pop %v5105
      %v5151 = vtanh.pop %v5106
      %v5152 = vtanh.pop %v5107
      %v5153 = vtanh.pop %v5108
      %v5154 = vtanh.pop %v5109
      %v5155 = vtanh.pop %v5110
      %v5156 = vtanh.pop %v5111
      %v5157 = vtanh.pop %v5112
      %v5158 = vtanh.pop %v5113
      %v5159 = vtanh.pop %v5114
      %v5160 = vtanh.pop %v5115
      %v5161 = vtanh.pop %v5116
      %v5162 = vtanh.pop %v5117
      %v5163 = vtanh.pop %v5118
      %v5164 = vtanh.pop %v5119
      %v5165 = vtanh.pop %v5120
      %v5166 = vtanh.pop %v5121
      %v5167 = vtanh.pop %v5122
      %v5168 = vtanh.pop %v5123
      %v5169 = vtanh.pop %v5124
      %v5170 = vtanh.pop %v5125
      %v5171 = vtanh.pop %v5126
      %v5172 = vtanh.pop %v5127
      %v5173 = vtanh.pop %v5128
      %v5174 = vtanh.pop %v5129
      %v5175 = vtanh.pop %v5130
      %v5176 = vtanh.pop %v5131
      %v5177 = vtanh.pop %v5132
      %v5178 = vtanh.pop %v5133
      %v5179 = vtanh.pop %v5134
      %v5180 = vtanh.pop %v5135
      %v5181 = vpack.c.bf16 %v5136, %v5136
      %v5182 = vpack.c.bf16 %v5137, %v5137
      %v5183 = vpack.c.bf16 %v5138, %v5138
      %v5184 = vpack.c.bf16 %v5139, %v5139
      %v5185 = vpack.c.bf16 %v5140, %v5140
      %v5186 = vpack.c.bf16 %v5141, %v5141
      %v5187 = vpack.c.bf16 %v5142, %v5142
      %v5188 = vpack.c.bf16 %v5143, %v5143
      %v5189 = vpack.c.bf16 %v5144, %v5144
      %v5190 = vpack.c.bf16 %v5145, %v5145
      %v5191 = vpack.c.bf16 %v5146, %v5146
      %v5192 = vpack.c.bf16 %v5147, %v5147
      %v5193 = vpack.c.bf16 %v5148, %v5148
      %v5194 = vpack.c.bf16 %v5149, %v5149
      %v5195 = vpack.c.bf16 %v5150, %v5150
      %v5196 = vpack.c.bf16 %v5151, %v5151
      %v5197 = vpack.c.bf16 %v5152, %v5152
      %v5198 = vpack.c.bf16 %v5153, %v5153
      %v5199 = vpack.c.bf16 %v5154, %v5154
      %v5200 = vpack.c.bf16 %v5155, %v5155
      %v5201 = vpack.c.bf16 %v5156, %v5156
      %v5202 = vpack.c.bf16 %v5157, %v5157
      %v5203 = vpack.c.bf16 %v5158, %v5158
      %v5204 = vpack.c.bf16 %v5159, %v5159
      %v5205 = vpack.c.bf16 %v5160, %v5160
      %v5206 = vpack.c.bf16 %v5161, %v5161
      %v5207 = vpack.c.bf16 %v5162, %v5162
      %v5208 = vpack.c.bf16 %v5163, %v5163
      %v5209 = vpack.c.bf16 %v5164, %v5164
      %v5210 = vpack.c.bf16 %v5165, %v5165
      %v5211 = vpack.c.bf16 %v5166, %v5166
      %v5212 = vpack.c.bf16 %v5167, %v5167
      %v5213 = vpack.c.bf16 %v5168, %v5168
      %v5214 = vpack.c.bf16 %v5169, %v5169
      %v5215 = vpack.c.bf16 %v5170, %v5170
      %v5216 = vpack.c.bf16 %v5171, %v5171
      %v5217 = vpack.c.bf16 %v5172, %v5172
      %v5218 = vpack.c.bf16 %v5173, %v5173
      %v5219 = vpack.c.bf16 %v5174, %v5174
      %v5220 = vpack.c.bf16 %v5175, %v5175
      %v5221 = vpack.c.bf16 %v5176, %v5176
      %v5222 = vpack.c.bf16 %v5177, %v5177
      %v5223 = vpack.c.bf16 %v5178, %v5178
      %v5224 = vpack.c.bf16 %v5179, %v5179
      %v5225 = vpack.c.bf16 %v5180, %v5180
      %5226 = vset.pattern.permute.xlu0 101
      %5227 = vperm.xlu0 %5226, %v953
      %v5228 = vpop.permute.xlu0 %5227
      %5229 = vset.pattern.permute.xlu0 101
      %5230 = vperm.xlu0 %5229, %v954
      %v5231 = vpop.permute.xlu0 %5230
      %5232 = vset.pattern.permute.xlu0 101
      %5233 = vperm.xlu0 %5232, %v955
      %v5234 = vpop.permute.xlu0 %5233
      %5235 = vset.pattern.permute.xlu0 101
      %5236 = vperm.xlu0 %5235, %v956
      %v5237 = vpop.permute.xlu0 %5236
      %5238 = vset.pattern.permute.xlu0 101
      %5239 = vperm.xlu0 %5238, %v957
      %v5240 = vpop.permute.xlu0 %5239
      %5241 = vset.pattern.permute.xlu0 101
      %5242 = vperm.xlu0 %5241, %v958
      %v5243 = vpop.permute.xlu0 %5242
      %5244 = vset.pattern.permute.xlu0 101
      %5245 = vperm.xlu0 %5244, %v959
      %v5246 = vpop.permute.xlu0 %5245
      %5247 = vset.pattern.permute.xlu0 101
      %5248 = vperm.xlu0 %5247, %v960
      %v5249 = vpop.permute.xlu0 %5248
      %5250 = vset.pattern.permute.xlu0 101
      %5251 = vperm.xlu0 %5250, %v961
      %v5252 = vpop.permute.xlu0 %5251
      %5253 = vset.pattern.permute.xlu0 101
      %5254 = vperm.xlu0 %5253, %v962
      %v5255 = vpop.permute.xlu0 %5254
      %5256 = vset.pattern.permute.xlu0 101
      %5257 = vperm.xlu0 %5256, %v963
      %v5258 = vpop.permute.xlu0 %5257
      %5259 = vset.pattern.permute.xlu0 101
      %5260 = vperm.xlu0 %5259, %v964
      %v5261 = vpop.permute.xlu0 %5260
      %5262 = vset.pattern.permute.xlu0 101
      %5263 = vperm.xlu0 %5262, %v965
      %v5264 = vpop.permute.xlu0 %5263
      %5265 = vset.pattern.permute.xlu0 101
      %5266 = vperm.xlu0 %5265, %v966
      %v5267 = vpop.permute.xlu0 %5266
      %5268 = vset.pattern.permute.xlu0 101
      %5269 = vperm.xlu0 %5268, %v967
      %v5270 = vpop.permute.xlu0 %5269
      %5271 = vset.pattern.permute.xlu0 101
      %5272 = vperm.xlu0 %5271, %v968
      %v5273 = vpop.permute.xlu0 %5272
      %5274 = vset.pattern.permute.xlu0 101
      %5275 = vperm.xlu0 %5274, %v969
      %v5276 = vpop.permute.xlu0 %5275
      %5277 = vset.pattern.permute.xlu0 101
      %5278 = vperm.xlu0 %5277, %v970
      %v5279 = vpop.permute.xlu0 %5278
      %5280 = vset.pattern.permute.xlu0 101
      %5281 = vperm.xlu0 %5280, %v971
      %v5282 = vpop.permute.xlu0 %5281
      %5283 = vset.pattern.permute.xlu0 101
      %5284 = vperm.xlu0 %5283, %v972
      %v5285 = vpop.permute.xlu0 %5284
      %5286 = vset.pattern.permute.xlu0 101
      %5287 = vperm.xlu0 %5286, %v973
      %v5288 = vpop.permute.xlu0 %5287
      %5289 = vset.pattern.permute.xlu0 101
      %5290 = vperm.xlu0 %5289, %v974
      %v5291 = vpop.permute.xlu0 %5290
      %5292 = vset.pattern.permute.xlu0 101
      %5293 = vperm.xlu0 %5292, %v975
      %v5294 = vpop.permute.xlu0 %5293
      %5295 = vset.pattern.permute.xlu0 101
      %5296 = vperm.xlu0 %5295, %v976
      %v5297 = vpop.permute.xlu0 %5296
      %5298 = vset.pattern.permute.xlu0 101
      %5299 = vperm.xlu0 %5298, %v977
      %v5300 = vpop.permute.xlu0 %5299
      %5301 = vset.pattern.permute.xlu0 101
      %5302 = vperm.xlu0 %5301, %v978
      %v5303 = vpop.permute.xlu0 %5302
      %5304 = vset.pattern.permute.xlu0 101
      %5305 = vperm.xlu0 %5304, %v979
      %v5306 = vpop.permute.xlu0 %5305
      %5307 = vset.pattern.permute.xlu0 101
      %5308 = vperm.xlu0 %5307, %v980
      %v5309 = vpop.permute.xlu0 %5308
      %5310 = vset.pattern.permute.xlu0 101
      %5311 = vperm.xlu0 %5310, %v981
      %v5312 = vpop.permute.xlu0 %5311
      %5313 = vset.pattern.permute.xlu0 101
      %5314 = vperm.xlu0 %5313, %v982
      %v5315 = vpop.permute.xlu0 %5314
      %5316 = vset.pattern.permute.xlu0 101
      %5317 = vperm.xlu0 %5316, %v983
      %v5318 = vpop.permute.xlu0 %5317
      %5319 = vset.pattern.permute.xlu0 101
      %5320 = vperm.xlu0 %5319, %v984
      %v5321 = vpop.permute.xlu0 %5320
      %5322 = vset.pattern.permute.xlu0 101
      %5323 = vperm.xlu0 %5322, %v985
      %v5324 = vpop.permute.xlu0 %5323
      %5325 = vset.pattern.permute.xlu0 101
      %5326 = vperm.xlu0 %5325, %v986
      %v5327 = vpop.permute.xlu0 %5326
      %5328 = vset.pattern.permute.xlu0 101
      %5329 = vperm.xlu0 %5328, %v987
      %v5330 = vpop.permute.xlu0 %5329
      %5331 = vset.pattern.permute.xlu0 101
      %5332 = vperm.xlu0 %5331, %v988
      %v5333 = vpop.permute.xlu0 %5332
      %5334 = vset.pattern.permute.xlu0 101
      %5335 = vperm.xlu0 %5334, %v989
      %v5336 = vpop.permute.xlu0 %5335
      %5337 = vset.pattern.permute.xlu0 101
      %5338 = vperm.xlu0 %5337, %v990
      %v5339 = vpop.permute.xlu0 %5338
      %5340 = vset.pattern.permute.xlu0 101
      %5341 = vperm.xlu0 %5340, %v991
      %v5342 = vpop.permute.xlu0 %5341
      %5343 = vset.pattern.permute.xlu0 101
      %5344 = vperm.xlu0 %5343, %v992
      %v5345 = vpop.permute.xlu0 %5344
      %5346 = vset.pattern.permute.xlu0 101
      %5347 = vperm.xlu0 %5346, %v993
      %v5348 = vpop.permute.xlu0 %5347
      %5349 = vset.pattern.permute.xlu0 101
      %5350 = vperm.xlu0 %5349, %v994
      %v5351 = vpop.permute.xlu0 %5350
      %5352 = vset.pattern.permute.xlu0 101
      %5353 = vperm.xlu0 %5352, %v995
      %v5354 = vpop.permute.xlu0 %5353
      %5355 = vset.pattern.permute.xlu0 101
      %5356 = vperm.xlu0 %5355, %v996
      %v5357 = vpop.permute.xlu0 %5356
      %5358 = vset.pattern.permute.xlu0 101
      %5359 = vperm.xlu0 %5358, %v997
      %v5360 = vpop.permute.xlu0 %5359
      %vm5361 = vcmp.eq.s32.totalorder %v5228, 1
      %vm5362 = vcmp.eq.s32.totalorder %v5231, 1
      %vm5363 = vcmp.eq.s32.totalorder %v5234, 1
      %vm5364 = vcmp.eq.s32.totalorder %v5237, 1
      %vm5365 = vcmp.eq.s32.totalorder %v5240, 1
      %vm5366 = vcmp.eq.s32.totalorder %v5243, 1
      %vm5367 = vcmp.eq.s32.totalorder %v5246, 1
      %vm5368 = vcmp.eq.s32.totalorder %v5249, 1
      %vm5369 = vcmp.eq.s32.totalorder %v5252, 1
      %vm5370 = vcmp.eq.s32.totalorder %v5255, 1
      %vm5371 = vcmp.eq.s32.totalorder %v5258, 1
      %vm5372 = vcmp.eq.s32.totalorder %v5261, 1
      %vm5373 = vcmp.eq.s32.totalorder %v5264, 1
      %vm5374 = vcmp.eq.s32.totalorder %v5267, 1
      %vm5375 = vcmp.eq.s32.totalorder %v5270, 1
      %vm5376 = vcmp.eq.s32.totalorder %v5273, 1
      %vm5377 = vcmp.eq.s32.totalorder %v5276, 1
      %vm5378 = vcmp.eq.s32.totalorder %v5279, 1
      %vm5379 = vcmp.eq.s32.totalorder %v5282, 1
      %vm5380 = vcmp.eq.s32.totalorder %v5285, 1
      %vm5381 = vcmp.eq.s32.totalorder %v5288, 1
      %vm5382 = vcmp.eq.s32.totalorder %v5291, 1
      %vm5383 = vcmp.eq.s32.totalorder %v5294, 1
      %vm5384 = vcmp.eq.s32.totalorder %v5297, 1
      %vm5385 = vcmp.eq.s32.totalorder %v5300, 1
      %vm5386 = vcmp.eq.s32.totalorder %v5303, 1
      %vm5387 = vcmp.eq.s32.totalorder %v5306, 1
      %vm5388 = vcmp.eq.s32.totalorder %v5309, 1
      %vm5389 = vcmp.eq.s32.totalorder %v5312, 1
      %vm5390 = vcmp.eq.s32.totalorder %v5315, 1
      %vm5391 = vcmp.eq.s32.totalorder %v5318, 1
      %vm5392 = vcmp.eq.s32.totalorder %v5321, 1
      %vm5393 = vcmp.eq.s32.totalorder %v5324, 1
      %vm5394 = vcmp.eq.s32.totalorder %v5327, 1
      %vm5395 = vcmp.eq.s32.totalorder %v5330, 1
      %vm5396 = vcmp.eq.s32.totalorder %v5333, 1
      %vm5397 = vcmp.eq.s32.totalorder %v5336, 1
      %vm5398 = vcmp.eq.s32.totalorder %v5339, 1
      %vm5399 = vcmp.eq.s32.totalorder %v5342, 1
      %vm5400 = vcmp.eq.s32.totalorder %v5345, 1
      %vm5401 = vcmp.eq.s32.totalorder %v5348, 1
      %vm5402 = vcmp.eq.s32.totalorder %v5351, 1
      %vm5403 = vcmp.eq.s32.totalorder %v5354, 1
      %vm5404 = vcmp.eq.s32.totalorder %v5357, 1
      %vm5405 = vcmp.eq.s32.totalorder %v5360, 1
      %vm5406 = vmpackc.low %vm5361, %vm5361
      %vm5407 = vmpackc.low %vm5362, %vm5362
      %vm5408 = vmpackc.low %vm5363, %vm5363
      %vm5409 = vmpackc.low %vm5364, %vm5364
      %vm5410 = vmpackc.low %vm5365, %vm5365
      %vm5411 = vmpackc.low %vm5366, %vm5366
      %vm5412 = vmpackc.low %vm5367, %vm5367
      %vm5413 = vmpackc.low %vm5368, %vm5368
      %vm5414 = vmpackc.low %vm5369, %vm5369
      %vm5415 = vmpackc.low %vm5370, %vm5370
      %vm5416 = vmpackc.low %vm5371, %vm5371
      %vm5417 = vmpackc.low %vm5372, %vm5372
      %vm5418 = vmpackc.low %vm5373, %vm5373
      %vm5419 = vmpackc.low %vm5374, %vm5374
      %vm5420 = vmpackc.low %vm5375, %vm5375
      %vm5421 = vmpackc.low %vm5376, %vm5376
      %vm5422 = vmpackc.low %vm5377, %vm5377
      %vm5423 = vmpackc.low %vm5378, %vm5378
      %vm5424 = vmpackc.low %vm5379, %vm5379
      %vm5425 = vmpackc.low %vm5380, %vm5380
      %vm5426 = vmpackc.low %vm5381, %vm5381
      %vm5427 = vmpackc.low %vm5382, %vm5382
      %vm5428 = vmpackc.low %vm5383, %vm5383
      %vm5429 = vmpackc.low %vm5384, %vm5384
      %vm5430 = vmpackc.low %vm5385, %vm5385
      %vm5431 = vmpackc.low %vm5386, %vm5386
      %vm5432 = vmpackc.low %vm5387, %vm5387
      %vm5433 = vmpackc.low %vm5388, %vm5388
      %vm5434 = vmpackc.low %vm5389, %vm5389
      %vm5435 = vmpackc.low %vm5390, %vm5390
      %vm5436 = vmpackc.low %vm5391, %vm5391
      %vm5437 = vmpackc.low %vm5392, %vm5392
      %vm5438 = vmpackc.low %vm5393, %vm5393
      %vm5439 = vmpackc.low %vm5394, %vm5394
      %vm5440 = vmpackc.low %vm5395, %vm5395
      %vm5441 = vmpackc.low %vm5396, %vm5396
      %vm5442 = vmpackc.low %vm5397, %vm5397
      %vm5443 = vmpackc.low %vm5398, %vm5398
      %vm5444 = vmpackc.low %vm5399, %vm5399
      %vm5445 = vmpackc.low %vm5400, %vm5400
      %vm5446 = vmpackc.low %vm5401, %vm5401
      %vm5447 = vmpackc.low %vm5402, %vm5402
      %vm5448 = vmpackc.low %vm5403, %vm5403
      %vm5449 = vmpackc.low %vm5404, %vm5404
      %vm5450 = vmpackc.low %vm5405, %vm5405
      %v5451 = vsel %vm5406, %v5181, 0
      %v5452 = vsel %vm5407, %v5182, 0
      %v5453 = vsel %vm5408, %v5183, 0
      %v5454 = vsel %vm5409, %v5184, 0
      %v5455 = vsel %vm5410, %v5185, 0
      %v5456 = vsel %vm5411, %v5186, 0
      %v5457 = vsel %vm5412, %v5187, 0
      %v5458 = vsel %vm5413, %v5188, 0
      %v5459 = vsel %vm5414, %v5189, 0
      %v5460 = vsel %vm5415, %v5190, 0
      %v5461 = vsel %vm5416, %v5191, 0
      %v5462 = vsel %vm5417, %v5192, 0
      %v5463 = vsel %vm5418, %v5193, 0
      %v5464 = vsel %vm5419, %v5194, 0
      %v5465 = vsel %vm5420, %v5195, 0
      %v5466 = vsel %vm5421, %v5196, 0
      %v5467 = vsel %vm5422, %v5197, 0
      %v5468 = vsel %vm5423, %v5198, 0
      %v5469 = vsel %vm5424, %v5199, 0
      %v5470 = vsel %vm5425, %v5200, 0
      %v5471 = vsel %vm5426, %v5201, 0
      %v5472 = vsel %vm5427, %v5202, 0
      %v5473 = vsel %vm5428, %v5203, 0
      %v5474 = vsel %vm5429, %v5204, 0
      %v5475 = vsel %vm5430, %v5205, 0
      %v5476 = vsel %vm5431, %v5206, 0
      %v5477 = vsel %vm5432, %v5207, 0
      %v5478 = vsel %vm5433, %v5208, 0
      %v5479 = vsel %vm5434, %v5209, 0
      %v5480 = vsel %vm5435, %v5210, 0
      %v5481 = vsel %vm5436, %v5211, 0
      %v5482 = vsel %vm5437, %v5212, 0
      %v5483 = vsel %vm5438, %v5213, 0
      %v5484 = vsel %vm5439, %v5214, 0
      %v5485 = vsel %vm5440, %v5215, 0
      %v5486 = vsel %vm5441, %v5216, 0
      %v5487 = vsel %vm5442, %v5217, 0
      %v5488 = vsel %vm5443, %v5218, 0
      %v5489 = vsel %vm5444, %v5219, 0
      %v5490 = vsel %vm5445, %v5220, 0
      %v5491 = vsel %vm5446, %v5221, 0
      %v5492 = vsel %vm5447, %v5222, 0
      %v5493 = vsel %vm5448, %v5223, 0
      %v5494 = vsel %vm5449, %v5224, 0
      %v5495 = vsel %vm5450, %v5225, 0
      %vm5496 = vcmask 257024
      %5497 = vst.msk [vmem:[#allocation3] sm:$0xf] %vm5496, %v5451
      %5498 = vst.msk [vmem:[#allocation3 + $0x4] sm:$0xf] %vm5496, %v5452
      %5499 = vst.msk [vmem:[#allocation3 + $0x8] sm:$0xf] %vm5496, %v5453
      %5500 = vst.msk [vmem:[#allocation3 + $0xc] sm:$0xf] %vm5496, %v5454
      %5501 = vst.msk [vmem:[#allocation3 + $0x10] sm:$0xf] %vm5496, %v5455
      %5502 = vst.msk [vmem:[#allocation3 + $0x14] sm:$0xf] %vm5496, %v5456
      %5503 = vst.msk [vmem:[#allocation3 + $0x18] sm:$0xf] %vm5496, %v5457
      %5504 = vst.msk [vmem:[#allocation3 + $0x1c] sm:$0xf] %vm5496, %v5458
      %5505 = vst.msk [vmem:[#allocation3 + $0x20] sm:$0xf] %vm5496, %v5459
      %5506 = vst.msk [vmem:[#allocation3 + $0x24] sm:$0xf] %vm5496, %v5460
      %5507 = vst.msk [vmem:[#allocation3 + $0x28] sm:$0xf] %vm5496, %v5461
      %5508 = vst.msk [vmem:[#allocation3 + $0x2c] sm:$0xf] %vm5496, %v5462
      %5509 = vst.msk [vmem:[#allocation3 + $0x30] sm:$0xf] %vm5496, %v5463
      %5510 = vst.msk [vmem:[#allocation3 + $0x34] sm:$0xf] %vm5496, %v5464
      %5511 = vst.msk [vmem:[#allocation3 + $0x38] sm:$0xf] %vm5496, %v5465
      %5512 = vst.msk [vmem:[#allocation3 + $0x3c] sm:$0xf] %vm5496, %v5466
      %5513 = vst.msk [vmem:[#allocation3 + $0x40] sm:$0xf] %vm5496, %v5467
      %5514 = vst.msk [vmem:[#allocation3 + $0x44] sm:$0xf] %vm5496, %v5468
      %5515 = vst.msk [vmem:[#allocation3 + $0x48] sm:$0xf] %vm5496, %v5469
      %5516 = vst.msk [vmem:[#allocation3 + $0x4c] sm:$0xf] %vm5496, %v5470
      %5517 = vst.msk [vmem:[#allocation3 + $0x50] sm:$0xf] %vm5496, %v5471
      %5518 = vst.msk [vmem:[#allocation3 + $0x54] sm:$0xf] %vm5496, %v5472
      %5519 = vst.msk [vmem:[#allocation3 + $0x58] sm:$0xf] %vm5496, %v5473
      %5520 = vst.msk [vmem:[#allocation3 + $0x5c] sm:$0xf] %vm5496, %v5474
      %5521 = vst.msk [vmem:[#allocation3 + $0x60] sm:$0xf] %vm5496, %v5475
      %5522 = vst.msk [vmem:[#allocation3 + $0x64] sm:$0xf] %vm5496, %v5476
      %5523 = vst.msk [vmem:[#allocation3 + $0x68] sm:$0xf] %vm5496, %v5477
      %5524 = vst.msk [vmem:[#allocation3 + $0x6c] sm:$0xf] %vm5496, %v5478
      %5525 = vst.msk [vmem:[#allocation3 + $0x70] sm:$0xf] %vm5496, %v5479
      %5526 = vst.msk [vmem:[#allocation3 + $0x74] sm:$0xf] %vm5496, %v5480
      %5527 = vst.msk [vmem:[#allocation3 + $0x78] sm:$0xf] %vm5496, %v5481
      %5528 = vst.msk [vmem:[#allocation3 + $0x7c] sm:$0xf] %vm5496, %v5482
      %5529 = vst.msk [vmem:[#allocation3 + $0x80] sm:$0xf] %vm5496, %v5483
      %5530 = vst.msk [vmem:[#allocation3 + $0x84] sm:$0xf] %vm5496, %v5484
      %5531 = vst.msk [vmem:[#allocation3 + $0x88] sm:$0xf] %vm5496, %v5485
      %5532 = vst.msk [vmem:[#allocation3 + $0x8c] sm:$0xf] %vm5496, %v5486
      %5533 = vst.msk [vmem:[#allocation3 + $0x90] sm:$0xf] %vm5496, %v5487
      %5534 = vst.msk [vmem:[#allocation3 + $0x94] sm:$0xf] %vm5496, %v5488
      %5535 = vst.msk [vmem:[#allocation3 + $0x98] sm:$0xf] %vm5496, %v5489
      %5536 = vst.msk [vmem:[#allocation3 + $0x9c] sm:$0xf] %vm5496, %v5490
      %5537 = vst.msk [vmem:[#allocation3 + $0xa0] sm:$0xf] %vm5496, %v5491
      %5538 = vst.msk [vmem:[#allocation3 + $0xa4] sm:$0xf] %vm5496, %v5492
      %5539 = vst.msk [vmem:[#allocation3 + $0xa8] sm:$0xf] %vm5496, %v5493
      %5540 = vst.msk [vmem:[#allocation3 + $0xac] sm:$0xf] %vm5496, %v5494
      %5541 = vst.msk [vmem:[#allocation3 + $0xb0] sm:$0xf] %vm5496, %v5495
      %v5542 = vld [vmem:[#allocation3] sm:$0xf]
      %v5543 = vld [vmem:[#allocation3 + $0x4] sm:$0xf]
      %v5544 = vld [vmem:[#allocation3 + $0x8] sm:$0xf]
      %v5545 = vld [vmem:[#allocation3 + $0xc] sm:$0xf]
      %v5546 = vld [vmem:[#allocation3 + $0x10] sm:$0xf]
      %v5547 = vld [vmem:[#allocation3 + $0x14] sm:$0xf]
      %v5548 = vld [vmem:[#allocation3 + $0x18] sm:$0xf]
      %v5549 = vld [vmem:[#allocation3 + $0x1c] sm:$0xf]
      %v5550 = vld [vmem:[#allocation3 + $0x20] sm:$0xf]
      %v5551 = vld [vmem:[#allocation3 + $0x24] sm:$0xf]
      %v5552 = vld [vmem:[#allocation3 + $0x28] sm:$0xf]
      %v5553 = vld [vmem:[#allocation3 + $0x2c] sm:$0xf]
      %v5554 = vld [vmem:[#allocation3 + $0x30] sm:$0xf]
      %v5555 = vld [vmem:[#allocation3 + $0x34] sm:$0xf]
      %v5556 = vld [vmem:[#allocation3 + $0x38] sm:$0xf]
      %v5557 = vld [vmem:[#allocation3 + $0x3c] sm:$0xf]
      %v5558 = vld [vmem:[#allocation3 + $0x40] sm:$0xf]
      %v5559 = vld [vmem:[#allocation3 + $0x44] sm:$0xf]
      %v5560 = vld [vmem:[#allocation3 + $0x48] sm:$0xf]
      %v5561 = vld [vmem:[#allocation3 + $0x4c] sm:$0xf]
      %v5562 = vld [vmem:[#allocation3 + $0x50] sm:$0xf]
      %v5563 = vld [vmem:[#allocation3 + $0x54] sm:$0xf]
      %v5564 = vld [vmem:[#allocation3 + $0x58] sm:$0xf]
      %v5565 = vld [vmem:[#allocation3 + $0x5c] sm:$0xf]
      %v5566 = vld [vmem:[#allocation3 + $0x60] sm:$0xf]
      %v5567 = vld [vmem:[#allocation3 + $0x64] sm:$0xf]
      %v5568 = vld [vmem:[#allocation3 + $0x68] sm:$0xf]
      %v5569 = vld [vmem:[#allocation3 + $0x6c] sm:$0xf]
      %v5570 = vld [vmem:[#allocation3 + $0x70] sm:$0xf]
      %v5571 = vld [vmem:[#allocation3 + $0x74] sm:$0xf]
      %v5572 = vld [vmem:[#allocation3 + $0x78] sm:$0xf]
      %v5573 = vld [vmem:[#allocation3 + $0x7c] sm:$0xf]
      %v5574 = vld [vmem:[#allocation3 + $0x80] sm:$0xf]
      %v5575 = vld [vmem:[#allocation3 + $0x84] sm:$0xf]
      %v5576 = vld [vmem:[#allocation3 + $0x88] sm:$0xf]
      %v5577 = vld [vmem:[#allocation3 + $0x8c] sm:$0xf]
      %v5578 = vld [vmem:[#allocation3 + $0x90] sm:$0xf]
      %v5579 = vld [vmem:[#allocation3 + $0x94] sm:$0xf]
      %v5580 = vld [vmem:[#allocation3 + $0x98] sm:$0xf]
      %v5581 = vld [vmem:[#allocation3 + $0x9c] sm:$0xf]
      %v5582 = vld [vmem:[%s5] sm:$0xf]
      %v5583 = vld [vmem:[%s5 + $0x4] sm:$0xf]
      %v5584 = vld [vmem:[%s5 + $0x8] sm:$0xf]
      %v5585 = vld [vmem:[%s5 + $0xc] sm:$0xf]
      %v5586 = vld [vmem:[#allocation3 + $0xa0] sm:$0x1]
      %s5587 = scalar_lea.vmem %s5, 16
      %v5588 = vld [vmem:[%s5587] sm:$0xf]
      %v5589 = vld [vmem:[%s5587 + $0x4] sm:$0xf]
      %v5590 = vld [vmem:[%s5587 + $0x8] sm:$0xf]
      %v5591 = vld [vmem:[%s5587 + $0xc] sm:$0xf]
      %v5633 = vunpack.c.l.b16 %v5542
      %v5634 = vunpack.c.l.b16 %v5543
      %v5635 = vunpack.c.l.b16 %v5544
      %v5636 = vunpack.c.l.b16 %v5545
      %v5637 = vunpack.c.l.b16 %v5546
      %v5638 = vunpack.c.l.b16 %v5547
      %v5639 = vunpack.c.l.b16 %v5548
      %v5640 = vunpack.c.l.b16 %v5549
      %v5641 = vunpack.c.l.b16 %v5550
      %v5642 = vunpack.c.l.b16 %v5551
      %v5643 = vunpack.c.l.b16 %v5552
      %v5644 = vunpack.c.l.b16 %v5553
      %v5645 = vunpack.c.l.b16 %v5554
      %v5646 = vunpack.c.l.b16 %v5555
      %v5647 = vunpack.c.l.b16 %v5556
      %v5648 = vunpack.c.l.b16 %v5557
      %v5649 = vunpack.c.l.b16 %v5558
      %v5650 = vunpack.c.l.b16 %v5559
      %v5651 = vunpack.c.l.b16 %v5560
      %v5652 = vunpack.c.l.b16 %v5561
      %v5653 = vunpack.c.l.b16 %v5562
      %v5654 = vunpack.c.l.b16 %v5563
      %v5655 = vunpack.c.l.b16 %v5564
      %v5656 = vunpack.c.l.b16 %v5565
      %v5657 = vunpack.c.l.b16 %v5566
      %v5658 = vunpack.c.l.b16 %v5567
      %v5659 = vunpack.c.l.b16 %v5568
      %v5660 = vunpack.c.l.b16 %v5569
      %v5661 = vunpack.c.l.b16 %v5570
      %v5662 = vunpack.c.l.b16 %v5571
      %v5663 = vunpack.c.l.b16 %v5572
      %v5664 = vunpack.c.l.b16 %v5573
      %v5665 = vunpack.c.l.b16 %v5574
      %v5666 = vunpack.c.l.b16 %v5575
      %v5667 = vunpack.c.l.b16 %v5576
      %v5668 = vunpack.c.l.b16 %v5577
      %v5669 = vunpack.c.l.b16 %v5578
      %v5670 = vunpack.c.l.b16 %v5579
      %v5671 = vunpack.c.l.b16 %v5580
      %v5672 = vunpack.c.l.b16 %v5581
      %v5673 = vunpack.c.l.b16 %v5586
      %v5674 = vpack.c.b16 %v5634, %v5633
      %v5675 = vpack.c.b16 %v5636, %v5635
      %v5676 = vpack.c.b16 %v5638, %v5637
      %v5677 = vpack.c.b16 %v5640, %v5639
      %v5678 = vpack.c.b16 %v5642, %v5641
      %v5679 = vpack.c.b16 %v5644, %v5643
      %v5680 = vpack.c.b16 %v5646, %v5645
      %v5681 = vpack.c.b16 %v5648, %v5647
      %v5682 = vpack.c.b16 %v5650, %v5649
      %v5683 = vpack.c.b16 %v5652, %v5651
      %v5684 = vpack.c.b16 %v5654, %v5653
      %v5685 = vpack.c.b16 %v5656, %v5655
      %v5686 = vpack.c.b16 %v5658, %v5657
      %v5687 = vpack.c.b16 %v5660, %v5659
      %v5688 = vpack.c.b16 %v5662, %v5661
      %v5689 = vpack.c.b16 %v5664, %v5663
      %v5690 = vpack.c.b16 %v5666, %v5665
      %v5691 = vpack.c.b16 %v5668, %v5667
      %v5692 = vpack.c.b16 %v5670, %v5669
      %v5693 = vpack.c.b16 %v5672, %v5671
      %v5694 = vpack.c.b16 %v5673, %v5673
      %v5696 = vshrl.u32 %v5674, 16
      %v5698 = vshll.u32 %v5674, 16
      %v5700 = vrot.slane %v5698, 1
      %v5701 = vor.u32 %v5696, %v5700
      %v5703 = vshll.u32 %v5675, 16
      %v5705 = vrot.slane %v5703, 1
      %v5706 = vsel %vm1532, %v5701, %v5705
      %v5707 = vshrl.u32 %v5675, 16
      %v5709 = vor.u32 %v5707, %v5705
      %v5711 = vshll.u32 %v5676, 16
      %v5713 = vrot.slane %v5711, 1
      %v5714 = vsel %vm1532, %v5709, %v5713
      %v5715 = vshrl.u32 %v5676, 16
      %v5717 = vor.u32 %v5715, %v5713
      %v5719 = vshll.u32 %v5677, 16
      %v5721 = vrot.slane %v5719, 1
      %v5722 = vsel %vm1532, %v5717, %v5721
      %v5723 = vshrl.u32 %v5677, 16
      %v5725 = vor.u32 %v5723, %v5721
      %v5727 = vshll.u32 %v5678, 16
      %v5729 = vrot.slane %v5727, 1
      %v5730 = vsel %vm1532, %v5725, %v5729
      %v5731 = vshrl.u32 %v5678, 16
      %v5733 = vor.u32 %v5731, %v5729
      %v5735 = vshll.u32 %v5679, 16
      %v5737 = vrot.slane %v5735, 1
      %v5738 = vsel %vm1532, %v5733, %v5737
      %v5739 = vshrl.u32 %v5679, 16
      %v5741 = vor.u32 %v5739, %v5737
      %v5743 = vshll.u32 %v5680, 16
      %v5745 = vrot.slane %v5743, 1
      %v5746 = vsel %vm1532, %v5741, %v5745
      %v5747 = vshrl.u32 %v5680, 16
      %v5749 = vor.u32 %v5747, %v5745
      %v5751 = vshll.u32 %v5681, 16
      %v5753 = vrot.slane %v5751, 1
      %v5754 = vsel %vm1532, %v5749, %v5753
      %v5755 = vshrl.u32 %v5681, 16
      %v5757 = vor.u32 %v5755, %v5753
      %v5759 = vshll.u32 %v5682, 16
      %v5761 = vrot.slane %v5759, 1
      %v5762 = vsel %vm1532, %v5757, %v5761
      %v5763 = vshrl.u32 %v5682, 16
      %v5765 = vor.u32 %v5763, %v5761
      %v5767 = vshll.u32 %v5683, 16
      %v5769 = vrot.slane %v5767, 1
      %v5770 = vsel %vm1532, %v5765, %v5769
      %v5771 = vshrl.u32 %v5683, 16
      %v5773 = vor.u32 %v5771, %v5769
      %v5775 = vshll.u32 %v5684, 16
      %v5777 = vrot.slane %v5775, 1
      %v5778 = vsel %vm1532, %v5773, %v5777
      %v5779 = vshrl.u32 %v5684, 16
      %v5781 = vor.u32 %v5779, %v5777
      %v5783 = vshll.u32 %v5685, 16
      %v5785 = vrot.slane %v5783, 1
      %v5786 = vsel %vm1532, %v5781, %v5785
      %v5787 = vshrl.u32 %v5685, 16
      %v5789 = vor.u32 %v5787, %v5785
      %v5791 = vshll.u32 %v5686, 16
      %v5793 = vrot.slane %v5791, 1
      %v5794 = vsel %vm1532, %v5789, %v5793
      %v5795 = vshrl.u32 %v5686, 16
      %v5797 = vor.u32 %v5795, %v5793
      %v5799 = vshll.u32 %v5687, 16
      %v5801 = vrot.slane %v5799, 1
      %v5802 = vsel %vm1532, %v5797, %v5801
      %v5803 = vshrl.u32 %v5687, 16
      %v5805 = vor.u32 %v5803, %v5801
      %v5807 = vshll.u32 %v5688, 16
      %v5809 = vrot.slane %v5807, 1
      %v5810 = vsel %vm1532, %v5805, %v5809
      %v5811 = vshrl.u32 %v5688, 16
      %v5813 = vor.u32 %v5811, %v5809
      %v5815 = vshll.u32 %v5689, 16
      %v5817 = vrot.slane %v5815, 1
      %v5818 = vsel %vm1532, %v5813, %v5817
      %v5819 = vshrl.u32 %v5689, 16
      %v5821 = vor.u32 %v5819, %v5817
      %v5823 = vshll.u32 %v5690, 16
      %v5825 = vrot.slane %v5823, 1
      %v5826 = vsel %vm1532, %v5821, %v5825
      %v5827 = vshrl.u32 %v5690, 16
      %v5829 = vor.u32 %v5827, %v5825
      %v5831 = vshll.u32 %v5691, 16
      %v5833 = vrot.slane %v5831, 1
      %v5834 = vsel %vm1532, %v5829, %v5833
      %v5835 = vshrl.u32 %v5691, 16
      %v5837 = vor.u32 %v5835, %v5833
      %v5839 = vshll.u32 %v5692, 16
      %v5841 = vrot.slane %v5839, 1
      %v5842 = vsel %vm1532, %v5837, %v5841
      %v5843 = vshrl.u32 %v5692, 16
      %v5845 = vor.u32 %v5843, %v5841
      %v5847 = vshll.u32 %v5693, 16
      %v5849 = vrot.slane %v5847, 1
      %v5850 = vsel %vm1532, %v5845, %v5849
      %v5851 = vshrl.u32 %v5693, 16
      %v5853 = vor.u32 %v5851, %v5849
      %v5855 = vshll.u32 %v5694, 16
      %v5857 = vrot.slane %v5855, 1
      %v5858 = vsel %vm1532, %v5853, %v5857
      %v5863 = vunpack.c.l.b16 %v5588
      %v5864 = vunpack.c.l.b16 %v5589
      %v5865 = vunpack.c.l.b16 %v5590
      %v5866 = vunpack.c.l.b16 %v5591
      %v5867 = vpack.c.b16 %v5864, %v5863
      %v5868 = vpack.c.b16 %v5866, %v5865
      %vm5871 = vcmask 261120
      %v5873 = vsel %vm5871, %v5706, 0
      %v5876 = vsel %vm5871, %v5714, 0
      %v5879 = vsel %vm5871, %v5722, 0
      %v5882 = vsel %vm5871, %v5730, 0
      %v5885 = vsel %vm5871, %v5738, 0
      %v5888 = vsel %vm5871, %v5746, 0
      %v5891 = vsel %vm5871, %v5754, 0
      %v5894 = vsel %vm5871, %v5762, 0
      %v5897 = vsel %vm5871, %v5770, 0
      %v5900 = vsel %vm5871, %v5778, 0
      %v5903 = vsel %vm5871, %v5786, 0
      %v5906 = vsel %vm5871, %v5794, 0
      %v5909 = vsel %vm5871, %v5802, 0
      %v5912 = vsel %vm5871, %v5810, 0
      %v5915 = vsel %vm5871, %v5818, 0
      %v5918 = vsel %vm5871, %v5826, 0
      %v5921 = vsel %vm5871, %v5834, 0
      %v5924 = vsel %vm5871, %v5842, 0
      %v5927 = vsel %vm5871, %v5850, 0
      %v5930 = vsel %vm5871, %v5858, 0
      %5932 = vmatpush.bf16.msra.mxu0 0
      %5933 = vmatpush.bf16.msra.mxu0 0
      %5934 = vmatpush.bf16.msra.mxu0 0
      %5935 = vmatpush.bf16.msra.mxu0 0
      %5936 = vmatpush.bf16.msra.mxu0 0
      %5937 = vmatpush.bf16.msra.mxu0 0
      %5938 = vmatpush.bf16.msra.mxu0 %v5868
      %5939 = vmatpush.bf16.msra.mxu0 %v5867
      %5940 = vmatmul.bf16.gmra.mxu0 %v5873
      %v5941 = vpop.f32.mrf.mxu0
      %v5942 = vadd.f32 0.0, %v5941
      %v5943 = vpop.f32.mrf.mxu0
      %v5944 = vadd.f32 0.0, %v5943
      %5945 = vmatmul.bf16.gmra.mxu0 %v5876
      %v5946 = vpop.f32.mrf.mxu0
      %v5947 = vadd.f32 0.0, %v5946
      %v5948 = vpop.f32.mrf.mxu0
      %v5949 = vadd.f32 0.0, %v5948
      %5950 = vmatmul.bf16.gmra.mxu0 %v5879
      %v5951 = vpop.f32.mrf.mxu0
      %v5952 = vadd.f32 0.0, %v5951
      %v5953 = vpop.f32.mrf.mxu0
      %v5954 = vadd.f32 0.0, %v5953
      %5955 = vmatmul.bf16.gmra.mxu0 %v5882
      %v5956 = vpop.f32.mrf.mxu0
      %v5957 = vadd.f32 0.0, %v5956
      %v5958 = vpop.f32.mrf.mxu0
      %v5959 = vadd.f32 0.0, %v5958
      %5960 = vmatmul.bf16.gmra.mxu0 %v5885
      %v5961 = vpop.f32.mrf.mxu0
      %v5962 = vadd.f32 0.0, %v5961
      %v5963 = vpop.f32.mrf.mxu0
      %v5964 = vadd.f32 0.0, %v5963
      %5965 = vmatmul.bf16.gmra.mxu0 %v5888
      %v5966 = vpop.f32.mrf.mxu0
      %v5967 = vadd.f32 0.0, %v5966
      %v5968 = vpop.f32.mrf.mxu0
      %v5969 = vadd.f32 0.0, %v5968
      %5970 = vmatmul.bf16.gmra.mxu0 %v5891
      %v5971 = vpop.f32.mrf.mxu0
      %v5972 = vadd.f32 0.0, %v5971
      %v5973 = vpop.f32.mrf.mxu0
      %v5974 = vadd.f32 0.0, %v5973
      %5975 = vmatmul.bf16.gmra.mxu0 %v5894
      %v5976 = vpop.f32.mrf.mxu0
      %v5977 = vadd.f32 0.0, %v5976
      %v5978 = vpop.f32.mrf.mxu0
      %v5979 = vadd.f32 0.0, %v5978
      %5980 = vmatmul.bf16.gmra.mxu0 %v5897
      %v5981 = vpop.f32.mrf.mxu0
      %v5982 = vadd.f32 0.0, %v5981
      %v5983 = vpop.f32.mrf.mxu0
      %v5984 = vadd.f32 0.0, %v5983
      %5985 = vmatmul.bf16.gmra.mxu0 %v5900
      %v5986 = vpop.f32.mrf.mxu0
      %v5987 = vadd.f32 0.0, %v5986
      %v5988 = vpop.f32.mrf.mxu0
      %v5989 = vadd.f32 0.0, %v5988
      %5990 = vmatmul.bf16.gmra.mxu0 %v5903
      %v5991 = vpop.f32.mrf.mxu0
      %v5992 = vadd.f32 0.0, %v5991
      %v5993 = vpop.f32.mrf.mxu0
      %v5994 = vadd.f32 0.0, %v5993
      %5995 = vmatmul.bf16.gmra.mxu0 %v5906
      %v5996 = vpop.f32.mrf.mxu0
      %v5997 = vadd.f32 0.0, %v5996
      %v5998 = vpop.f32.mrf.mxu0
      %v5999 = vadd.f32 0.0, %v5998
      %6000 = vmatmul.bf16.gmra.mxu0 %v5909
      %v6001 = vpop.f32.mrf.mxu0
      %v6002 = vadd.f32 0.0, %v6001
      %v6003 = vpop.f32.mrf.mxu0
      %v6004 = vadd.f32 0.0, %v6003
      %6005 = vmatmul.bf16.gmra.mxu0 %v5912
      %v6006 = vpop.f32.mrf.mxu0
      %v6007 = vadd.f32 0.0, %v6006
      %v6008 = vpop.f32.mrf.mxu0
      %v6009 = vadd.f32 0.0, %v6008
      %6010 = vmatmul.bf16.gmra.mxu0 %v5915
      %v6011 = vpop.f32.mrf.mxu0
      %v6012 = vadd.f32 0.0, %v6011
      %v6013 = vpop.f32.mrf.mxu0
      %v6014 = vadd.f32 0.0, %v6013
      %6015 = vmatmul.bf16.gmra.mxu0 %v5918
      %v6016 = vpop.f32.mrf.mxu0
      %v6017 = vadd.f32 0.0, %v6016
      %v6018 = vpop.f32.mrf.mxu0
      %v6019 = vadd.f32 0.0, %v6018
      %6020 = vmatmul.bf16.gmra.mxu0 %v5921
      %v6021 = vpop.f32.mrf.mxu0
      %v6022 = vadd.f32 0.0, %v6021
      %v6023 = vpop.f32.mrf.mxu0
      %v6024 = vadd.f32 0.0, %v6023
      %6025 = vmatmul.bf16.gmra.mxu0 %v5924
      %v6026 = vpop.f32.mrf.mxu0
      %v6027 = vadd.f32 0.0, %v6026
      %v6028 = vpop.f32.mrf.mxu0
      %v6029 = vadd.f32 0.0, %v6028
      %6030 = vmatmul.bf16.gmra.mxu0 %v5927
      %v6031 = vpop.f32.mrf.mxu0
      %v6032 = vadd.f32 0.0, %v6031
      %v6033 = vpop.f32.mrf.mxu0
      %v6034 = vadd.f32 0.0, %v6033
      %6035 = vmatmul.bf16.gmra.mxu0 %v5930
      %v6036 = vpop.f32.mrf.mxu0
      %v6037 = vadd.f32 0.0, %v6036
      %v6038 = vpop.f32.mrf.mxu0
      %v6039 = vadd.f32 0.0, %v6038
      %6040 = vdwg.mxu0
      %v6045 = vunpack.c.l.b16 %v5582
      %v6046 = vunpack.c.l.b16 %v5583
      %v6047 = vunpack.c.l.b16 %v5584
      %v6048 = vunpack.c.l.b16 %v5585
      %v6049 = vpack.c.b16 %v6046, %v6045
      %v6050 = vpack.c.b16 %v6048, %v6047
      %v6053 = vsel %vm5871, %v5674, 0
      %v6055 = vsel %vm5871, %v5675, 0
      %v6057 = vsel %vm5871, %v5676, 0
      %v6059 = vsel %vm5871, %v5677, 0
      %v6061 = vsel %vm5871, %v5678, 0
      %v6063 = vsel %vm5871, %v5679, 0
      %v6065 = vsel %vm5871, %v5680, 0
      %v6067 = vsel %vm5871, %v5681, 0
      %v6069 = vsel %vm5871, %v5682, 0
      %v6071 = vsel %vm5871, %v5683, 0
      %v6073 = vsel %vm5871, %v5684, 0
      %v6075 = vsel %vm5871, %v5685, 0
      %v6077 = vsel %vm5871, %v5686, 0
      %v6079 = vsel %vm5871, %v5687, 0
      %v6081 = vsel %vm5871, %v5688, 0
      %v6083 = vsel %vm5871, %v5689, 0
      %v6085 = vsel %vm5871, %v5690, 0
      %v6087 = vsel %vm5871, %v5691, 0
      %v6089 = vsel %vm5871, %v5692, 0
      %v6091 = vsel %vm5871, %v5693, 0
      %6093 = vmatpush.bf16.msra.mxu0 0
      %6094 = vmatpush.bf16.msra.mxu0 0
      %6095 = vmatpush.bf16.msra.mxu0 0
      %6096 = vmatpush.bf16.msra.mxu0 0
      %6097 = vmatpush.bf16.msra.mxu0 0
      %6098 = vmatpush.bf16.msra.mxu0 0
      %6099 = vmatpush.bf16.msra.mxu0 %v6050
      %6100 = vmatpush.bf16.msra.mxu0 %v6049
      %6101 = vmatmul.bf16.gmra.mxu0 %v6053
      %v6102 = vpop.f32.mrf.mxu0
      %v6103 = vadd.f32 %v5942, %v6102
      %v6104 = vpop.f32.mrf.mxu0
      %v6105 = vadd.f32 %v5944, %v6104
      %6106 = vmatmul.bf16.gmra.mxu0 %v6055
      %v6107 = vpop.f32.mrf.mxu0
      %v6108 = vadd.f32 %v5947, %v6107
      %v6109 = vpop.f32.mrf.mxu0
      %v6110 = vadd.f32 %v5949, %v6109
      %6111 = vmatmul.bf16.gmra.mxu0 %v6057
      %v6112 = vpop.f32.mrf.mxu0
      %v6113 = vadd.f32 %v5952, %v6112
      %v6114 = vpop.f32.mrf.mxu0
      %v6115 = vadd.f32 %v5954, %v6114
      %6116 = vmatmul.bf16.gmra.mxu0 %v6059
      %v6117 = vpop.f32.mrf.mxu0
      %v6118 = vadd.f32 %v5957, %v6117
      %v6119 = vpop.f32.mrf.mxu0
      %v6120 = vadd.f32 %v5959, %v6119
      %6121 = vmatmul.bf16.gmra.mxu0 %v6061
      %v6122 = vpop.f32.mrf.mxu0
      %v6123 = vadd.f32 %v5962, %v6122
      %v6124 = vpop.f32.mrf.mxu0
      %v6125 = vadd.f32 %v5964, %v6124
      %6126 = vmatmul.bf16.gmra.mxu0 %v6063
      %v6127 = vpop.f32.mrf.mxu0
      %v6128 = vadd.f32 %v5967, %v6127
      %v6129 = vpop.f32.mrf.mxu0
      %v6130 = vadd.f32 %v5969, %v6129
      %6131 = vmatmul.bf16.gmra.mxu0 %v6065
      %v6132 = vpop.f32.mrf.mxu0
      %v6133 = vadd.f32 %v5972, %v6132
      %v6134 = vpop.f32.mrf.mxu0
      %v6135 = vadd.f32 %v5974, %v6134
      %6136 = vmatmul.bf16.gmra.mxu0 %v6067
      %v6137 = vpop.f32.mrf.mxu0
      %v6138 = vadd.f32 %v5977, %v6137
      %v6139 = vpop.f32.mrf.mxu0
      %v6140 = vadd.f32 %v5979, %v6139
      %6141 = vmatmul.bf16.gmra.mxu0 %v6069
      %v6142 = vpop.f32.mrf.mxu0
      %v6143 = vadd.f32 %v5982, %v6142
      %v6144 = vpop.f32.mrf.mxu0
      %v6145 = vadd.f32 %v5984, %v6144
      %6146 = vmatmul.bf16.gmra.mxu0 %v6071
      %v6147 = vpop.f32.mrf.mxu0
      %v6148 = vadd.f32 %v5987, %v6147
      %v6149 = vpop.f32.mrf.mxu0
      %v6150 = vadd.f32 %v5989, %v6149
      %6151 = vmatmul.bf16.gmra.mxu0 %v6073
      %v6152 = vpop.f32.mrf.mxu0
      %v6153 = vadd.f32 %v5992, %v6152
      %v6154 = vpop.f32.mrf.mxu0
      %v6155 = vadd.f32 %v5994, %v6154
      %6156 = vmatmul.bf16.gmra.mxu0 %v6075
      %v6157 = vpop.f32.mrf.mxu0
      %v6158 = vadd.f32 %v5997, %v6157
      %v6159 = vpop.f32.mrf.mxu0
      %v6160 = vadd.f32 %v5999, %v6159
      %6161 = vmatmul.bf16.gmra.mxu0 %v6077
      %v6162 = vpop.f32.mrf.mxu0
      %v6163 = vadd.f32 %v6002, %v6162
      %v6164 = vpop.f32.mrf.mxu0
      %v6165 = vadd.f32 %v6004, %v6164
      %6166 = vmatmul.bf16.gmra.mxu0 %v6079
      %v6167 = vpop.f32.mrf.mxu0
      %v6168 = vadd.f32 %v6007, %v6167
      %v6169 = vpop.f32.mrf.mxu0
      %v6170 = vadd.f32 %v6009, %v6169
      %6171 = vmatmul.bf16.gmra.mxu0 %v6081
      %v6172 = vpop.f32.mrf.mxu0
      %v6173 = vadd.f32 %v6012, %v6172
      %v6174 = vpop.f32.mrf.mxu0
      %v6175 = vadd.f32 %v6014, %v6174
      %6176 = vmatmul.bf16.gmra.mxu0 %v6083
      %v6177 = vpop.f32.mrf.mxu0
      %v6178 = vadd.f32 %v6017, %v6177
      %v6179 = vpop.f32.mrf.mxu0
      %v6180 = vadd.f32 %v6019, %v6179
      %6181 = vmatmul.bf16.gmra.mxu0 %v6085
      %v6182 = vpop.f32.mrf.mxu0
      %v6183 = vadd.f32 %v6022, %v6182
      %v6184 = vpop.f32.mrf.mxu0
      %v6185 = vadd.f32 %v6024, %v6184
      %6186 = vmatmul.bf16.gmra.mxu0 %v6087
      %v6187 = vpop.f32.mrf.mxu0
      %v6188 = vadd.f32 %v6027, %v6187
      %v6189 = vpop.f32.mrf.mxu0
      %v6190 = vadd.f32 %v6029, %v6189
      %6191 = vmatmul.bf16.gmra.mxu0 %v6089
      %v6192 = vpop.f32.mrf.mxu0
      %v6193 = vadd.f32 %v6032, %v6192
      %v6194 = vpop.f32.mrf.mxu0
      %v6195 = vadd.f32 %v6034, %v6194
      %6196 = vmatmul.bf16.gmra.mxu0 %v6091
      %v6197 = vpop.f32.mrf.mxu0
      %v6198 = vadd.f32 %v6037, %v6197
      %v6199 = vpop.f32.mrf.mxu0
      %v6200 = vadd.f32 %v6039, %v6199
      %6201 = vdwg.mxu0
      %v6202 = vld [vmem:[#allocation3] sm:$0xe]
      %s6203 = scalar_lea.vmem %s5, 32
      %v6204 = vld [vmem:[%s6203] sm:$0xf]
      %v6205 = vld [vmem:[%s6203 + $0x4] sm:$0xf]
      %v6206 = vld [vmem:[%s6203 + $0x8] sm:$0xf]
      %v6207 = vld [vmem:[%s6203 + $0xc] sm:$0xf]
      %v6209 = vunpack.c.l.b16 %v6202
      %v6210 = vpack.c.b16 %v5634, %v6209
      %v6211 = vrot.slane %v6210, 1
      %v6212 = vrot.slane %v5675, 1
      %v6213 = vsel %vm2141, %v6211, %v6212
      %v6214 = vrot.slane %v5676, 1
      %v6215 = vsel %vm2141, %v6212, %v6214
      %v6216 = vrot.slane %v5677, 1
      %v6217 = vsel %vm2141, %v6214, %v6216
      %v6218 = vrot.slane %v5678, 1
      %v6219 = vsel %vm2141, %v6216, %v6218
      %v6220 = vrot.slane %v5679, 1
      %v6221 = vsel %vm2141, %v6218, %v6220
      %v6222 = vrot.slane %v5680, 1
      %v6223 = vsel %vm2141, %v6220, %v6222
      %v6224 = vrot.slane %v5681, 1
      %v6225 = vsel %vm2141, %v6222, %v6224
      %v6226 = vrot.slane %v5682, 1
      %v6227 = vsel %vm2141, %v6224, %v6226
      %v6228 = vrot.slane %v5683, 1
      %v6229 = vsel %vm2141, %v6226, %v6228
      %v6230 = vrot.slane %v5684, 1
      %v6231 = vsel %vm2141, %v6228, %v6230
      %v6232 = vrot.slane %v5685, 1
      %v6233 = vsel %vm2141, %v6230, %v6232
      %v6234 = vrot.slane %v5686, 1
      %v6235 = vsel %vm2141, %v6232, %v6234
      %v6236 = vrot.slane %v5687, 1
      %v6237 = vsel %vm2141, %v6234, %v6236
      %v6238 = vrot.slane %v5688, 1
      %v6239 = vsel %vm2141, %v6236, %v6238
      %v6240 = vrot.slane %v5689, 1
      %v6241 = vsel %vm2141, %v6238, %v6240
      %v6242 = vrot.slane %v5690, 1
      %v6243 = vsel %vm2141, %v6240, %v6242
      %v6244 = vrot.slane %v5691, 1
      %v6245 = vsel %vm2141, %v6242, %v6244
      %v6246 = vrot.slane %v5692, 1
      %v6247 = vsel %vm2141, %v6244, %v6246
      %v6248 = vrot.slane %v5693, 1
      %v6249 = vsel %vm2141, %v6246, %v6248
      %v6250 = vrot.slane %v5694, 1
      %v6251 = vsel %vm2141, %v6248, %v6250
      %v6256 = vunpack.c.l.b16 %v6204
      %v6257 = vunpack.c.l.b16 %v6205
      %v6258 = vunpack.c.l.b16 %v6206
      %v6259 = vunpack.c.l.b16 %v6207
      %v6260 = vpack.c.b16 %v6257, %v6256
      %v6261 = vpack.c.b16 %v6259, %v6258
      %v6265 = vsel %vm5871, %v6213, 0
      %v6268 = vsel %vm5871, %v6215, 0
      %v6271 = vsel %vm5871, %v6217, 0
      %v6274 = vsel %vm5871, %v6219, 0
      %v6277 = vsel %vm5871, %v6221, 0
      %v6280 = vsel %vm5871, %v6223, 0
      %v6283 = vsel %vm5871, %v6225, 0
      %v6286 = vsel %vm5871, %v6227, 0
      %v6289 = vsel %vm5871, %v6229, 0
      %v6292 = vsel %vm5871, %v6231, 0
      %v6295 = vsel %vm5871, %v6233, 0
      %v6298 = vsel %vm5871, %v6235, 0
      %v6301 = vsel %vm5871, %v6237, 0
      %v6304 = vsel %vm5871, %v6239, 0
      %v6307 = vsel %vm5871, %v6241, 0
      %v6310 = vsel %vm5871, %v6243, 0
      %v6313 = vsel %vm5871, %v6245, 0
      %v6316 = vsel %vm5871, %v6247, 0
      %v6319 = vsel %vm5871, %v6249, 0
      %v6322 = vsel %vm5871, %v6251, 0
      %6324 = vmatpush.bf16.msra.mxu0 0
      %6325 = vmatpush.bf16.msra.mxu0 0
      %6326 = vmatpush.bf16.msra.mxu0 0
      %6327 = vmatpush.bf16.msra.mxu0 0
      %6328 = vmatpush.bf16.msra.mxu0 0
      %6329 = vmatpush.bf16.msra.mxu0 0
      %6330 = vmatpush.bf16.msra.mxu0 %v6261
      %6331 = vmatpush.bf16.msra.mxu0 %v6260
      %6332 = vmatmul.bf16.gmra.mxu0 %v6265
      %v6333 = vpop.f32.mrf.mxu0
      %v6334 = vadd.f32 0.0, %v6333
      %v6335 = vpop.f32.mrf.mxu0
      %v6336 = vadd.f32 0.0, %v6335
      %6337 = vmatmul.bf16.gmra.mxu0 %v6268
      %v6338 = vpop.f32.mrf.mxu0
      %v6339 = vadd.f32 0.0, %v6338
      %v6340 = vpop.f32.mrf.mxu0
      %v6341 = vadd.f32 0.0, %v6340
      %6342 = vmatmul.bf16.gmra.mxu0 %v6271
      %v6343 = vpop.f32.mrf.mxu0
      %v6344 = vadd.f32 0.0, %v6343
      %v6345 = vpop.f32.mrf.mxu0
      %v6346 = vadd.f32 0.0, %v6345
      %6347 = vmatmul.bf16.gmra.mxu0 %v6274
      %v6348 = vpop.f32.mrf.mxu0
      %v6349 = vadd.f32 0.0, %v6348
      %v6350 = vpop.f32.mrf.mxu0
      %v6351 = vadd.f32 0.0, %v6350
      %6352 = vmatmul.bf16.gmra.mxu0 %v6277
      %v6353 = vpop.f32.mrf.mxu0
      %v6354 = vadd.f32 0.0, %v6353
      %v6355 = vpop.f32.mrf.mxu0
      %v6356 = vadd.f32 0.0, %v6355
      %6357 = vmatmul.bf16.gmra.mxu0 %v6280
      %v6358 = vpop.f32.mrf.mxu0
      %v6359 = vadd.f32 0.0, %v6358
      %v6360 = vpop.f32.mrf.mxu0
      %v6361 = vadd.f32 0.0, %v6360
      %6362 = vmatmul.bf16.gmra.mxu0 %v6283
      %v6363 = vpop.f32.mrf.mxu0
      %v6364 = vadd.f32 0.0, %v6363
      %v6365 = vpop.f32.mrf.mxu0
      %v6366 = vadd.f32 0.0, %v6365
      %6367 = vmatmul.bf16.gmra.mxu0 %v6286
      %v6368 = vpop.f32.mrf.mxu0
      %v6369 = vadd.f32 0.0, %v6368
      %v6370 = vpop.f32.mrf.mxu0
      %v6371 = vadd.f32 0.0, %v6370
      %6372 = vmatmul.bf16.gmra.mxu0 %v6289
      %v6373 = vpop.f32.mrf.mxu0
      %v6374 = vadd.f32 0.0, %v6373
      %v6375 = vpop.f32.mrf.mxu0
      %v6376 = vadd.f32 0.0, %v6375
      %6377 = vmatmul.bf16.gmra.mxu0 %v6292
      %v6378 = vpop.f32.mrf.mxu0
      %v6379 = vadd.f32 0.0, %v6378
      %v6380 = vpop.f32.mrf.mxu0
      %v6381 = vadd.f32 0.0, %v6380
      %6382 = vmatmul.bf16.gmra.mxu0 %v6295
      %v6383 = vpop.f32.mrf.mxu0
      %v6384 = vadd.f32 0.0, %v6383
      %v6385 = vpop.f32.mrf.mxu0
      %v6386 = vadd.f32 0.0, %v6385
      %6387 = vmatmul.bf16.gmra.mxu0 %v6298
      %v6388 = vpop.f32.mrf.mxu0
      %v6389 = vadd.f32 0.0, %v6388
      %v6390 = vpop.f32.mrf.mxu0
      %v6391 = vadd.f32 0.0, %v6390
      %6392 = vmatmul.bf16.gmra.mxu0 %v6301
      %v6393 = vpop.f32.mrf.mxu0
      %v6394 = vadd.f32 0.0, %v6393
      %v6395 = vpop.f32.mrf.mxu0
      %v6396 = vadd.f32 0.0, %v6395
      %6397 = vmatmul.bf16.gmra.mxu0 %v6304
      %v6398 = vpop.f32.mrf.mxu0
      %v6399 = vadd.f32 0.0, %v6398
      %v6400 = vpop.f32.mrf.mxu0
      %v6401 = vadd.f32 0.0, %v6400
      %6402 = vmatmul.bf16.gmra.mxu0 %v6307
      %v6403 = vpop.f32.mrf.mxu0
      %v6404 = vadd.f32 0.0, %v6403
      %v6405 = vpop.f32.mrf.mxu0
      %v6406 = vadd.f32 0.0, %v6405
      %6407 = vmatmul.bf16.gmra.mxu0 %v6310
      %v6408 = vpop.f32.mrf.mxu0
      %v6409 = vadd.f32 0.0, %v6408
      %v6410 = vpop.f32.mrf.mxu0
      %v6411 = vadd.f32 0.0, %v6410
      %6412 = vmatmul.bf16.gmra.mxu0 %v6313
      %v6413 = vpop.f32.mrf.mxu0
      %v6414 = vadd.f32 0.0, %v6413
      %v6415 = vpop.f32.mrf.mxu0
      %v6416 = vadd.f32 0.0, %v6415
      %6417 = vmatmul.bf16.gmra.mxu0 %v6316
      %v6418 = vpop.f32.mrf.mxu0
      %v6419 = vadd.f32 0.0, %v6418
      %v6420 = vpop.f32.mrf.mxu0
      %v6421 = vadd.f32 0.0, %v6420
      %6422 = vmatmul.bf16.gmra.mxu0 %v6319
      %v6423 = vpop.f32.mrf.mxu0
      %v6424 = vadd.f32 0.0, %v6423
      %v6425 = vpop.f32.mrf.mxu0
      %v6426 = vadd.f32 0.0, %v6425
      %6427 = vmatmul.bf16.gmra.mxu0 %v6322
      %v6428 = vpop.f32.mrf.mxu0
      %v6429 = vadd.f32 0.0, %v6428
      %v6430 = vpop.f32.mrf.mxu0
      %v6431 = vadd.f32 0.0, %v6430
      %6432 = vdwg.mxu0
      %v6433 = vadd.f32 %v6103, %v6334
      %v6434 = vadd.f32 %v6105, %v6336
      %v6435 = vadd.f32 %v6108, %v6339
      %v6436 = vadd.f32 %v6110, %v6341
      %v6437 = vadd.f32 %v6113, %v6344
      %v6438 = vadd.f32 %v6115, %v6346
      %v6439 = vadd.f32 %v6118, %v6349
      %v6440 = vadd.f32 %v6120, %v6351
      %v6441 = vadd.f32 %v6123, %v6354
      %v6442 = vadd.f32 %v6125, %v6356
      %v6443 = vadd.f32 %v6128, %v6359
      %v6444 = vadd.f32 %v6130, %v6361
      %v6445 = vadd.f32 %v6133, %v6364
      %v6446 = vadd.f32 %v6135, %v6366
      %v6447 = vadd.f32 %v6138, %v6369
      %v6448 = vadd.f32 %v6140, %v6371
      %v6449 = vadd.f32 %v6143, %v6374
      %v6450 = vadd.f32 %v6145, %v6376
      %v6451 = vadd.f32 %v6148, %v6379
      %v6452 = vadd.f32 %v6150, %v6381
      %v6453 = vadd.f32 %v6153, %v6384
      %v6454 = vadd.f32 %v6155, %v6386
      %v6455 = vadd.f32 %v6158, %v6389
      %v6456 = vadd.f32 %v6160, %v6391
      %v6457 = vadd.f32 %v6163, %v6394
      %v6458 = vadd.f32 %v6165, %v6396
      %v6459 = vadd.f32 %v6168, %v6399
      %v6460 = vadd.f32 %v6170, %v6401
      %v6461 = vadd.f32 %v6173, %v6404
      %v6462 = vadd.f32 %v6175, %v6406
      %v6463 = vadd.f32 %v6178, %v6409
      %v6464 = vadd.f32 %v6180, %v6411
      %v6465 = vadd.f32 %v6183, %v6414
      %v6466 = vadd.f32 %v6185, %v6416
      %v6467 = vadd.f32 %v6188, %v6419
      %v6468 = vadd.f32 %v6190, %v6421
      %v6469 = vadd.f32 %v6193, %v6424
      %v6470 = vadd.f32 %v6195, %v6426
      %v6471 = vadd.f32 %v6198, %v6429
      %v6472 = vadd.f32 %v6200, %v6431
      %v6473 = vld [vmem:[#allocation3 + $0x8] sm:$0xc]
      %v6474 = vld [vmem:[#allocation3 + $0xc] sm:$0xf]
      %v6475 = vld [vmem:[#allocation3 + $0x10] sm:$0xf]
      %v6476 = vld [vmem:[#allocation3 + $0x14] sm:$0xf]
      %v6477 = vld [vmem:[#allocation3 + $0x18] sm:$0xf]
      %v6478 = vld [vmem:[#allocation3 + $0x1c] sm:$0xf]
      %v6479 = vld [vmem:[#allocation3 + $0x20] sm:$0xf]
      %v6480 = vld [vmem:[#allocation3 + $0x24] sm:$0xf]
      %v6481 = vld [vmem:[#allocation3 + $0x28] sm:$0xf]
      %v6482 = vld [vmem:[#allocation3 + $0x2c] sm:$0xf]
      %v6483 = vld [vmem:[#allocation3 + $0x30] sm:$0xf]
      %v6484 = vld [vmem:[#allocation3 + $0x34] sm:$0xf]
      %v6485 = vld [vmem:[#allocation3 + $0x38] sm:$0xf]
      %v6486 = vld [vmem:[#allocation3 + $0x3c] sm:$0xf]
      %v6487 = vld [vmem:[#allocation3 + $0x40] sm:$0xf]
      %v6488 = vld [vmem:[#allocation3 + $0x44] sm:$0xf]
      %v6489 = vld [vmem:[#allocation3 + $0x48] sm:$0xf]
      %v6490 = vld [vmem:[#allocation3 + $0x4c] sm:$0xf]
      %v6491 = vld [vmem:[#allocation3 + $0x50] sm:$0xf]
      %v6492 = vld [vmem:[#allocation3 + $0x54] sm:$0xf]
      %v6493 = vld [vmem:[#allocation3 + $0x58] sm:$0xf]
      %v6494 = vld [vmem:[#allocation3 + $0x5c] sm:$0xf]
      %v6495 = vld [vmem:[#allocation3 + $0x60] sm:$0xf]
      %v6496 = vld [vmem:[#allocation3 + $0x64] sm:$0xf]
      %v6497 = vld [vmem:[#allocation3 + $0x68] sm:$0xf]
      %v6498 = vld [vmem:[#allocation3 + $0x6c] sm:$0xf]
      %v6499 = vld [vmem:[#allocation3 + $0x70] sm:$0xf]
      %v6500 = vld [vmem:[#allocation3 + $0x74] sm:$0xf]
      %v6501 = vld [vmem:[#allocation3 + $0x78] sm:$0xf]
      %v6502 = vld [vmem:[#allocation3 + $0x7c] sm:$0xf]
      %v6503 = vld [vmem:[#allocation3 + $0x80] sm:$0xf]
      %v6504 = vld [vmem:[#allocation3 + $0x84] sm:$0xf]
      %v6505 = vld [vmem:[#allocation3 + $0x88] sm:$0xf]
      %v6506 = vld [vmem:[#allocation3 + $0x8c] sm:$0xf]
      %v6507 = vld [vmem:[#allocation3 + $0x90] sm:$0xf]
      %v6508 = vld [vmem:[#allocation3 + $0x94] sm:$0xf]
      %v6509 = vld [vmem:[#allocation3 + $0x98] sm:$0xf]
      %v6510 = vld [vmem:[#allocation3 + $0x9c] sm:$0xf]
      %v6511 = vld [vmem:[#allocation3 + $0xa0] sm:$0xf]
      %v6512 = vld [vmem:[#allocation3 + $0xa4] sm:$0xf]
      %v6513 = vld [vmem:[#allocation3 + $0xa8] sm:$0x3]
      %s6514 = scalar_lea.vmem %s5, 48
      %v6515 = vld [vmem:[%s6514] sm:$0xf]
      %v6516 = vld [vmem:[%s6514 + $0x4] sm:$0xf]
      %v6517 = vld [vmem:[%s6514 + $0x8] sm:$0xf]
      %v6518 = vld [vmem:[%s6514 + $0xc] sm:$0xf]
      %v6560 = vunpack.c.l.b16 %v6473
      %v6561 = vunpack.c.l.b16 %v6474
      %v6562 = vunpack.c.l.b16 %v6475
      %v6563 = vunpack.c.l.b16 %v6476
      %v6564 = vunpack.c.l.b16 %v6477
      %v6565 = vunpack.c.l.b16 %v6478
      %v6566 = vunpack.c.l.b16 %v6479
      %v6567 = vunpack.c.l.b16 %v6480
      %v6568 = vunpack.c.l.b16 %v6481
      %v6569 = vunpack.c.l.b16 %v6482
      %v6570 = vunpack.c.l.b16 %v6483
      %v6571 = vunpack.c.l.b16 %v6484
      %v6572 = vunpack.c.l.b16 %v6485
      %v6573 = vunpack.c.l.b16 %v6486
      %v6574 = vunpack.c.l.b16 %v6487
      %v6575 = vunpack.c.l.b16 %v6488
      %v6576 = vunpack.c.l.b16 %v6489
      %v6577 = vunpack.c.l.b16 %v6490
      %v6578 = vunpack.c.l.b16 %v6491
      %v6579 = vunpack.c.l.b16 %v6492
      %v6580 = vunpack.c.l.b16 %v6493
      %v6581 = vunpack.c.l.b16 %v6494
      %v6582 = vunpack.c.l.b16 %v6495
      %v6583 = vunpack.c.l.b16 %v6496
      %v6584 = vunpack.c.l.b16 %v6497
      %v6585 = vunpack.c.l.b16 %v6498
      %v6586 = vunpack.c.l.b16 %v6499
      %v6587 = vunpack.c.l.b16 %v6500
      %v6588 = vunpack.c.l.b16 %v6501
      %v6589 = vunpack.c.l.b16 %v6502
      %v6590 = vunpack.c.l.b16 %v6503
      %v6591 = vunpack.c.l.b16 %v6504
      %v6592 = vunpack.c.l.b16 %v6505
      %v6593 = vunpack.c.l.b16 %v6506
      %v6594 = vunpack.c.l.b16 %v6507
      %v6595 = vunpack.c.l.b16 %v6508
      %v6596 = vunpack.c.l.b16 %v6509
      %v6597 = vunpack.c.l.b16 %v6510
      %v6598 = vunpack.c.l.b16 %v6511
      %v6599 = vunpack.c.l.b16 %v6512
      %v6600 = vunpack.c.l.b16 %v6513
      %v6601 = vpack.c.b16 %v6561, %v6560
      %v6602 = vpack.c.b16 %v6563, %v6562
      %v6603 = vpack.c.b16 %v6565, %v6564
      %v6604 = vpack.c.b16 %v6567, %v6566
      %v6605 = vpack.c.b16 %v6569, %v6568
      %v6606 = vpack.c.b16 %v6571, %v6570
      %v6607 = vpack.c.b16 %v6573, %v6572
      %v6608 = vpack.c.b16 %v6575, %v6574
      %v6609 = vpack.c.b16 %v6577, %v6576
      %v6610 = vpack.c.b16 %v6579, %v6578
      %v6611 = vpack.c.b16 %v6581, %v6580
      %v6612 = vpack.c.b16 %v6583, %v6582
      %v6613 = vpack.c.b16 %v6585, %v6584
      %v6614 = vpack.c.b16 %v6587, %v6586
      %v6615 = vpack.c.b16 %v6589, %v6588
      %v6616 = vpack.c.b16 %v6591, %v6590
      %v6617 = vpack.c.b16 %v6593, %v6592
      %v6618 = vpack.c.b16 %v6595, %v6594
      %v6619 = vpack.c.b16 %v6597, %v6596
      %v6620 = vpack.c.b16 %v6599, %v6598
      %v6621 = vpack.c.b16 %v6600, %v6600
      %v6622 = vrot.slane %v6601, 2
      %v6623 = vrot.slane %v6602, 2
      %v6624 = vsel %vm2618, %v6622, %v6623
      %v6625 = vrot.slane %v6603, 2
      %v6626 = vsel %vm2618, %v6623, %v6625
      %v6627 = vrot.slane %v6604, 2
      %v6628 = vsel %vm2618, %v6625, %v6627
      %v6629 = vrot.slane %v6605, 2
      %v6630 = vsel %vm2618, %v6627, %v6629
      %v6631 = vrot.slane %v6606, 2
      %v6632 = vsel %vm2618, %v6629, %v6631
      %v6633 = vrot.slane %v6607, 2
      %v6634 = vsel %vm2618, %v6631, %v6633
      %v6635 = vrot.slane %v6608, 2
      %v6636 = vsel %vm2618, %v6633, %v6635
      %v6637 = vrot.slane %v6609, 2
      %v6638 = vsel %vm2618, %v6635, %v6637
      %v6639 = vrot.slane %v6610, 2
      %v6640 = vsel %vm2618, %v6637, %v6639
      %v6641 = vrot.slane %v6611, 2
      %v6642 = vsel %vm2618, %v6639, %v6641
      %v6643 = vrot.slane %v6612, 2
      %v6644 = vsel %vm2618, %v6641, %v6643
      %v6645 = vrot.slane %v6613, 2
      %v6646 = vsel %vm2618, %v6643, %v6645
      %v6647 = vrot.slane %v6614, 2
      %v6648 = vsel %vm2618, %v6645, %v6647
      %v6649 = vrot.slane %v6615, 2
      %v6650 = vsel %vm2618, %v6647, %v6649
      %v6651 = vrot.slane %v6616, 2
      %v6652 = vsel %vm2618, %v6649, %v6651
      %v6653 = vrot.slane %v6617, 2
      %v6654 = vsel %vm2618, %v6651, %v6653
      %v6655 = vrot.slane %v6618, 2
      %v6656 = vsel %vm2618, %v6653, %v6655
      %v6657 = vrot.slane %v6619, 2
      %v6658 = vsel %vm2618, %v6655, %v6657
      %v6659 = vrot.slane %v6620, 2
      %v6660 = vsel %vm2618, %v6657, %v6659
      %v6661 = vrot.slane %v6621, 2
      %v6662 = vsel %vm2618, %v6659, %v6661
      %v6667 = vunpack.c.l.b16 %v6515
      %v6668 = vunpack.c.l.b16 %v6516
      %v6669 = vunpack.c.l.b16 %v6517
      %v6670 = vunpack.c.l.b16 %v6518
      %v6671 = vpack.c.b16 %v6668, %v6667
      %v6672 = vpack.c.b16 %v6670, %v6669
      %v6676 = vsel %vm5871, %v6624, 0
      %v6679 = vsel %vm5871, %v6626, 0
      %v6682 = vsel %vm5871, %v6628, 0
      %v6685 = vsel %vm5871, %v6630, 0
      %v6688 = vsel %vm5871, %v6632, 0
      %v6691 = vsel %vm5871, %v6634, 0
      %v6694 = vsel %vm5871, %v6636, 0
      %v6697 = vsel %vm5871, %v6638, 0
      %v6700 = vsel %vm5871, %v6640, 0
      %v6703 = vsel %vm5871, %v6642, 0
      %v6706 = vsel %vm5871, %v6644, 0
      %v6709 = vsel %vm5871, %v6646, 0
      %v6712 = vsel %vm5871, %v6648, 0
      %v6715 = vsel %vm5871, %v6650, 0
      %v6718 = vsel %vm5871, %v6652, 0
      %v6721 = vsel %vm5871, %v6654, 0
      %v6724 = vsel %vm5871, %v6656, 0
      %v6727 = vsel %vm5871, %v6658, 0
      %v6730 = vsel %vm5871, %v6660, 0
      %v6733 = vsel %vm5871, %v6662, 0
      %6735 = vmatpush.bf16.msra.mxu0 0
      %6736 = vmatpush.bf16.msra.mxu0 0
      %6737 = vmatpush.bf16.msra.mxu0 0
      %6738 = vmatpush.bf16.msra.mxu0 0
      %6739 = vmatpush.bf16.msra.mxu0 0
      %6740 = vmatpush.bf16.msra.mxu0 0
      %6741 = vmatpush.bf16.msra.mxu0 %v6672
      %6742 = vmatpush.bf16.msra.mxu0 %v6671
      %6743 = vmatmul.bf16.gmra.mxu0 %v6676
      %v6744 = vpop.f32.mrf.mxu0
      %v6745 = vadd.f32 0.0, %v6744
      %v6746 = vpop.f32.mrf.mxu0
      %v6747 = vadd.f32 0.0, %v6746
      %6748 = vmatmul.bf16.gmra.mxu0 %v6679
      %v6749 = vpop.f32.mrf.mxu0
      %v6750 = vadd.f32 0.0, %v6749
      %v6751 = vpop.f32.mrf.mxu0
      %v6752 = vadd.f32 0.0, %v6751
      %6753 = vmatmul.bf16.gmra.mxu0 %v6682
      %v6754 = vpop.f32.mrf.mxu0
      %v6755 = vadd.f32 0.0, %v6754
      %v6756 = vpop.f32.mrf.mxu0
      %v6757 = vadd.f32 0.0, %v6756
      %6758 = vmatmul.bf16.gmra.mxu0 %v6685
      %v6759 = vpop.f32.mrf.mxu0
      %v6760 = vadd.f32 0.0, %v6759
      %v6761 = vpop.f32.mrf.mxu0
      %v6762 = vadd.f32 0.0, %v6761
      %6763 = vmatmul.bf16.gmra.mxu0 %v6688
      %v6764 = vpop.f32.mrf.mxu0
      %v6765 = vadd.f32 0.0, %v6764
      %v6766 = vpop.f32.mrf.mxu0
      %v6767 = vadd.f32 0.0, %v6766
      %6768 = vmatmul.bf16.gmra.mxu0 %v6691
      %v6769 = vpop.f32.mrf.mxu0
      %v6770 = vadd.f32 0.0, %v6769
      %v6771 = vpop.f32.mrf.mxu0
      %v6772 = vadd.f32 0.0, %v6771
      %6773 = vmatmul.bf16.gmra.mxu0 %v6694
      %v6774 = vpop.f32.mrf.mxu0
      %v6775 = vadd.f32 0.0, %v6774
      %v6776 = vpop.f32.mrf.mxu0
      %v6777 = vadd.f32 0.0, %v6776
      %6778 = vmatmul.bf16.gmra.mxu0 %v6697
      %v6779 = vpop.f32.mrf.mxu0
      %v6780 = vadd.f32 0.0, %v6779
      %v6781 = vpop.f32.mrf.mxu0
      %v6782 = vadd.f32 0.0, %v6781
      %6783 = vmatmul.bf16.gmra.mxu0 %v6700
      %v6784 = vpop.f32.mrf.mxu0
      %v6785 = vadd.f32 0.0, %v6784
      %v6786 = vpop.f32.mrf.mxu0
      %v6787 = vadd.f32 0.0, %v6786
      %6788 = vmatmul.bf16.gmra.mxu0 %v6703
      %v6789 = vpop.f32.mrf.mxu0
      %v6790 = vadd.f32 0.0, %v6789
      %v6791 = vpop.f32.mrf.mxu0
      %v6792 = vadd.f32 0.0, %v6791
      %6793 = vmatmul.bf16.gmra.mxu0 %v6706
      %v6794 = vpop.f32.mrf.mxu0
      %v6795 = vadd.f32 0.0, %v6794
      %v6796 = vpop.f32.mrf.mxu0
      %v6797 = vadd.f32 0.0, %v6796
      %6798 = vmatmul.bf16.gmra.mxu0 %v6709
      %v6799 = vpop.f32.mrf.mxu0
      %v6800 = vadd.f32 0.0, %v6799
      %v6801 = vpop.f32.mrf.mxu0
      %v6802 = vadd.f32 0.0, %v6801
      %6803 = vmatmul.bf16.gmra.mxu0 %v6712
      %v6804 = vpop.f32.mrf.mxu0
      %v6805 = vadd.f32 0.0, %v6804
      %v6806 = vpop.f32.mrf.mxu0
      %v6807 = vadd.f32 0.0, %v6806
      %6808 = vmatmul.bf16.gmra.mxu0 %v6715
      %v6809 = vpop.f32.mrf.mxu0
      %v6810 = vadd.f32 0.0, %v6809
      %v6811 = vpop.f32.mrf.mxu0
      %v6812 = vadd.f32 0.0, %v6811
      %6813 = vmatmul.bf16.gmra.mxu0 %v6718
      %v6814 = vpop.f32.mrf.mxu0
      %v6815 = vadd.f32 0.0, %v6814
      %v6816 = vpop.f32.mrf.mxu0
      %v6817 = vadd.f32 0.0, %v6816
      %6818 = vmatmul.bf16.gmra.mxu0 %v6721
      %v6819 = vpop.f32.mrf.mxu0
      %v6820 = vadd.f32 0.0, %v6819
      %v6821 = vpop.f32.mrf.mxu0
      %v6822 = vadd.f32 0.0, %v6821
      %6823 = vmatmul.bf16.gmra.mxu0 %v6724
      %v6824 = vpop.f32.mrf.mxu0
      %v6825 = vadd.f32 0.0, %v6824
      %v6826 = vpop.f32.mrf.mxu0
      %v6827 = vadd.f32 0.0, %v6826
      %6828 = vmatmul.bf16.gmra.mxu0 %v6727
      %v6829 = vpop.f32.mrf.mxu0
      %v6830 = vadd.f32 0.0, %v6829
      %v6831 = vpop.f32.mrf.mxu0
      %v6832 = vadd.f32 0.0, %v6831
      %6833 = vmatmul.bf16.gmra.mxu0 %v6730
      %v6834 = vpop.f32.mrf.mxu0
      %v6835 = vadd.f32 0.0, %v6834
      %v6836 = vpop.f32.mrf.mxu0
      %v6837 = vadd.f32 0.0, %v6836
      %6838 = vmatmul.bf16.gmra.mxu0 %v6733
      %v6839 = vpop.f32.mrf.mxu0
      %v6840 = vadd.f32 0.0, %v6839
      %v6841 = vpop.f32.mrf.mxu0
      %v6842 = vadd.f32 0.0, %v6841
      %6843 = vdwg.mxu0
      %v6844 = vadd.f32 %v6433, %v6745
      %v6845 = vadd.f32 %v6434, %v6747
      %v6846 = vadd.f32 %v6435, %v6750
      %v6847 = vadd.f32 %v6436, %v6752
      %v6848 = vadd.f32 %v6437, %v6755
      %v6849 = vadd.f32 %v6438, %v6757
      %v6850 = vadd.f32 %v6439, %v6760
      %v6851 = vadd.f32 %v6440, %v6762
      %v6852 = vadd.f32 %v6441, %v6765
      %v6853 = vadd.f32 %v6442, %v6767
      %v6854 = vadd.f32 %v6443, %v6770
      %v6855 = vadd.f32 %v6444, %v6772
      %v6856 = vadd.f32 %v6445, %v6775
      %v6857 = vadd.f32 %v6446, %v6777
      %v6858 = vadd.f32 %v6447, %v6780
      %v6859 = vadd.f32 %v6448, %v6782
      %v6860 = vadd.f32 %v6449, %v6785
      %v6861 = vadd.f32 %v6450, %v6787
      %v6862 = vadd.f32 %v6451, %v6790
      %v6863 = vadd.f32 %v6452, %v6792
      %v6864 = vadd.f32 %v6453, %v6795
      %v6865 = vadd.f32 %v6454, %v6797
      %v6866 = vadd.f32 %v6455, %v6800
      %v6867 = vadd.f32 %v6456, %v6802
      %v6868 = vadd.f32 %v6457, %v6805
      %v6869 = vadd.f32 %v6458, %v6807
      %v6870 = vadd.f32 %v6459, %v6810
      %v6871 = vadd.f32 %v6460, %v6812
      %v6872 = vadd.f32 %v6461, %v6815
      %v6873 = vadd.f32 %v6462, %v6817
      %v6874 = vadd.f32 %v6463, %v6820
      %v6875 = vadd.f32 %v6464, %v6822
      %v6876 = vadd.f32 %v6465, %v6825
      %v6877 = vadd.f32 %v6466, %v6827
      %v6878 = vadd.f32 %v6467, %v6830
      %v6879 = vadd.f32 %v6468, %v6832
      %v6880 = vadd.f32 %v6469, %v6835
      %v6881 = vadd.f32 %v6470, %v6837
      %v6882 = vadd.f32 %v6471, %v6840
      %v6883 = vadd.f32 %v6472, %v6842
      %v6884 = vld [vmem:[#allocation3 + $0xa8] sm:$0x7]
      %s6885 = scalar_lea.vmem %s5, 64
      %v6886 = vld [vmem:[%s6885] sm:$0xf]
      %v6887 = vld [vmem:[%s6885 + $0x4] sm:$0xf]
      %v6888 = vld [vmem:[%s6885 + $0x8] sm:$0xf]
      %v6889 = vld [vmem:[%s6885 + $0xc] sm:$0xf]
      %v6891 = vunpack.c.l.b16 %v6884
      %v6892 = vpack.c.b16 %v6891, %v6891
      %v6894 = vshrl.u32 %v6601, 16
      %v6896 = vrot.slane %v6894, 2
      %v6897 = vshll.u32 %v6601, 16
      %v6899 = vrot.slane %v6897, 3
      %v6900 = vor.u32 %v6896, %v6899
      %v6902 = vshrl.u32 %v6602, 16
      %v6904 = vrot.slane %v6902, 2
      %v6905 = vshll.u32 %v6602, 16
      %v6907 = vrot.slane %v6905, 3
      %v6908 = vor.u32 %v6904, %v6907
      %v6909 = vsel %vm2938, %v6900, %v6908
      %v6911 = vshrl.u32 %v6603, 16
      %v6913 = vrot.slane %v6911, 2
      %v6914 = vshll.u32 %v6603, 16
      %v6916 = vrot.slane %v6914, 3
      %v6917 = vor.u32 %v6913, %v6916
      %v6918 = vsel %vm2938, %v6908, %v6917
      %v6920 = vshrl.u32 %v6604, 16
      %v6922 = vrot.slane %v6920, 2
      %v6923 = vshll.u32 %v6604, 16
      %v6925 = vrot.slane %v6923, 3
      %v6926 = vor.u32 %v6922, %v6925
      %v6927 = vsel %vm2938, %v6917, %v6926
      %v6929 = vshrl.u32 %v6605, 16
      %v6931 = vrot.slane %v6929, 2
      %v6932 = vshll.u32 %v6605, 16
      %v6934 = vrot.slane %v6932, 3
      %v6935 = vor.u32 %v6931, %v6934
      %v6936 = vsel %vm2938, %v6926, %v6935
      %v6938 = vshrl.u32 %v6606, 16
      %v6940 = vrot.slane %v6938, 2
      %v6941 = vshll.u32 %v6606, 16
      %v6943 = vrot.slane %v6941, 3
      %v6944 = vor.u32 %v6940, %v6943
      %v6945 = vsel %vm2938, %v6935, %v6944
      %v6947 = vshrl.u32 %v6607, 16
      %v6949 = vrot.slane %v6947, 2
      %v6950 = vshll.u32 %v6607, 16
      %v6952 = vrot.slane %v6950, 3
      %v6953 = vor.u32 %v6949, %v6952
      %v6954 = vsel %vm2938, %v6944, %v6953
      %v6956 = vshrl.u32 %v6608, 16
      %v6958 = vrot.slane %v6956, 2
      %v6959 = vshll.u32 %v6608, 16
      %v6961 = vrot.slane %v6959, 3
      %v6962 = vor.u32 %v6958, %v6961
      %v6963 = vsel %vm2938, %v6953, %v6962
      %v6965 = vshrl.u32 %v6609, 16
      %v6967 = vrot.slane %v6965, 2
      %v6968 = vshll.u32 %v6609, 16
      %v6970 = vrot.slane %v6968, 3
      %v6971 = vor.u32 %v6967, %v6970
      %v6972 = vsel %vm2938, %v6962, %v6971
      %v6974 = vshrl.u32 %v6610, 16
      %v6976 = vrot.slane %v6974, 2
      %v6977 = vshll.u32 %v6610, 16
      %v6979 = vrot.slane %v6977, 3
      %v6980 = vor.u32 %v6976, %v6979
      %v6981 = vsel %vm2938, %v6971, %v6980
      %v6983 = vshrl.u32 %v6611, 16
      %v6985 = vrot.slane %v6983, 2
      %v6986 = vshll.u32 %v6611, 16
      %v6988 = vrot.slane %v6986, 3
      %v6989 = vor.u32 %v6985, %v6988
      %v6990 = vsel %vm2938, %v6980, %v6989
      %v6992 = vshrl.u32 %v6612, 16
      %v6994 = vrot.slane %v6992, 2
      %v6995 = vshll.u32 %v6612, 16
      %v6997 = vrot.slane %v6995, 3
      %v6998 = vor.u32 %v6994, %v6997
      %v6999 = vsel %vm2938, %v6989, %v6998
      %v7001 = vshrl.u32 %v6613, 16
      %v7003 = vrot.slane %v7001, 2
      %v7004 = vshll.u32 %v6613, 16
      %v7006 = vrot.slane %v7004, 3
      %v7007 = vor.u32 %v7003, %v7006
      %v7008 = vsel %vm2938, %v6998, %v7007
      %v7010 = vshrl.u32 %v6614, 16
      %v7012 = vrot.slane %v7010, 2
      %v7013 = vshll.u32 %v6614, 16
      %v7015 = vrot.slane %v7013, 3
      %v7016 = vor.u32 %v7012, %v7015
      %v7017 = vsel %vm2938, %v7007, %v7016
      %v7019 = vshrl.u32 %v6615, 16
      %v7021 = vrot.slane %v7019, 2
      %v7022 = vshll.u32 %v6615, 16
      %v7024 = vrot.slane %v7022, 3
      %v7025 = vor.u32 %v7021, %v7024
      %v7026 = vsel %vm2938, %v7016, %v7025
      %v7028 = vshrl.u32 %v6616, 16
      %v7030 = vrot.slane %v7028, 2
      %v7031 = vshll.u32 %v6616, 16
      %v7033 = vrot.slane %v7031, 3
      %v7034 = vor.u32 %v7030, %v7033
      %v7035 = vsel %vm2938, %v7025, %v7034
      %v7037 = vshrl.u32 %v6617, 16
      %v7039 = vrot.slane %v7037, 2
      %v7040 = vshll.u32 %v6617, 16
      %v7042 = vrot.slane %v7040, 3
      %v7043 = vor.u32 %v7039, %v7042
      %v7044 = vsel %vm2938, %v7034, %v7043
      %v7046 = vshrl.u32 %v6618, 16
      %v7048 = vrot.slane %v7046, 2
      %v7049 = vshll.u32 %v6618, 16
      %v7051 = vrot.slane %v7049, 3
      %v7052 = vor.u32 %v7048, %v7051
      %v7053 = vsel %vm2938, %v7043, %v7052
      %v7055 = vshrl.u32 %v6619, 16
      %v7057 = vrot.slane %v7055, 2
      %v7058 = vshll.u32 %v6619, 16
      %v7060 = vrot.slane %v7058, 3
      %v7061 = vor.u32 %v7057, %v7060
      %v7062 = vsel %vm2938, %v7052, %v7061
      %v7064 = vshrl.u32 %v6620, 16
      %v7066 = vrot.slane %v7064, 2
      %v7067 = vshll.u32 %v6620, 16
      %v7069 = vrot.slane %v7067, 3
      %v7070 = vor.u32 %v7066, %v7069
      %v7071 = vsel %vm2938, %v7061, %v7070
      %v7073 = vshrl.u32 %v6892, 16
      %v7075 = vrot.slane %v7073, 2
      %v7076 = vshll.u32 %v6892, 16
      %v7078 = vrot.slane %v7076, 3
      %v7079 = vor.u32 %v7075, %v7078
      %v7080 = vsel %vm2938, %v7070, %v7079
      %v7085 = vunpack.c.l.b16 %v6886
      %v7086 = vunpack.c.l.b16 %v6887
      %v7087 = vunpack.c.l.b16 %v6888
      %v7088 = vunpack.c.l.b16 %v6889
      %v7089 = vpack.c.b16 %v7086, %v7085
      %v7090 = vpack.c.b16 %v7088, %v7087
      %v7094 = vsel %vm5871, %v6909, 0
      %v7097 = vsel %vm5871, %v6918, 0
      %v7100 = vsel %vm5871, %v6927, 0
      %v7103 = vsel %vm5871, %v6936, 0
      %v7106 = vsel %vm5871, %v6945, 0
      %v7109 = vsel %vm5871, %v6954, 0
      %v7112 = vsel %vm5871, %v6963, 0
      %v7115 = vsel %vm5871, %v6972, 0
      %v7118 = vsel %vm5871, %v6981, 0
      %v7121 = vsel %vm5871, %v6990, 0
      %v7124 = vsel %vm5871, %v6999, 0
      %v7127 = vsel %vm5871, %v7008, 0
      %v7130 = vsel %vm5871, %v7017, 0
      %v7133 = vsel %vm5871, %v7026, 0
      %v7136 = vsel %vm5871, %v7035, 0
      %v7139 = vsel %vm5871, %v7044, 0
      %v7142 = vsel %vm5871, %v7053, 0
      %v7145 = vsel %vm5871, %v7062, 0
      %v7148 = vsel %vm5871, %v7071, 0
      %v7151 = vsel %vm5871, %v7080, 0
      %7153 = vmatpush.bf16.msra.mxu0 0
      %7154 = vmatpush.bf16.msra.mxu0 0
      %7155 = vmatpush.bf16.msra.mxu0 0
      %7156 = vmatpush.bf16.msra.mxu0 0
      %7157 = vmatpush.bf16.msra.mxu0 0
      %7158 = vmatpush.bf16.msra.mxu0 0
      %7159 = vmatpush.bf16.msra.mxu0 %v7090
      %7160 = vmatpush.bf16.msra.mxu0 %v7089
      %7161 = vmatmul.bf16.gmra.mxu0 %v7094
      %v7162 = vpop.f32.mrf.mxu0
      %v7163 = vadd.f32 0.0, %v7162
      %v7164 = vpop.f32.mrf.mxu0
      %v7165 = vadd.f32 0.0, %v7164
      %7166 = vmatmul.bf16.gmra.mxu0 %v7097
      %v7167 = vpop.f32.mrf.mxu0
      %v7168 = vadd.f32 0.0, %v7167
      %v7169 = vpop.f32.mrf.mxu0
      %v7170 = vadd.f32 0.0, %v7169
      %7171 = vmatmul.bf16.gmra.mxu0 %v7100
      %v7172 = vpop.f32.mrf.mxu0
      %v7173 = vadd.f32 0.0, %v7172
      %v7174 = vpop.f32.mrf.mxu0
      %v7175 = vadd.f32 0.0, %v7174
      %7176 = vmatmul.bf16.gmra.mxu0 %v7103
      %v7177 = vpop.f32.mrf.mxu0
      %v7178 = vadd.f32 0.0, %v7177
      %v7179 = vpop.f32.mrf.mxu0
      %v7180 = vadd.f32 0.0, %v7179
      %7181 = vmatmul.bf16.gmra.mxu0 %v7106
      %v7182 = vpop.f32.mrf.mxu0
      %v7183 = vadd.f32 0.0, %v7182
      %v7184 = vpop.f32.mrf.mxu0
      %v7185 = vadd.f32 0.0, %v7184
      %7186 = vmatmul.bf16.gmra.mxu0 %v7109
      %v7187 = vpop.f32.mrf.mxu0
      %v7188 = vadd.f32 0.0, %v7187
      %v7189 = vpop.f32.mrf.mxu0
      %v7190 = vadd.f32 0.0, %v7189
      %7191 = vmatmul.bf16.gmra.mxu0 %v7112
      %v7192 = vpop.f32.mrf.mxu0
      %v7193 = vadd.f32 0.0, %v7192
      %v7194 = vpop.f32.mrf.mxu0
      %v7195 = vadd.f32 0.0, %v7194
      %7196 = vmatmul.bf16.gmra.mxu0 %v7115
      %v7197 = vpop.f32.mrf.mxu0
      %v7198 = vadd.f32 0.0, %v7197
      %v7199 = vpop.f32.mrf.mxu0
      %v7200 = vadd.f32 0.0, %v7199
      %7201 = vmatmul.bf16.gmra.mxu0 %v7118
      %v7202 = vpop.f32.mrf.mxu0
      %v7203 = vadd.f32 0.0, %v7202
      %v7204 = vpop.f32.mrf.mxu0
      %v7205 = vadd.f32 0.0, %v7204
      %7206 = vmatmul.bf16.gmra.mxu0 %v7121
      %v7207 = vpop.f32.mrf.mxu0
      %v7208 = vadd.f32 0.0, %v7207
      %v7209 = vpop.f32.mrf.mxu0
      %v7210 = vadd.f32 0.0, %v7209
      %7211 = vmatmul.bf16.gmra.mxu0 %v7124
      %v7212 = vpop.f32.mrf.mxu0
      %v7213 = vadd.f32 0.0, %v7212
      %v7214 = vpop.f32.mrf.mxu0
      %v7215 = vadd.f32 0.0, %v7214
      %7216 = vmatmul.bf16.gmra.mxu0 %v7127
      %v7217 = vpop.f32.mrf.mxu0
      %v7218 = vadd.f32 0.0, %v7217
      %v7219 = vpop.f32.mrf.mxu0
      %v7220 = vadd.f32 0.0, %v7219
      %7221 = vmatmul.bf16.gmra.mxu0 %v7130
      %v7222 = vpop.f32.mrf.mxu0
      %v7223 = vadd.f32 0.0, %v7222
      %v7224 = vpop.f32.mrf.mxu0
      %v7225 = vadd.f32 0.0, %v7224
      %7226 = vmatmul.bf16.gmra.mxu0 %v7133
      %v7227 = vpop.f32.mrf.mxu0
      %v7228 = vadd.f32 0.0, %v7227
      %v7229 = vpop.f32.mrf.mxu0
      %v7230 = vadd.f32 0.0, %v7229
      %7231 = vmatmul.bf16.gmra.mxu0 %v7136
      %v7232 = vpop.f32.mrf.mxu0
      %v7233 = vadd.f32 0.0, %v7232
      %v7234 = vpop.f32.mrf.mxu0
      %v7235 = vadd.f32 0.0, %v7234
      %7236 = vmatmul.bf16.gmra.mxu0 %v7139
      %v7237 = vpop.f32.mrf.mxu0
      %v7238 = vadd.f32 0.0, %v7237
      %v7239 = vpop.f32.mrf.mxu0
      %v7240 = vadd.f32 0.0, %v7239
      %7241 = vmatmul.bf16.gmra.mxu0 %v7142
      %v7242 = vpop.f32.mrf.mxu0
      %v7243 = vadd.f32 0.0, %v7242
      %v7244 = vpop.f32.mrf.mxu0
      %v7245 = vadd.f32 0.0, %v7244
      %7246 = vmatmul.bf16.gmra.mxu0 %v7145
      %v7247 = vpop.f32.mrf.mxu0
      %v7248 = vadd.f32 0.0, %v7247
      %v7249 = vpop.f32.mrf.mxu0
      %v7250 = vadd.f32 0.0, %v7249
      %7251 = vmatmul.bf16.gmra.mxu0 %v7148
      %v7252 = vpop.f32.mrf.mxu0
      %v7253 = vadd.f32 0.0, %v7252
      %v7254 = vpop.f32.mrf.mxu0
      %v7255 = vadd.f32 0.0, %v7254
      %7256 = vmatmul.bf16.gmra.mxu0 %v7151
      %v7257 = vpop.f32.mrf.mxu0
      %v7258 = vadd.f32 0.0, %v7257
      %v7259 = vpop.f32.mrf.mxu0
      %v7260 = vadd.f32 0.0, %v7259
      %7261 = vdwg.mxu0
      %v7262 = vadd.f32 %v6844, %v7163
      %v7263 = vadd.f32 %v6845, %v7165
      %v7264 = vadd.f32 %v6846, %v7168
      %v7265 = vadd.f32 %v6847, %v7170
      %v7266 = vadd.f32 %v6848, %v7173
      %v7267 = vadd.f32 %v6849, %v7175
      %v7268 = vadd.f32 %v6850, %v7178
      %v7269 = vadd.f32 %v6851, %v7180
      %v7270 = vadd.f32 %v6852, %v7183
      %v7271 = vadd.f32 %v6853, %v7185
      %v7272 = vadd.f32 %v6854, %v7188
      %v7273 = vadd.f32 %v6855, %v7190
      %v7274 = vadd.f32 %v6856, %v7193
      %v7275 = vadd.f32 %v6857, %v7195
      %v7276 = vadd.f32 %v6858, %v7198
      %v7277 = vadd.f32 %v6859, %v7200
      %v7278 = vadd.f32 %v6860, %v7203
      %v7279 = vadd.f32 %v6861, %v7205
      %v7280 = vadd.f32 %v6862, %v7208
      %v7281 = vadd.f32 %v6863, %v7210
      %v7282 = vadd.f32 %v6864, %v7213
      %v7283 = vadd.f32 %v6865, %v7215
      %v7284 = vadd.f32 %v6866, %v7218
      %v7285 = vadd.f32 %v6867, %v7220
      %v7286 = vadd.f32 %v6868, %v7223
      %v7287 = vadd.f32 %v6869, %v7225
      %v7288 = vadd.f32 %v6870, %v7228
      %v7289 = vadd.f32 %v6871, %v7230
      %v7290 = vadd.f32 %v6872, %v7233
      %v7291 = vadd.f32 %v6873, %v7235
      %v7292 = vadd.f32 %v6874, %v7238
      %v7293 = vadd.f32 %v6875, %v7240
      %v7294 = vadd.f32 %v6876, %v7243
      %v7295 = vadd.f32 %v6877, %v7245
      %v7296 = vadd.f32 %v6878, %v7248
      %v7297 = vadd.f32 %v6879, %v7250
      %v7298 = vadd.f32 %v6880, %v7253
      %v7299 = vadd.f32 %v6881, %v7255
      %v7300 = vadd.f32 %v6882, %v7258
      %v7301 = vadd.f32 %v6883, %v7260
      %v7302 = vld [vmem:[#allocation3 + $0x8] sm:$0x8]
      %s7303 = scalar_lea.vmem %s5, 80
      %v7304 = vld [vmem:[%s7303] sm:$0xf]
      %v7305 = vld [vmem:[%s7303 + $0x4] sm:$0xf]
      %v7306 = vld [vmem:[%s7303 + $0x8] sm:$0xf]
      %v7307 = vld [vmem:[%s7303 + $0xc] sm:$0xf]
      %v7309 = vunpack.c.l.b16 %v7302
      %v7310 = vpack.c.b16 %v6561, %v7309
      %v7311 = vrot.slane %v7310, 3
      %v7312 = vrot.slane %v6602, 3
      %v7313 = vsel %vm3419, %v7311, %v7312
      %v7314 = vrot.slane %v6603, 3
      %v7315 = vsel %vm3419, %v7312, %v7314
      %v7316 = vrot.slane %v6604, 3
      %v7317 = vsel %vm3419, %v7314, %v7316
      %v7318 = vrot.slane %v6605, 3
      %v7319 = vsel %vm3419, %v7316, %v7318
      %v7320 = vrot.slane %v6606, 3
      %v7321 = vsel %vm3419, %v7318, %v7320
      %v7322 = vrot.slane %v6607, 3
      %v7323 = vsel %vm3419, %v7320, %v7322
      %v7324 = vrot.slane %v6608, 3
      %v7325 = vsel %vm3419, %v7322, %v7324
      %v7326 = vrot.slane %v6609, 3
      %v7327 = vsel %vm3419, %v7324, %v7326
      %v7328 = vrot.slane %v6610, 3
      %v7329 = vsel %vm3419, %v7326, %v7328
      %v7330 = vrot.slane %v6611, 3
      %v7331 = vsel %vm3419, %v7328, %v7330
      %v7332 = vrot.slane %v6612, 3
      %v7333 = vsel %vm3419, %v7330, %v7332
      %v7334 = vrot.slane %v6613, 3
      %v7335 = vsel %vm3419, %v7332, %v7334
      %v7336 = vrot.slane %v6614, 3
      %v7337 = vsel %vm3419, %v7334, %v7336
      %v7338 = vrot.slane %v6615, 3
      %v7339 = vsel %vm3419, %v7336, %v7338
      %v7340 = vrot.slane %v6616, 3
      %v7341 = vsel %vm3419, %v7338, %v7340
      %v7342 = vrot.slane %v6617, 3
      %v7343 = vsel %vm3419, %v7340, %v7342
      %v7344 = vrot.slane %v6618, 3
      %v7345 = vsel %vm3419, %v7342, %v7344
      %v7346 = vrot.slane %v6619, 3
      %v7347 = vsel %vm3419, %v7344, %v7346
      %v7348 = vrot.slane %v6620, 3
      %v7349 = vsel %vm3419, %v7346, %v7348
      %v7350 = vrot.slane %v6892, 3
      %v7351 = vsel %vm3419, %v7348, %v7350
      %v7356 = vunpack.c.l.b16 %v7304
      %v7357 = vunpack.c.l.b16 %v7305
      %v7358 = vunpack.c.l.b16 %v7306
      %v7359 = vunpack.c.l.b16 %v7307
      %v7360 = vpack.c.b16 %v7357, %v7356
      %v7361 = vpack.c.b16 %v7359, %v7358
      %v7365 = vsel %vm5871, %v7313, 0
      %v7368 = vsel %vm5871, %v7315, 0
      %v7371 = vsel %vm5871, %v7317, 0
      %v7374 = vsel %vm5871, %v7319, 0
      %v7377 = vsel %vm5871, %v7321, 0
      %v7380 = vsel %vm5871, %v7323, 0
      %v7383 = vsel %vm5871, %v7325, 0
      %v7386 = vsel %vm5871, %v7327, 0
      %v7389 = vsel %vm5871, %v7329, 0
      %v7392 = vsel %vm5871, %v7331, 0
      %v7395 = vsel %vm5871, %v7333, 0
      %v7398 = vsel %vm5871, %v7335, 0
      %v7401 = vsel %vm5871, %v7337, 0
      %v7404 = vsel %vm5871, %v7339, 0
      %v7407 = vsel %vm5871, %v7341, 0
      %v7410 = vsel %vm5871, %v7343, 0
      %v7413 = vsel %vm5871, %v7345, 0
      %v7416 = vsel %vm5871, %v7347, 0
      %v7419 = vsel %vm5871, %v7349, 0
      %v7422 = vsel %vm5871, %v7351, 0
      %7424 = vmatpush.bf16.msra.mxu0 0
      %7425 = vmatpush.bf16.msra.mxu0 0
      %7426 = vmatpush.bf16.msra.mxu0 0
      %7427 = vmatpush.bf16.msra.mxu0 0
      %7428 = vmatpush.bf16.msra.mxu0 0
      %7429 = vmatpush.bf16.msra.mxu0 0
      %7430 = vmatpush.bf16.msra.mxu0 %v7361
      %7431 = vmatpush.bf16.msra.mxu0 %v7360
      %7432 = vmatmul.bf16.gmra.mxu0 %v7365
      %v7433 = vpop.f32.mrf.mxu0
      %v7434 = vadd.f32 0.0, %v7433
      %v7435 = vpop.f32.mrf.mxu0
      %v7436 = vadd.f32 0.0, %v7435
      %7437 = vmatmul.bf16.gmra.mxu0 %v7368
      %v7438 = vpop.f32.mrf.mxu0
      %v7439 = vadd.f32 0.0, %v7438
      %v7440 = vpop.f32.mrf.mxu0
      %v7441 = vadd.f32 0.0, %v7440
      %7442 = vmatmul.bf16.gmra.mxu0 %v7371
      %v7443 = vpop.f32.mrf.mxu0
      %v7444 = vadd.f32 0.0, %v7443
      %v7445 = vpop.f32.mrf.mxu0
      %v7446 = vadd.f32 0.0, %v7445
      %7447 = vmatmul.bf16.gmra.mxu0 %v7374
      %v7448 = vpop.f32.mrf.mxu0
      %v7449 = vadd.f32 0.0, %v7448
      %v7450 = vpop.f32.mrf.mxu0
      %v7451 = vadd.f32 0.0, %v7450
      %7452 = vmatmul.bf16.gmra.mxu0 %v7377
      %v7453 = vpop.f32.mrf.mxu0
      %v7454 = vadd.f32 0.0, %v7453
      %v7455 = vpop.f32.mrf.mxu0
      %v7456 = vadd.f32 0.0, %v7455
      %7457 = vmatmul.bf16.gmra.mxu0 %v7380
      %v7458 = vpop.f32.mrf.mxu0
      %v7459 = vadd.f32 0.0, %v7458
      %v7460 = vpop.f32.mrf.mxu0
      %v7461 = vadd.f32 0.0, %v7460
      %7462 = vmatmul.bf16.gmra.mxu0 %v7383
      %v7463 = vpop.f32.mrf.mxu0
      %v7464 = vadd.f32 0.0, %v7463
      %v7465 = vpop.f32.mrf.mxu0
      %v7466 = vadd.f32 0.0, %v7465
      %7467 = vmatmul.bf16.gmra.mxu0 %v7386
      %v7468 = vpop.f32.mrf.mxu0
      %v7469 = vadd.f32 0.0, %v7468
      %v7470 = vpop.f32.mrf.mxu0
      %v7471 = vadd.f32 0.0, %v7470
      %7472 = vmatmul.bf16.gmra.mxu0 %v7389
      %v7473 = vpop.f32.mrf.mxu0
      %v7474 = vadd.f32 0.0, %v7473
      %v7475 = vpop.f32.mrf.mxu0
      %v7476 = vadd.f32 0.0, %v7475
      %7477 = vmatmul.bf16.gmra.mxu0 %v7392
      %v7478 = vpop.f32.mrf.mxu0
      %v7479 = vadd.f32 0.0, %v7478
      %v7480 = vpop.f32.mrf.mxu0
      %v7481 = vadd.f32 0.0, %v7480
      %7482 = vmatmul.bf16.gmra.mxu0 %v7395
      %v7483 = vpop.f32.mrf.mxu0
      %v7484 = vadd.f32 0.0, %v7483
      %v7485 = vpop.f32.mrf.mxu0
      %v7486 = vadd.f32 0.0, %v7485
      %7487 = vmatmul.bf16.gmra.mxu0 %v7398
      %v7488 = vpop.f32.mrf.mxu0
      %v7489 = vadd.f32 0.0, %v7488
      %v7490 = vpop.f32.mrf.mxu0
      %v7491 = vadd.f32 0.0, %v7490
      %7492 = vmatmul.bf16.gmra.mxu0 %v7401
      %v7493 = vpop.f32.mrf.mxu0
      %v7494 = vadd.f32 0.0, %v7493
      %v7495 = vpop.f32.mrf.mxu0
      %v7496 = vadd.f32 0.0, %v7495
      %7497 = vmatmul.bf16.gmra.mxu0 %v7404
      %v7498 = vpop.f32.mrf.mxu0
      %v7499 = vadd.f32 0.0, %v7498
      %v7500 = vpop.f32.mrf.mxu0
      %v7501 = vadd.f32 0.0, %v7500
      %7502 = vmatmul.bf16.gmra.mxu0 %v7407
      %v7503 = vpop.f32.mrf.mxu0
      %v7504 = vadd.f32 0.0, %v7503
      %v7505 = vpop.f32.mrf.mxu0
      %v7506 = vadd.f32 0.0, %v7505
      %7507 = vmatmul.bf16.gmra.mxu0 %v7410
      %v7508 = vpop.f32.mrf.mxu0
      %v7509 = vadd.f32 0.0, %v7508
      %v7510 = vpop.f32.mrf.mxu0
      %v7511 = vadd.f32 0.0, %v7510
      %7512 = vmatmul.bf16.gmra.mxu0 %v7413
      %v7513 = vpop.f32.mrf.mxu0
      %v7514 = vadd.f32 0.0, %v7513
      %v7515 = vpop.f32.mrf.mxu0
      %v7516 = vadd.f32 0.0, %v7515
      %7517 = vmatmul.bf16.gmra.mxu0 %v7416
      %v7518 = vpop.f32.mrf.mxu0
      %v7519 = vadd.f32 0.0, %v7518
      %v7520 = vpop.f32.mrf.mxu0
      %v7521 = vadd.f32 0.0, %v7520
      %7522 = vmatmul.bf16.gmra.mxu0 %v7419
      %v7523 = vpop.f32.mrf.mxu0
      %v7524 = vadd.f32 0.0, %v7523
      %v7525 = vpop.f32.mrf.mxu0
      %v7526 = vadd.f32 0.0, %v7525
      %7527 = vmatmul.bf16.gmra.mxu0 %v7422
      %v7528 = vpop.f32.mrf.mxu0
      %v7529 = vadd.f32 0.0, %v7528
      %v7530 = vpop.f32.mrf.mxu0
      %v7531 = vadd.f32 0.0, %v7530
      %7532 = vdwg.mxu0
      %v7533 = vadd.f32 %v7262, %v7434
      %v7534 = vadd.f32 %v7263, %v7436
      %v7535 = vadd.f32 %v7264, %v7439
      %v7536 = vadd.f32 %v7265, %v7441
      %v7537 = vadd.f32 %v7266, %v7444
      %v7538 = vadd.f32 %v7267, %v7446
      %v7539 = vadd.f32 %v7268, %v7449
      %v7540 = vadd.f32 %v7269, %v7451
      %v7541 = vadd.f32 %v7270, %v7454
      %v7542 = vadd.f32 %v7271, %v7456
      %v7543 = vadd.f32 %v7272, %v7459
      %v7544 = vadd.f32 %v7273, %v7461
      %v7545 = vadd.f32 %v7274, %v7464
      %v7546 = vadd.f32 %v7275, %v7466
      %v7547 = vadd.f32 %v7276, %v7469
      %v7548 = vadd.f32 %v7277, %v7471
      %v7549 = vadd.f32 %v7278, %v7474
      %v7550 = vadd.f32 %v7279, %v7476
      %v7551 = vadd.f32 %v7280, %v7479
      %v7552 = vadd.f32 %v7281, %v7481
      %v7553 = vadd.f32 %v7282, %v7484
      %v7554 = vadd.f32 %v7283, %v7486
      %v7555 = vadd.f32 %v7284, %v7489
      %v7556 = vadd.f32 %v7285, %v7491
      %v7557 = vadd.f32 %v7286, %v7494
      %v7558 = vadd.f32 %v7287, %v7496
      %v7559 = vadd.f32 %v7288, %v7499
      %v7560 = vadd.f32 %v7289, %v7501
      %v7561 = vadd.f32 %v7290, %v7504
      %v7562 = vadd.f32 %v7291, %v7506
      %v7563 = vadd.f32 %v7292, %v7509
      %v7564 = vadd.f32 %v7293, %v7511
      %v7565 = vadd.f32 %v7294, %v7514
      %v7566 = vadd.f32 %v7295, %v7516
      %v7567 = vadd.f32 %v7296, %v7519
      %v7568 = vadd.f32 %v7297, %v7521
      %v7569 = vadd.f32 %v7298, %v7524
      %v7570 = vadd.f32 %v7299, %v7526
      %v7571 = vadd.f32 %v7300, %v7529
      %v7572 = vadd.f32 %v7301, %v7531
      %v7573 = vld [vmem:[#allocation3 + $0x14] sm:$0xf]
      %v7574 = vld [vmem:[#allocation3 + $0x18] sm:$0xf]
      %v7575 = vld [vmem:[#allocation3 + $0x1c] sm:$0xf]
      %v7576 = vld [vmem:[#allocation3 + $0x20] sm:$0xf]
      %v7577 = vld [vmem:[#allocation3 + $0x24] sm:$0xf]
      %v7578 = vld [vmem:[#allocation3 + $0x28] sm:$0xf]
      %v7579 = vld [vmem:[#allocation3 + $0x2c] sm:$0xf]
      %v7580 = vld [vmem:[#allocation3 + $0x30] sm:$0xf]
      %v7581 = vld [vmem:[#allocation3 + $0x34] sm:$0xf]
      %v7582 = vld [vmem:[#allocation3 + $0x38] sm:$0xf]
      %v7583 = vld [vmem:[#allocation3 + $0x3c] sm:$0xf]
      %v7584 = vld [vmem:[#allocation3 + $0x40] sm:$0xf]
      %v7585 = vld [vmem:[#allocation3 + $0x44] sm:$0xf]
      %v7586 = vld [vmem:[#allocation3 + $0x48] sm:$0xf]
      %v7587 = vld [vmem:[#allocation3 + $0x4c] sm:$0xf]
      %v7588 = vld [vmem:[#allocation3 + $0x50] sm:$0xf]
      %v7589 = vld [vmem:[#allocation3 + $0x54] sm:$0xf]
      %v7590 = vld [vmem:[#allocation3 + $0x58] sm:$0xf]
      %v7591 = vld [vmem:[#allocation3 + $0x5c] sm:$0xf]
      %v7592 = vld [vmem:[#allocation3 + $0x60] sm:$0xf]
      %v7593 = vld [vmem:[#allocation3 + $0x64] sm:$0xf]
      %v7594 = vld [vmem:[#allocation3 + $0x68] sm:$0xf]
      %v7595 = vld [vmem:[#allocation3 + $0x6c] sm:$0xf]
      %v7596 = vld [vmem:[#allocation3 + $0x70] sm:$0xf]
      %v7597 = vld [vmem:[#allocation3 + $0x74] sm:$0xf]
      %v7598 = vld [vmem:[#allocation3 + $0x78] sm:$0xf]
      %v7599 = vld [vmem:[#allocation3 + $0x7c] sm:$0xf]
      %v7600 = vld [vmem:[#allocation3 + $0x80] sm:$0xf]
      %v7601 = vld [vmem:[#allocation3 + $0x84] sm:$0xf]
      %v7602 = vld [vmem:[#allocation3 + $0x88] sm:$0xf]
      %v7603 = vld [vmem:[#allocation3 + $0x8c] sm:$0xf]
      %v7604 = vld [vmem:[#allocation3 + $0x90] sm:$0xf]
      %v7605 = vld [vmem:[#allocation3 + $0x94] sm:$0xf]
      %v7606 = vld [vmem:[#allocation3 + $0x98] sm:$0xf]
      %v7607 = vld [vmem:[#allocation3 + $0x9c] sm:$0xf]
      %v7608 = vld [vmem:[#allocation3 + $0xa0] sm:$0xf]
      %v7609 = vld [vmem:[#allocation3 + $0xa4] sm:$0xf]
      %v7610 = vld [vmem:[#allocation3 + $0xa8] sm:$0xf]
      %v7611 = vld [vmem:[#allocation3 + $0xac] sm:$0xf]
      %v7612 = vld [vmem:[#allocation3 + $0xb0] sm:$0xf]
      %s7613 = scalar_lea.vmem %s5, 96
      %v7614 = vld [vmem:[%s7613] sm:$0xf]
      %v7615 = vld [vmem:[%s7613 + $0x4] sm:$0xf]
      %v7616 = vld [vmem:[%s7613 + $0x8] sm:$0xf]
      %v7617 = vld [vmem:[%s7613 + $0xc] sm:$0xf]
      %v7658 = vunpack.c.l.b16 %v7573
      %v7659 = vunpack.c.l.b16 %v7574
      %v7660 = vunpack.c.l.b16 %v7575
      %v7661 = vunpack.c.l.b16 %v7576
      %v7662 = vunpack.c.l.b16 %v7577
      %v7663 = vunpack.c.l.b16 %v7578
      %v7664 = vunpack.c.l.b16 %v7579
      %v7665 = vunpack.c.l.b16 %v7580
      %v7666 = vunpack.c.l.b16 %v7581
      %v7667 = vunpack.c.l.b16 %v7582
      %v7668 = vunpack.c.l.b16 %v7583
      %v7669 = vunpack.c.l.b16 %v7584
      %v7670 = vunpack.c.l.b16 %v7585
      %v7671 = vunpack.c.l.b16 %v7586
      %v7672 = vunpack.c.l.b16 %v7587
      %v7673 = vunpack.c.l.b16 %v7588
      %v7674 = vunpack.c.l.b16 %v7589
      %v7675 = vunpack.c.l.b16 %v7590
      %v7676 = vunpack.c.l.b16 %v7591
      %v7677 = vunpack.c.l.b16 %v7592
      %v7678 = vunpack.c.l.b16 %v7593
      %v7679 = vunpack.c.l.b16 %v7594
      %v7680 = vunpack.c.l.b16 %v7595
      %v7681 = vunpack.c.l.b16 %v7596
      %v7682 = vunpack.c.l.b16 %v7597
      %v7683 = vunpack.c.l.b16 %v7598
      %v7684 = vunpack.c.l.b16 %v7599
      %v7685 = vunpack.c.l.b16 %v7600
      %v7686 = vunpack.c.l.b16 %v7601
      %v7687 = vunpack.c.l.b16 %v7602
      %v7688 = vunpack.c.l.b16 %v7603
      %v7689 = vunpack.c.l.b16 %v7604
      %v7690 = vunpack.c.l.b16 %v7605
      %v7691 = vunpack.c.l.b16 %v7606
      %v7692 = vunpack.c.l.b16 %v7607
      %v7693 = vunpack.c.l.b16 %v7608
      %v7694 = vunpack.c.l.b16 %v7609
      %v7695 = vunpack.c.l.b16 %v7610
      %v7696 = vunpack.c.l.b16 %v7611
      %v7697 = vunpack.c.l.b16 %v7612
      %v7698 = vpack.c.b16 %v7659, %v7658
      %v7699 = vpack.c.b16 %v7661, %v7660
      %v7700 = vpack.c.b16 %v7663, %v7662
      %v7701 = vpack.c.b16 %v7665, %v7664
      %v7702 = vpack.c.b16 %v7667, %v7666
      %v7703 = vpack.c.b16 %v7669, %v7668
      %v7704 = vpack.c.b16 %v7671, %v7670
      %v7705 = vpack.c.b16 %v7673, %v7672
      %v7706 = vpack.c.b16 %v7675, %v7674
      %v7707 = vpack.c.b16 %v7677, %v7676
      %v7708 = vpack.c.b16 %v7679, %v7678
      %v7709 = vpack.c.b16 %v7681, %v7680
      %v7710 = vpack.c.b16 %v7683, %v7682
      %v7711 = vpack.c.b16 %v7685, %v7684
      %v7712 = vpack.c.b16 %v7687, %v7686
      %v7713 = vpack.c.b16 %v7689, %v7688
      %v7714 = vpack.c.b16 %v7691, %v7690
      %v7715 = vpack.c.b16 %v7693, %v7692
      %v7716 = vpack.c.b16 %v7695, %v7694
      %v7717 = vpack.c.b16 %v7697, %v7696
      %v7722 = vunpack.c.l.b16 %v7614
      %v7723 = vunpack.c.l.b16 %v7615
      %v7724 = vunpack.c.l.b16 %v7616
      %v7725 = vunpack.c.l.b16 %v7617
      %v7726 = vpack.c.b16 %v7723, %v7722
      %v7727 = vpack.c.b16 %v7725, %v7724
      %v7731 = vsel %vm5871, %v7698, 0
      %v7734 = vsel %vm5871, %v7699, 0
      %v7737 = vsel %vm5871, %v7700, 0
      %v7740 = vsel %vm5871, %v7701, 0
      %v7743 = vsel %vm5871, %v7702, 0
      %v7746 = vsel %vm5871, %v7703, 0
      %v7749 = vsel %vm5871, %v7704, 0
      %v7752 = vsel %vm5871, %v7705, 0
      %v7755 = vsel %vm5871, %v7706, 0
      %v7758 = vsel %vm5871, %v7707, 0
      %v7761 = vsel %vm5871, %v7708, 0
      %v7764 = vsel %vm5871, %v7709, 0
      %v7767 = vsel %vm5871, %v7710, 0
      %v7770 = vsel %vm5871, %v7711, 0
      %v7773 = vsel %vm5871, %v7712, 0
      %v7776 = vsel %vm5871, %v7713, 0
      %v7779 = vsel %vm5871, %v7714, 0
      %v7782 = vsel %vm5871, %v7715, 0
      %v7785 = vsel %vm5871, %v7716, 0
      %v7788 = vsel %vm5871, %v7717, 0
      %7790 = vmatpush.bf16.msra.mxu0 0
      %7791 = vmatpush.bf16.msra.mxu0 0
      %7792 = vmatpush.bf16.msra.mxu0 0
      %7793 = vmatpush.bf16.msra.mxu0 0
      %7794 = vmatpush.bf16.msra.mxu0 0
      %7795 = vmatpush.bf16.msra.mxu0 0
      %7796 = vmatpush.bf16.msra.mxu0 %v7727
      %7797 = vmatpush.bf16.msra.mxu0 %v7726
      %7798 = vmatmul.bf16.gmra.mxu0 %v7731
      %v7799 = vpop.f32.mrf.mxu0
      %v7800 = vadd.f32 0.0, %v7799
      %v7801 = vpop.f32.mrf.mxu0
      %v7802 = vadd.f32 0.0, %v7801
      %7803 = vmatmul.bf16.gmra.mxu0 %v7734
      %v7804 = vpop.f32.mrf.mxu0
      %v7805 = vadd.f32 0.0, %v7804
      %v7806 = vpop.f32.mrf.mxu0
      %v7807 = vadd.f32 0.0, %v7806
      %7808 = vmatmul.bf16.gmra.mxu0 %v7737
      %v7809 = vpop.f32.mrf.mxu0
      %v7810 = vadd.f32 0.0, %v7809
      %v7811 = vpop.f32.mrf.mxu0
      %v7812 = vadd.f32 0.0, %v7811
      %7813 = vmatmul.bf16.gmra.mxu0 %v7740
      %v7814 = vpop.f32.mrf.mxu0
      %v7815 = vadd.f32 0.0, %v7814
      %v7816 = vpop.f32.mrf.mxu0
      %v7817 = vadd.f32 0.0, %v7816
      %7818 = vmatmul.bf16.gmra.mxu0 %v7743
      %v7819 = vpop.f32.mrf.mxu0
      %v7820 = vadd.f32 0.0, %v7819
      %v7821 = vpop.f32.mrf.mxu0
      %v7822 = vadd.f32 0.0, %v7821
      %7823 = vmatmul.bf16.gmra.mxu0 %v7746
      %v7824 = vpop.f32.mrf.mxu0
      %v7825 = vadd.f32 0.0, %v7824
      %v7826 = vpop.f32.mrf.mxu0
      %v7827 = vadd.f32 0.0, %v7826
      %7828 = vmatmul.bf16.gmra.mxu0 %v7749
      %v7829 = vpop.f32.mrf.mxu0
      %v7830 = vadd.f32 0.0, %v7829
      %v7831 = vpop.f32.mrf.mxu0
      %v7832 = vadd.f32 0.0, %v7831
      %7833 = vmatmul.bf16.gmra.mxu0 %v7752
      %v7834 = vpop.f32.mrf.mxu0
      %v7835 = vadd.f32 0.0, %v7834
      %v7836 = vpop.f32.mrf.mxu0
      %v7837 = vadd.f32 0.0, %v7836
      %7838 = vmatmul.bf16.gmra.mxu0 %v7755
      %v7839 = vpop.f32.mrf.mxu0
      %v7840 = vadd.f32 0.0, %v7839
      %v7841 = vpop.f32.mrf.mxu0
      %v7842 = vadd.f32 0.0, %v7841
      %7843 = vmatmul.bf16.gmra.mxu0 %v7758
      %v7844 = vpop.f32.mrf.mxu0
      %v7845 = vadd.f32 0.0, %v7844
      %v7846 = vpop.f32.mrf.mxu0
      %v7847 = vadd.f32 0.0, %v7846
      %7848 = vmatmul.bf16.gmra.mxu0 %v7761
      %v7849 = vpop.f32.mrf.mxu0
      %v7850 = vadd.f32 0.0, %v7849
      %v7851 = vpop.f32.mrf.mxu0
      %v7852 = vadd.f32 0.0, %v7851
      %7853 = vmatmul.bf16.gmra.mxu0 %v7764
      %v7854 = vpop.f32.mrf.mxu0
      %v7855 = vadd.f32 0.0, %v7854
      %v7856 = vpop.f32.mrf.mxu0
      %v7857 = vadd.f32 0.0, %v7856
      %7858 = vmatmul.bf16.gmra.mxu0 %v7767
      %v7859 = vpop.f32.mrf.mxu0
      %v7860 = vadd.f32 0.0, %v7859
      %v7861 = vpop.f32.mrf.mxu0
      %v7862 = vadd.f32 0.0, %v7861
      %7863 = vmatmul.bf16.gmra.mxu0 %v7770
      %v7864 = vpop.f32.mrf.mxu0
      %v7865 = vadd.f32 0.0, %v7864
      %v7866 = vpop.f32.mrf.mxu0
      %v7867 = vadd.f32 0.0, %v7866
      %7868 = vmatmul.bf16.gmra.mxu0 %v7773
      %v7869 = vpop.f32.mrf.mxu0
      %v7870 = vadd.f32 0.0, %v7869
      %v7871 = vpop.f32.mrf.mxu0
      %v7872 = vadd.f32 0.0, %v7871
      %7873 = vmatmul.bf16.gmra.mxu0 %v7776
      %v7874 = vpop.f32.mrf.mxu0
      %v7875 = vadd.f32 0.0, %v7874
      %v7876 = vpop.f32.mrf.mxu0
      %v7877 = vadd.f32 0.0, %v7876
      %7878 = vmatmul.bf16.gmra.mxu0 %v7779
      %v7879 = vpop.f32.mrf.mxu0
      %v7880 = vadd.f32 0.0, %v7879
      %v7881 = vpop.f32.mrf.mxu0
      %v7882 = vadd.f32 0.0, %v7881
      %7883 = vmatmul.bf16.gmra.mxu0 %v7782
      %v7884 = vpop.f32.mrf.mxu0
      %v7885 = vadd.f32 0.0, %v7884
      %v7886 = vpop.f32.mrf.mxu0
      %v7887 = vadd.f32 0.0, %v7886
      %7888 = vmatmul.bf16.gmra.mxu0 %v7785
      %v7889 = vpop.f32.mrf.mxu0
      %v7890 = vadd.f32 0.0, %v7889
      %v7891 = vpop.f32.mrf.mxu0
      %v7892 = vadd.f32 0.0, %v7891
      %7893 = vmatmul.bf16.gmra.mxu0 %v7788
      %v7894 = vpop.f32.mrf.mxu0
      %v7895 = vadd.f32 0.0, %v7894
      %v7896 = vpop.f32.mrf.mxu0
      %v7897 = vadd.f32 0.0, %v7896
      %7898 = vdwg.mxu0
      %v7899 = vadd.f32 %v7533, %v7800
      %v7900 = vadd.f32 %v7534, %v7802
      %v7901 = vadd.f32 %v7535, %v7805
      %v7902 = vadd.f32 %v7536, %v7807
      %v7903 = vadd.f32 %v7537, %v7810
      %v7904 = vadd.f32 %v7538, %v7812
      %v7905 = vadd.f32 %v7539, %v7815
      %v7906 = vadd.f32 %v7540, %v7817
      %v7907 = vadd.f32 %v7541, %v7820
      %v7908 = vadd.f32 %v7542, %v7822
      %v7909 = vadd.f32 %v7543, %v7825
      %v7910 = vadd.f32 %v7544, %v7827
      %v7911 = vadd.f32 %v7545, %v7830
      %v7912 = vadd.f32 %v7546, %v7832
      %v7913 = vadd.f32 %v7547, %v7835
      %v7914 = vadd.f32 %v7548, %v7837
      %v7915 = vadd.f32 %v7549, %v7840
      %v7916 = vadd.f32 %v7550, %v7842
      %v7917 = vadd.f32 %v7551, %v7845
      %v7918 = vadd.f32 %v7552, %v7847
      %v7919 = vadd.f32 %v7553, %v7850
      %v7920 = vadd.f32 %v7554, %v7852
      %v7921 = vadd.f32 %v7555, %v7855
      %v7922 = vadd.f32 %v7556, %v7857
      %v7923 = vadd.f32 %v7557, %v7860
      %v7924 = vadd.f32 %v7558, %v7862
      %v7925 = vadd.f32 %v7559, %v7865
      %v7926 = vadd.f32 %v7560, %v7867
      %v7927 = vadd.f32 %v7561, %v7870
      %v7928 = vadd.f32 %v7562, %v7872
      %v7929 = vadd.f32 %v7563, %v7875
      %v7930 = vadd.f32 %v7564, %v7877
      %v7931 = vadd.f32 %v7565, %v7880
      %v7932 = vadd.f32 %v7566, %v7882
      %v7933 = vadd.f32 %v7567, %v7885
      %v7934 = vadd.f32 %v7568, %v7887
      %v7935 = vadd.f32 %v7569, %v7890
      %v7936 = vadd.f32 %v7570, %v7892
      %v7937 = vadd.f32 %v7571, %v7895
      %v7938 = vadd.f32 %v7572, %v7897
      %v7939 = vld [vmem:[#allocation3 + $0x14] sm:$0xf]
      %v7940 = vld [vmem:[#allocation3 + $0x18] sm:$0xf]
      %v7941 = vld [vmem:[#allocation3 + $0x1c] sm:$0xf]
      %v7942 = vld [vmem:[#allocation3 + $0x20] sm:$0xf]
      %v7943 = vld [vmem:[#allocation3 + $0x24] sm:$0xf]
      %v7944 = vld [vmem:[#allocation3 + $0x28] sm:$0xf]
      %v7945 = vld [vmem:[#allocation3 + $0x2c] sm:$0xf]
      %v7946 = vld [vmem:[#allocation3 + $0x30] sm:$0xf]
      %v7947 = vld [vmem:[#allocation3 + $0x34] sm:$0xf]
      %v7948 = vld [vmem:[#allocation3 + $0x38] sm:$0xf]
      %v7949 = vld [vmem:[#allocation3 + $0x3c] sm:$0xf]
      %v7950 = vld [vmem:[#allocation3 + $0x40] sm:$0xf]
      %v7951 = vld [vmem:[#allocation3 + $0x44] sm:$0xf]
      %v7952 = vld [vmem:[#allocation3 + $0x48] sm:$0xf]
      %v7953 = vld [vmem:[#allocation3 + $0x4c] sm:$0xf]
      %v7954 = vld [vmem:[#allocation3 + $0x50] sm:$0xf]
      %v7955 = vld [vmem:[#allocation3 + $0x54] sm:$0xf]
      %v7956 = vld [vmem:[#allocation3 + $0x58] sm:$0xf]
      %v7957 = vld [vmem:[#allocation3 + $0x5c] sm:$0xf]
      %v7958 = vld [vmem:[#allocation3 + $0x60] sm:$0xf]
      %v7959 = vld [vmem:[#allocation3 + $0x64] sm:$0xf]
      %v7960 = vld [vmem:[#allocation3 + $0x68] sm:$0xf]
      %v7961 = vld [vmem:[#allocation3 + $0x6c] sm:$0xf]
      %v7962 = vld [vmem:[#allocation3 + $0x70] sm:$0xf]
      %v7963 = vld [vmem:[#allocation3 + $0x74] sm:$0xf]
      %v7964 = vld [vmem:[#allocation3 + $0x78] sm:$0xf]
      %v7965 = vld [vmem:[#allocation3 + $0x7c] sm:$0xf]
      %v7966 = vld [vmem:[#allocation3 + $0x80] sm:$0xf]
      %v7967 = vld [vmem:[#allocation3 + $0x84] sm:$0xf]
      %v7968 = vld [vmem:[#allocation3 + $0x88] sm:$0xf]
      %v7969 = vld [vmem:[#allocation3 + $0x8c] sm:$0xf]
      %v7970 = vld [vmem:[#allocation3 + $0x90] sm:$0xf]
      %v7971 = vld [vmem:[#allocation3 + $0x94] sm:$0xf]
      %v7972 = vld [vmem:[#allocation3 + $0x98] sm:$0xf]
      %v7973 = vld [vmem:[#allocation3 + $0x9c] sm:$0xf]
      %v7974 = vld [vmem:[#allocation3 + $0xa0] sm:$0xf]
      %v7975 = vld [vmem:[#allocation3 + $0xa4] sm:$0xf]
      %v7976 = vld [vmem:[#allocation3 + $0xa8] sm:$0xf]
      %v7977 = vld [vmem:[#allocation3 + $0xac] sm:$0xf]
      %v7978 = vld [vmem:[#allocation3 + $0xb0] sm:$0xf]
      %v7979 = vld [vmem:[#allocation3 + $0xb4] sm:$0x1]
      %s7980 = scalar_lea.vmem %s5, 112
      %v7981 = vld [vmem:[%s7980] sm:$0xf]
      %v7982 = vld [vmem:[%s7980 + $0x4] sm:$0xf]
      %v7983 = vld [vmem:[%s7980 + $0x8] sm:$0xf]
      %v7984 = vld [vmem:[%s7980 + $0xc] sm:$0xf]
      %v8026 = vunpack.c.l.b16 %v7939
      %v8027 = vunpack.c.l.b16 %v7940
      %v8028 = vunpack.c.l.b16 %v7941
      %v8029 = vunpack.c.l.b16 %v7942
      %v8030 = vunpack.c.l.b16 %v7943
      %v8031 = vunpack.c.l.b16 %v7944
      %v8032 = vunpack.c.l.b16 %v7945
      %v8033 = vunpack.c.l.b16 %v7946
      %v8034 = vunpack.c.l.b16 %v7947
      %v8035 = vunpack.c.l.b16 %v7948
      %v8036 = vunpack.c.l.b16 %v7949
      %v8037 = vunpack.c.l.b16 %v7950
      %v8038 = vunpack.c.l.b16 %v7951
      %v8039 = vunpack.c.l.b16 %v7952
      %v8040 = vunpack.c.l.b16 %v7953
      %v8041 = vunpack.c.l.b16 %v7954
      %v8042 = vunpack.c.l.b16 %v7955
      %v8043 = vunpack.c.l.b16 %v7956
      %v8044 = vunpack.c.l.b16 %v7957
      %v8045 = vunpack.c.l.b16 %v7958
      %v8046 = vunpack.c.l.b16 %v7959
      %v8047 = vunpack.c.l.b16 %v7960
      %v8048 = vunpack.c.l.b16 %v7961
      %v8049 = vunpack.c.l.b16 %v7962
      %v8050 = vunpack.c.l.b16 %v7963
      %v8051 = vunpack.c.l.b16 %v7964
      %v8052 = vunpack.c.l.b16 %v7965
      %v8053 = vunpack.c.l.b16 %v7966
      %v8054 = vunpack.c.l.b16 %v7967
      %v8055 = vunpack.c.l.b16 %v7968
      %v8056 = vunpack.c.l.b16 %v7969
      %v8057 = vunpack.c.l.b16 %v7970
      %v8058 = vunpack.c.l.b16 %v7971
      %v8059 = vunpack.c.l.b16 %v7972
      %v8060 = vunpack.c.l.b16 %v7973
      %v8061 = vunpack.c.l.b16 %v7974
      %v8062 = vunpack.c.l.b16 %v7975
      %v8063 = vunpack.c.l.b16 %v7976
      %v8064 = vunpack.c.l.b16 %v7977
      %v8065 = vunpack.c.l.b16 %v7978
      %v8066 = vunpack.c.l.b16 %v7979
      %v8067 = vpack.c.b16 %v8027, %v8026
      %v8068 = vpack.c.b16 %v8029, %v8028
      %v8069 = vpack.c.b16 %v8031, %v8030
      %v8070 = vpack.c.b16 %v8033, %v8032
      %v8071 = vpack.c.b16 %v8035, %v8034
      %v8072 = vpack.c.b16 %v8037, %v8036
      %v8073 = vpack.c.b16 %v8039, %v8038
      %v8074 = vpack.c.b16 %v8041, %v8040
      %v8075 = vpack.c.b16 %v8043, %v8042
      %v8076 = vpack.c.b16 %v8045, %v8044
      %v8077 = vpack.c.b16 %v8047, %v8046
      %v8078 = vpack.c.b16 %v8049, %v8048
      %v8079 = vpack.c.b16 %v8051, %v8050
      %v8080 = vpack.c.b16 %v8053, %v8052
      %v8081 = vpack.c.b16 %v8055, %v8054
      %v8082 = vpack.c.b16 %v8057, %v8056
      %v8083 = vpack.c.b16 %v8059, %v8058
      %v8084 = vpack.c.b16 %v8061, %v8060
      %v8085 = vpack.c.b16 %v8063, %v8062
      %v8086 = vpack.c.b16 %v8065, %v8064
      %v8087 = vpack.c.b16 %v8066, %v8066
      %v8089 = vshrl.u32 %v8067, 16
      %v8091 = vshll.u32 %v8067, 16
      %v8093 = vrot.slane %v8091, 1
      %v8094 = vor.u32 %v8089, %v8093
      %v8096 = vshll.u32 %v8068, 16
      %v8098 = vrot.slane %v8096, 1
      %v8099 = vsel %vm1532, %v8094, %v8098
      %v8100 = vshrl.u32 %v8068, 16
      %v8102 = vor.u32 %v8100, %v8098
      %v8104 = vshll.u32 %v8069, 16
      %v8106 = vrot.slane %v8104, 1
      %v8107 = vsel %vm1532, %v8102, %v8106
      %v8108 = vshrl.u32 %v8069, 16
      %v8110 = vor.u32 %v8108, %v8106
      %v8112 = vshll.u32 %v8070, 16
      %v8114 = vrot.slane %v8112, 1
      %v8115 = vsel %vm1532, %v8110, %v8114
      %v8116 = vshrl.u32 %v8070, 16
      %v8118 = vor.u32 %v8116, %v8114
      %v8120 = vshll.u32 %v8071, 16
      %v8122 = vrot.slane %v8120, 1
      %v8123 = vsel %vm1532, %v8118, %v8122
      %v8124 = vshrl.u32 %v8071, 16
      %v8126 = vor.u32 %v8124, %v8122
      %v8128 = vshll.u32 %v8072, 16
      %v8130 = vrot.slane %v8128, 1
      %v8131 = vsel %vm1532, %v8126, %v8130
      %v8132 = vshrl.u32 %v8072, 16
      %v8134 = vor.u32 %v8132, %v8130
      %v8136 = vshll.u32 %v8073, 16
      %v8138 = vrot.slane %v8136, 1
      %v8139 = vsel %vm1532, %v8134, %v8138
      %v8140 = vshrl.u32 %v8073, 16
      %v8142 = vor.u32 %v8140, %v8138
      %v8144 = vshll.u32 %v8074, 16
      %v8146 = vrot.slane %v8144, 1
      %v8147 = vsel %vm1532, %v8142, %v8146
      %v8148 = vshrl.u32 %v8074, 16
      %v8150 = vor.u32 %v8148, %v8146
      %v8152 = vshll.u32 %v8075, 16
      %v8154 = vrot.slane %v8152, 1
      %v8155 = vsel %vm1532, %v8150, %v8154
      %v8156 = vshrl.u32 %v8075, 16
      %v8158 = vor.u32 %v8156, %v8154
      %v8160 = vshll.u32 %v8076, 16
      %v8162 = vrot.slane %v8160, 1
      %v8163 = vsel %vm1532, %v8158, %v8162
      %v8164 = vshrl.u32 %v8076, 16
      %v8166 = vor.u32 %v8164, %v8162
      %v8168 = vshll.u32 %v8077, 16
      %v8170 = vrot.slane %v8168, 1
      %v8171 = vsel %vm1532, %v8166, %v8170
      %v8172 = vshrl.u32 %v8077, 16
      %v8174 = vor.u32 %v8172, %v8170
      %v8176 = vshll.u32 %v8078, 16
      %v8178 = vrot.slane %v8176, 1
      %v8179 = vsel %vm1532, %v8174, %v8178
      %v8180 = vshrl.u32 %v8078, 16
      %v8182 = vor.u32 %v8180, %v8178
      %v8184 = vshll.u32 %v8079, 16
      %v8186 = vrot.slane %v8184, 1
      %v8187 = vsel %vm1532, %v8182, %v8186
      %v8188 = vshrl.u32 %v8079, 16
      %v8190 = vor.u32 %v8188, %v8186
      %v8192 = vshll.u32 %v8080, 16
      %v8194 = vrot.slane %v8192, 1
      %v8195 = vsel %vm1532, %v8190, %v8194
      %v8196 = vshrl.u32 %v8080, 16
      %v8198 = vor.u32 %v8196, %v8194
      %v8200 = vshll.u32 %v8081, 16
      %v8202 = vrot.slane %v8200, 1
      %v8203 = vsel %vm1532, %v8198, %v8202
      %v8204 = vshrl.u32 %v8081, 16
      %v8206 = vor.u32 %v8204, %v8202
      %v8208 = vshll.u32 %v8082, 16
      %v8210 = vrot.slane %v8208, 1
      %v8211 = vsel %vm1532, %v8206, %v8210
      %v8212 = vshrl.u32 %v8082, 16
      %v8214 = vor.u32 %v8212, %v8210
      %v8216 = vshll.u32 %v8083, 16
      %v8218 = vrot.slane %v8216, 1
      %v8219 = vsel %vm1532, %v8214, %v8218
      %v8220 = vshrl.u32 %v8083, 16
      %v8222 = vor.u32 %v8220, %v8218
      %v8224 = vshll.u32 %v8084, 16
      %v8226 = vrot.slane %v8224, 1
      %v8227 = vsel %vm1532, %v8222, %v8226
      %v8228 = vshrl.u32 %v8084, 16
      %v8230 = vor.u32 %v8228, %v8226
      %v8232 = vshll.u32 %v8085, 16
      %v8234 = vrot.slane %v8232, 1
      %v8235 = vsel %vm1532, %v8230, %v8234
      %v8236 = vshrl.u32 %v8085, 16
      %v8238 = vor.u32 %v8236, %v8234
      %v8240 = vshll.u32 %v8086, 16
      %v8242 = vrot.slane %v8240, 1
      %v8243 = vsel %vm1532, %v8238, %v8242
      %v8244 = vshrl.u32 %v8086, 16
      %v8246 = vor.u32 %v8244, %v8242
      %v8248 = vshll.u32 %v8087, 16
      %v8250 = vrot.slane %v8248, 1
      %v8251 = vsel %vm1532, %v8246, %v8250
      %v8256 = vunpack.c.l.b16 %v7981
      %v8257 = vunpack.c.l.b16 %v7982
      %v8258 = vunpack.c.l.b16 %v7983
      %v8259 = vunpack.c.l.b16 %v7984
      %v8260 = vpack.c.b16 %v8257, %v8256
      %v8261 = vpack.c.b16 %v8259, %v8258
      %v8265 = vsel %vm5871, %v8099, 0
      %v8268 = vsel %vm5871, %v8107, 0
      %v8271 = vsel %vm5871, %v8115, 0
      %v8274 = vsel %vm5871, %v8123, 0
      %v8277 = vsel %vm5871, %v8131, 0
      %v8280 = vsel %vm5871, %v8139, 0
      %v8283 = vsel %vm5871, %v8147, 0
      %v8286 = vsel %vm5871, %v8155, 0
      %v8289 = vsel %vm5871, %v8163, 0
      %v8292 = vsel %vm5871, %v8171, 0
      %v8295 = vsel %vm5871, %v8179, 0
      %v8298 = vsel %vm5871, %v8187, 0
      %v8301 = vsel %vm5871, %v8195, 0
      %v8304 = vsel %vm5871, %v8203, 0
      %v8307 = vsel %vm5871, %v8211, 0
      %v8310 = vsel %vm5871, %v8219, 0
      %v8313 = vsel %vm5871, %v8227, 0
      %v8316 = vsel %vm5871, %v8235, 0
      %v8319 = vsel %vm5871, %v8243, 0
      %v8322 = vsel %vm5871, %v8251, 0
      %8324 = vmatpush.bf16.msra.mxu0 0
      %8325 = vmatpush.bf16.msra.mxu0 0
      %8326 = vmatpush.bf16.msra.mxu0 0
      %8327 = vmatpush.bf16.msra.mxu0 0
      %8328 = vmatpush.bf16.msra.mxu0 0
      %8329 = vmatpush.bf16.msra.mxu0 0
      %8330 = vmatpush.bf16.msra.mxu0 %v8261
      %8331 = vmatpush.bf16.msra.mxu0 %v8260
      %8332 = vmatmul.bf16.gmra.mxu0 %v8265
      %v8333 = vpop.f32.mrf.mxu0
      %v8334 = vadd.f32 0.0, %v8333
      %v8335 = vpop.f32.mrf.mxu0
      %v8336 = vadd.f32 0.0, %v8335
      %8337 = vmatmul.bf16.gmra.mxu0 %v8268
      %v8338 = vpop.f32.mrf.mxu0
      %v8339 = vadd.f32 0.0, %v8338
      %v8340 = vpop.f32.mrf.mxu0
      %v8341 = vadd.f32 0.0, %v8340
      %8342 = vmatmul.bf16.gmra.mxu0 %v8271
      %v8343 = vpop.f32.mrf.mxu0
      %v8344 = vadd.f32 0.0, %v8343
      %v8345 = vpop.f32.mrf.mxu0
      %v8346 = vadd.f32 0.0, %v8345
      %8347 = vmatmul.bf16.gmra.mxu0 %v8274
      %v8348 = vpop.f32.mrf.mxu0
      %v8349 = vadd.f32 0.0, %v8348
      %v8350 = vpop.f32.mrf.mxu0
      %v8351 = vadd.f32 0.0, %v8350
      %8352 = vmatmul.bf16.gmra.mxu0 %v8277
      %v8353 = vpop.f32.mrf.mxu0
      %v8354 = vadd.f32 0.0, %v8353
      %v8355 = vpop.f32.mrf.mxu0
      %v8356 = vadd.f32 0.0, %v8355
      %8357 = vmatmul.bf16.gmra.mxu0 %v8280
      %v8358 = vpop.f32.mrf.mxu0
      %v8359 = vadd.f32 0.0, %v8358
      %v8360 = vpop.f32.mrf.mxu0
      %v8361 = vadd.f32 0.0, %v8360
      %8362 = vmatmul.bf16.gmra.mxu0 %v8283
      %v8363 = vpop.f32.mrf.mxu0
      %v8364 = vadd.f32 0.0, %v8363
      %v8365 = vpop.f32.mrf.mxu0
      %v8366 = vadd.f32 0.0, %v8365
      %8367 = vmatmul.bf16.gmra.mxu0 %v8286
      %v8368 = vpop.f32.mrf.mxu0
      %v8369 = vadd.f32 0.0, %v8368
      %v8370 = vpop.f32.mrf.mxu0
      %v8371 = vadd.f32 0.0, %v8370
      %8372 = vmatmul.bf16.gmra.mxu0 %v8289
      %v8373 = vpop.f32.mrf.mxu0
      %v8374 = vadd.f32 0.0, %v8373
      %v8375 = vpop.f32.mrf.mxu0
      %v8376 = vadd.f32 0.0, %v8375
      %8377 = vmatmul.bf16.gmra.mxu0 %v8292
      %v8378 = vpop.f32.mrf.mxu0
      %v8379 = vadd.f32 0.0, %v8378
      %v8380 = vpop.f32.mrf.mxu0
      %v8381 = vadd.f32 0.0, %v8380
      %8382 = vmatmul.bf16.gmra.mxu0 %v8295
      %v8383 = vpop.f32.mrf.mxu0
      %v8384 = vadd.f32 0.0, %v8383
      %v8385 = vpop.f32.mrf.mxu0
      %v8386 = vadd.f32 0.0, %v8385
      %8387 = vmatmul.bf16.gmra.mxu0 %v8298
      %v8388 = vpop.f32.mrf.mxu0
      %v8389 = vadd.f32 0.0, %v8388
      %v8390 = vpop.f32.mrf.mxu0
      %v8391 = vadd.f32 0.0, %v8390
      %8392 = vmatmul.bf16.gmra.mxu0 %v8301
      %v8393 = vpop.f32.mrf.mxu0
      %v8394 = vadd.f32 0.0, %v8393
      %v8395 = vpop.f32.mrf.mxu0
      %v8396 = vadd.f32 0.0, %v8395
      %8397 = vmatmul.bf16.gmra.mxu0 %v8304
      %v8398 = vpop.f32.mrf.mxu0
      %v8399 = vadd.f32 0.0, %v8398
      %v8400 = vpop.f32.mrf.mxu0
      %v8401 = vadd.f32 0.0, %v8400
      %8402 = vmatmul.bf16.gmra.mxu0 %v8307
      %v8403 = vpop.f32.mrf.mxu0
      %v8404 = vadd.f32 0.0, %v8403
      %v8405 = vpop.f32.mrf.mxu0
      %v8406 = vadd.f32 0.0, %v8405
      %8407 = vmatmul.bf16.gmra.mxu0 %v8310
      %v8408 = vpop.f32.mrf.mxu0
      %v8409 = vadd.f32 0.0, %v8408
      %v8410 = vpop.f32.mrf.mxu0
      %v8411 = vadd.f32 0.0, %v8410
      %8412 = vmatmul.bf16.gmra.mxu0 %v8313
      %v8413 = vpop.f32.mrf.mxu0
      %v8414 = vadd.f32 0.0, %v8413
      %v8415 = vpop.f32.mrf.mxu0
      %v8416 = vadd.f32 0.0, %v8415
      %8417 = vmatmul.bf16.gmra.mxu0 %v8316
      %v8418 = vpop.f32.mrf.mxu0
      %v8419 = vadd.f32 0.0, %v8418
      %v8420 = vpop.f32.mrf.mxu0
      %v8421 = vadd.f32 0.0, %v8420
      %8422 = vmatmul.bf16.gmra.mxu0 %v8319
      %v8423 = vpop.f32.mrf.mxu0
      %v8424 = vadd.f32 0.0, %v8423
      %v8425 = vpop.f32.mrf.mxu0
      %v8426 = vadd.f32 0.0, %v8425
      %8427 = vmatmul.bf16.gmra.mxu0 %v8322
      %v8428 = vpop.f32.mrf.mxu0
      %v8429 = vadd.f32 0.0, %v8428
      %v8430 = vpop.f32.mrf.mxu0
      %v8431 = vadd.f32 0.0, %v8430
      %8432 = vdwg.mxu0
      %v8433 = vadd.f32 %v7899, %v8334
      %v8434 = vadd.f32 %v7900, %v8336
      %v8435 = vadd.f32 %v7901, %v8339
      %v8436 = vadd.f32 %v7902, %v8341
      %v8437 = vadd.f32 %v7903, %v8344
      %v8438 = vadd.f32 %v7904, %v8346
      %v8439 = vadd.f32 %v7905, %v8349
      %v8440 = vadd.f32 %v7906, %v8351
      %v8441 = vadd.f32 %v7907, %v8354
      %v8442 = vadd.f32 %v7908, %v8356
      %v8443 = vadd.f32 %v7909, %v8359
      %v8444 = vadd.f32 %v7910, %v8361
      %v8445 = vadd.f32 %v7911, %v8364
      %v8446 = vadd.f32 %v7912, %v8366
      %v8447 = vadd.f32 %v7913, %v8369
      %v8448 = vadd.f32 %v7914, %v8371
      %v8449 = vadd.f32 %v7915, %v8374
      %v8450 = vadd.f32 %v7916, %v8376
      %v8451 = vadd.f32 %v7917, %v8379
      %v8452 = vadd.f32 %v7918, %v8381
      %v8453 = vadd.f32 %v7919, %v8384
      %v8454 = vadd.f32 %v7920, %v8386
      %v8455 = vadd.f32 %v7921, %v8389
      %v8456 = vadd.f32 %v7922, %v8391
      %v8457 = vadd.f32 %v7923, %v8394
      %v8458 = vadd.f32 %v7924, %v8396
      %v8459 = vadd.f32 %v7925, %v8399
      %v8460 = vadd.f32 %v7926, %v8401
      %v8461 = vadd.f32 %v7927, %v8404
      %v8462 = vadd.f32 %v7928, %v8406
      %v8463 = vadd.f32 %v7929, %v8409
      %v8464 = vadd.f32 %v7930, %v8411
      %v8465 = vadd.f32 %v7931, %v8414
      %v8466 = vadd.f32 %v7932, %v8416
      %v8467 = vadd.f32 %v7933, %v8419
      %v8468 = vadd.f32 %v7934, %v8421
      %v8469 = vadd.f32 %v7935, %v8424
      %v8470 = vadd.f32 %v7936, %v8426
      %v8471 = vadd.f32 %v7937, %v8429
      %v8472 = vadd.f32 %v7938, %v8431
      %v8473 = vld [vmem:[#allocation3 + $0x14] sm:$0xe]
      %s8474 = scalar_lea.vmem %s5, 128
      %v8475 = vld [vmem:[%s8474] sm:$0xf]
      %v8476 = vld [vmem:[%s8474 + $0x4] sm:$0xf]
      %v8477 = vld [vmem:[%s8474 + $0x8] sm:$0xf]
      %v8478 = vld [vmem:[%s8474 + $0xc] sm:$0xf]
      %v8480 = vunpack.c.l.b16 %v8473
      %v8481 = vpack.c.b16 %v8027, %v8480
      %v8482 = vrot.slane %v8481, 1
      %v8483 = vrot.slane %v8068, 1
      %v8484 = vsel %vm2141, %v8482, %v8483
      %v8485 = vrot.slane %v8069, 1
      %v8486 = vsel %vm2141, %v8483, %v8485
      %v8487 = vrot.slane %v8070, 1
      %v8488 = vsel %vm2141, %v8485, %v8487
      %v8489 = vrot.slane %v8071, 1
      %v8490 = vsel %vm2141, %v8487, %v8489
      %v8491 = vrot.slane %v8072, 1
      %v8492 = vsel %vm2141, %v8489, %v8491
      %v8493 = vrot.slane %v8073, 1
      %v8494 = vsel %vm2141, %v8491, %v8493
      %v8495 = vrot.slane %v8074, 1
      %v8496 = vsel %vm2141, %v8493, %v8495
      %v8497 = vrot.slane %v8075, 1
      %v8498 = vsel %vm2141, %v8495, %v8497
      %v8499 = vrot.slane %v8076, 1
      %v8500 = vsel %vm2141, %v8497, %v8499
      %v8501 = vrot.slane %v8077, 1
      %v8502 = vsel %vm2141, %v8499, %v8501
      %v8503 = vrot.slane %v8078, 1
      %v8504 = vsel %vm2141, %v8501, %v8503
      %v8505 = vrot.slane %v8079, 1
      %v8506 = vsel %vm2141, %v8503, %v8505
      %v8507 = vrot.slane %v8080, 1
      %v8508 = vsel %vm2141, %v8505, %v8507
      %v8509 = vrot.slane %v8081, 1
      %v8510 = vsel %vm2141, %v8507, %v8509
      %v8511 = vrot.slane %v8082, 1
      %v8512 = vsel %vm2141, %v8509, %v8511
      %v8513 = vrot.slane %v8083, 1
      %v8514 = vsel %vm2141, %v8511, %v8513
      %v8515 = vrot.slane %v8084, 1
      %v8516 = vsel %vm2141, %v8513, %v8515
      %v8517 = vrot.slane %v8085, 1
      %v8518 = vsel %vm2141, %v8515, %v8517
      %v8519 = vrot.slane %v8086, 1
      %v8520 = vsel %vm2141, %v8517, %v8519
      %v8521 = vrot.slane %v8087, 1
      %v8522 = vsel %vm2141, %v8519, %v8521
      %v8527 = vunpack.c.l.b16 %v8475
      %v8528 = vunpack.c.l.b16 %v8476
      %v8529 = vunpack.c.l.b16 %v8477
      %v8530 = vunpack.c.l.b16 %v8478
      %v8531 = vpack.c.b16 %v8528, %v8527
      %v8532 = vpack.c.b16 %v8530, %v8529
      %v8536 = vsel %vm5871, %v8484, 0
      %v8539 = vsel %vm5871, %v8486, 0
      %v8542 = vsel %vm5871, %v8488, 0
      %v8545 = vsel %vm5871, %v8490, 0
      %v8548 = vsel %vm5871, %v8492, 0
      %v8551 = vsel %vm5871, %v8494, 0
      %v8554 = vsel %vm5871, %v8496, 0
      %v8557 = vsel %vm5871, %v8498, 0
      %v8560 = vsel %vm5871, %v8500, 0
      %v8563 = vsel %vm5871, %v8502, 0
      %v8566 = vsel %vm5871, %v8504, 0
      %v8569 = vsel %vm5871, %v8506, 0
      %v8572 = vsel %vm5871, %v8508, 0
      %v8575 = vsel %vm5871, %v8510, 0
      %v8578 = vsel %vm5871, %v8512, 0
      %v8581 = vsel %vm5871, %v8514, 0
      %v8584 = vsel %vm5871, %v8516, 0
      %v8587 = vsel %vm5871, %v8518, 0
      %v8590 = vsel %vm5871, %v8520, 0
      %v8593 = vsel %vm5871, %v8522, 0
      %8595 = vmatpush.bf16.msra.mxu0 0
      %8596 = vmatpush.bf16.msra.mxu0 0
      %8597 = vmatpush.bf16.msra.mxu0 0
      %8598 = vmatpush.bf16.msra.mxu0 0
      %8599 = vmatpush.bf16.msra.mxu0 0
      %8600 = vmatpush.bf16.msra.mxu0 0
      %8601 = vmatpush.bf16.msra.mxu0 %v8532
      %8602 = vmatpush.bf16.msra.mxu0 %v8531
      %8603 = vmatmul.bf16.gmra.mxu0 %v8536
      %v8604 = vpop.f32.mrf.mxu0
      %v8605 = vadd.f32 0.0, %v8604
      %v8606 = vpop.f32.mrf.mxu0
      %v8607 = vadd.f32 0.0, %v8606
      %8608 = vmatmul.bf16.gmra.mxu0 %v8539
      %v8609 = vpop.f32.mrf.mxu0
      %v8610 = vadd.f32 0.0, %v8609
      %v8611 = vpop.f32.mrf.mxu0
      %v8612 = vadd.f32 0.0, %v8611
      %8613 = vmatmul.bf16.gmra.mxu0 %v8542
      %v8614 = vpop.f32.mrf.mxu0
      %v8615 = vadd.f32 0.0, %v8614
      %v8616 = vpop.f32.mrf.mxu0
      %v8617 = vadd.f32 0.0, %v8616
      %8618 = vmatmul.bf16.gmra.mxu0 %v8545
      %v8619 = vpop.f32.mrf.mxu0
      %v8620 = vadd.f32 0.0, %v8619
      %v8621 = vpop.f32.mrf.mxu0
      %v8622 = vadd.f32 0.0, %v8621
      %8623 = vmatmul.bf16.gmra.mxu0 %v8548
      %v8624 = vpop.f32.mrf.mxu0
      %v8625 = vadd.f32 0.0, %v8624
      %v8626 = vpop.f32.mrf.mxu0
      %v8627 = vadd.f32 0.0, %v8626
      %8628 = vmatmul.bf16.gmra.mxu0 %v8551
      %v8629 = vpop.f32.mrf.mxu0
      %v8630 = vadd.f32 0.0, %v8629
      %v8631 = vpop.f32.mrf.mxu0
      %v8632 = vadd.f32 0.0, %v8631
      %8633 = vmatmul.bf16.gmra.mxu0 %v8554
      %v8634 = vpop.f32.mrf.mxu0
      %v8635 = vadd.f32 0.0, %v8634
      %v8636 = vpop.f32.mrf.mxu0
      %v8637 = vadd.f32 0.0, %v8636
      %8638 = vmatmul.bf16.gmra.mxu0 %v8557
      %v8639 = vpop.f32.mrf.mxu0
      %v8640 = vadd.f32 0.0, %v8639
      %v8641 = vpop.f32.mrf.mxu0
      %v8642 = vadd.f32 0.0, %v8641
      %8643 = vmatmul.bf16.gmra.mxu0 %v8560
      %v8644 = vpop.f32.mrf.mxu0
      %v8645 = vadd.f32 0.0, %v8644
      %v8646 = vpop.f32.mrf.mxu0
      %v8647 = vadd.f32 0.0, %v8646
      %8648 = vmatmul.bf16.gmra.mxu0 %v8563
      %v8649 = vpop.f32.mrf.mxu0
      %v8650 = vadd.f32 0.0, %v8649
      %v8651 = vpop.f32.mrf.mxu0
      %v8652 = vadd.f32 0.0, %v8651
      %8653 = vmatmul.bf16.gmra.mxu0 %v8566
      %v8654 = vpop.f32.mrf.mxu0
      %v8655 = vadd.f32 0.0, %v8654
      %v8656 = vpop.f32.mrf.mxu0
      %v8657 = vadd.f32 0.0, %v8656
      %8658 = vmatmul.bf16.gmra.mxu0 %v8569
      %v8659 = vpop.f32.mrf.mxu0
      %v8660 = vadd.f32 0.0, %v8659
      %v8661 = vpop.f32.mrf.mxu0
      %v8662 = vadd.f32 0.0, %v8661
      %8663 = vmatmul.bf16.gmra.mxu0 %v8572
      %v8664 = vpop.f32.mrf.mxu0
      %v8665 = vadd.f32 0.0, %v8664
      %v8666 = vpop.f32.mrf.mxu0
      %v8667 = vadd.f32 0.0, %v8666
      %8668 = vmatmul.bf16.gmra.mxu0 %v8575
      %v8669 = vpop.f32.mrf.mxu0
      %v8670 = vadd.f32 0.0, %v8669
      %v8671 = vpop.f32.mrf.mxu0
      %v8672 = vadd.f32 0.0, %v8671
      %8673 = vmatmul.bf16.gmra.mxu0 %v8578
      %v8674 = vpop.f32.mrf.mxu0
      %v8675 = vadd.f32 0.0, %v8674
      %v8676 = vpop.f32.mrf.mxu0
      %v8677 = vadd.f32 0.0, %v8676
      %8678 = vmatmul.bf16.gmra.mxu0 %v8581
      %v8679 = vpop.f32.mrf.mxu0
      %v8680 = vadd.f32 0.0, %v8679
      %v8681 = vpop.f32.mrf.mxu0
      %v8682 = vadd.f32 0.0, %v8681
      %8683 = vmatmul.bf16.gmra.mxu0 %v8584
      %v8684 = vpop.f32.mrf.mxu0
      %v8685 = vadd.f32 0.0, %v8684
      %v8686 = vpop.f32.mrf.mxu0
      %v8687 = vadd.f32 0.0, %v8686
      %8688 = vmatmul.bf16.gmra.mxu0 %v8587
      %v8689 = vpop.f32.mrf.mxu0
      %v8690 = vadd.f32 0.0, %v8689
      %v8691 = vpop.f32.mrf.mxu0
      %v8692 = vadd.f32 0.0, %v8691
      %8693 = vmatmul.bf16.gmra.mxu0 %v8590
      %v8694 = vpop.f32.mrf.mxu0
      %v8695 = vadd.f32 0.0, %v8694
      %v8696 = vpop.f32.mrf.mxu0
      %v8697 = vadd.f32 0.0, %v8696
      %8698 = vmatmul.bf16.gmra.mxu0 %v8593
      %v8699 = vpop.f32.mrf.mxu0
      %v8700 = vadd.f32 0.0, %v8699
      %v8701 = vpop.f32.mrf.mxu0
      %v8702 = vadd.f32 0.0, %v8701
      %8703 = vdwg.mxu0
      %v8704 = vadd.f32 %v8433, %v8605
      %v8705 = vadd.f32 %v8434, %v8607
      %v8706 = vadd.f32 %v8435, %v8610
      %v8707 = vadd.f32 %v8436, %v8612
      %v8708 = vadd.f32 %v8437, %v8615
      %v8709 = vadd.f32 %v8438, %v8617
      %v8710 = vadd.f32 %v8439, %v8620
      %v8711 = vadd.f32 %v8440, %v8622
      %v8712 = vadd.f32 %v8441, %v8625
      %v8713 = vadd.f32 %v8442, %v8627
      %v8714 = vadd.f32 %v8443, %v8630
      %v8715 = vadd.f32 %v8444, %v8632
      %v8716 = vadd.f32 %v8445, %v8635
      %v8717 = vadd.f32 %v8446, %v8637
      %v8718 = vadd.f32 %v8447, %v8640
      %v8719 = vadd.f32 %v8448, %v8642
      %v8720 = vadd.f32 %v8449, %v8645
      %v8721 = vadd.f32 %v8450, %v8647
      %v8722 = vadd.f32 %v8451, %v8650
      %v8723 = vadd.f32 %v8452, %v8652
      %v8724 = vadd.f32 %v8453, %v8655
      %v8725 = vadd.f32 %v8454, %v8657
      %v8726 = vadd.f32 %v8455, %v8660
      %v8727 = vadd.f32 %v8456, %v8662
      %v8728 = vadd.f32 %v8457, %v8665
      %v8729 = vadd.f32 %v8458, %v8667
      %v8730 = vadd.f32 %v8459, %v8670
      %v8731 = vadd.f32 %v8460, %v8672
      %v8732 = vadd.f32 %v8461, %v8675
      %v8733 = vadd.f32 %v8462, %v8677
      %v8734 = vadd.f32 %v8463, %v8680
      %v8735 = vadd.f32 %v8464, %v8682
      %v8736 = vadd.f32 %v8465, %v8685
      %v8737 = vadd.f32 %v8466, %v8687
      %v8738 = vadd.f32 %v8467, %v8690
      %v8739 = vadd.f32 %v8468, %v8692
      %v8740 = vadd.f32 %v8469, %v8695
      %v8741 = vadd.f32 %v8470, %v8697
      %v8742 = vadd.f32 %v8471, %v8700
      %v8743 = vadd.f32 %v8472, %v8702
      %v8744 = vld [vmem:[%s6] sm:$0x1]
      %v8746 = vperm.slane %v8744, 0
      %v8748 = vadd.f32 %v8704, %v8746
      %v8749 = vadd.f32 %v8705, %v8746
      %v8750 = vadd.f32 %v8706, %v8746
      %v8751 = vadd.f32 %v8707, %v8746
      %v8752 = vadd.f32 %v8708, %v8746
      %v8753 = vadd.f32 %v8709, %v8746
      %v8754 = vadd.f32 %v8710, %v8746
      %v8755 = vadd.f32 %v8711, %v8746
      %v8756 = vadd.f32 %v8712, %v8746
      %v8757 = vadd.f32 %v8713, %v8746
      %v8758 = vadd.f32 %v8714, %v8746
      %v8759 = vadd.f32 %v8715, %v8746
      %v8760 = vadd.f32 %v8716, %v8746
      %v8761 = vadd.f32 %v8717, %v8746
      %v8762 = vadd.f32 %v8718, %v8746
      %v8763 = vadd.f32 %v8719, %v8746
      %v8764 = vadd.f32 %v8720, %v8746
      %v8765 = vadd.f32 %v8721, %v8746
      %v8766 = vadd.f32 %v8722, %v8746
      %v8767 = vadd.f32 %v8723, %v8746
      %v8768 = vadd.f32 %v8724, %v8746
      %v8769 = vadd.f32 %v8725, %v8746
      %v8770 = vadd.f32 %v8726, %v8746
      %v8771 = vadd.f32 %v8727, %v8746
      %v8772 = vadd.f32 %v8728, %v8746
      %v8773 = vadd.f32 %v8729, %v8746
      %v8774 = vadd.f32 %v8730, %v8746
      %v8775 = vadd.f32 %v8731, %v8746
      %v8776 = vadd.f32 %v8732, %v8746
      %v8777 = vadd.f32 %v8733, %v8746
      %v8778 = vadd.f32 %v8734, %v8746
      %v8779 = vadd.f32 %v8735, %v8746
      %v8780 = vadd.f32 %v8736, %v8746
      %v8781 = vadd.f32 %v8737, %v8746
      %v8782 = vadd.f32 %v8738, %v8746
      %v8783 = vadd.f32 %v8739, %v8746
      %v8784 = vadd.f32 %v8740, %v8746
      %v8785 = vadd.f32 %v8741, %v8746
      %v8786 = vadd.f32 %v8742, %v8746
      %v8787 = vadd.f32 %v8743, %v8746
      %vm8788 = vcmask 392192
      %8789 = vst.msk [vmem:[%s300] sm:$0xff] %vm8788, %v8748
      %8790 = vst.msk [vmem:[%s300 + $0x8] sm:$0xff] %vm8788, %v8749
      %8791 = vst.msk [vmem:[%s300 + $0x10] sm:$0xff] %vm8788, %v8750
      %8792 = vst.msk [vmem:[%s300 + $0x18] sm:$0xff] %vm8788, %v8751
      %8793 = vst.msk [vmem:[%s300 + $0x20] sm:$0xff] %vm8788, %v8752
      %8794 = vst.msk [vmem:[%s300 + $0x28] sm:$0xff] %vm8788, %v8753
      %8795 = vst.msk [vmem:[%s300 + $0x30] sm:$0xff] %vm8788, %v8754
      %8796 = vst.msk [vmem:[%s300 + $0x38] sm:$0xff] %vm8788, %v8755
      %8797 = vst.msk [vmem:[%s300 + $0x40] sm:$0xff] %vm8788, %v8756
      %8798 = vst.msk [vmem:[%s300 + $0x48] sm:$0xff] %vm8788, %v8757
      %8799 = vst.msk [vmem:[%s300 + $0x50] sm:$0xff] %vm8788, %v8758
      %8800 = vst.msk [vmem:[%s300 + $0x58] sm:$0xff] %vm8788, %v8759
      %8801 = vst.msk [vmem:[%s300 + $0x60] sm:$0xff] %vm8788, %v8760
      %8802 = vst.msk [vmem:[%s300 + $0x68] sm:$0xff] %vm8788, %v8761
      %8803 = vst.msk [vmem:[%s300 + $0x70] sm:$0xff] %vm8788, %v8762
      %8804 = vst.msk [vmem:[%s300 + $0x78] sm:$0xff] %vm8788, %v8763
      %8805 = vst.msk [vmem:[%s300 + $0x80] sm:$0xff] %vm8788, %v8764
      %8806 = vst.msk [vmem:[%s300 + $0x88] sm:$0xff] %vm8788, %v8765
      %8807 = vst.msk [vmem:[%s300 + $0x90] sm:$0xff] %vm8788, %v8766
      %8808 = vst.msk [vmem:[%s300 + $0x98] sm:$0xff] %vm8788, %v8767
      %8809 = vst.msk [vmem:[%s300 + $0xa0] sm:$0xff] %vm8788, %v8768
      %8810 = vst.msk [vmem:[%s300 + $0xa8] sm:$0xff] %vm8788, %v8769
      %8811 = vst.msk [vmem:[%s300 + $0xb0] sm:$0xff] %vm8788, %v8770
      %8812 = vst.msk [vmem:[%s300 + $0xb8] sm:$0xff] %vm8788, %v8771
      %8813 = vst.msk [vmem:[%s300 + $0xc0] sm:$0xff] %vm8788, %v8772
      %8814 = vst.msk [vmem:[%s300 + $0xc8] sm:$0xff] %vm8788, %v8773
      %8815 = vst.msk [vmem:[%s300 + $0xd0] sm:$0xff] %vm8788, %v8774
      %8816 = vst.msk [vmem:[%s300 + $0xd8] sm:$0xff] %vm8788, %v8775
      %8817 = vst.msk [vmem:[%s300 + $0xe0] sm:$0xff] %vm8788, %v8776
      %8818 = vst.msk [vmem:[%s300 + $0xe8] sm:$0xff] %vm8788, %v8777
      %8819 = vst.msk [vmem:[%s300 + $0xf0] sm:$0xff] %vm8788, %v8778
      %8820 = vst.msk [vmem:[%s300 + $0xf8] sm:$0xff] %vm8788, %v8779
      %8821 = vst.msk [vmem:[%s300 + $0x100] sm:$0xff] %vm8788, %v8780
      %8822 = vst.msk [vmem:[%s300 + $0x108] sm:$0xff] %vm8788, %v8781
      %8823 = vst.msk [vmem:[%s300 + $0x110] sm:$0xff] %vm8788, %v8782
      %8824 = vst.msk [vmem:[%s300 + $0x118] sm:$0xff] %vm8788, %v8783
      %8825 = vst.msk [vmem:[%s300 + $0x120] sm:$0xff] %vm8788, %v8784
      %8826 = vst.msk [vmem:[%s300 + $0x128] sm:$0xff] %vm8788, %v8785
      %8827 = vst.msk [vmem:[%s300 + $0x130] sm:$0xff] %vm8788, %v8786
      %8828 = vst.msk [vmem:[%s300 + $0x138] sm:$0xff] %vm8788, %v8787
      %s8829 = smul.u32 40, %s23
      %p8830 = scmp.lt.s32.totalorder %s22, 1
      %s8831 = scalar_select %p8830, %s22, 1
      %p8832 = scmp.lt.s32.totalorder %s8829, 39
      %s8833 = scalar_select %p8832, %s8829, 39
      %s8834 = smul.addr %s8831, 40
      %s8835 = sadd.s32 %s8833, %s8834
      %s8836 = smul.addr %s8835, 8
      %s8837 = scalar_lea.vmem %s7, %s8836
      // Predicated region
      $region49: #{espc_pallas.1} parent=47 // pred_check
        %p8838 = pneg %p202
      $region50: #{espc_pallas.1} parent=47 // pred_check_branch
        %8840 = sbr.rel (%p8838) target = $region52
      $region51: #{espc_pallas.1} parent=47 // pred_region
        %s8841 = smul.u32 40, %s23
      $region52: #{espc_pallas.1} parent=47 // pred_fallthru
        _
    $region48: #{espc_pallas.1} parent=5 // pred_fallthru
      _
    %p8842 = scmp.le.s32.totalorder 2, %s13
    // Predicated region
    $region53: #{espc_pallas.1} parent=5 // pred_check
      %p8843 = pneg %p8842
    $region54: #{espc_pallas.1} parent=5 // pred_check_branch
      %8845 = sbr.rel (%p8843) target = $region56
    $region55: #{espc_pallas.1} parent=5 // pred_region
      %s8846 = ssub.s32 %s13, 2
      // Predicated region
      $region57: #{espc_pallas.1} parent=55 // pred_check
        %p8847 = pneg %p208
      $region58: #{espc_pallas.1} parent=55 // pred_check_branch
        %8849 = sbr.rel (%p8847) target = $region60
      $region59: #{espc_pallas.1} parent=55 // pred_region
        %s8850 = smul.u32 40, %s25
        %p8851 = scmp.lt.s32.totalorder %s24, 1
        %s8852 = scalar_select %p8851, %s24, 1
        %p8853 = scmp.lt.s32.totalorder %s8850, 39
        %s8854 = scalar_select %p8853, %s8850, 39
        %s8855 = smul.addr %s8852, 40
        %s8856 = sadd.s32 %s8854, %s8855
        %s8857 = smul.addr %s8856, 8
        %s8858 = scalar_lea.vmem %s7, %s8857
      $region60: #{espc_pallas.1} parent=55 // pred_fallthru
        _
    $region56: #{espc_pallas.1} parent=5 // pred_fallthru
      _
  $region6: #{espc_pallas.1} parent=0 // loop_footer
    %s17 = sadd.s32 1, %s13
  $region7: #{espc_pallas.1} parent=0 // loop_footer_branch
    %12 = sbr.rel target = $region3
  $region8: #{espc_pallas.1} parent=0 // loop_exit
    _

</llo_original>
